<compile_context>
chip_gen: v6e
topology: v6e:2x2x1
jax: 0.10.0
libtpu: 0.0.40
codegen_flags: <defaults>
</compile_context>

<pallas_src>
import functools

import jax
import jax.numpy as jnp
from jax.experimental import pallas as pl
from jax.experimental.pallas import tpu as pltpu

_BN_EPS = 1e-5
_LANES = 128
_VMEM = pl.BlockSpec(memory_space=pltpu.MemorySpace.VMEM)

# (kernel_size, padding) of the three main-path convs in every TSResNetBlock;
# the shortcut conv is (1, 1).
_MAIN_STAGES = ((9, 4), (5, 2), (3, 2))
_SC_STAGE = (1, 1)


# ----------------------------------------------------------------------------
# Fused Pallas kernel
# ----------------------------------------------------------------------------
def _tsresnet_kernel(x_ref, *refs, B, pool_len):
    """Fused forward: 3x(conv/BN/ReLU x3 + shortcut conv/BN + add + ReLU)
    -> AvgPool1d -> Linear.  Activations are kept as per-sample 2-D (L, 128)
    values (channel axis on the 128-lane vreg axis) for the whole network,
    which avoids any non-trivial in-kernel reshapes."""
    out_ref = refs[-1]
    param_it = iter(refs[:-1])

    def conv_bn(xs, K, pad, relu, residual=None):
        # Consume this stage's parameters (order fixed by prepare_params()).
        w = next(param_it)[...]        # (K*128, 128)  im2col-flattened weights
        gamma = next(param_it)[...]    # (1, 128)
        beta = next(param_it)[...]     # (1, 128)

        L = xs[0].shape[0]
        L_out = L + 2 * pad - K + 1
        zpad = jnp.zeros((pad, _LANES), jnp.float32)

        accs = []
        s1 = jnp.zeros((1, _LANES), jnp.float32)
        s2 = jnp.zeros((1, _LANES), jnp.float32)
        for xb in xs:                                   # static loop over batch
            xp = jnp.concatenate([zpad, xb, zpad], axis=0) if pad else xb
            if K > 1:
                # Lane-aligned im2col: K shifted (L_out, 128) windows side by
                # side -> one MXU matmul with contraction depth K*128.
                slab = jnp.concatenate(
                    [xp[k:k + L_out, :] for k in range(K)], axis=1)
            else:
                slab = xp                               # K == 1: L_out == L_pad
            acc = jnp.dot(slab, w, preferred_element_type=jnp.float32)
            accs.append(acc)                            # (L_out, 128)
            s1 = s1 + jnp.sum(acc, axis=0, keepdims=True)
            s2 = s2 + jnp.sum(acc * acc, axis=0, keepdims=True)

        # BatchNorm1d training mode: per-channel batch stats over (N, L),
        # one pass; biased variance, clamped at 0 before rsqrt.
        inv_n = 1.0 / float(len(xs) * L_out)
        mean = s1 * inv_n
        var = jnp.maximum(s2 * inv_n - mean * mean, 0.0)
        scale = gamma * jax.lax.rsqrt(var + _BN_EPS)
        shift = beta - mean * scale

        outs = []
        for i, acc in enumerate(accs):
            y = acc * scale + shift
            if residual is not None:
                y = y + residual[i]                     # shortcut + main path
            if relu or residual is not None:
                y = jnp.maximum(y, 0.0)
            outs.append(y)
        return outs

    def block(xs):
        h = xs
        for K, pad in _MAIN_STAGES:
            h = conv_bn(h, K, pad, relu=True)
        return conv_bn(xs, *_SC_STAGE, relu=False, residual=h)

    x = x_ref[...]                                      # (B, L, 128), f32
    acts = [x[b] for b in range(B)]
    for _ in range(3):
        acts = block(acts)

    # AvgPool1d(kernel_size=pool_len, stride=pool_len): a single window over
    # the first pool_len timesteps -> squeeze -> Linear.
    w_f = next(param_it)[...]                           # (128, n_classes)
    b_f = next(param_it)[...]                           # (1, n_classes)
    inv = 1.0 / float(pool_len)
    pooled = jnp.concatenate(
        [jnp.sum(a[:pool_len, :], axis=0, keepdims=True) for a in acts],
        axis=0) * inv                                   # (B, 128)
    out_ref[...] = (jnp.dot(pooled, w_f, preferred_element_type=jnp.float32)
                    + b_f).astype(out_ref.dtype)


# ----------------------------------------------------------------------------
# Parameter preparation (lane padding, im2col flattening) + JAX glue
# ----------------------------------------------------------------------------
def _pad_conv_weight(w):
    """(K, Cin, Cout) conv weight -> lane-padded, im2col-flattened (K*128, 128)."""
    K, cin, cout = w.shape
    w = jnp.pad(w, ((0, 0), (0, _LANES - cin), (0, _LANES - cout)))
    return w.reshape(K * _LANES, _LANES).astype(jnp.float32)


def _pad_channel_vec(v):
    """(C,) per-channel BN parameter -> zero-padded (1, 128).  Zero-padded
    gamma keeps the dead (padded) channels exactly zero through every stage."""
    return jnp.pad(v, (0, _LANES - v.shape[0])).reshape(1, _LANES).astype(jnp.float32)


def prepare_params(params):
    """Flatten + lane-pad parameters once, outside the jitted forward.
    Conv biases are intentionally dropped: under training-mode BatchNorm the
    per-channel bias is exactly cancelled by the batch-mean subtraction."""
    flat = []
    for bname in ("block1", "block2", "block3"):
        p = params[bname]
        for s in ("1", "2", "3", "sc"):
            flat.append(_pad_conv_weight(p["w" + s]))
            flat.append(_pad_channel_vec(p["g" + s]))
            flat.append(_pad_channel_vec(p["be" + s]))
    n_classes = params["w_final"].shape[1]
    flat.append(params["w_final"].astype(jnp.float32))           # (128, n_out)
    flat.append(params["b_final"].reshape(1, n_classes).astype(jnp.float32))
    return flat


@functools.partial(jax.jit, static_argnames=("input_size",))
def ts_resnet_forward(x, flat_params, *, input_size):
    B, _, n_var = x.shape
    n_classes = flat_params[-1].shape[-1]
    # PyTorch: out.view(B, shape[2], shape[1]) is a memory reinterpret
    # (reshape), NOT a transpose -- reproduced exactly, then converted to
    # channels-last (B, L, C) and lane-padded to 128 channels.
    x_cl = jnp.transpose(x.reshape(B, n_var, input_size), (0, 2, 1))
    x_cl = jnp.pad(x_cl, ((0, 0), (0, 0), (0, _LANES - n_var))).astype(jnp.float32)

    kernel = functools.partial(_tsresnet_kernel, B=B, pool_len=input_size - 2)
    return pl.pallas_call(
        kernel,
        out_shape=jax.ShapeDtypeStruct((B, n_classes), jnp.float32),
        in_specs=[_VMEM] * (1 + len(flat_params)),
        out_specs=_VMEM,
    )(x_cl, *flat_params)


# ----------------------------------------------------------------------------
# Deterministic parameter initialization (synthetic, not a checkpoint)
# ----------------------------------------------------------------------------
def _conv_params(key, K, cin, cout):
    kw, kb = jax.random.split(key)
    bound = 1.0 / (cin * K) ** 0.5
    w = jax.random.uniform(kw, (K, cin, cout), jnp.float32, -bound, bound)
    b = jax.random.uniform(kb, (cout,), jnp.float32, -bound, bound)
    return w, b


def init_block(key, cin, nf):
    ks = jax.random.split(key, 4)
    p = {}
    for name, ksz, kk, ci in (("1", 9, ks[0], cin), ("2", 5, ks[1], nf),
                              ("3", 3, ks[2], nf), ("sc", 1, ks[3], cin)):
        w, b = _conv_params(kk, ksz, ci, nf)
        p["w" + name] = w
        p["b" + name] = b          # unused in forward (cancelled by batch-stat BN)
        p["g" + name] = jnp.ones((nf,), jnp.float32)    # BN gamma (init 1)
        p["be" + name] = jnp.zeros((nf,), jnp.float32)  # BN beta  (init 0)
    return p


def init_params(key, n_variates, n_classes):
    k1, k2, k3, kf = jax.random.split(key, 4)
    kfw, kfb = jax.random.split(kf)
    bound = 1.0 / 128 ** 0.5
    return {
        "block1": init_block(k1, n_variates, 64),
        "block2": init_block(k2, 64, 128),
        "block3": init_block(k3, 128, 128),
        "w_final": jax.random.uniform(kfw, (128, n_classes), jnp.float32,
                                      -bound, bound),
        "b_final": jax.random.uniform(kfb, (n_classes,), jnp.float32,
                                      -bound, bound),
    }


if __name__ == "__main__":
    key = jax.random.PRNGKey(0)
    kx, kp = jax.random.split(key)

    # dataset.n_variates = 4, dataset.input_size = 16, dataset.output_size = 10
    B, input_size, n_variates, n_classes = 2, 16, 4, 10

    x = jax.random.normal(kx, (B, input_size, n_variates), jnp.float32)
    params = init_params(kp, n_variates, n_classes)
    flat_params = prepare_params(params)      # lane-pad / flatten once

    out = ts_resnet_forward(x, flat_params, input_size=input_size)
    jax.block_until_ready(out)
    assert out.shape == (B, n_classes), out.shape
    assert bool(jnp.all(jnp.isfinite(out)))
    print("KERNEL_OK")
</pallas_src>

<mosaic_0001>
module attributes {stable_mosaic.version = 11 : i64} {
  func.func @_tsresnet_kernel(%arg0: memref<2x16x128xf32, #tpu.memory_space<vmem>>, %arg1: memref<1152x128xf32, #tpu.memory_space<vmem>>, %arg2: memref<1x128xf32, #tpu.memory_space<vmem>>, %arg3: memref<1x128xf32, #tpu.memory_space<vmem>>, %arg4: memref<640x128xf32, #tpu.memory_space<vmem>>, %arg5: memref<1x128xf32, #tpu.memory_space<vmem>>, %arg6: memref<1x128xf32, #tpu.memory_space<vmem>>, %arg7: memref<384x128xf32, #tpu.memory_space<vmem>>, %arg8: memref<1x128xf32, #tpu.memory_space<vmem>>, %arg9: memref<1x128xf32, #tpu.memory_space<vmem>>, %arg10: memref<128x128xf32, #tpu.memory_space<vmem>>, %arg11: memref<1x128xf32, #tpu.memory_space<vmem>>, %arg12: memref<1x128xf32, #tpu.memory_space<vmem>>, %arg13: memref<1152x128xf32, #tpu.memory_space<vmem>>, %arg14: memref<1x128xf32, #tpu.memory_space<vmem>>, %arg15: memref<1x128xf32, #tpu.memory_space<vmem>>, %arg16: memref<640x128xf32, #tpu.memory_space<vmem>>, %arg17: memref<1x128xf32, #tpu.memory_space<vmem>>, %arg18: memref<1x128xf32, #tpu.memory_space<vmem>>, %arg19: memref<384x128xf32, #tpu.memory_space<vmem>>, %arg20: memref<1x128xf32, #tpu.memory_space<vmem>>, %arg21: memref<1x128xf32, #tpu.memory_space<vmem>>, %arg22: memref<128x128xf32, #tpu.memory_space<vmem>>, %arg23: memref<1x128xf32, #tpu.memory_space<vmem>>, %arg24: memref<1x128xf32, #tpu.memory_space<vmem>>, %arg25: memref<1152x128xf32, #tpu.memory_space<vmem>>, %arg26: memref<1x128xf32, #tpu.memory_space<vmem>>, %arg27: memref<1x128xf32, #tpu.memory_space<vmem>>, %arg28: memref<640x128xf32, #tpu.memory_space<vmem>>, %arg29: memref<1x128xf32, #tpu.memory_space<vmem>>, %arg30: memref<1x128xf32, #tpu.memory_space<vmem>>, %arg31: memref<384x128xf32, #tpu.memory_space<vmem>>, %arg32: memref<1x128xf32, #tpu.memory_space<vmem>>, %arg33: memref<1x128xf32, #tpu.memory_space<vmem>>, %arg34: memref<128x128xf32, #tpu.memory_space<vmem>>, %arg35: memref<1x128xf32, #tpu.memory_space<vmem>>, %arg36: memref<1x128xf32, #tpu.memory_space<vmem>>, %arg37: memref<128x10xf32, #tpu.memory_space<vmem>>, %arg38: memref<1x10xf32, #tpu.memory_space<vmem>>, %arg39: memref<2x10xf32, #tpu.memory_space<vmem>>) attributes {dimension_semantics = [], scalar_prefetch = 0 : i64, scratch_operands = 0 : i64, tpu.core_type = #tpu.core_type<tc>} {
    %c0 = arith.constant 0 : index
    %c0_0 = arith.constant 0 : index
    %c0_1 = arith.constant 0 : index
    %0 = vector.load %arg0[%c0, %c0_0, %c0_1] : memref<2x16x128xf32, #tpu.memory_space<vmem>>, vector<2x16x128xf32>
    %1 = vector.extract_strided_slice %0 {offsets = [0, 0, 0], sizes = [1, 16, 128], strides = [1, 1, 1]} : vector<2x16x128xf32> to vector<1x16x128xf32>
    %2 = vector.shape_cast %1 : vector<1x16x128xf32> to vector<16x128xf32>
    %3 = vector.extract_strided_slice %0 {offsets = [1, 0, 0], sizes = [1, 16, 128], strides = [1, 1, 1]} : vector<2x16x128xf32> to vector<1x16x128xf32>
    %4 = vector.shape_cast %3 : vector<1x16x128xf32> to vector<16x128xf32>
    %c0_2 = arith.constant 0 : index
    %c0_3 = arith.constant 0 : index
    %5 = vector.load %arg1[%c0_2, %c0_3] : memref<1152x128xf32, #tpu.memory_space<vmem>>, vector<1152x128xf32>
    %c0_4 = arith.constant 0 : index
    %c0_5 = arith.constant 0 : index
    %6 = vector.load %arg2[%c0_4, %c0_5] : memref<1x128xf32, #tpu.memory_space<vmem>>, vector<1x128xf32>
    %c0_6 = arith.constant 0 : index
    %c0_7 = arith.constant 0 : index
    %7 = vector.load %arg3[%c0_6, %c0_7] : memref<1x128xf32, #tpu.memory_space<vmem>>, vector<1x128xf32>
    %cst = arith.constant 0.000000e+00 : f32
    %8 = vector.broadcast %cst : f32 to vector<4x128xf32>
    %cst_8 = arith.constant 0.000000e+00 : f32
    %9 = vector.broadcast %cst_8 : f32 to vector<1x128xf32>
    %cst_9 = arith.constant 0.000000e+00 : f32
    %10 = vector.broadcast %cst_9 : f32 to vector<1x128xf32>
    %11 = tpu.concatenate %8, %2, %8 in 0 : vector<4x128xf32>, vector<16x128xf32>, vector<4x128xf32> -> vector<24x128xf32>
    %12 = vector.extract_strided_slice %11 {offsets = [0, 0], sizes = [16, 128], strides = [1, 1]} : vector<24x128xf32> to vector<16x128xf32>
    %13 = vector.extract_strided_slice %11 {offsets = [1, 0], sizes = [16, 128], strides = [1, 1]} : vector<24x128xf32> to vector<16x128xf32>
    %14 = vector.extract_strided_slice %11 {offsets = [2, 0], sizes = [16, 128], strides = [1, 1]} : vector<24x128xf32> to vector<16x128xf32>
    %15 = vector.extract_strided_slice %11 {offsets = [3, 0], sizes = [16, 128], strides = [1, 1]} : vector<24x128xf32> to vector<16x128xf32>
    %16 = vector.extract_strided_slice %11 {offsets = [4, 0], sizes = [16, 128], strides = [1, 1]} : vector<24x128xf32> to vector<16x128xf32>
    %17 = vector.extract_strided_slice %11 {offsets = [5, 0], sizes = [16, 128], strides = [1, 1]} : vector<24x128xf32> to vector<16x128xf32>
    %18 = vector.extract_strided_slice %11 {offsets = [6, 0], sizes = [16, 128], strides = [1, 1]} : vector<24x128xf32> to vector<16x128xf32>
    %19 = vector.extract_strided_slice %11 {offsets = [7, 0], sizes = [16, 128], strides = [1, 1]} : vector<24x128xf32> to vector<16x128xf32>
    %20 = vector.extract_strided_slice %11 {offsets = [8, 0], sizes = [16, 128], strides = [1, 1]} : vector<24x128xf32> to vector<16x128xf32>
    %21 = tpu.concatenate %12, %13, %14, %15, %16, %17, %18, %19, %20 in 1 : vector<16x128xf32>, vector<16x128xf32>, vector<16x128xf32>, vector<16x128xf32>, vector<16x128xf32>, vector<16x128xf32>, vector<16x128xf32>, vector<16x128xf32>, vector<16x128xf32> -> vector<16x1152xf32>
    %cst_10 = arith.constant dense<0.000000e+00> : vector<16x128xf32>
    %22 = tpu.matmul %21, %5, %cst_10 {dimension_numbers = #tpu.dot_dimension_numbers<[1], [0], [0], [1], [0, 0, 1, 1], [], []>} : vector<16x1152xf32>, vector<1152x128xf32>, vector<16x128xf32> -> vector<16x128xf32>
    %cst_11 = arith.constant dense<0.000000e+00> : vector<128xf32>
    %23 = vector.multi_reduction <add>, %22, %cst_11 [0] : vector<16x128xf32> to vector<128xf32>
    %24 = vector.shape_cast %23 : vector<128xf32> to vector<1x128xf32>
    %25 = arith.addf %9, %24 : vector<1x128xf32>
    %26 = arith.mulf %22, %22 : vector<16x128xf32>
    %cst_12 = arith.constant dense<0.000000e+00> : vector<128xf32>
    %27 = vector.multi_reduction <add>, %26, %cst_12 [0] : vector<16x128xf32> to vector<128xf32>
    %28 = vector.shape_cast %27 : vector<128xf32> to vector<1x128xf32>
    %29 = arith.addf %10, %28 : vector<1x128xf32>
    %30 = tpu.concatenate %8, %4, %8 in 0 : vector<4x128xf32>, vector<16x128xf32>, vector<4x128xf32> -> vector<24x128xf32>
    %31 = vector.extract_strided_slice %30 {offsets = [0, 0], sizes = [16, 128], strides = [1, 1]} : vector<24x128xf32> to vector<16x128xf32>
    %32 = vector.extract_strided_slice %30 {offsets = [1, 0], sizes = [16, 128], strides = [1, 1]} : vector<24x128xf32> to vector<16x128xf32>
    %33 = vector.extract_strided_slice %30 {offsets = [2, 0], sizes = [16, 128], strides = [1, 1]} : vector<24x128xf32> to vector<16x128xf32>
    %34 = vector.extract_strided_slice %30 {offsets = [3, 0], sizes = [16, 128], strides = [1, 1]} : vector<24x128xf32> to vector<16x128xf32>
    %35 = vector.extract_strided_slice %30 {offsets = [4, 0], sizes = [16, 128], strides = [1, 1]} : vector<24x128xf32> to vector<16x128xf32>
    %36 = vector.extract_strided_slice %30 {offsets = [5, 0], sizes = [16, 128], strides = [1, 1]} : vector<24x128xf32> to vector<16x128xf32>
    %37 = vector.extract_strided_slice %30 {offsets = [6, 0], sizes = [16, 128], strides = [1, 1]} : vector<24x128xf32> to vector<16x128xf32>
    %38 = vector.extract_strided_slice %30 {offsets = [7, 0], sizes = [16, 128], strides = [1, 1]} : vector<24x128xf32> to vector<16x128xf32>
    %39 = vector.extract_strided_slice %30 {offsets = [8, 0], sizes = [16, 128], strides = [1, 1]} : vector<24x128xf32> to vector<16x128xf32>
    %40 = tpu.concatenate %31, %32, %33, %34, %35, %36, %37, %38, %39 in 1 : vector<16x128xf32>, vector<16x128xf32>, vector<16x128xf32>, vector<16x128xf32>, vector<16x128xf32>, vector<16x128xf32>, vector<16x128xf32>, vector<16x128xf32>, vector<16x128xf32> -> vector<16x1152xf32>
    %cst_13 = arith.constant dense<0.000000e+00> : vector<16x128xf32>
    %41 = tpu.matmul %40, %5, %cst_13 {dimension_numbers = #tpu.dot_dimension_numbers<[1], [0], [0], [1], [0, 0, 1, 1], [], []>} : vector<16x1152xf32>, vector<1152x128xf32>, vector<16x128xf32> -> vector<16x128xf32>
    %cst_14 = arith.constant dense<0.000000e+00> : vector<128xf32>
    %42 = vector.multi_reduction <add>, %41, %cst_14 [0] : vector<16x128xf32> to vector<128xf32>
    %43 = vector.shape_cast %42 : vector<128xf32> to vector<1x128xf32>
    %44 = arith.addf %25, %43 : vector<1x128xf32>
    %45 = arith.mulf %41, %41 : vector<16x128xf32>
    %cst_15 = arith.constant dense<0.000000e+00> : vector<128xf32>
    %46 = vector.multi_reduction <add>, %45, %cst_15 [0] : vector<16x128xf32> to vector<128xf32>
    %47 = vector.shape_cast %46 : vector<128xf32> to vector<1x128xf32>
    %48 = arith.addf %29, %47 : vector<1x128xf32>
    %cst_16 = arith.constant 3.125000e-02 : f32
    %49 = vector.broadcast %cst_16 : f32 to vector<1x128xf32>
    %50 = arith.mulf %44, %49 : vector<1x128xf32>
    %cst_17 = arith.constant 3.125000e-02 : f32
    %51 = vector.broadcast %cst_17 : f32 to vector<1x128xf32>
    %52 = arith.mulf %48, %51 : vector<1x128xf32>
    %53 = arith.mulf %50, %50 : vector<1x128xf32>
    %54 = arith.subf %52, %53 : vector<1x128xf32>
    %cst_18 = arith.constant 0.000000e+00 : f32
    %55 = vector.broadcast %cst_18 : f32 to vector<1x128xf32>
    %56 = arith.maximumf %54, %55 : vector<1x128xf32>
    %cst_19 = arith.constant 9.99999974E-6 : f32
    %57 = vector.broadcast %cst_19 : f32 to vector<1x128xf32>
    %58 = arith.addf %56, %57 : vector<1x128xf32>
    %59 = math.rsqrt %58 : vector<1x128xf32>
    %60 = arith.mulf %6, %59 : vector<1x128xf32>
    %61 = arith.mulf %50, %60 : vector<1x128xf32>
    %62 = arith.subf %7, %61 : vector<1x128xf32>
    %63 = vector.broadcast %60 : vector<1x128xf32> to vector<16x128xf32>
    %64 = arith.mulf %22, %63 : vector<16x128xf32>
    %65 = vector.broadcast %62 : vector<1x128xf32> to vector<16x128xf32>
    %66 = arith.addf %64, %65 : vector<16x128xf32>
    %cst_20 = arith.constant 0.000000e+00 : f32
    %67 = vector.broadcast %cst_20 : f32 to vector<16x128xf32>
    %68 = arith.maximumf %66, %67 : vector<16x128xf32>
    %69 = vector.broadcast %60 : vector<1x128xf32> to vector<16x128xf32>
    %70 = arith.mulf %41, %69 : vector<16x128xf32>
    %71 = vector.broadcast %62 : vector<1x128xf32> to vector<16x128xf32>
    %72 = arith.addf %70, %71 : vector<16x128xf32>
    %cst_21 = arith.constant 0.000000e+00 : f32
    %73 = vector.broadcast %cst_21 : f32 to vector<16x128xf32>
    %74 = arith.maximumf %72, %73 : vector<16x128xf32>
    %c0_22 = arith.constant 0 : index
    %c0_23 = arith.constant 0 : index
    %75 = vector.load %arg4[%c0_22, %c0_23] : memref<640x128xf32, #tpu.memory_space<vmem>>, vector<640x128xf32>
    %c0_24 = arith.constant 0 : index
    %c0_25 = arith.constant 0 : index
    %76 = vector.load %arg5[%c0_24, %c0_25] : memref<1x128xf32, #tpu.memory_space<vmem>>, vector<1x128xf32>
    %c0_26 = arith.constant 0 : index
    %c0_27 = arith.constant 0 : index
    %77 = vector.load %arg6[%c0_26, %c0_27] : memref<1x128xf32, #tpu.memory_space<vmem>>, vector<1x128xf32>
    %cst_28 = arith.constant 0.000000e+00 : f32
    %78 = vector.broadcast %cst_28 : f32 to vector<2x128xf32>
    %cst_29 = arith.constant 0.000000e+00 : f32
    %79 = vector.broadcast %cst_29 : f32 to vector<1x128xf32>
    %cst_30 = arith.constant 0.000000e+00 : f32
    %80 = vector.broadcast %cst_30 : f32 to vector<1x128xf32>
    %81 = tpu.concatenate %78, %68, %78 in 0 : vector<2x128xf32>, vector<16x128xf32>, vector<2x128xf32> -> vector<20x128xf32>
    %82 = vector.extract_strided_slice %81 {offsets = [0, 0], sizes = [16, 128], strides = [1, 1]} : vector<20x128xf32> to vector<16x128xf32>
    %83 = vector.extract_strided_slice %81 {offsets = [1, 0], sizes = [16, 128], strides = [1, 1]} : vector<20x128xf32> to vector<16x128xf32>
    %84 = vector.extract_strided_slice %81 {offsets = [2, 0], sizes = [16, 128], strides = [1, 1]} : vector<20x128xf32> to vector<16x128xf32>
    %85 = vector.extract_strided_slice %81 {offsets = [3, 0], sizes = [16, 128], strides = [1, 1]} : vector<20x128xf32> to vector<16x128xf32>
    %86 = vector.extract_strided_slice %81 {offsets = [4, 0], sizes = [16, 128], strides = [1, 1]} : vector<20x128xf32> to vector<16x128xf32>
    %87 = tpu.concatenate %82, %83, %84, %85, %86 in 1 : vector<16x128xf32>, vector<16x128xf32>, vector<16x128xf32>, vector<16x128xf32>, vector<16x128xf32> -> vector<16x640xf32>
    %cst_31 = arith.constant dense<0.000000e+00> : vector<16x128xf32>
    %88 = tpu.matmul %87, %75, %cst_31 {dimension_numbers = #tpu.dot_dimension_numbers<[1], [0], [0], [1], [0, 0, 1, 1], [], []>} : vector<16x640xf32>, vector<640x128xf32>, vector<16x128xf32> -> vector<16x128xf32>
    %cst_32 = arith.constant dense<0.000000e+00> : vector<128xf32>
    %89 = vector.multi_reduction <add>, %88, %cst_32 [0] : vector<16x128xf32> to vector<128xf32>
    %90 = vector.shape_cast %89 : vector<128xf32> to vector<1x128xf32>
    %91 = arith.addf %79, %90 : vector<1x128xf32>
    %92 = arith.mulf %88, %88 : vector<16x128xf32>
    %cst_33 = arith.constant dense<0.000000e+00> : vector<128xf32>
    %93 = vector.multi_reduction <add>, %92, %cst_33 [0] : vector<16x128xf32> to vector<128xf32>
    %94 = vector.shape_cast %93 : vector<128xf32> to vector<1x128xf32>
    %95 = arith.addf %80, %94 : vector<1x128xf32>
    %96 = tpu.concatenate %78, %74, %78 in 0 : vector<2x128xf32>, vector<16x128xf32>, vector<2x128xf32> -> vector<20x128xf32>
    %97 = vector.extract_strided_slice %96 {offsets = [0, 0], sizes = [16, 128], strides = [1, 1]} : vector<20x128xf32> to vector<16x128xf32>
    %98 = vector.extract_strided_slice %96 {offsets = [1, 0], sizes = [16, 128], strides = [1, 1]} : vector<20x128xf32> to vector<16x128xf32>
    %99 = vector.extract_strided_slice %96 {offsets = [2, 0], sizes = [16, 128], strides = [1, 1]} : vector<20x128xf32> to vector<16x128xf32>
    %100 = vector.extract_strided_slice %96 {offsets = [3, 0], sizes = [16, 128], strides = [1, 1]} : vector<20x128xf32> to vector<16x128xf32>
    %101 = vector.extract_strided_slice %96 {offsets = [4, 0], sizes = [16, 128], strides = [1, 1]} : vector<20x128xf32> to vector<16x128xf32>
    %102 = tpu.concatenate %97, %98, %99, %100, %101 in 1 : vector<16x128xf32>, vector<16x128xf32>, vector<16x128xf32>, vector<16x128xf32>, vector<16x128xf32> -> vector<16x640xf32>
    %cst_34 = arith.constant dense<0.000000e+00> : vector<16x128xf32>
    %103 = tpu.matmul %102, %75, %cst_34 {dimension_numbers = #tpu.dot_dimension_numbers<[1], [0], [0], [1], [0, 0, 1, 1], [], []>} : vector<16x640xf32>, vector<640x128xf32>, vector<16x128xf32> -> vector<16x128xf32>
    %cst_35 = arith.constant dense<0.000000e+00> : vector<128xf32>
    %104 = vector.multi_reduction <add>, %103, %cst_35 [0] : vector<16x128xf32> to vector<128xf32>
    %105 = vector.shape_cast %104 : vector<128xf32> to vector<1x128xf32>
    %106 = arith.addf %91, %105 : vector<1x128xf32>
    %107 = arith.mulf %103, %103 : vector<16x128xf32>
    %cst_36 = arith.constant dense<0.000000e+00> : vector<128xf32>
    %108 = vector.multi_reduction <add>, %107, %cst_36 [0] : vector<16x128xf32> to vector<128xf32>
    %109 = vector.shape_cast %108 : vector<128xf32> to vector<1x128xf32>
    %110 = arith.addf %95, %109 : vector<1x128xf32>
    %cst_37 = arith.constant 3.125000e-02 : f32
    %111 = vector.broadcast %cst_37 : f32 to vector<1x128xf32>
    %112 = arith.mulf %106, %111 : vector<1x128xf32>
    %cst_38 = arith.constant 3.125000e-02 : f32
    %113 = vector.broadcast %cst_38 : f32 to vector<1x128xf32>
    %114 = arith.mulf %110, %113 : vector<1x128xf32>
    %115 = arith.mulf %112, %112 : vector<1x128xf32>
    %116 = arith.subf %114, %115 : vector<1x128xf32>
    %cst_39 = arith.constant 0.000000e+00 : f32
    %117 = vector.broadcast %cst_39 : f32 to vector<1x128xf32>
    %118 = arith.maximumf %116, %117 : vector<1x128xf32>
    %cst_40 = arith.constant 9.99999974E-6 : f32
    %119 = vector.broadcast %cst_40 : f32 to vector<1x128xf32>
    %120 = arith.addf %118, %119 : vector<1x128xf32>
    %121 = math.rsqrt %120 : vector<1x128xf32>
    %122 = arith.mulf %76, %121 : vector<1x128xf32>
    %123 = arith.mulf %112, %122 : vector<1x128xf32>
    %124 = arith.subf %77, %123 : vector<1x128xf32>
    %125 = vector.broadcast %122 : vector<1x128xf32> to vector<16x128xf32>
    %126 = arith.mulf %88, %125 : vector<16x128xf32>
    %127 = vector.broadcast %124 : vector<1x128xf32> to vector<16x128xf32>
    %128 = arith.addf %126, %127 : vector<16x128xf32>
    %cst_41 = arith.constant 0.000000e+00 : f32
    %129 = vector.broadcast %cst_41 : f32 to vector<16x128xf32>
    %130 = arith.maximumf %128, %129 : vector<16x128xf32>
    %131 = vector.broadcast %122 : vector<1x128xf32> to vector<16x128xf32>
    %132 = arith.mulf %103, %131 : vector<16x128xf32>
    %133 = vector.broadcast %124 : vector<1x128xf32> to vector<16x128xf32>
    %134 = arith.addf %132, %133 : vector<16x128xf32>
    %cst_42 = arith.constant 0.000000e+00 : f32
    %135 = vector.broadcast %cst_42 : f32 to vector<16x128xf32>
    %136 = arith.maximumf %134, %135 : vector<16x128xf32>
    %c0_43 = arith.constant 0 : index
    %c0_44 = arith.constant 0 : index
    %137 = vector.load %arg7[%c0_43, %c0_44] : memref<384x128xf32, #tpu.memory_space<vmem>>, vector<384x128xf32>
    %c0_45 = arith.constant 0 : index
    %c0_46 = arith.constant 0 : index
    %138 = vector.load %arg8[%c0_45, %c0_46] : memref<1x128xf32, #tpu.memory_space<vmem>>, vector<1x128xf32>
    %c0_47 = arith.constant 0 : index
    %c0_48 = arith.constant 0 : index
    %139 = vector.load %arg9[%c0_47, %c0_48] : memref<1x128xf32, #tpu.memory_space<vmem>>, vector<1x128xf32>
    %cst_49 = arith.constant 0.000000e+00 : f32
    %140 = vector.broadcast %cst_49 : f32 to vector<2x128xf32>
    %cst_50 = arith.constant 0.000000e+00 : f32
    %141 = vector.broadcast %cst_50 : f32 to vector<1x128xf32>
    %cst_51 = arith.constant 0.000000e+00 : f32
    %142 = vector.broadcast %cst_51 : f32 to vector<1x128xf32>
    %143 = tpu.concatenate %140, %130, %140 in 0 : vector<2x128xf32>, vector<16x128xf32>, vector<2x128xf32> -> vector<20x128xf32>
    %144 = vector.extract_strided_slice %143 {offsets = [0, 0], sizes = [18, 128], strides = [1, 1]} : vector<20x128xf32> to vector<18x128xf32>
    %145 = vector.extract_strided_slice %143 {offsets = [1, 0], sizes = [18, 128], strides = [1, 1]} : vector<20x128xf32> to vector<18x128xf32>
    %146 = vector.extract_strided_slice %143 {offsets = [2, 0], sizes = [18, 128], strides = [1, 1]} : vector<20x128xf32> to vector<18x128xf32>
    %147 = tpu.concatenate %144, %145, %146 in 1 : vector<18x128xf32>, vector<18x128xf32>, vector<18x128xf32> -> vector<18x384xf32>
    %cst_52 = arith.constant dense<0.000000e+00> : vector<18x128xf32>
    %148 = tpu.matmul %147, %137, %cst_52 {dimension_numbers = #tpu.dot_dimension_numbers<[1], [0], [0], [1], [0, 0, 1, 1], [], []>} : vector<18x384xf32>, vector<384x128xf32>, vector<18x128xf32> -> vector<18x128xf32>
    %cst_53 = arith.constant dense<0.000000e+00> : vector<128xf32>
    %149 = vector.multi_reduction <add>, %148, %cst_53 [0] : vector<18x128xf32> to vector<128xf32>
    %150 = vector.shape_cast %149 : vector<128xf32> to vector<1x128xf32>
    %151 = arith.addf %141, %150 : vector<1x128xf32>
    %152 = arith.mulf %148, %148 : vector<18x128xf32>
    %cst_54 = arith.constant dense<0.000000e+00> : vector<128xf32>
    %153 = vector.multi_reduction <add>, %152, %cst_54 [0] : vector<18x128xf32> to vector<128xf32>
    %154 = vector.shape_cast %153 : vector<128xf32> to vector<1x128xf32>
    %155 = arith.addf %142, %154 : vector<1x128xf32>
    %156 = tpu.concatenate %140, %136, %140 in 0 : vector<2x128xf32>, vector<16x128xf32>, vector<2x128xf32> -> vector<20x128xf32>
    %157 = vector.extract_strided_slice %156 {offsets = [0, 0], sizes = [18, 128], strides = [1, 1]} : vector<20x128xf32> to vector<18x128xf32>
    %158 = vector.extract_strided_slice %156 {offsets = [1, 0], sizes = [18, 128], strides = [1, 1]} : vector<20x128xf32> to vector<18x128xf32>
    %159 = vector.extract_strided_slice %156 {offsets = [2, 0], sizes = [18, 128], strides = [1, 1]} : vector<20x128xf32> to vector<18x128xf32>
    %160 = tpu.concatenate %157, %158, %159 in 1 : vector<18x128xf32>, vector<18x128xf32>, vector<18x128xf32> -> vector<18x384xf32>
    %cst_55 = arith.constant dense<0.000000e+00> : vector<18x128xf32>
    %161 = tpu.matmul %160, %137, %cst_55 {dimension_numbers = #tpu.dot_dimension_numbers<[1], [0], [0], [1], [0, 0, 1, 1], [], []>} : vector<18x384xf32>, vector<384x128xf32>, vector<18x128xf32> -> vector<18x128xf32>
    %cst_56 = arith.constant dense<0.000000e+00> : vector<128xf32>
    %162 = vector.multi_reduction <add>, %161, %cst_56 [0] : vector<18x128xf32> to vector<128xf32>
    %163 = vector.shape_cast %162 : vector<128xf32> to vector<1x128xf32>
    %164 = arith.addf %151, %163 : vector<1x128xf32>
    %165 = arith.mulf %161, %161 : vector<18x128xf32>
    %cst_57 = arith.constant dense<0.000000e+00> : vector<128xf32>
    %166 = vector.multi_reduction <add>, %165, %cst_57 [0] : vector<18x128xf32> to vector<128xf32>
    %167 = vector.shape_cast %166 : vector<128xf32> to vector<1x128xf32>
    %168 = arith.addf %155, %167 : vector<1x128xf32>
    %cst_58 = arith.constant 0.027777778 : f32
    %169 = vector.broadcast %cst_58 : f32 to vector<1x128xf32>
    %170 = arith.mulf %164, %169 : vector<1x128xf32>
    %cst_59 = arith.constant 0.027777778 : f32
    %171 = vector.broadcast %cst_59 : f32 to vector<1x128xf32>
    %172 = arith.mulf %168, %171 : vector<1x128xf32>
    %173 = arith.mulf %170, %170 : vector<1x128xf32>
    %174 = arith.subf %172, %173 : vector<1x128xf32>
    %cst_60 = arith.constant 0.000000e+00 : f32
    %175 = vector.broadcast %cst_60 : f32 to vector<1x128xf32>
    %176 = arith.maximumf %174, %175 : vector<1x128xf32>
    %cst_61 = arith.constant 9.99999974E-6 : f32
    %177 = vector.broadcast %cst_61 : f32 to vector<1x128xf32>
    %178 = arith.addf %176, %177 : vector<1x128xf32>
    %179 = math.rsqrt %178 : vector<1x128xf32>
    %180 = arith.mulf %138, %179 : vector<1x128xf32>
    %181 = arith.mulf %170, %180 : vector<1x128xf32>
    %182 = arith.subf %139, %181 : vector<1x128xf32>
    %183 = vector.broadcast %180 : vector<1x128xf32> to vector<18x128xf32>
    %184 = arith.mulf %148, %183 : vector<18x128xf32>
    %185 = vector.broadcast %182 : vector<1x128xf32> to vector<18x128xf32>
    %186 = arith.addf %184, %185 : vector<18x128xf32>
    %cst_62 = arith.constant 0.000000e+00 : f32
    %187 = vector.broadcast %cst_62 : f32 to vector<18x128xf32>
    %188 = arith.maximumf %186, %187 : vector<18x128xf32>
    %189 = vector.broadcast %180 : vector<1x128xf32> to vector<18x128xf32>
    %190 = arith.mulf %161, %189 : vector<18x128xf32>
    %191 = vector.broadcast %182 : vector<1x128xf32> to vector<18x128xf32>
    %192 = arith.addf %190, %191 : vector<18x128xf32>
    %cst_63 = arith.constant 0.000000e+00 : f32
    %193 = vector.broadcast %cst_63 : f32 to vector<18x128xf32>
    %194 = arith.maximumf %192, %193 : vector<18x128xf32>
    %c0_64 = arith.constant 0 : index
    %c0_65 = arith.constant 0 : index
    %195 = vector.load %arg10[%c0_64, %c0_65] : memref<128x128xf32, #tpu.memory_space<vmem>>, vector<128x128xf32>
    %c0_66 = arith.constant 0 : index
    %c0_67 = arith.constant 0 : index
    %196 = vector.load %arg11[%c0_66, %c0_67] : memref<1x128xf32, #tpu.memory_space<vmem>>, vector<1x128xf32>
    %c0_68 = arith.constant 0 : index
    %c0_69 = arith.constant 0 : index
    %197 = vector.load %arg12[%c0_68, %c0_69] : memref<1x128xf32, #tpu.memory_space<vmem>>, vector<1x128xf32>
    %cst_70 = arith.constant 0.000000e+00 : f32
    %198 = vector.broadcast %cst_70 : f32 to vector<1x128xf32>
    %cst_71 = arith.constant 0.000000e+00 : f32
    %199 = vector.broadcast %cst_71 : f32 to vector<1x128xf32>
    %cst_72 = arith.constant 0.000000e+00 : f32
    %200 = vector.broadcast %cst_72 : f32 to vector<1x128xf32>
    %201 = tpu.concatenate %198, %2, %198 in 0 : vector<1x128xf32>, vector<16x128xf32>, vector<1x128xf32> -> vector<18x128xf32>
    %cst_73 = arith.constant dense<0.000000e+00> : vector<18x128xf32>
    %202 = tpu.matmul %201, %195, %cst_73 {dimension_numbers = #tpu.dot_dimension_numbers<[1], [0], [0], [1], [0, 0, 1, 1], [], []>} : vector<18x128xf32>, vector<128x128xf32>, vector<18x128xf32> -> vector<18x128xf32>
    %cst_74 = arith.constant dense<0.000000e+00> : vector<128xf32>
    %203 = vector.multi_reduction <add>, %202, %cst_74 [0] : vector<18x128xf32> to vector<128xf32>
    %204 = vector.shape_cast %203 : vector<128xf32> to vector<1x128xf32>
    %205 = arith.addf %199, %204 : vector<1x128xf32>
    %206 = arith.mulf %202, %202 : vector<18x128xf32>
    %cst_75 = arith.constant dense<0.000000e+00> : vector<128xf32>
    %207 = vector.multi_reduction <add>, %206, %cst_75 [0] : vector<18x128xf32> to vector<128xf32>
    %208 = vector.shape_cast %207 : vector<128xf32> to vector<1x128xf32>
    %209 = arith.addf %200, %208 : vector<1x128xf32>
    %210 = tpu.concatenate %198, %4, %198 in 0 : vector<1x128xf32>, vector<16x128xf32>, vector<1x128xf32> -> vector<18x128xf32>
    %cst_76 = arith.constant dense<0.000000e+00> : vector<18x128xf32>
    %211 = tpu.matmul %210, %195, %cst_76 {dimension_numbers = #tpu.dot_dimension_numbers<[1], [0], [0], [1], [0, 0, 1, 1], [], []>} : vector<18x128xf32>, vector<128x128xf32>, vector<18x128xf32> -> vector<18x128xf32>
    %cst_77 = arith.constant dense<0.000000e+00> : vector<128xf32>
    %212 = vector.multi_reduction <add>, %211, %cst_77 [0] : vector<18x128xf32> to vector<128xf32>
    %213 = vector.shape_cast %212 : vector<128xf32> to vector<1x128xf32>
    %214 = arith.addf %205, %213 : vector<1x128xf32>
    %215 = arith.mulf %211, %211 : vector<18x128xf32>
    %cst_78 = arith.constant dense<0.000000e+00> : vector<128xf32>
    %216 = vector.multi_reduction <add>, %215, %cst_78 [0] : vector<18x128xf32> to vector<128xf32>
    %217 = vector.shape_cast %216 : vector<128xf32> to vector<1x128xf32>
    %218 = arith.addf %209, %217 : vector<1x128xf32>
    %cst_79 = arith.constant 0.027777778 : f32
    %219 = vector.broadcast %cst_79 : f32 to vector<1x128xf32>
    %220 = arith.mulf %214, %219 : vector<1x128xf32>
    %cst_80 = arith.constant 0.027777778 : f32
    %221 = vector.broadcast %cst_80 : f32 to vector<1x128xf32>
    %222 = arith.mulf %218, %221 : vector<1x128xf32>
    %223 = arith.mulf %220, %220 : vector<1x128xf32>
    %224 = arith.subf %222, %223 : vector<1x128xf32>
    %cst_81 = arith.constant 0.000000e+00 : f32
    %225 = vector.broadcast %cst_81 : f32 to vector<1x128xf32>
    %226 = arith.maximumf %224, %225 : vector<1x128xf32>
    %cst_82 = arith.constant 9.99999974E-6 : f32
    %227 = vector.broadcast %cst_82 : f32 to vector<1x128xf32>
    %228 = arith.addf %226, %227 : vector<1x128xf32>
    %229 = math.rsqrt %228 : vector<1x128xf32>
    %230 = arith.mulf %196, %229 : vector<1x128xf32>
    %231 = arith.mulf %220, %230 : vector<1x128xf32>
    %232 = arith.subf %197, %231 : vector<1x128xf32>
    %233 = vector.broadcast %230 : vector<1x128xf32> to vector<18x128xf32>
    %234 = arith.mulf %202, %233 : vector<18x128xf32>
    %235 = vector.broadcast %232 : vector<1x128xf32> to vector<18x128xf32>
    %236 = arith.addf %234, %235 : vector<18x128xf32>
    %237 = arith.addf %236, %188 : vector<18x128xf32>
    %cst_83 = arith.constant 0.000000e+00 : f32
    %238 = vector.broadcast %cst_83 : f32 to vector<18x128xf32>
    %239 = arith.maximumf %237, %238 : vector<18x128xf32>
    %240 = vector.broadcast %230 : vector<1x128xf32> to vector<18x128xf32>
    %241 = arith.mulf %211, %240 : vector<18x128xf32>
    %242 = vector.broadcast %232 : vector<1x128xf32> to vector<18x128xf32>
    %243 = arith.addf %241, %242 : vector<18x128xf32>
    %244 = arith.addf %243, %194 : vector<18x128xf32>
    %cst_84 = arith.constant 0.000000e+00 : f32
    %245 = vector.broadcast %cst_84 : f32 to vector<18x128xf32>
    %246 = arith.maximumf %244, %245 : vector<18x128xf32>
    %c0_85 = arith.constant 0 : index
    %c0_86 = arith.constant 0 : index
    %247 = vector.load %arg13[%c0_85, %c0_86] : memref<1152x128xf32, #tpu.memory_space<vmem>>, vector<1152x128xf32>
    %c0_87 = arith.constant 0 : index
    %c0_88 = arith.constant 0 : index
    %248 = vector.load %arg14[%c0_87, %c0_88] : memref<1x128xf32, #tpu.memory_space<vmem>>, vector<1x128xf32>
    %c0_89 = arith.constant 0 : index
    %c0_90 = arith.constant 0 : index
    %249 = vector.load %arg15[%c0_89, %c0_90] : memref<1x128xf32, #tpu.memory_space<vmem>>, vector<1x128xf32>
    %cst_91 = arith.constant 0.000000e+00 : f32
    %250 = vector.broadcast %cst_91 : f32 to vector<4x128xf32>
    %cst_92 = arith.constant 0.000000e+00 : f32
    %251 = vector.broadcast %cst_92 : f32 to vector<1x128xf32>
    %cst_93 = arith.constant 0.000000e+00 : f32
    %252 = vector.broadcast %cst_93 : f32 to vector<1x128xf32>
    %253 = tpu.concatenate %250, %239, %250 in 0 : vector<4x128xf32>, vector<18x128xf32>, vector<4x128xf32> -> vector<26x128xf32>
    %254 = vector.extract_strided_slice %253 {offsets = [0, 0], sizes = [18, 128], strides = [1, 1]} : vector<26x128xf32> to vector<18x128xf32>
    %255 = vector.extract_strided_slice %253 {offsets = [1, 0], sizes = [18, 128], strides = [1, 1]} : vector<26x128xf32> to vector<18x128xf32>
    %256 = vector.extract_strided_slice %253 {offsets = [2, 0], sizes = [18, 128], strides = [1, 1]} : vector<26x128xf32> to vector<18x128xf32>
    %257 = vector.extract_strided_slice %253 {offsets = [3, 0], sizes = [18, 128], strides = [1, 1]} : vector<26x128xf32> to vector<18x128xf32>
    %258 = vector.extract_strided_slice %253 {offsets = [4, 0], sizes = [18, 128], strides = [1, 1]} : vector<26x128xf32> to vector<18x128xf32>
    %259 = vector.extract_strided_slice %253 {offsets = [5, 0], sizes = [18, 128], strides = [1, 1]} : vector<26x128xf32> to vector<18x128xf32>
    %260 = vector.extract_strided_slice %253 {offsets = [6, 0], sizes = [18, 128], strides = [1, 1]} : vector<26x128xf32> to vector<18x128xf32>
    %261 = vector.extract_strided_slice %253 {offsets = [7, 0], sizes = [18, 128], strides = [1, 1]} : vector<26x128xf32> to vector<18x128xf32>
    %262 = vector.extract_strided_slice %253 {offsets = [8, 0], sizes = [18, 128], strides = [1, 1]} : vector<26x128xf32> to vector<18x128xf32>
    %263 = tpu.concatenate %254, %255, %256, %257, %258, %259, %260, %261, %262 in 1 : vector<18x128xf32>, vector<18x128xf32>, vector<18x128xf32>, vector<18x128xf32>, vector<18x128xf32>, vector<18x128xf32>, vector<18x128xf32>, vector<18x128xf32>, vector<18x128xf32> -> vector<18x1152xf32>
    %cst_94 = arith.constant dense<0.000000e+00> : vector<18x128xf32>
    %264 = tpu.matmul %263, %247, %cst_94 {dimension_numbers = #tpu.dot_dimension_numbers<[1], [0], [0], [1], [0, 0, 1, 1], [], []>} : vector<18x1152xf32>, vector<1152x128xf32>, vector<18x128xf32> -> vector<18x128xf32>
    %cst_95 = arith.constant dense<0.000000e+00> : vector<128xf32>
    %265 = vector.multi_reduction <add>, %264, %cst_95 [0] : vector<18x128xf32> to vector<128xf32>
    %266 = vector.shape_cast %265 : vector<128xf32> to vector<1x128xf32>
    %267 = arith.addf %251, %266 : vector<1x128xf32>
    %268 = arith.mulf %264, %264 : vector<18x128xf32>
    %cst_96 = arith.constant dense<0.000000e+00> : vector<128xf32>
    %269 = vector.multi_reduction <add>, %268, %cst_96 [0] : vector<18x128xf32> to vector<128xf32>
    %270 = vector.shape_cast %269 : vector<128xf32> to vector<1x128xf32>
    %271 = arith.addf %252, %270 : vector<1x128xf32>
    %272 = tpu.concatenate %250, %246, %250 in 0 : vector<4x128xf32>, vector<18x128xf32>, vector<4x128xf32> -> vector<26x128xf32>
    %273 = vector.extract_strided_slice %272 {offsets = [0, 0], sizes = [18, 128], strides = [1, 1]} : vector<26x128xf32> to vector<18x128xf32>
    %274 = vector.extract_strided_slice %272 {offsets = [1, 0], sizes = [18, 128], strides = [1, 1]} : vector<26x128xf32> to vector<18x128xf32>
    %275 = vector.extract_strided_slice %272 {offsets = [2, 0], sizes = [18, 128], strides = [1, 1]} : vector<26x128xf32> to vector<18x128xf32>
    %276 = vector.extract_strided_slice %272 {offsets = [3, 0], sizes = [18, 128], strides = [1, 1]} : vector<26x128xf32> to vector<18x128xf32>
    %277 = vector.extract_strided_slice %272 {offsets = [4, 0], sizes = [18, 128], strides = [1, 1]} : vector<26x128xf32> to vector<18x128xf32>
    %278 = vector.extract_strided_slice %272 {offsets = [5, 0], sizes = [18, 128], strides = [1, 1]} : vector<26x128xf32> to vector<18x128xf32>
    %279 = vector.extract_strided_slice %272 {offsets = [6, 0], sizes = [18, 128], strides = [1, 1]} : vector<26x128xf32> to vector<18x128xf32>
    %280 = vector.extract_strided_slice %272 {offsets = [7, 0], sizes = [18, 128], strides = [1, 1]} : vector<26x128xf32> to vector<18x128xf32>
    %281 = vector.extract_strided_slice %272 {offsets = [8, 0], sizes = [18, 128], strides = [1, 1]} : vector<26x128xf32> to vector<18x128xf32>
    %282 = tpu.concatenate %273, %274, %275, %276, %277, %278, %279, %280, %281 in 1 : vector<18x128xf32>, vector<18x128xf32>, vector<18x128xf32>, vector<18x128xf32>, vector<18x128xf32>, vector<18x128xf32>, vector<18x128xf32>, vector<18x128xf32>, vector<18x128xf32> -> vector<18x1152xf32>
    %cst_97 = arith.constant dense<0.000000e+00> : vector<18x128xf32>
    %283 = tpu.matmul %282, %247, %cst_97 {dimension_numbers = #tpu.dot_dimension_numbers<[1], [0], [0], [1], [0, 0, 1, 1], [], []>} : vector<18x1152xf32>, vector<1152x128xf32>, vector<18x128xf32> -> vector<18x128xf32>
    %cst_98 = arith.constant dense<0.000000e+00> : vector<128xf32>
    %284 = vector.multi_reduction <add>, %283, %cst_98 [0] : vector<18x128xf32> to vector<128xf32>
    %285 = vector.shape_cast %284 : vector<128xf32> to vector<1x128xf32>
    %286 = arith.addf %267, %285 : vector<1x128xf32>
    %287 = arith.mulf %283, %283 : vector<18x128xf32>
    %cst_99 = arith.constant dense<0.000000e+00> : vector<128xf32>
    %288 = vector.multi_reduction <add>, %287, %cst_99 [0] : vector<18x128xf32> to vector<128xf32>
    %289 = vector.shape_cast %288 : vector<128xf32> to vector<1x128xf32>
    %290 = arith.addf %271, %289 : vector<1x128xf32>
    %cst_100 = arith.constant 0.027777778 : f32
    %291 = vector.broadcast %cst_100 : f32 to vector<1x128xf32>
    %292 = arith.mulf %286, %291 : vector<1x128xf32>
    %cst_101 = arith.constant 0.027777778 : f32
    %293 = vector.broadcast %cst_101 : f32 to vector<1x128xf32>
    %294 = arith.mulf %290, %293 : vector<1x128xf32>
    %295 = arith.mulf %292, %292 : vector<1x128xf32>
    %296 = arith.subf %294, %295 : vector<1x128xf32>
    %cst_102 = arith.constant 0.000000e+00 : f32
    %297 = vector.broadcast %cst_102 : f32 to vector<1x128xf32>
    %298 = arith.maximumf %296, %297 : vector<1x128xf32>
    %cst_103 = arith.constant 9.99999974E-6 : f32
    %299 = vector.broadcast %cst_103 : f32 to vector<1x128xf32>
    %300 = arith.addf %298, %299 : vector<1x128xf32>
    %301 = math.rsqrt %300 : vector<1x128xf32>
    %302 = arith.mulf %248, %301 : vector<1x128xf32>
    %303 = arith.mulf %292, %302 : vector<1x128xf32>
    %304 = arith.subf %249, %303 : vector<1x128xf32>
    %305 = vector.broadcast %302 : vector<1x128xf32> to vector<18x128xf32>
    %306 = arith.mulf %264, %305 : vector<18x128xf32>
    %307 = vector.broadcast %304 : vector<1x128xf32> to vector<18x128xf32>
    %308 = arith.addf %306, %307 : vector<18x128xf32>
    %cst_104 = arith.constant 0.000000e+00 : f32
    %309 = vector.broadcast %cst_104 : f32 to vector<18x128xf32>
    %310 = arith.maximumf %308, %309 : vector<18x128xf32>
    %311 = vector.broadcast %302 : vector<1x128xf32> to vector<18x128xf32>
    %312 = arith.mulf %283, %311 : vector<18x128xf32>
    %313 = vector.broadcast %304 : vector<1x128xf32> to vector<18x128xf32>
    %314 = arith.addf %312, %313 : vector<18x128xf32>
    %cst_105 = arith.constant 0.000000e+00 : f32
    %315 = vector.broadcast %cst_105 : f32 to vector<18x128xf32>
    %316 = arith.maximumf %314, %315 : vector<18x128xf32>
    %c0_106 = arith.constant 0 : index
    %c0_107 = arith.constant 0 : index
    %317 = vector.load %arg16[%c0_106, %c0_107] : memref<640x128xf32, #tpu.memory_space<vmem>>, vector<640x128xf32>
    %c0_108 = arith.constant 0 : index
    %c0_109 = arith.constant 0 : index
    %318 = vector.load %arg17[%c0_108, %c0_109] : memref<1x128xf32, #tpu.memory_space<vmem>>, vector<1x128xf32>
    %c0_110 = arith.constant 0 : index
    %c0_111 = arith.constant 0 : index
    %319 = vector.load %arg18[%c0_110, %c0_111] : memref<1x128xf32, #tpu.memory_space<vmem>>, vector<1x128xf32>
    %cst_112 = arith.constant 0.000000e+00 : f32
    %320 = vector.broadcast %cst_112 : f32 to vector<2x128xf32>
    %cst_113 = arith.constant 0.000000e+00 : f32
    %321 = vector.broadcast %cst_113 : f32 to vector<1x128xf32>
    %cst_114 = arith.constant 0.000000e+00 : f32
    %322 = vector.broadcast %cst_114 : f32 to vector<1x128xf32>
    %323 = tpu.concatenate %320, %310, %320 in 0 : vector<2x128xf32>, vector<18x128xf32>, vector<2x128xf32> -> vector<22x128xf32>
    %324 = vector.extract_strided_slice %323 {offsets = [0, 0], sizes = [18, 128], strides = [1, 1]} : vector<22x128xf32> to vector<18x128xf32>
    %325 = vector.extract_strided_slice %323 {offsets = [1, 0], sizes = [18, 128], strides = [1, 1]} : vector<22x128xf32> to vector<18x128xf32>
    %326 = vector.extract_strided_slice %323 {offsets = [2, 0], sizes = [18, 128], strides = [1, 1]} : vector<22x128xf32> to vector<18x128xf32>
    %327 = vector.extract_strided_slice %323 {offsets = [3, 0], sizes = [18, 128], strides = [1, 1]} : vector<22x128xf32> to vector<18x128xf32>
    %328 = vector.extract_strided_slice %323 {offsets = [4, 0], sizes = [18, 128], strides = [1, 1]} : vector<22x128xf32> to vector<18x128xf32>
    %329 = tpu.concatenate %324, %325, %326, %327, %328 in 1 : vector<18x128xf32>, vector<18x128xf32>, vector<18x128xf32>, vector<18x128xf32>, vector<18x128xf32> -> vector<18x640xf32>
    %cst_115 = arith.constant dense<0.000000e+00> : vector<18x128xf32>
    %330 = tpu.matmul %329, %317, %cst_115 {dimension_numbers = #tpu.dot_dimension_numbers<[1], [0], [0], [1], [0, 0, 1, 1], [], []>} : vector<18x640xf32>, vector<640x128xf32>, vector<18x128xf32> -> vector<18x128xf32>
    %cst_116 = arith.constant dense<0.000000e+00> : vector<128xf32>
    %331 = vector.multi_reduction <add>, %330, %cst_116 [0] : vector<18x128xf32> to vector<128xf32>
    %332 = vector.shape_cast %331 : vector<128xf32> to vector<1x128xf32>
    %333 = arith.addf %321, %332 : vector<1x128xf32>
    %334 = arith.mulf %330, %330 : vector<18x128xf32>
    %cst_117 = arith.constant dense<0.000000e+00> : vector<128xf32>
    %335 = vector.multi_reduction <add>, %334, %cst_117 [0] : vector<18x128xf32> to vector<128xf32>
    %336 = vector.shape_cast %335 : vector<128xf32> to vector<1x128xf32>
    %337 = arith.addf %322, %336 : vector<1x128xf32>
    %338 = tpu.concatenate %320, %316, %320 in 0 : vector<2x128xf32>, vector<18x128xf32>, vector<2x128xf32> -> vector<22x128xf32>
    %339 = vector.extract_strided_slice %338 {offsets = [0, 0], sizes = [18, 128], strides = [1, 1]} : vector<22x128xf32> to vector<18x128xf32>
    %340 = vector.extract_strided_slice %338 {offsets = [1, 0], sizes = [18, 128], strides = [1, 1]} : vector<22x128xf32> to vector<18x128xf32>
    %341 = vector.extract_strided_slice %338 {offsets = [2, 0], sizes = [18, 128], strides = [1, 1]} : vector<22x128xf32> to vector<18x128xf32>
    %342 = vector.extract_strided_slice %338 {offsets = [3, 0], sizes = [18, 128], strides = [1, 1]} : vector<22x128xf32> to vector<18x128xf32>
    %343 = vector.extract_strided_slice %338 {offsets = [4, 0], sizes = [18, 128], strides = [1, 1]} : vector<22x128xf32> to vector<18x128xf32>
    %344 = tpu.concatenate %339, %340, %341, %342, %343 in 1 : vector<18x128xf32>, vector<18x128xf32>, vector<18x128xf32>, vector<18x128xf32>, vector<18x128xf32> -> vector<18x640xf32>
    %cst_118 = arith.constant dense<0.000000e+00> : vector<18x128xf32>
    %345 = tpu.matmul %344, %317, %cst_118 {dimension_numbers = #tpu.dot_dimension_numbers<[1], [0], [0], [1], [0, 0, 1, 1], [], []>} : vector<18x640xf32>, vector<640x128xf32>, vector<18x128xf32> -> vector<18x128xf32>
    %cst_119 = arith.constant dense<0.000000e+00> : vector<128xf32>
    %346 = vector.multi_reduction <add>, %345, %cst_119 [0] : vector<18x128xf32> to vector<128xf32>
    %347 = vector.shape_cast %346 : vector<128xf32> to vector<1x128xf32>
    %348 = arith.addf %333, %347 : vector<1x128xf32>
    %349 = arith.mulf %345, %345 : vector<18x128xf32>
    %cst_120 = arith.constant dense<0.000000e+00> : vector<128xf32>
    %350 = vector.multi_reduction <add>, %349, %cst_120 [0] : vector<18x128xf32> to vector<128xf32>
    %351 = vector.shape_cast %350 : vector<128xf32> to vector<1x128xf32>
    %352 = arith.addf %337, %351 : vector<1x128xf32>
    %cst_121 = arith.constant 0.027777778 : f32
    %353 = vector.broadcast %cst_121 : f32 to vector<1x128xf32>
    %354 = arith.mulf %348, %353 : vector<1x128xf32>
    %cst_122 = arith.constant 0.027777778 : f32
    %355 = vector.broadcast %cst_122 : f32 to vector<1x128xf32>
    %356 = arith.mulf %352, %355 : vector<1x128xf32>
    %357 = arith.mulf %354, %354 : vector<1x128xf32>
    %358 = arith.subf %356, %357 : vector<1x128xf32>
    %cst_123 = arith.constant 0.000000e+00 : f32
    %359 = vector.broadcast %cst_123 : f32 to vector<1x128xf32>
    %360 = arith.maximumf %358, %359 : vector<1x128xf32>
    %cst_124 = arith.constant 9.99999974E-6 : f32
    %361 = vector.broadcast %cst_124 : f32 to vector<1x128xf32>
    %362 = arith.addf %360, %361 : vector<1x128xf32>
    %363 = math.rsqrt %362 : vector<1x128xf32>
    %364 = arith.mulf %318, %363 : vector<1x128xf32>
    %365 = arith.mulf %354, %364 : vector<1x128xf32>
    %366 = arith.subf %319, %365 : vector<1x128xf32>
    %367 = vector.broadcast %364 : vector<1x128xf32> to vector<18x128xf32>
    %368 = arith.mulf %330, %367 : vector<18x128xf32>
    %369 = vector.broadcast %366 : vector<1x128xf32> to vector<18x128xf32>
    %370 = arith.addf %368, %369 : vector<18x128xf32>
    %cst_125 = arith.constant 0.000000e+00 : f32
    %371 = vector.broadcast %cst_125 : f32 to vector<18x128xf32>
    %372 = arith.maximumf %370, %371 : vector<18x128xf32>
    %373 = vector.broadcast %364 : vector<1x128xf32> to vector<18x128xf32>
    %374 = arith.mulf %345, %373 : vector<18x128xf32>
    %375 = vector.broadcast %366 : vector<1x128xf32> to vector<18x128xf32>
    %376 = arith.addf %374, %375 : vector<18x128xf32>
    %cst_126 = arith.constant 0.000000e+00 : f32
    %377 = vector.broadcast %cst_126 : f32 to vector<18x128xf32>
    %378 = arith.maximumf %376, %377 : vector<18x128xf32>
    %c0_127 = arith.constant 0 : index
    %c0_128 = arith.constant 0 : index
    %379 = vector.load %arg19[%c0_127, %c0_128] : memref<384x128xf32, #tpu.memory_space<vmem>>, vector<384x128xf32>
    %c0_129 = arith.constant 0 : index
    %c0_130 = arith.constant 0 : index
    %380 = vector.load %arg20[%c0_129, %c0_130] : memref<1x128xf32, #tpu.memory_space<vmem>>, vector<1x128xf32>
    %c0_131 = arith.constant 0 : index
    %c0_132 = arith.constant 0 : index
    %381 = vector.load %arg21[%c0_131, %c0_132] : memref<1x128xf32, #tpu.memory_space<vmem>>, vector<1x128xf32>
    %cst_133 = arith.constant 0.000000e+00 : f32
    %382 = vector.broadcast %cst_133 : f32 to vector<2x128xf32>
    %cst_134 = arith.constant 0.000000e+00 : f32
    %383 = vector.broadcast %cst_134 : f32 to vector<1x128xf32>
    %cst_135 = arith.constant 0.000000e+00 : f32
    %384 = vector.broadcast %cst_135 : f32 to vector<1x128xf32>
    %385 = tpu.concatenate %382, %372, %382 in 0 : vector<2x128xf32>, vector<18x128xf32>, vector<2x128xf32> -> vector<22x128xf32>
    %386 = vector.extract_strided_slice %385 {offsets = [0, 0], sizes = [20, 128], strides = [1, 1]} : vector<22x128xf32> to vector<20x128xf32>
    %387 = vector.extract_strided_slice %385 {offsets = [1, 0], sizes = [20, 128], strides = [1, 1]} : vector<22x128xf32> to vector<20x128xf32>
    %388 = vector.extract_strided_slice %385 {offsets = [2, 0], sizes = [20, 128], strides = [1, 1]} : vector<22x128xf32> to vector<20x128xf32>
    %389 = tpu.concatenate %386, %387, %388 in 1 : vector<20x128xf32>, vector<20x128xf32>, vector<20x128xf32> -> vector<20x384xf32>
    %cst_136 = arith.constant dense<0.000000e+00> : vector<20x128xf32>
    %390 = tpu.matmul %389, %379, %cst_136 {dimension_numbers = #tpu.dot_dimension_numbers<[1], [0], [0], [1], [0, 0, 1, 1], [], []>} : vector<20x384xf32>, vector<384x128xf32>, vector<20x128xf32> -> vector<20x128xf32>
    %cst_137 = arith.constant dense<0.000000e+00> : vector<128xf32>
    %391 = vector.multi_reduction <add>, %390, %cst_137 [0] : vector<20x128xf32> to vector<128xf32>
    %392 = vector.shape_cast %391 : vector<128xf32> to vector<1x128xf32>
    %393 = arith.addf %383, %392 : vector<1x128xf32>
    %394 = arith.mulf %390, %390 : vector<20x128xf32>
    %cst_138 = arith.constant dense<0.000000e+00> : vector<128xf32>
    %395 = vector.multi_reduction <add>, %394, %cst_138 [0] : vector<20x128xf32> to vector<128xf32>
    %396 = vector.shape_cast %395 : vector<128xf32> to vector<1x128xf32>
    %397 = arith.addf %384, %396 : vector<1x128xf32>
    %398 = tpu.concatenate %382, %378, %382 in 0 : vector<2x128xf32>, vector<18x128xf32>, vector<2x128xf32> -> vector<22x128xf32>
    %399 = vector.extract_strided_slice %398 {offsets = [0, 0], sizes = [20, 128], strides = [1, 1]} : vector<22x128xf32> to vector<20x128xf32>
    %400 = vector.extract_strided_slice %398 {offsets = [1, 0], sizes = [20, 128], strides = [1, 1]} : vector<22x128xf32> to vector<20x128xf32>
    %401 = vector.extract_strided_slice %398 {offsets = [2, 0], sizes = [20, 128], strides = [1, 1]} : vector<22x128xf32> to vector<20x128xf32>
    %402 = tpu.concatenate %399, %400, %401 in 1 : vector<20x128xf32>, vector<20x128xf32>, vector<20x128xf32> -> vector<20x384xf32>
    %cst_139 = arith.constant dense<0.000000e+00> : vector<20x128xf32>
    %403 = tpu.matmul %402, %379, %cst_139 {dimension_numbers = #tpu.dot_dimension_numbers<[1], [0], [0], [1], [0, 0, 1, 1], [], []>} : vector<20x384xf32>, vector<384x128xf32>, vector<20x128xf32> -> vector<20x128xf32>
    %cst_140 = arith.constant dense<0.000000e+00> : vector<128xf32>
    %404 = vector.multi_reduction <add>, %403, %cst_140 [0] : vector<20x128xf32> to vector<128xf32>
    %405 = vector.shape_cast %404 : vector<128xf32> to vector<1x128xf32>
    %406 = arith.addf %393, %405 : vector<1x128xf32>
    %407 = arith.mulf %403, %403 : vector<20x128xf32>
    %cst_141 = arith.constant dense<0.000000e+00> : vector<128xf32>
    %408 = vector.multi_reduction <add>, %407, %cst_141 [0] : vector<20x128xf32> to vector<128xf32>
    %409 = vector.shape_cast %408 : vector<128xf32> to vector<1x128xf32>
    %410 = arith.addf %397, %409 : vector<1x128xf32>
    %cst_142 = arith.constant 2.500000e-02 : f32
    %411 = vector.broadcast %cst_142 : f32 to vector<1x128xf32>
    %412 = arith.mulf %406, %411 : vector<1x128xf32>
    %cst_143 = arith.constant 2.500000e-02 : f32
    %413 = vector.broadcast %cst_143 : f32 to vector<1x128xf32>
    %414 = arith.mulf %410, %413 : vector<1x128xf32>
    %415 = arith.mulf %412, %412 : vector<1x128xf32>
    %416 = arith.subf %414, %415 : vector<1x128xf32>
    %cst_144 = arith.constant 0.000000e+00 : f32
    %417 = vector.broadcast %cst_144 : f32 to vector<1x128xf32>
    %418 = arith.maximumf %416, %417 : vector<1x128xf32>
    %cst_145 = arith.constant 9.99999974E-6 : f32
    %419 = vector.broadcast %cst_145 : f32 to vector<1x128xf32>
    %420 = arith.addf %418, %419 : vector<1x128xf32>
    %421 = math.rsqrt %420 : vector<1x128xf32>
    %422 = arith.mulf %380, %421 : vector<1x128xf32>
    %423 = arith.mulf %412, %422 : vector<1x128xf32>
    %424 = arith.subf %381, %423 : vector<1x128xf32>
    %425 = vector.broadcast %422 : vector<1x128xf32> to vector<20x128xf32>
    %426 = arith.mulf %390, %425 : vector<20x128xf32>
    %427 = vector.broadcast %424 : vector<1x128xf32> to vector<20x128xf32>
    %428 = arith.addf %426, %427 : vector<20x128xf32>
    %cst_146 = arith.constant 0.000000e+00 : f32
    %429 = vector.broadcast %cst_146 : f32 to vector<20x128xf32>
    %430 = arith.maximumf %428, %429 : vector<20x128xf32>
    %431 = vector.broadcast %422 : vector<1x128xf32> to vector<20x128xf32>
    %432 = arith.mulf %403, %431 : vector<20x128xf32>
    %433 = vector.broadcast %424 : vector<1x128xf32> to vector<20x128xf32>
    %434 = arith.addf %432, %433 : vector<20x128xf32>
    %cst_147 = arith.constant 0.000000e+00 : f32
    %435 = vector.broadcast %cst_147 : f32 to vector<20x128xf32>
    %436 = arith.maximumf %434, %435 : vector<20x128xf32>
    %c0_148 = arith.constant 0 : index
    %c0_149 = arith.constant 0 : index
    %437 = vector.load %arg22[%c0_148, %c0_149] : memref<128x128xf32, #tpu.memory_space<vmem>>, vector<128x128xf32>
    %c0_150 = arith.constant 0 : index
    %c0_151 = arith.constant 0 : index
    %438 = vector.load %arg23[%c0_150, %c0_151] : memref<1x128xf32, #tpu.memory_space<vmem>>, vector<1x128xf32>
    %c0_152 = arith.constant 0 : index
    %c0_153 = arith.constant 0 : index
    %439 = vector.load %arg24[%c0_152, %c0_153] : memref<1x128xf32, #tpu.memory_space<vmem>>, vector<1x128xf32>
    %cst_154 = arith.constant 0.000000e+00 : f32
    %440 = vector.broadcast %cst_154 : f32 to vector<1x128xf32>
    %cst_155 = arith.constant 0.000000e+00 : f32
    %441 = vector.broadcast %cst_155 : f32 to vector<1x128xf32>
    %cst_156 = arith.constant 0.000000e+00 : f32
    %442 = vector.broadcast %cst_156 : f32 to vector<1x128xf32>
    %443 = tpu.concatenate %440, %239, %440 in 0 : vector<1x128xf32>, vector<18x128xf32>, vector<1x128xf32> -> vector<20x128xf32>
    %cst_157 = arith.constant dense<0.000000e+00> : vector<20x128xf32>
    %444 = tpu.matmul %443, %437, %cst_157 {dimension_numbers = #tpu.dot_dimension_numbers<[1], [0], [0], [1], [0, 0, 1, 1], [], []>} : vector<20x128xf32>, vector<128x128xf32>, vector<20x128xf32> -> vector<20x128xf32>
    %cst_158 = arith.constant dense<0.000000e+00> : vector<128xf32>
    %445 = vector.multi_reduction <add>, %444, %cst_158 [0] : vector<20x128xf32> to vector<128xf32>
    %446 = vector.shape_cast %445 : vector<128xf32> to vector<1x128xf32>
    %447 = arith.addf %441, %446 : vector<1x128xf32>
    %448 = arith.mulf %444, %444 : vector<20x128xf32>
    %cst_159 = arith.constant dense<0.000000e+00> : vector<128xf32>
    %449 = vector.multi_reduction <add>, %448, %cst_159 [0] : vector<20x128xf32> to vector<128xf32>
    %450 = vector.shape_cast %449 : vector<128xf32> to vector<1x128xf32>
    %451 = arith.addf %442, %450 : vector<1x128xf32>
    %452 = tpu.concatenate %440, %246, %440 in 0 : vector<1x128xf32>, vector<18x128xf32>, vector<1x128xf32> -> vector<20x128xf32>
    %cst_160 = arith.constant dense<0.000000e+00> : vector<20x128xf32>
    %453 = tpu.matmul %452, %437, %cst_160 {dimension_numbers = #tpu.dot_dimension_numbers<[1], [0], [0], [1], [0, 0, 1, 1], [], []>} : vector<20x128xf32>, vector<128x128xf32>, vector<20x128xf32> -> vector<20x128xf32>
    %cst_161 = arith.constant dense<0.000000e+00> : vector<128xf32>
    %454 = vector.multi_reduction <add>, %453, %cst_161 [0] : vector<20x128xf32> to vector<128xf32>
    %455 = vector.shape_cast %454 : vector<128xf32> to vector<1x128xf32>
    %456 = arith.addf %447, %455 : vector<1x128xf32>
    %457 = arith.mulf %453, %453 : vector<20x128xf32>
    %cst_162 = arith.constant dense<0.000000e+00> : vector<128xf32>
    %458 = vector.multi_reduction <add>, %457, %cst_162 [0] : vector<20x128xf32> to vector<128xf32>
    %459 = vector.shape_cast %458 : vector<128xf32> to vector<1x128xf32>
    %460 = arith.addf %451, %459 : vector<1x128xf32>
    %cst_163 = arith.constant 2.500000e-02 : f32
    %461 = vector.broadcast %cst_163 : f32 to vector<1x128xf32>
    %462 = arith.mulf %456, %461 : vector<1x128xf32>
    %cst_164 = arith.constant 2.500000e-02 : f32
    %463 = vector.broadcast %cst_164 : f32 to vector<1x128xf32>
    %464 = arith.mulf %460, %463 : vector<1x128xf32>
    %465 = arith.mulf %462, %462 : vector<1x128xf32>
    %466 = arith.subf %464, %465 : vector<1x128xf32>
    %cst_165 = arith.constant 0.000000e+00 : f32
    %467 = vector.broadcast %cst_165 : f32 to vector<1x128xf32>
    %468 = arith.maximumf %466, %467 : vector<1x128xf32>
    %cst_166 = arith.constant 9.99999974E-6 : f32
    %469 = vector.broadcast %cst_166 : f32 to vector<1x128xf32>
    %470 = arith.addf %468, %469 : vector<1x128xf32>
    %471 = math.rsqrt %470 : vector<1x128xf32>
    %472 = arith.mulf %438, %471 : vector<1x128xf32>
    %473 = arith.mulf %462, %472 : vector<1x128xf32>
    %474 = arith.subf %439, %473 : vector<1x128xf32>
    %475 = vector.broadcast %472 : vector<1x128xf32> to vector<20x128xf32>
    %476 = arith.mulf %444, %475 : vector<20x128xf32>
    %477 = vector.broadcast %474 : vector<1x128xf32> to vector<20x128xf32>
    %478 = arith.addf %476, %477 : vector<20x128xf32>
    %479 = arith.addf %478, %430 : vector<20x128xf32>
    %cst_167 = arith.constant 0.000000e+00 : f32
    %480 = vector.broadcast %cst_167 : f32 to vector<20x128xf32>
    %481 = arith.maximumf %479, %480 : vector<20x128xf32>
    %482 = vector.broadcast %472 : vector<1x128xf32> to vector<20x128xf32>
    %483 = arith.mulf %453, %482 : vector<20x128xf32>
    %484 = vector.broadcast %474 : vector<1x128xf32> to vector<20x128xf32>
    %485 = arith.addf %483, %484 : vector<20x128xf32>
    %486 = arith.addf %485, %436 : vector<20x128xf32>
    %cst_168 = arith.constant 0.000000e+00 : f32
    %487 = vector.broadcast %cst_168 : f32 to vector<20x128xf32>
    %488 = arith.maximumf %486, %487 : vector<20x128xf32>
    %c0_169 = arith.constant 0 : index
    %c0_170 = arith.constant 0 : index
    %489 = vector.load %arg25[%c0_169, %c0_170] : memref<1152x128xf32, #tpu.memory_space<vmem>>, vector<1152x128xf32>
    %c0_171 = arith.constant 0 : index
    %c0_172 = arith.constant 0 : index
    %490 = vector.load %arg26[%c0_171, %c0_172] : memref<1x128xf32, #tpu.memory_space<vmem>>, vector<1x128xf32>
    %c0_173 = arith.constant 0 : index
    %c0_174 = arith.constant 0 : index
    %491 = vector.load %arg27[%c0_173, %c0_174] : memref<1x128xf32, #tpu.memory_space<vmem>>, vector<1x128xf32>
    %cst_175 = arith.constant 0.000000e+00 : f32
    %492 = vector.broadcast %cst_175 : f32 to vector<4x128xf32>
    %cst_176 = arith.constant 0.000000e+00 : f32
    %493 = vector.broadcast %cst_176 : f32 to vector<1x128xf32>
    %cst_177 = arith.constant 0.000000e+00 : f32
    %494 = vector.broadcast %cst_177 : f32 to vector<1x128xf32>
    %495 = tpu.concatenate %492, %481, %492 in 0 : vector<4x128xf32>, vector<20x128xf32>, vector<4x128xf32> -> vector<28x128xf32>
    %496 = vector.extract_strided_slice %495 {offsets = [0, 0], sizes = [20, 128], strides = [1, 1]} : vector<28x128xf32> to vector<20x128xf32>
    %497 = vector.extract_strided_slice %495 {offsets = [1, 0], sizes = [20, 128], strides = [1, 1]} : vector<28x128xf32> to vector<20x128xf32>
    %498 = vector.extract_strided_slice %495 {offsets = [2, 0], sizes = [20, 128], strides = [1, 1]} : vector<28x128xf32> to vector<20x128xf32>
    %499 = vector.extract_strided_slice %495 {offsets = [3, 0], sizes = [20, 128], strides = [1, 1]} : vector<28x128xf32> to vector<20x128xf32>
    %500 = vector.extract_strided_slice %495 {offsets = [4, 0], sizes = [20, 128], strides = [1, 1]} : vector<28x128xf32> to vector<20x128xf32>
    %501 = vector.extract_strided_slice %495 {offsets = [5, 0], sizes = [20, 128], strides = [1, 1]} : vector<28x128xf32> to vector<20x128xf32>
    %502 = vector.extract_strided_slice %495 {offsets = [6, 0], sizes = [20, 128], strides = [1, 1]} : vector<28x128xf32> to vector<20x128xf32>
    %503 = vector.extract_strided_slice %495 {offsets = [7, 0], sizes = [20, 128], strides = [1, 1]} : vector<28x128xf32> to vector<20x128xf32>
    %504 = vector.extract_strided_slice %495 {offsets = [8, 0], sizes = [20, 128], strides = [1, 1]} : vector<28x128xf32> to vector<20x128xf32>
    %505 = tpu.concatenate %496, %497, %498, %499, %500, %501, %502, %503, %504 in 1 : vector<20x128xf32>, vector<20x128xf32>, vector<20x128xf32>, vector<20x128xf32>, vector<20x128xf32>, vector<20x128xf32>, vector<20x128xf32>, vector<20x128xf32>, vector<20x128xf32> -> vector<20x1152xf32>
    %cst_178 = arith.constant dense<0.000000e+00> : vector<20x128xf32>
    %506 = tpu.matmul %505, %489, %cst_178 {dimension_numbers = #tpu.dot_dimension_numbers<[1], [0], [0], [1], [0, 0, 1, 1], [], []>} : vector<20x1152xf32>, vector<1152x128xf32>, vector<20x128xf32> -> vector<20x128xf32>
    %cst_179 = arith.constant dense<0.000000e+00> : vector<128xf32>
    %507 = vector.multi_reduction <add>, %506, %cst_179 [0] : vector<20x128xf32> to vector<128xf32>
    %508 = vector.shape_cast %507 : vector<128xf32> to vector<1x128xf32>
    %509 = arith.addf %493, %508 : vector<1x128xf32>
    %510 = arith.mulf %506, %506 : vector<20x128xf32>
    %cst_180 = arith.constant dense<0.000000e+00> : vector<128xf32>
    %511 = vector.multi_reduction <add>, %510, %cst_180 [0] : vector<20x128xf32> to vector<128xf32>
    %512 = vector.shape_cast %511 : vector<128xf32> to vector<1x128xf32>
    %513 = arith.addf %494, %512 : vector<1x128xf32>
    %514 = tpu.concatenate %492, %488, %492 in 0 : vector<4x128xf32>, vector<20x128xf32>, vector<4x128xf32> -> vector<28x128xf32>
    %515 = vector.extract_strided_slice %514 {offsets = [0, 0], sizes = [20, 128], strides = [1, 1]} : vector<28x128xf32> to vector<20x128xf32>
    %516 = vector.extract_strided_slice %514 {offsets = [1, 0], sizes = [20, 128], strides = [1, 1]} : vector<28x128xf32> to vector<20x128xf32>
    %517 = vector.extract_strided_slice %514 {offsets = [2, 0], sizes = [20, 128], strides = [1, 1]} : vector<28x128xf32> to vector<20x128xf32>
    %518 = vector.extract_strided_slice %514 {offsets = [3, 0], sizes = [20, 128], strides = [1, 1]} : vector<28x128xf32> to vector<20x128xf32>
    %519 = vector.extract_strided_slice %514 {offsets = [4, 0], sizes = [20, 128], strides = [1, 1]} : vector<28x128xf32> to vector<20x128xf32>
    %520 = vector.extract_strided_slice %514 {offsets = [5, 0], sizes = [20, 128], strides = [1, 1]} : vector<28x128xf32> to vector<20x128xf32>
    %521 = vector.extract_strided_slice %514 {offsets = [6, 0], sizes = [20, 128], strides = [1, 1]} : vector<28x128xf32> to vector<20x128xf32>
    %522 = vector.extract_strided_slice %514 {offsets = [7, 0], sizes = [20, 128], strides = [1, 1]} : vector<28x128xf32> to vector<20x128xf32>
    %523 = vector.extract_strided_slice %514 {offsets = [8, 0], sizes = [20, 128], strides = [1, 1]} : vector<28x128xf32> to vector<20x128xf32>
    %524 = tpu.concatenate %515, %516, %517, %518, %519, %520, %521, %522, %523 in 1 : vector<20x128xf32>, vector<20x128xf32>, vector<20x128xf32>, vector<20x128xf32>, vector<20x128xf32>, vector<20x128xf32>, vector<20x128xf32>, vector<20x128xf32>, vector<20x128xf32> -> vector<20x1152xf32>
    %cst_181 = arith.constant dense<0.000000e+00> : vector<20x128xf32>
    %525 = tpu.matmul %524, %489, %cst_181 {dimension_numbers = #tpu.dot_dimension_numbers<[1], [0], [0], [1], [0, 0, 1, 1], [], []>} : vector<20x1152xf32>, vector<1152x128xf32>, vector<20x128xf32> -> vector<20x128xf32>
    %cst_182 = arith.constant dense<0.000000e+00> : vector<128xf32>
    %526 = vector.multi_reduction <add>, %525, %cst_182 [0] : vector<20x128xf32> to vector<128xf32>
    %527 = vector.shape_cast %526 : vector<128xf32> to vector<1x128xf32>
    %528 = arith.addf %509, %527 : vector<1x128xf32>
    %529 = arith.mulf %525, %525 : vector<20x128xf32>
    %cst_183 = arith.constant dense<0.000000e+00> : vector<128xf32>
    %530 = vector.multi_reduction <add>, %529, %cst_183 [0] : vector<20x128xf32> to vector<128xf32>
    %531 = vector.shape_cast %530 : vector<128xf32> to vector<1x128xf32>
    %532 = arith.addf %513, %531 : vector<1x128xf32>
    %cst_184 = arith.constant 2.500000e-02 : f32
    %533 = vector.broadcast %cst_184 : f32 to vector<1x128xf32>
    %534 = arith.mulf %528, %533 : vector<1x128xf32>
    %cst_185 = arith.constant 2.500000e-02 : f32
    %535 = vector.broadcast %cst_185 : f32 to vector<1x128xf32>
    %536 = arith.mulf %532, %535 : vector<1x128xf32>
    %537 = arith.mulf %534, %534 : vector<1x128xf32>
    %538 = arith.subf %536, %537 : vector<1x128xf32>
    %cst_186 = arith.constant 0.000000e+00 : f32
    %539 = vector.broadcast %cst_186 : f32 to vector<1x128xf32>
    %540 = arith.maximumf %538, %539 : vector<1x128xf32>
    %cst_187 = arith.constant 9.99999974E-6 : f32
    %541 = vector.broadcast %cst_187 : f32 to vector<1x128xf32>
    %542 = arith.addf %540, %541 : vector<1x128xf32>
    %543 = math.rsqrt %542 : vector<1x128xf32>
    %544 = arith.mulf %490, %543 : vector<1x128xf32>
    %545 = arith.mulf %534, %544 : vector<1x128xf32>
    %546 = arith.subf %491, %545 : vector<1x128xf32>
    %547 = vector.broadcast %544 : vector<1x128xf32> to vector<20x128xf32>
    %548 = arith.mulf %506, %547 : vector<20x128xf32>
    %549 = vector.broadcast %546 : vector<1x128xf32> to vector<20x128xf32>
    %550 = arith.addf %548, %549 : vector<20x128xf32>
    %cst_188 = arith.constant 0.000000e+00 : f32
    %551 = vector.broadcast %cst_188 : f32 to vector<20x128xf32>
    %552 = arith.maximumf %550, %551 : vector<20x128xf32>
    %553 = vector.broadcast %544 : vector<1x128xf32> to vector<20x128xf32>
    %554 = arith.mulf %525, %553 : vector<20x128xf32>
    %555 = vector.broadcast %546 : vector<1x128xf32> to vector<20x128xf32>
    %556 = arith.addf %554, %555 : vector<20x128xf32>
    %cst_189 = arith.constant 0.000000e+00 : f32
    %557 = vector.broadcast %cst_189 : f32 to vector<20x128xf32>
    %558 = arith.maximumf %556, %557 : vector<20x128xf32>
    %c0_190 = arith.constant 0 : index
    %c0_191 = arith.constant 0 : index
    %559 = vector.load %arg28[%c0_190, %c0_191] : memref<640x128xf32, #tpu.memory_space<vmem>>, vector<640x128xf32>
    %c0_192 = arith.constant 0 : index
    %c0_193 = arith.constant 0 : index
    %560 = vector.load %arg29[%c0_192, %c0_193] : memref<1x128xf32, #tpu.memory_space<vmem>>, vector<1x128xf32>
    %c0_194 = arith.constant 0 : index
    %c0_195 = arith.constant 0 : index
    %561 = vector.load %arg30[%c0_194, %c0_195] : memref<1x128xf32, #tpu.memory_space<vmem>>, vector<1x128xf32>
    %cst_196 = arith.constant 0.000000e+00 : f32
    %562 = vector.broadcast %cst_196 : f32 to vector<2x128xf32>
    %cst_197 = arith.constant 0.000000e+00 : f32
    %563 = vector.broadcast %cst_197 : f32 to vector<1x128xf32>
    %cst_198 = arith.constant 0.000000e+00 : f32
    %564 = vector.broadcast %cst_198 : f32 to vector<1x128xf32>
    %565 = tpu.concatenate %562, %552, %562 in 0 : vector<2x128xf32>, vector<20x128xf32>, vector<2x128xf32> -> vector<24x128xf32>
    %566 = vector.extract_strided_slice %565 {offsets = [0, 0], sizes = [20, 128], strides = [1, 1]} : vector<24x128xf32> to vector<20x128xf32>
    %567 = vector.extract_strided_slice %565 {offsets = [1, 0], sizes = [20, 128], strides = [1, 1]} : vector<24x128xf32> to vector<20x128xf32>
    %568 = vector.extract_strided_slice %565 {offsets = [2, 0], sizes = [20, 128], strides = [1, 1]} : vector<24x128xf32> to vector<20x128xf32>
    %569 = vector.extract_strided_slice %565 {offsets = [3, 0], sizes = [20, 128], strides = [1, 1]} : vector<24x128xf32> to vector<20x128xf32>
    %570 = vector.extract_strided_slice %565 {offsets = [4, 0], sizes = [20, 128], strides = [1, 1]} : vector<24x128xf32> to vector<20x128xf32>
    %571 = tpu.concatenate %566, %567, %568, %569, %570 in 1 : vector<20x128xf32>, vector<20x128xf32>, vector<20x128xf32>, vector<20x128xf32>, vector<20x128xf32> -> vector<20x640xf32>
    %cst_199 = arith.constant dense<0.000000e+00> : vector<20x128xf32>
    %572 = tpu.matmul %571, %559, %cst_199 {dimension_numbers = #tpu.dot_dimension_numbers<[1], [0], [0], [1], [0, 0, 1, 1], [], []>} : vector<20x640xf32>, vector<640x128xf32>, vector<20x128xf32> -> vector<20x128xf32>
    %cst_200 = arith.constant dense<0.000000e+00> : vector<128xf32>
    %573 = vector.multi_reduction <add>, %572, %cst_200 [0] : vector<20x128xf32> to vector<128xf32>
    %574 = vector.shape_cast %573 : vector<128xf32> to vector<1x128xf32>
    %575 = arith.addf %563, %574 : vector<1x128xf32>
    %576 = arith.mulf %572, %572 : vector<20x128xf32>
    %cst_201 = arith.constant dense<0.000000e+00> : vector<128xf32>
    %577 = vector.multi_reduction <add>, %576, %cst_201 [0] : vector<20x128xf32> to vector<128xf32>
    %578 = vector.shape_cast %577 : vector<128xf32> to vector<1x128xf32>
    %579 = arith.addf %564, %578 : vector<1x128xf32>
    %580 = tpu.concatenate %562, %558, %562 in 0 : vector<2x128xf32>, vector<20x128xf32>, vector<2x128xf32> -> vector<24x128xf32>
    %581 = vector.extract_strided_slice %580 {offsets = [0, 0], sizes = [20, 128], strides = [1, 1]} : vector<24x128xf32> to vector<20x128xf32>
    %582 = vector.extract_strided_slice %580 {offsets = [1, 0], sizes = [20, 128], strides = [1, 1]} : vector<24x128xf32> to vector<20x128xf32>
    %583 = vector.extract_strided_slice %580 {offsets = [2, 0], sizes = [20, 128], strides = [1, 1]} : vector<24x128xf32> to vector<20x128xf32>
    %584 = vector.extract_strided_slice %580 {offsets = [3, 0], sizes = [20, 128], strides = [1, 1]} : vector<24x128xf32> to vector<20x128xf32>
    %585 = vector.extract_strided_slice %580 {offsets = [4, 0], sizes = [20, 128], strides = [1, 1]} : vector<24x128xf32> to vector<20x128xf32>
    %586 = tpu.concatenate %581, %582, %583, %584, %585 in 1 : vector<20x128xf32>, vector<20x128xf32>, vector<20x128xf32>, vector<20x128xf32>, vector<20x128xf32> -> vector<20x640xf32>
    %cst_202 = arith.constant dense<0.000000e+00> : vector<20x128xf32>
    %587 = tpu.matmul %586, %559, %cst_202 {dimension_numbers = #tpu.dot_dimension_numbers<[1], [0], [0], [1], [0, 0, 1, 1], [], []>} : vector<20x640xf32>, vector<640x128xf32>, vector<20x128xf32> -> vector<20x128xf32>
    %cst_203 = arith.constant dense<0.000000e+00> : vector<128xf32>
    %588 = vector.multi_reduction <add>, %587, %cst_203 [0] : vector<20x128xf32> to vector<128xf32>
    %589 = vector.shape_cast %588 : vector<128xf32> to vector<1x128xf32>
    %590 = arith.addf %575, %589 : vector<1x128xf32>
    %591 = arith.mulf %587, %587 : vector<20x128xf32>
    %cst_204 = arith.constant dense<0.000000e+00> : vector<128xf32>
    %592 = vector.multi_reduction <add>, %591, %cst_204 [0] : vector<20x128xf32> to vector<128xf32>
    %593 = vector.shape_cast %592 : vector<128xf32> to vector<1x128xf32>
    %594 = arith.addf %579, %593 : vector<1x128xf32>
    %cst_205 = arith.constant 2.500000e-02 : f32
    %595 = vector.broadcast %cst_205 : f32 to vector<1x128xf32>
    %596 = arith.mulf %590, %595 : vector<1x128xf32>
    %cst_206 = arith.constant 2.500000e-02 : f32
    %597 = vector.broadcast %cst_206 : f32 to vector<1x128xf32>
    %598 = arith.mulf %594, %597 : vector<1x128xf32>
    %599 = arith.mulf %596, %596 : vector<1x128xf32>
    %600 = arith.subf %598, %599 : vector<1x128xf32>
    %cst_207 = arith.constant 0.000000e+00 : f32
    %601 = vector.broadcast %cst_207 : f32 to vector<1x128xf32>
    %602 = arith.maximumf %600, %601 : vector<1x128xf32>
    %cst_208 = arith.constant 9.99999974E-6 : f32
    %603 = vector.broadcast %cst_208 : f32 to vector<1x128xf32>
    %604 = arith.addf %602, %603 : vector<1x128xf32>
    %605 = math.rsqrt %604 : vector<1x128xf32>
    %606 = arith.mulf %560, %605 : vector<1x128xf32>
    %607 = arith.mulf %596, %606 : vector<1x128xf32>
    %608 = arith.subf %561, %607 : vector<1x128xf32>
    %609 = vector.broadcast %606 : vector<1x128xf32> to vector<20x128xf32>
    %610 = arith.mulf %572, %609 : vector<20x128xf32>
    %611 = vector.broadcast %608 : vector<1x128xf32> to vector<20x128xf32>
    %612 = arith.addf %610, %611 : vector<20x128xf32>
    %cst_209 = arith.constant 0.000000e+00 : f32
    %613 = vector.broadcast %cst_209 : f32 to vector<20x128xf32>
    %614 = arith.maximumf %612, %613 : vector<20x128xf32>
    %615 = vector.broadcast %606 : vector<1x128xf32> to vector<20x128xf32>
    %616 = arith.mulf %587, %615 : vector<20x128xf32>
    %617 = vector.broadcast %608 : vector<1x128xf32> to vector<20x128xf32>
    %618 = arith.addf %616, %617 : vector<20x128xf32>
    %cst_210 = arith.constant 0.000000e+00 : f32
    %619 = vector.broadcast %cst_210 : f32 to vector<20x128xf32>
    %620 = arith.maximumf %618, %619 : vector<20x128xf32>
    %c0_211 = arith.constant 0 : index
    %c0_212 = arith.constant 0 : index
    %621 = vector.load %arg31[%c0_211, %c0_212] : memref<384x128xf32, #tpu.memory_space<vmem>>, vector<384x128xf32>
    %c0_213 = arith.constant 0 : index
    %c0_214 = arith.constant 0 : index
    %622 = vector.load %arg32[%c0_213, %c0_214] : memref<1x128xf32, #tpu.memory_space<vmem>>, vector<1x128xf32>
    %c0_215 = arith.constant 0 : index
    %c0_216 = arith.constant 0 : index
    %623 = vector.load %arg33[%c0_215, %c0_216] : memref<1x128xf32, #tpu.memory_space<vmem>>, vector<1x128xf32>
    %cst_217 = arith.constant 0.000000e+00 : f32
    %624 = vector.broadcast %cst_217 : f32 to vector<2x128xf32>
    %cst_218 = arith.constant 0.000000e+00 : f32
    %625 = vector.broadcast %cst_218 : f32 to vector<1x128xf32>
    %cst_219 = arith.constant 0.000000e+00 : f32
    %626 = vector.broadcast %cst_219 : f32 to vector<1x128xf32>
    %627 = tpu.concatenate %624, %614, %624 in 0 : vector<2x128xf32>, vector<20x128xf32>, vector<2x128xf32> -> vector<24x128xf32>
    %628 = vector.extract_strided_slice %627 {offsets = [0, 0], sizes = [22, 128], strides = [1, 1]} : vector<24x128xf32> to vector<22x128xf32>
    %629 = vector.extract_strided_slice %627 {offsets = [1, 0], sizes = [22, 128], strides = [1, 1]} : vector<24x128xf32> to vector<22x128xf32>
    %630 = vector.extract_strided_slice %627 {offsets = [2, 0], sizes = [22, 128], strides = [1, 1]} : vector<24x128xf32> to vector<22x128xf32>
    %631 = tpu.concatenate %628, %629, %630 in 1 : vector<22x128xf32>, vector<22x128xf32>, vector<22x128xf32> -> vector<22x384xf32>
    %cst_220 = arith.constant dense<0.000000e+00> : vector<22x128xf32>
    %632 = tpu.matmul %631, %621, %cst_220 {dimension_numbers = #tpu.dot_dimension_numbers<[1], [0], [0], [1], [0, 0, 1, 1], [], []>} : vector<22x384xf32>, vector<384x128xf32>, vector<22x128xf32> -> vector<22x128xf32>
    %cst_221 = arith.constant dense<0.000000e+00> : vector<128xf32>
    %633 = vector.multi_reduction <add>, %632, %cst_221 [0] : vector<22x128xf32> to vector<128xf32>
    %634 = vector.shape_cast %633 : vector<128xf32> to vector<1x128xf32>
    %635 = arith.addf %625, %634 : vector<1x128xf32>
    %636 = arith.mulf %632, %632 : vector<22x128xf32>
    %cst_222 = arith.constant dense<0.000000e+00> : vector<128xf32>
    %637 = vector.multi_reduction <add>, %636, %cst_222 [0] : vector<22x128xf32> to vector<128xf32>
    %638 = vector.shape_cast %637 : vector<128xf32> to vector<1x128xf32>
    %639 = arith.addf %626, %638 : vector<1x128xf32>
    %640 = tpu.concatenate %624, %620, %624 in 0 : vector<2x128xf32>, vector<20x128xf32>, vector<2x128xf32> -> vector<24x128xf32>
    %641 = vector.extract_strided_slice %640 {offsets = [0, 0], sizes = [22, 128], strides = [1, 1]} : vector<24x128xf32> to vector<22x128xf32>
    %642 = vector.extract_strided_slice %640 {offsets = [1, 0], sizes = [22, 128], strides = [1, 1]} : vector<24x128xf32> to vector<22x128xf32>
    %643 = vector.extract_strided_slice %640 {offsets = [2, 0], sizes = [22, 128], strides = [1, 1]} : vector<24x128xf32> to vector<22x128xf32>
    %644 = tpu.concatenate %641, %642, %643 in 1 : vector<22x128xf32>, vector<22x128xf32>, vector<22x128xf32> -> vector<22x384xf32>
    %cst_223 = arith.constant dense<0.000000e+00> : vector<22x128xf32>
    %645 = tpu.matmul %644, %621, %cst_223 {dimension_numbers = #tpu.dot_dimension_numbers<[1], [0], [0], [1], [0, 0, 1, 1], [], []>} : vector<22x384xf32>, vector<384x128xf32>, vector<22x128xf32> -> vector<22x128xf32>
    %cst_224 = arith.constant dense<0.000000e+00> : vector<128xf32>
    %646 = vector.multi_reduction <add>, %645, %cst_224 [0] : vector<22x128xf32> to vector<128xf32>
    %647 = vector.shape_cast %646 : vector<128xf32> to vector<1x128xf32>
    %648 = arith.addf %635, %647 : vector<1x128xf32>
    %649 = arith.mulf %645, %645 : vector<22x128xf32>
    %cst_225 = arith.constant dense<0.000000e+00> : vector<128xf32>
    %650 = vector.multi_reduction <add>, %649, %cst_225 [0] : vector<22x128xf32> to vector<128xf32>
    %651 = vector.shape_cast %650 : vector<128xf32> to vector<1x128xf32>
    %652 = arith.addf %639, %651 : vector<1x128xf32>
    %cst_226 = arith.constant 0.0227272734 : f32
    %653 = vector.broadcast %cst_226 : f32 to vector<1x128xf32>
    %654 = arith.mulf %648, %653 : vector<1x128xf32>
    %cst_227 = arith.constant 0.0227272734 : f32
    %655 = vector.broadcast %cst_227 : f32 to vector<1x128xf32>
    %656 = arith.mulf %652, %655 : vector<1x128xf32>
    %657 = arith.mulf %654, %654 : vector<1x128xf32>
    %658 = arith.subf %656, %657 : vector<1x128xf32>
    %cst_228 = arith.constant 0.000000e+00 : f32
    %659 = vector.broadcast %cst_228 : f32 to vector<1x128xf32>
    %660 = arith.maximumf %658, %659 : vector<1x128xf32>
    %cst_229 = arith.constant 9.99999974E-6 : f32
    %661 = vector.broadcast %cst_229 : f32 to vector<1x128xf32>
    %662 = arith.addf %660, %661 : vector<1x128xf32>
    %663 = math.rsqrt %662 : vector<1x128xf32>
    %664 = arith.mulf %622, %663 : vector<1x128xf32>
    %665 = arith.mulf %654, %664 : vector<1x128xf32>
    %666 = arith.subf %623, %665 : vector<1x128xf32>
    %667 = vector.broadcast %664 : vector<1x128xf32> to vector<22x128xf32>
    %668 = arith.mulf %632, %667 : vector<22x128xf32>
    %669 = vector.broadcast %666 : vector<1x128xf32> to vector<22x128xf32>
    %670 = arith.addf %668, %669 : vector<22x128xf32>
    %cst_230 = arith.constant 0.000000e+00 : f32
    %671 = vector.broadcast %cst_230 : f32 to vector<22x128xf32>
    %672 = arith.maximumf %670, %671 : vector<22x128xf32>
    %673 = vector.broadcast %664 : vector<1x128xf32> to vector<22x128xf32>
    %674 = arith.mulf %645, %673 : vector<22x128xf32>
    %675 = vector.broadcast %666 : vector<1x128xf32> to vector<22x128xf32>
    %676 = arith.addf %674, %675 : vector<22x128xf32>
    %cst_231 = arith.constant 0.000000e+00 : f32
    %677 = vector.broadcast %cst_231 : f32 to vector<22x128xf32>
    %678 = arith.maximumf %676, %677 : vector<22x128xf32>
    %c0_232 = arith.constant 0 : index
    %c0_233 = arith.constant 0 : index
    %679 = vector.load %arg34[%c0_232, %c0_233] : memref<128x128xf32, #tpu.memory_space<vmem>>, vector<128x128xf32>
    %c0_234 = arith.constant 0 : index
    %c0_235 = arith.constant 0 : index
    %680 = vector.load %arg35[%c0_234, %c0_235] : memref<1x128xf32, #tpu.memory_space<vmem>>, vector<1x128xf32>
    %c0_236 = arith.constant 0 : index
    %c0_237 = arith.constant 0 : index
    %681 = vector.load %arg36[%c0_236, %c0_237] : memref<1x128xf32, #tpu.memory_space<vmem>>, vector<1x128xf32>
    %cst_238 = arith.constant 0.000000e+00 : f32
    %682 = vector.broadcast %cst_238 : f32 to vector<1x128xf32>
    %cst_239 = arith.constant 0.000000e+00 : f32
    %683 = vector.broadcast %cst_239 : f32 to vector<1x128xf32>
    %cst_240 = arith.constant 0.000000e+00 : f32
    %684 = vector.broadcast %cst_240 : f32 to vector<1x128xf32>
    %685 = tpu.concatenate %682, %481, %682 in 0 : vector<1x128xf32>, vector<20x128xf32>, vector<1x128xf32> -> vector<22x128xf32>
    %cst_241 = arith.constant dense<0.000000e+00> : vector<22x128xf32>
    %686 = tpu.matmul %685, %679, %cst_241 {dimension_numbers = #tpu.dot_dimension_numbers<[1], [0], [0], [1], [0, 0, 1, 1], [], []>} : vector<22x128xf32>, vector<128x128xf32>, vector<22x128xf32> -> vector<22x128xf32>
    %cst_242 = arith.constant dense<0.000000e+00> : vector<128xf32>
    %687 = vector.multi_reduction <add>, %686, %cst_242 [0] : vector<22x128xf32> to vector<128xf32>
    %688 = vector.shape_cast %687 : vector<128xf32> to vector<1x128xf32>
    %689 = arith.addf %683, %688 : vector<1x128xf32>
    %690 = arith.mulf %686, %686 : vector<22x128xf32>
    %cst_243 = arith.constant dense<0.000000e+00> : vector<128xf32>
    %691 = vector.multi_reduction <add>, %690, %cst_243 [0] : vector<22x128xf32> to vector<128xf32>
    %692 = vector.shape_cast %691 : vector<128xf32> to vector<1x128xf32>
    %693 = arith.addf %684, %692 : vector<1x128xf32>
    %694 = tpu.concatenate %682, %488, %682 in 0 : vector<1x128xf32>, vector<20x128xf32>, vector<1x128xf32> -> vector<22x128xf32>
    %cst_244 = arith.constant dense<0.000000e+00> : vector<22x128xf32>
    %695 = tpu.matmul %694, %679, %cst_244 {dimension_numbers = #tpu.dot_dimension_numbers<[1], [0], [0], [1], [0, 0, 1, 1], [], []>} : vector<22x128xf32>, vector<128x128xf32>, vector<22x128xf32> -> vector<22x128xf32>
    %cst_245 = arith.constant dense<0.000000e+00> : vector<128xf32>
    %696 = vector.multi_reduction <add>, %695, %cst_245 [0] : vector<22x128xf32> to vector<128xf32>
    %697 = vector.shape_cast %696 : vector<128xf32> to vector<1x128xf32>
    %698 = arith.addf %689, %697 : vector<1x128xf32>
    %699 = arith.mulf %695, %695 : vector<22x128xf32>
    %cst_246 = arith.constant dense<0.000000e+00> : vector<128xf32>
    %700 = vector.multi_reduction <add>, %699, %cst_246 [0] : vector<22x128xf32> to vector<128xf32>
    %701 = vector.shape_cast %700 : vector<128xf32> to vector<1x128xf32>
    %702 = arith.addf %693, %701 : vector<1x128xf32>
    %cst_247 = arith.constant 0.0227272734 : f32
    %703 = vector.broadcast %cst_247 : f32 to vector<1x128xf32>
    %704 = arith.mulf %698, %703 : vector<1x128xf32>
    %cst_248 = arith.constant 0.0227272734 : f32
    %705 = vector.broadcast %cst_248 : f32 to vector<1x128xf32>
    %706 = arith.mulf %702, %705 : vector<1x128xf32>
    %707 = arith.mulf %704, %704 : vector<1x128xf32>
    %708 = arith.subf %706, %707 : vector<1x128xf32>
    %cst_249 = arith.constant 0.000000e+00 : f32
    %709 = vector.broadcast %cst_249 : f32 to vector<1x128xf32>
    %710 = arith.maximumf %708, %709 : vector<1x128xf32>
    %cst_250 = arith.constant 9.99999974E-6 : f32
    %711 = vector.broadcast %cst_250 : f32 to vector<1x128xf32>
    %712 = arith.addf %710, %711 : vector<1x128xf32>
    %713 = math.rsqrt %712 : vector<1x128xf32>
    %714 = arith.mulf %680, %713 : vector<1x128xf32>
    %715 = arith.mulf %704, %714 : vector<1x128xf32>
    %716 = arith.subf %681, %715 : vector<1x128xf32>
    %717 = vector.broadcast %714 : vector<1x128xf32> to vector<22x128xf32>
    %718 = arith.mulf %686, %717 : vector<22x128xf32>
    %719 = vector.broadcast %716 : vector<1x128xf32> to vector<22x128xf32>
    %720 = arith.addf %718, %719 : vector<22x128xf32>
    %721 = arith.addf %720, %672 : vector<22x128xf32>
    %cst_251 = arith.constant 0.000000e+00 : f32
    %722 = vector.broadcast %cst_251 : f32 to vector<22x128xf32>
    %723 = arith.maximumf %721, %722 : vector<22x128xf32>
    %724 = vector.broadcast %714 : vector<1x128xf32> to vector<22x128xf32>
    %725 = arith.mulf %695, %724 : vector<22x128xf32>
    %726 = vector.broadcast %716 : vector<1x128xf32> to vector<22x128xf32>
    %727 = arith.addf %725, %726 : vector<22x128xf32>
    %728 = arith.addf %727, %678 : vector<22x128xf32>
    %cst_252 = arith.constant 0.000000e+00 : f32
    %729 = vector.broadcast %cst_252 : f32 to vector<22x128xf32>
    %730 = arith.maximumf %728, %729 : vector<22x128xf32>
    %c0_253 = arith.constant 0 : index
    %c0_254 = arith.constant 0 : index
    %731 = vector.load %arg37[%c0_253, %c0_254] : memref<128x10xf32, #tpu.memory_space<vmem>>, vector<128x10xf32>
    %c0_255 = arith.constant 0 : index
    %c0_256 = arith.constant 0 : index
    %732 = vector.load %arg38[%c0_255, %c0_256] : memref<1x10xf32, #tpu.memory_space<vmem>>, vector<1x10xf32>
    %733 = vector.extract_strided_slice %723 {offsets = [0, 0], sizes = [14, 128], strides = [1, 1]} : vector<22x128xf32> to vector<14x128xf32>
    %cst_257 = arith.constant dense<0.000000e+00> : vector<128xf32>
    %734 = vector.multi_reduction <add>, %733, %cst_257 [0] : vector<14x128xf32> to vector<128xf32>
    %735 = vector.shape_cast %734 : vector<128xf32> to vector<1x128xf32>
    %736 = vector.extract_strided_slice %730 {offsets = [0, 0], sizes = [14, 128], strides = [1, 1]} : vector<22x128xf32> to vector<14x128xf32>
    %cst_258 = arith.constant dense<0.000000e+00> : vector<128xf32>
    %737 = vector.multi_reduction <add>, %736, %cst_258 [0] : vector<14x128xf32> to vector<128xf32>
    %738 = vector.shape_cast %737 : vector<128xf32> to vector<1x128xf32>
    %739 = tpu.concatenate %735, %738 in 0 : vector<1x128xf32>, vector<1x128xf32> -> vector<2x128xf32>
    %cst_259 = arith.constant 0.0714285746 : f32
    %740 = vector.broadcast %cst_259 : f32 to vector<2x128xf32>
    %741 = arith.mulf %739, %740 : vector<2x128xf32>
    %cst_260 = arith.constant dense<0.000000e+00> : vector<2x10xf32>
    %742 = tpu.matmul %741, %731, %cst_260 {dimension_numbers = #tpu.dot_dimension_numbers<[1], [0], [0], [1], [0, 0, 1, 1], [], []>} : vector<2x128xf32>, vector<128x10xf32>, vector<2x10xf32> -> vector<2x10xf32>
    %743 = vector.broadcast %732 : vector<1x10xf32> to vector<2x10xf32>
    %744 = arith.addf %742, %743 : vector<2x10xf32>
    %c0_261 = arith.constant 0 : index
    %c0_262 = arith.constant 0 : index
    %745 = vector.load %arg39[%c0_261, %c0_262] : memref<2x10xf32, #tpu.memory_space<vmem>>, vector<2x10xf32>
    tpu.vector_store %arg39[%c0_261, %c0_262], %744 {strides = array<i32>} : memref<2x10xf32, #tpu.memory_space<vmem>>, vector<2x10xf32>,
    return
  }
}

</mosaic_0001>

<llo_original>
// kernel: ts_resnet_forward.1
$region0: #{ts_resnet_forward.1}
  #allocation0 [shape = 'u32[]', space=smem, size = 0x4, offset = 0x4, fixed_abs, tag = 'smem constant byte address 0x4 - core index']
  #allocation1 [shape = 'u32[144,128]{1,0:T(1,128)}', space=vmem, size = 0x12000, scoped, tag = 'internal scratch']
  %s0 = inlined_call_operand.smem [shape: u32[40], index: -1, kind: input, shape index: {}]
  %s1 = sld [smem:[%s0]]
  %s2 = scalar_lea.smem %s0, 1
  %s3 = sld [smem:[%s2]]
  %s4 = scalar_lea.smem %s0, 2
  %s5 = sld [smem:[%s4]]
  %s6 = scalar_lea.smem %s0, 3
  %s7 = sld [smem:[%s6]]
  %s8 = scalar_lea.smem %s0, 4
  %s9 = sld [smem:[%s8]]
  %s10 = scalar_lea.smem %s0, 5
  %s11 = sld [smem:[%s10]]
  %s12 = scalar_lea.smem %s0, 6
  %s13 = sld [smem:[%s12]]
  %s14 = scalar_lea.smem %s0, 7
  %s15 = sld [smem:[%s14]]
  %s16 = scalar_lea.smem %s0, 8
  %s17 = sld [smem:[%s16]]
  %s18 = scalar_lea.smem %s0, 9
  %s19 = sld [smem:[%s18]]
  %s20 = scalar_lea.smem %s0, 10
  %s21 = sld [smem:[%s20]]
  %s22 = scalar_lea.smem %s0, 11
  %s23 = sld [smem:[%s22]]
  %s24 = scalar_lea.smem %s0, 12
  %s25 = sld [smem:[%s24]]
  %s26 = scalar_lea.smem %s0, 13
  %s27 = sld [smem:[%s26]]
  %s28 = scalar_lea.smem %s0, 14
  %s29 = sld [smem:[%s28]]
  %s30 = scalar_lea.smem %s0, 15
  %s31 = sld [smem:[%s30]]
  %s32 = scalar_lea.smem %s0, 16
  %s33 = sld [smem:[%s32]]
  %s34 = scalar_lea.smem %s0, 17
  %s35 = sld [smem:[%s34]]
  %s36 = scalar_lea.smem %s0, 18
  %s37 = sld [smem:[%s36]]
  %s38 = scalar_lea.smem %s0, 19
  %s39 = sld [smem:[%s38]]
  %s40 = scalar_lea.smem %s0, 20
  %s41 = sld [smem:[%s40]]
  %s42 = scalar_lea.smem %s0, 21
  %s43 = sld [smem:[%s42]]
  %s44 = scalar_lea.smem %s0, 22
  %s45 = sld [smem:[%s44]]
  %s46 = scalar_lea.smem %s0, 23
  %s47 = sld [smem:[%s46]]
  %s48 = scalar_lea.smem %s0, 24
  %s49 = sld [smem:[%s48]]
  %s50 = scalar_lea.smem %s0, 25
  %s51 = sld [smem:[%s50]]
  %s52 = scalar_lea.smem %s0, 26
  %s53 = sld [smem:[%s52]]
  %s54 = scalar_lea.smem %s0, 27
  %s55 = sld [smem:[%s54]]
  %s56 = scalar_lea.smem %s0, 28
  %s57 = sld [smem:[%s56]]
  %s58 = scalar_lea.smem %s0, 29
  %s59 = sld [smem:[%s58]]
  %s60 = scalar_lea.smem %s0, 30
  %s61 = sld [smem:[%s60]]
  %s62 = scalar_lea.smem %s0, 31
  %s63 = sld [smem:[%s62]]
  %s64 = scalar_lea.smem %s0, 32
  %s65 = sld [smem:[%s64]]
  %s66 = scalar_lea.smem %s0, 33
  %s67 = sld [smem:[%s66]]
  %s68 = scalar_lea.smem %s0, 34
  %s69 = sld [smem:[%s68]]
  %s70 = scalar_lea.smem %s0, 35
  %s71 = sld [smem:[%s70]]
  %s72 = scalar_lea.smem %s0, 36
  %s73 = sld [smem:[%s72]]
  %s74 = scalar_lea.smem %s0, 37
  %s75 = sld [smem:[%s74]]
  %s76 = scalar_lea.smem %s0, 38
  %s77 = sld [smem:[%s76]]
  %s78 = scalar_lea.smem %s0, 39
  %s79 = sld [smem:[%s78]]
  %s80 = sld [smem:[#allocation0]]
  $region282: #{ts_resnet_forward.1} parent=0
    _
  %s82 = ssub.s32 1, %s80
  %s83 = scalar_select 0, %s82, %s80
  $region1: #{ts_resnet_forward.1} parent=0
    #allocation2 [shape = 'u8[589824]{0}', space=vmem, size = 0x90000, scoped, tag = 'input window, operand 1, single buffered']
    #allocation3 [shape = 's32[1]{0}', space=sflag, size = 0x4, scoped, tag = 'scoped memory for ts_resnet_forward.1']
    #allocation4 [shape = 's32[1]{0}', space=sflag, size = 0x4, scoped, tag = 'scoped memory for ts_resnet_forward.1']
    #allocation5 [shape = 'u8[327680]{0}', space=vmem, size = 0x50000, scoped, tag = 'input window, operand 4, single buffered']
    #allocation6 [shape = 's32[1]{0}', space=sflag, size = 0x4, scoped, tag = 'scoped memory for ts_resnet_forward.1']
    #allocation7 [shape = 'u8[512]{0}', space=vmem, size = 0x400, scoped, tag = 'input window, operand 6, single buffered']
    #allocation8 [shape = 'u8[196608]{0}', space=vmem, size = 0x30000, scoped, tag = 'input window, operand 7, single buffered']
    #allocation9 [shape = 's32[1]{0}', space=sflag, size = 0x4, scoped, tag = 'scoped memory for ts_resnet_forward.1']
    #allocation10 [shape = 'u8[512]{0}', space=vmem, size = 0x400, scoped, tag = 'input window, operand 8, single buffered']
    #allocation11 [shape = 'u8[512]{0}', space=vmem, size = 0x400, scoped, tag = 'input window, operand 9, single buffered']
    #allocation12 [shape = 's32[1]{0}', space=sflag, size = 0x4, scoped, tag = 'scoped memory for ts_resnet_forward.1']
    #allocation13 [shape = 'u8[65536]{0}', space=vmem, size = 0x10000, scoped, tag = 'input window, operand 10, single buffered']
    #allocation14 [shape = 'u8[512]{0}', space=vmem, size = 0x400, scoped, tag = 'input window, operand 11, single buffered']
    #allocation15 [shape = 's32[1]{0}', space=sflag, size = 0x4, scoped, tag = 'scoped memory for ts_resnet_forward.1']
    #allocation16 [shape = 'u8[512]{0}', space=vmem, size = 0x400, scoped, tag = 'input window, operand 12, single buffered']
    #allocation17 [shape = 'u8[589824]{0}', space=vmem, size = 0x90000, scoped, tag = 'input window, operand 13, single buffered']
    #allocation18 [shape = 's32[1]{0}', space=sflag, size = 0x4, scoped, tag = 'scoped memory for ts_resnet_forward.1']
    #allocation19 [shape = 'u8[512]{0}', space=vmem, size = 0x400, scoped, tag = 'input window, operand 14, single buffered']
    #allocation20 [shape = 'u8[512]{0}', space=vmem, size = 0x400, scoped, tag = 'input window, operand 15, single buffered']
    #allocation21 [shape = 's32[1]{0}', space=sflag, size = 0x4, scoped, tag = 'scoped memory for ts_resnet_forward.1']
    #allocation22 [shape = 'u8[327680]{0}', space=vmem, size = 0x50000, scoped, tag = 'input window, operand 16, single buffered']
    #allocation23 [shape = 'u8[512]{0}', space=vmem, size = 0x400, scoped, tag = 'input window, operand 17, single buffered']
    #allocation24 [shape = 's32[1]{0}', space=sflag, size = 0x4, scoped, tag = 'scoped memory for ts_resnet_forward.1']
    #allocation25 [shape = 'u8[512]{0}', space=vmem, size = 0x400, scoped, tag = 'input window, operand 18, single buffered']
    #allocation26 [shape = 'u8[196608]{0}', space=vmem, size = 0x30000, scoped, tag = 'input window, operand 19, single buffered']
    #allocation27 [shape = 's32[1]{0}', space=sflag, size = 0x4, scoped, tag = 'scoped memory for ts_resnet_forward.1']
    #allocation28 [shape = 'u8[512]{0}', space=vmem, size = 0x400, scoped, tag = 'input window, operand 20, single buffered']
    #allocation29 [shape = 'u8[512]{0}', space=vmem, size = 0x400, scoped, tag = 'input window, operand 21, single buffered']
    #allocation30 [shape = 's32[1]{0}', space=sflag, size = 0x4, scoped, tag = 'scoped memory for ts_resnet_forward.1']
    #allocation31 [shape = 'u8[65536]{0}', space=vmem, size = 0x10000, scoped, tag = 'input window, operand 22, single buffered']
    #allocation32 [shape = 'u8[512]{0}', space=vmem, size = 0x400, scoped, tag = 'input window, operand 23, single buffered']
    #allocation33 [shape = 's32[1]{0}', space=sflag, size = 0x4, scoped, tag = 'scoped memory for ts_resnet_forward.1']
    #allocation34 [shape = 'u8[512]{0}', space=vmem, size = 0x400, scoped, tag = 'input window, operand 24, single buffered']
    #allocation35 [shape = 'u8[589824]{0}', space=vmem, size = 0x90000, scoped, tag = 'input window, operand 25, single buffered']
    #allocation36 [shape = 's32[1]{0}', space=sflag, size = 0x4, scoped, tag = 'scoped memory for ts_resnet_forward.1']
    #allocation37 [shape = 'u8[512]{0}', space=vmem, size = 0x400, scoped, tag = 'input window, operand 26, single buffered']
    #allocation38 [shape = 'u8[512]{0}', space=vmem, size = 0x400, scoped, tag = 'input window, operand 27, single buffered']
    #allocation39 [shape = 's32[1]{0}', space=sflag, size = 0x4, scoped, tag = 'scoped memory for ts_resnet_forward.1']
    #allocation40 [shape = 'u8[327680]{0}', space=vmem, size = 0x50000, scoped, tag = 'input window, operand 28, single buffered']
    #allocation41 [shape = 'u8[512]{0}', space=vmem, size = 0x400, scoped, tag = 'input window, operand 29, single buffered']
    #allocation42 [shape = 's32[1]{0}', space=sflag, size = 0x4, scoped, tag = 'scoped memory for ts_resnet_forward.1']
    #allocation43 [shape = 'u8[512]{0}', space=vmem, size = 0x400, scoped, tag = 'input window, operand 30, single buffered']
    #allocation44 [shape = 'u8[512]{0}', space=vmem, size = 0x400, scoped, tag = 'input window, operand 32, single buffered']
    #allocation45 [shape = 's32[1]{0}', space=sflag, size = 0x4, scoped, tag = 'scoped memory for ts_resnet_forward.1']
    #allocation46 [shape = 'u8[65536]{0}', space=vmem, size = 0x10000, scoped, tag = 'input window, operand 34, single buffered']
    #allocation47 [shape = 'u8[1024]{0}', space=vmem, size = 0x400, scoped, tag = 'output window, operand 0, single buffered']
    %84 = vsyncpa [#allocation3], 0
    %85 = vsyncpa [#allocation6], 0
    %86 = vsyncpa [#allocation9], 0
    %87 = vsyncpa [#allocation12], 0
    %88 = vsyncpa [#allocation15], 0
    %89 = vsyncpa [#allocation18], 0
    %90 = vsyncpa [#allocation21], 0
    %91 = vsyncpa [#allocation24], 0
    %92 = vsyncpa [#allocation27], 0
    %93 = vsyncpa [#allocation30], 0
    %94 = vsyncpa [#allocation33], 0
    %95 = vsyncpa [#allocation36], 0
    %96 = vsyncpa [#allocation39], 0
    %97 = vsyncpa [#allocation42], 0
    %98 = vsyncpa [#allocation45], 0
    %99 = vsyncpa [#allocation4], 0
    // Predicated region
    $region2: #{ts_resnet_forward.1} parent=1 // pred_check
      _
    $region3: #{ts_resnet_forward.1} parent=1 // pred_check_branch
      %101 = sbr.rel (0) target = $region5
    $region4: #{ts_resnet_forward.1} parent=1 // pred_region
      _
    $region5: #{ts_resnet_forward.1} parent=1 // pred_fallthru
      _
    // Predicated region
    $region6: #{ts_resnet_forward.1} parent=1 // pred_check
      _
    $region7: #{ts_resnet_forward.1} parent=1 // pred_check_branch
      %103 = sbr.rel (0) target = $region9
    $region8: #{ts_resnet_forward.1} parent=1 // pred_region
      %s105 = ssub.s32 18432, 18432
      %106 = vsyncadd [#allocation3], %s105
      %s107 = sshll.u32 [#allocation2], 4
      %s108 = int_to_ptr.vmem [resolvable:$true] %s107
      %113 = dma.hbm_to_vmem [thread:$0]  %s3, 18432, %s108, [#allocation3], 128, 128, 8
    $region9: #{ts_resnet_forward.1} parent=1 // pred_fallthru
      _
    // Predicated region
    $region10: #{ts_resnet_forward.1} parent=1 // pred_check
      _
    $region11: #{ts_resnet_forward.1} parent=1 // pred_check_branch
      %115 = sbr.rel (0) target = $region13
    $region12: #{ts_resnet_forward.1} parent=1 // pred_region
      _
    $region13: #{ts_resnet_forward.1} parent=1 // pred_fallthru
      _
    // Predicated region
    $region14: #{ts_resnet_forward.1} parent=1 // pred_check
      _
    $region15: #{ts_resnet_forward.1} parent=1 // pred_check_branch
      %117 = sbr.rel (0) target = $region17
    $region16: #{ts_resnet_forward.1} parent=1 // pred_region
      _
    $region17: #{ts_resnet_forward.1} parent=1 // pred_fallthru
      _
    // Predicated region
    $region18: #{ts_resnet_forward.1} parent=1 // pred_check
      _
    $region19: #{ts_resnet_forward.1} parent=1 // pred_check_branch
      %119 = sbr.rel (0) target = $region21
    $region20: #{ts_resnet_forward.1} parent=1 // pred_region
      %s121 = ssub.s32 10240, 10240
      %122 = vsyncadd [#allocation6], %s121
      %s123 = sshll.u32 [#allocation5], 4
      %s124 = int_to_ptr.vmem [resolvable:$true] %s123
      %129 = dma.hbm_to_vmem [thread:$0]  %s9, 10240, %s124, [#allocation6], 128, 128, 8
    $region21: #{ts_resnet_forward.1} parent=1 // pred_fallthru
      _
    // Predicated region
    $region22: #{ts_resnet_forward.1} parent=1 // pred_check
      _
    $region23: #{ts_resnet_forward.1} parent=1 // pred_check_branch
      %131 = sbr.rel (0) target = $region25
    $region24: #{ts_resnet_forward.1} parent=1 // pred_region
      _
    $region25: #{ts_resnet_forward.1} parent=1 // pred_fallthru
      _
    // Predicated region
    $region26: #{ts_resnet_forward.1} parent=1 // pred_check
      _
    $region27: #{ts_resnet_forward.1} parent=1 // pred_check_branch
      %133 = sbr.rel (0) target = $region29
    $region28: #{ts_resnet_forward.1} parent=1 // pred_region
      %s135 = ssub.s32 16, 16
      %136 = vsyncadd [#allocation6], %s135
      %s138 = sshll.u32 [#allocation7], 4
      %s139 = int_to_ptr.vmem [resolvable:$true] %s138
      %141 = dma.hbm_to_vmem [thread:$0]  %s13, 16, %s139, [#allocation6]
    $region29: #{ts_resnet_forward.1} parent=1 // pred_fallthru
      _
    // Predicated region
    $region30: #{ts_resnet_forward.1} parent=1 // pred_check
      _
    $region31: #{ts_resnet_forward.1} parent=1 // pred_check_branch
      %143 = sbr.rel (0) target = $region33
    $region32: #{ts_resnet_forward.1} parent=1 // pred_region
      %s145 = ssub.s32 6144, 6144
      %146 = vsyncadd [#allocation9], %s145
      %s147 = sshll.u32 [#allocation8], 4
      %s148 = int_to_ptr.vmem [resolvable:$true] %s147
      %153 = dma.hbm_to_vmem [thread:$0]  %s15, 6144, %s148, [#allocation9], 128, 128, 8
    $region33: #{ts_resnet_forward.1} parent=1 // pred_fallthru
      _
    // Predicated region
    $region34: #{ts_resnet_forward.1} parent=1 // pred_check
      _
    $region35: #{ts_resnet_forward.1} parent=1 // pred_check_branch
      %155 = sbr.rel (0) target = $region37
    $region36: #{ts_resnet_forward.1} parent=1 // pred_region
      %s157 = ssub.s32 16, 16
      %158 = vsyncadd [#allocation9], %s157
      %s160 = sshll.u32 [#allocation10], 4
      %s161 = int_to_ptr.vmem [resolvable:$true] %s160
      %163 = dma.hbm_to_vmem [thread:$0]  %s17, 16, %s161, [#allocation9]
    $region37: #{ts_resnet_forward.1} parent=1 // pred_fallthru
      _
    // Predicated region
    $region38: #{ts_resnet_forward.1} parent=1 // pred_check
      _
    $region39: #{ts_resnet_forward.1} parent=1 // pred_check_branch
      %165 = sbr.rel (0) target = $region41
    $region40: #{ts_resnet_forward.1} parent=1 // pred_region
      %s167 = ssub.s32 16, 16
      %168 = vsyncadd [#allocation12], %s167
      %s170 = sshll.u32 [#allocation11], 4
      %s171 = int_to_ptr.vmem [resolvable:$true] %s170
      %173 = dma.hbm_to_vmem [thread:$0]  %s19, 16, %s171, [#allocation12]
    $region41: #{ts_resnet_forward.1} parent=1 // pred_fallthru
      _
    // Predicated region
    $region42: #{ts_resnet_forward.1} parent=1 // pred_check
      _
    $region43: #{ts_resnet_forward.1} parent=1 // pred_check_branch
      %175 = sbr.rel (0) target = $region45
    $region44: #{ts_resnet_forward.1} parent=1 // pred_region
      %s177 = ssub.s32 2048, 2048
      %178 = vsyncadd [#allocation12], %s177
      %s179 = sshll.u32 [#allocation13], 4
      %s180 = int_to_ptr.vmem [resolvable:$true] %s179
      %185 = dma.hbm_to_vmem [thread:$0]  %s21, 2048, %s180, [#allocation12], 128, 128, 8
    $region45: #{ts_resnet_forward.1} parent=1 // pred_fallthru
      _
    // Predicated region
    $region46: #{ts_resnet_forward.1} parent=1 // pred_check
      _
    $region47: #{ts_resnet_forward.1} parent=1 // pred_check_branch
      %187 = sbr.rel (0) target = $region49
    $region48: #{ts_resnet_forward.1} parent=1 // pred_region
      %s189 = ssub.s32 16, 16
      %190 = vsyncadd [#allocation15], %s189
      %s192 = sshll.u32 [#allocation14], 4
      %s193 = int_to_ptr.vmem [resolvable:$true] %s192
      %195 = dma.hbm_to_vmem [thread:$0]  %s23, 16, %s193, [#allocation15]
    $region49: #{ts_resnet_forward.1} parent=1 // pred_fallthru
      _
    // Predicated region
    $region50: #{ts_resnet_forward.1} parent=1 // pred_check
      _
    $region51: #{ts_resnet_forward.1} parent=1 // pred_check_branch
      %197 = sbr.rel (0) target = $region53
    $region52: #{ts_resnet_forward.1} parent=1 // pred_region
      %s199 = ssub.s32 16, 16
      %200 = vsyncadd [#allocation15], %s199
      %s202 = sshll.u32 [#allocation16], 4
      %s203 = int_to_ptr.vmem [resolvable:$true] %s202
      %205 = dma.hbm_to_vmem [thread:$0]  %s25, 16, %s203, [#allocation15]
    $region53: #{ts_resnet_forward.1} parent=1 // pred_fallthru
      _
    // Predicated region
    $region54: #{ts_resnet_forward.1} parent=1 // pred_check
      _
    $region55: #{ts_resnet_forward.1} parent=1 // pred_check_branch
      %207 = sbr.rel (0) target = $region57
    $region56: #{ts_resnet_forward.1} parent=1 // pred_region
      %s209 = ssub.s32 18432, 18432
      %210 = vsyncadd [#allocation18], %s209
      %s211 = sshll.u32 [#allocation17], 4
      %s212 = int_to_ptr.vmem [resolvable:$true] %s211
      %217 = dma.hbm_to_vmem [thread:$0]  %s27, 18432, %s212, [#allocation18], 128, 128, 8
    $region57: #{ts_resnet_forward.1} parent=1 // pred_fallthru
      _
    // Predicated region
    $region58: #{ts_resnet_forward.1} parent=1 // pred_check
      _
    $region59: #{ts_resnet_forward.1} parent=1 // pred_check_branch
      %219 = sbr.rel (0) target = $region61
    $region60: #{ts_resnet_forward.1} parent=1 // pred_region
      %s221 = ssub.s32 16, 16
      %222 = vsyncadd [#allocation18], %s221
      %s224 = sshll.u32 [#allocation19], 4
      %s225 = int_to_ptr.vmem [resolvable:$true] %s224
      %227 = dma.hbm_to_vmem [thread:$0]  %s29, 16, %s225, [#allocation18]
    $region61: #{ts_resnet_forward.1} parent=1 // pred_fallthru
      _
    // Predicated region
    $region62: #{ts_resnet_forward.1} parent=1 // pred_check
      _
    $region63: #{ts_resnet_forward.1} parent=1 // pred_check_branch
      %229 = sbr.rel (0) target = $region65
    $region64: #{ts_resnet_forward.1} parent=1 // pred_region
      %s231 = ssub.s32 16, 16
      %232 = vsyncadd [#allocation21], %s231
      %s234 = sshll.u32 [#allocation20], 4
      %s235 = int_to_ptr.vmem [resolvable:$true] %s234
      %237 = dma.hbm_to_vmem [thread:$0]  %s31, 16, %s235, [#allocation21]
    $region65: #{ts_resnet_forward.1} parent=1 // pred_fallthru
      _
    // Predicated region
    $region66: #{ts_resnet_forward.1} parent=1 // pred_check
      _
    $region67: #{ts_resnet_forward.1} parent=1 // pred_check_branch
      %239 = sbr.rel (0) target = $region69
    $region68: #{ts_resnet_forward.1} parent=1 // pred_region
      %s241 = ssub.s32 10240, 10240
      %242 = vsyncadd [#allocation21], %s241
      %s243 = sshll.u32 [#allocation22], 4
      %s244 = int_to_ptr.vmem [resolvable:$true] %s243
      %249 = dma.hbm_to_vmem [thread:$0]  %s33, 10240, %s244, [#allocation21], 128, 128, 8
    $region69: #{ts_resnet_forward.1} parent=1 // pred_fallthru
      _
    // Predicated region
    $region70: #{ts_resnet_forward.1} parent=1 // pred_check
      _
    $region71: #{ts_resnet_forward.1} parent=1 // pred_check_branch
      %251 = sbr.rel (0) target = $region73
    $region72: #{ts_resnet_forward.1} parent=1 // pred_region
      %s253 = ssub.s32 16, 16
      %254 = vsyncadd [#allocation24], %s253
      %s256 = sshll.u32 [#allocation23], 4
      %s257 = int_to_ptr.vmem [resolvable:$true] %s256
      %259 = dma.hbm_to_vmem [thread:$0]  %s35, 16, %s257, [#allocation24]
    $region73: #{ts_resnet_forward.1} parent=1 // pred_fallthru
      _
    // Predicated region
    $region74: #{ts_resnet_forward.1} parent=1 // pred_check
      _
    $region75: #{ts_resnet_forward.1} parent=1 // pred_check_branch
      %261 = sbr.rel (0) target = $region77
    $region76: #{ts_resnet_forward.1} parent=1 // pred_region
      %s263 = ssub.s32 16, 16
      %264 = vsyncadd [#allocation24], %s263
      %s266 = sshll.u32 [#allocation25], 4
      %s267 = int_to_ptr.vmem [resolvable:$true] %s266
      %269 = dma.hbm_to_vmem [thread:$0]  %s37, 16, %s267, [#allocation24]
    $region77: #{ts_resnet_forward.1} parent=1 // pred_fallthru
      _
    // Predicated region
    $region78: #{ts_resnet_forward.1} parent=1 // pred_check
      _
    $region79: #{ts_resnet_forward.1} parent=1 // pred_check_branch
      %271 = sbr.rel (0) target = $region81
    $region80: #{ts_resnet_forward.1} parent=1 // pred_region
      %s273 = ssub.s32 6144, 6144
      %274 = vsyncadd [#allocation27], %s273
      %s275 = sshll.u32 [#allocation26], 4
      %s276 = int_to_ptr.vmem [resolvable:$true] %s275
      %281 = dma.hbm_to_vmem [thread:$0]  %s39, 6144, %s276, [#allocation27], 128, 128, 8
    $region81: #{ts_resnet_forward.1} parent=1 // pred_fallthru
      _
    // Predicated region
    $region82: #{ts_resnet_forward.1} parent=1 // pred_check
      _
    $region83: #{ts_resnet_forward.1} parent=1 // pred_check_branch
      %283 = sbr.rel (0) target = $region85
    $region84: #{ts_resnet_forward.1} parent=1 // pred_region
      %s285 = ssub.s32 16, 16
      %286 = vsyncadd [#allocation27], %s285
      %s288 = sshll.u32 [#allocation28], 4
      %s289 = int_to_ptr.vmem [resolvable:$true] %s288
      %291 = dma.hbm_to_vmem [thread:$0]  %s41, 16, %s289, [#allocation27]
    $region85: #{ts_resnet_forward.1} parent=1 // pred_fallthru
      _
    // Predicated region
    $region86: #{ts_resnet_forward.1} parent=1 // pred_check
      _
    $region87: #{ts_resnet_forward.1} parent=1 // pred_check_branch
      %293 = sbr.rel (0) target = $region89
    $region88: #{ts_resnet_forward.1} parent=1 // pred_region
      %s295 = ssub.s32 16, 16
      %296 = vsyncadd [#allocation30], %s295
      %s298 = sshll.u32 [#allocation29], 4
      %s299 = int_to_ptr.vmem [resolvable:$true] %s298
      %301 = dma.hbm_to_vmem [thread:$0]  %s43, 16, %s299, [#allocation30]
    $region89: #{ts_resnet_forward.1} parent=1 // pred_fallthru
      _
    // Predicated region
    $region90: #{ts_resnet_forward.1} parent=1 // pred_check
      _
    $region91: #{ts_resnet_forward.1} parent=1 // pred_check_branch
      %303 = sbr.rel (0) target = $region93
    $region92: #{ts_resnet_forward.1} parent=1 // pred_region
      %s305 = ssub.s32 2048, 2048
      %306 = vsyncadd [#allocation30], %s305
      %s307 = sshll.u32 [#allocation31], 4
      %s308 = int_to_ptr.vmem [resolvable:$true] %s307
      %313 = dma.hbm_to_vmem [thread:$0]  %s45, 2048, %s308, [#allocation30], 128, 128, 8
    $region93: #{ts_resnet_forward.1} parent=1 // pred_fallthru
      _
    // Predicated region
    $region94: #{ts_resnet_forward.1} parent=1 // pred_check
      _
    $region95: #{ts_resnet_forward.1} parent=1 // pred_check_branch
      %315 = sbr.rel (0) target = $region97
    $region96: #{ts_resnet_forward.1} parent=1 // pred_region
      %s317 = ssub.s32 16, 16
      %318 = vsyncadd [#allocation33], %s317
      %s320 = sshll.u32 [#allocation32], 4
      %s321 = int_to_ptr.vmem [resolvable:$true] %s320
      %323 = dma.hbm_to_vmem [thread:$0]  %s47, 16, %s321, [#allocation33]
    $region97: #{ts_resnet_forward.1} parent=1 // pred_fallthru
      _
    // Predicated region
    $region98: #{ts_resnet_forward.1} parent=1 // pred_check
      _
    $region99: #{ts_resnet_forward.1} parent=1 // pred_check_branch
      %325 = sbr.rel (0) target = $region101
    $region100: #{ts_resnet_forward.1} parent=1 // pred_region
      %s327 = ssub.s32 16, 16
      %328 = vsyncadd [#allocation33], %s327
      %s330 = sshll.u32 [#allocation34], 4
      %s331 = int_to_ptr.vmem [resolvable:$true] %s330
      %333 = dma.hbm_to_vmem [thread:$0]  %s49, 16, %s331, [#allocation33]
    $region101: #{ts_resnet_forward.1} parent=1 // pred_fallthru
      _
    // Predicated region
    $region102: #{ts_resnet_forward.1} parent=1 // pred_check
      _
    $region103: #{ts_resnet_forward.1} parent=1 // pred_check_branch
      %335 = sbr.rel (0) target = $region105
    $region104: #{ts_resnet_forward.1} parent=1 // pred_region
      %s337 = ssub.s32 18432, 18432
      %338 = vsyncadd [#allocation36], %s337
      %s339 = sshll.u32 [#allocation35], 4
      %s340 = int_to_ptr.vmem [resolvable:$true] %s339
      %345 = dma.hbm_to_vmem [thread:$0]  %s51, 18432, %s340, [#allocation36], 128, 128, 8
    $region105: #{ts_resnet_forward.1} parent=1 // pred_fallthru
      _
    // Predicated region
    $region106: #{ts_resnet_forward.1} parent=1 // pred_check
      _
    $region107: #{ts_resnet_forward.1} parent=1 // pred_check_branch
      %347 = sbr.rel (0) target = $region109
    $region108: #{ts_resnet_forward.1} parent=1 // pred_region
      %s349 = ssub.s32 16, 16
      %350 = vsyncadd [#allocation36], %s349
      %s352 = sshll.u32 [#allocation37], 4
      %s353 = int_to_ptr.vmem [resolvable:$true] %s352
      %355 = dma.hbm_to_vmem [thread:$0]  %s53, 16, %s353, [#allocation36]
    $region109: #{ts_resnet_forward.1} parent=1 // pred_fallthru
      _
    // Predicated region
    $region110: #{ts_resnet_forward.1} parent=1 // pred_check
      _
    $region111: #{ts_resnet_forward.1} parent=1 // pred_check_branch
      %357 = sbr.rel (0) target = $region113
    $region112: #{ts_resnet_forward.1} parent=1 // pred_region
      %s359 = ssub.s32 16, 16
      %360 = vsyncadd [#allocation39], %s359
      %s362 = sshll.u32 [#allocation38], 4
      %s363 = int_to_ptr.vmem [resolvable:$true] %s362
      %365 = dma.hbm_to_vmem [thread:$0]  %s55, 16, %s363, [#allocation39]
    $region113: #{ts_resnet_forward.1} parent=1 // pred_fallthru
      _
    // Predicated region
    $region114: #{ts_resnet_forward.1} parent=1 // pred_check
      _
    $region115: #{ts_resnet_forward.1} parent=1 // pred_check_branch
      %367 = sbr.rel (0) target = $region117
    $region116: #{ts_resnet_forward.1} parent=1 // pred_region
      %s369 = ssub.s32 10240, 10240
      %370 = vsyncadd [#allocation39], %s369
      %s371 = sshll.u32 [#allocation40], 4
      %s372 = int_to_ptr.vmem [resolvable:$true] %s371
      %377 = dma.hbm_to_vmem [thread:$0]  %s57, 10240, %s372, [#allocation39], 128, 128, 8
    $region117: #{ts_resnet_forward.1} parent=1 // pred_fallthru
      _
    // Predicated region
    $region118: #{ts_resnet_forward.1} parent=1 // pred_check
      _
    $region119: #{ts_resnet_forward.1} parent=1 // pred_check_branch
      %379 = sbr.rel (0) target = $region121
    $region120: #{ts_resnet_forward.1} parent=1 // pred_region
      %s381 = ssub.s32 16, 16
      %382 = vsyncadd [#allocation42], %s381
      %s384 = sshll.u32 [#allocation41], 4
      %s385 = int_to_ptr.vmem [resolvable:$true] %s384
      %387 = dma.hbm_to_vmem [thread:$0]  %s59, 16, %s385, [#allocation42]
    $region121: #{ts_resnet_forward.1} parent=1 // pred_fallthru
      _
    // Predicated region
    $region122: #{ts_resnet_forward.1} parent=1 // pred_check
      _
    $region123: #{ts_resnet_forward.1} parent=1 // pred_check_branch
      %389 = sbr.rel (0) target = $region125
    $region124: #{ts_resnet_forward.1} parent=1 // pred_region
      %s391 = ssub.s32 16, 16
      %392 = vsyncadd [#allocation42], %s391
      %s394 = sshll.u32 [#allocation43], 4
      %s395 = int_to_ptr.vmem [resolvable:$true] %s394
      %397 = dma.hbm_to_vmem [thread:$0]  %s61, 16, %s395, [#allocation42]
    $region125: #{ts_resnet_forward.1} parent=1 // pred_fallthru
      _
    // Predicated region
    $region126: #{ts_resnet_forward.1} parent=1 // pred_check
      _
    $region127: #{ts_resnet_forward.1} parent=1 // pred_check_branch
      %399 = sbr.rel (0) target = $region129
    $region128: #{ts_resnet_forward.1} parent=1 // pred_region
      _
    $region129: #{ts_resnet_forward.1} parent=1 // pred_fallthru
      _
    // Predicated region
    $region130: #{ts_resnet_forward.1} parent=1 // pred_check
      _
    $region131: #{ts_resnet_forward.1} parent=1 // pred_check_branch
      %401 = sbr.rel (0) target = $region133
    $region132: #{ts_resnet_forward.1} parent=1 // pred_region
      %s403 = ssub.s32 16, 16
      %404 = vsyncadd [#allocation45], %s403
      %s406 = sshll.u32 [#allocation44], 4
      %s407 = int_to_ptr.vmem [resolvable:$true] %s406
      %409 = dma.hbm_to_vmem [thread:$0]  %s65, 16, %s407, [#allocation45]
    $region133: #{ts_resnet_forward.1} parent=1 // pred_fallthru
      _
    // Predicated region
    $region134: #{ts_resnet_forward.1} parent=1 // pred_check
      _
    $region135: #{ts_resnet_forward.1} parent=1 // pred_check_branch
      %411 = sbr.rel (0) target = $region137
    $region136: #{ts_resnet_forward.1} parent=1 // pred_region
      _
    $region137: #{ts_resnet_forward.1} parent=1 // pred_fallthru
      _
    // Predicated region
    $region138: #{ts_resnet_forward.1} parent=1 // pred_check
      _
    $region139: #{ts_resnet_forward.1} parent=1 // pred_check_branch
      %413 = sbr.rel (0) target = $region141
    $region140: #{ts_resnet_forward.1} parent=1 // pred_region
      %s415 = ssub.s32 2048, 2048
      %416 = vsyncadd [#allocation45], %s415
      %s417 = sshll.u32 [#allocation46], 4
      %s418 = int_to_ptr.vmem [resolvable:$true] %s417
      %423 = dma.hbm_to_vmem [thread:$0]  %s69, 2048, %s418, [#allocation45], 128, 128, 8
    $region141: #{ts_resnet_forward.1} parent=1 // pred_fallthru
      _
    // Predicated region
    $region142: #{ts_resnet_forward.1} parent=1 // pred_check
      _
    $region143: #{ts_resnet_forward.1} parent=1 // pred_check_branch
      %425 = sbr.rel (0) target = $region145
    $region144: #{ts_resnet_forward.1} parent=1 // pred_region
      _
    $region145: #{ts_resnet_forward.1} parent=1 // pred_fallthru
      _
    // Predicated region
    $region146: #{ts_resnet_forward.1} parent=1 // pred_check
      _
    $region147: #{ts_resnet_forward.1} parent=1 // pred_check_branch
      %427 = sbr.rel (0) target = $region149
    $region148: #{ts_resnet_forward.1} parent=1 // pred_region
      _
    $region149: #{ts_resnet_forward.1} parent=1 // pred_fallthru
      _
    // Predicated region
    $region150: #{ts_resnet_forward.1} parent=1 // pred_check
      _
    $region151: #{ts_resnet_forward.1} parent=1 // pred_check_branch
      %429 = sbr.rel (0) target = $region153
    $region152: #{ts_resnet_forward.1} parent=1 // pred_region
      _
    $region153: #{ts_resnet_forward.1} parent=1 // pred_fallthru
      _
    // Predicated region
    $region154: #{ts_resnet_forward.1} parent=1 // pred_check
      _
    $region155: #{ts_resnet_forward.1} parent=1 // pred_check_branch
      %431 = sbr.rel (0) target = $region157
    $region156: #{ts_resnet_forward.1} parent=1 // pred_region
      _
    $region157: #{ts_resnet_forward.1} parent=1 // pred_fallthru
      _
    // Predicated region
    $region158: #{ts_resnet_forward.1} parent=1 // pred_check
      _
    $region159: #{ts_resnet_forward.1} parent=1 // pred_check_branch
      %433 = sbr.rel (0) target = $region161
    $region160: #{ts_resnet_forward.1} parent=1 // pred_region
      %434 = dma.done [#allocation3], 18432
    $region161: #{ts_resnet_forward.1} parent=1 // pred_fallthru
      _
    // Predicated region
    $region162: #{ts_resnet_forward.1} parent=1 // pred_check
      _
    $region163: #{ts_resnet_forward.1} parent=1 // pred_check_branch
      %436 = sbr.rel (0) target = $region165
    $region164: #{ts_resnet_forward.1} parent=1 // pred_region
      %437 = dma.done [#allocation6], 10240
    $region165: #{ts_resnet_forward.1} parent=1 // pred_fallthru
      _
    // Predicated region
    $region166: #{ts_resnet_forward.1} parent=1 // pred_check
      _
    $region167: #{ts_resnet_forward.1} parent=1 // pred_check_branch
      %439 = sbr.rel (0) target = $region169
    $region168: #{ts_resnet_forward.1} parent=1 // pred_region
      %440 = dma.done [#allocation6], 16
    $region169: #{ts_resnet_forward.1} parent=1 // pred_fallthru
      _
    // Predicated region
    $region170: #{ts_resnet_forward.1} parent=1 // pred_check
      _
    $region171: #{ts_resnet_forward.1} parent=1 // pred_check_branch
      %442 = sbr.rel (0) target = $region173
    $region172: #{ts_resnet_forward.1} parent=1 // pred_region
      %443 = dma.done [#allocation9], 6144
    $region173: #{ts_resnet_forward.1} parent=1 // pred_fallthru
      _
    // Predicated region
    $region174: #{ts_resnet_forward.1} parent=1 // pred_check
      _
    $region175: #{ts_resnet_forward.1} parent=1 // pred_check_branch
      %445 = sbr.rel (0) target = $region177
    $region176: #{ts_resnet_forward.1} parent=1 // pred_region
      %446 = dma.done [#allocation9], 16
    $region177: #{ts_resnet_forward.1} parent=1 // pred_fallthru
      _
    // Predicated region
    $region178: #{ts_resnet_forward.1} parent=1 // pred_check
      _
    $region179: #{ts_resnet_forward.1} parent=1 // pred_check_branch
      %448 = sbr.rel (0) target = $region181
    $region180: #{ts_resnet_forward.1} parent=1 // pred_region
      %449 = dma.done [#allocation12], 16
    $region181: #{ts_resnet_forward.1} parent=1 // pred_fallthru
      _
    // Predicated region
    $region182: #{ts_resnet_forward.1} parent=1 // pred_check
      _
    $region183: #{ts_resnet_forward.1} parent=1 // pred_check_branch
      %451 = sbr.rel (0) target = $region185
    $region184: #{ts_resnet_forward.1} parent=1 // pred_region
      %452 = dma.done [#allocation12], 2048
    $region185: #{ts_resnet_forward.1} parent=1 // pred_fallthru
      _
    // Predicated region
    $region186: #{ts_resnet_forward.1} parent=1 // pred_check
      _
    $region187: #{ts_resnet_forward.1} parent=1 // pred_check_branch
      %454 = sbr.rel (0) target = $region189
    $region188: #{ts_resnet_forward.1} parent=1 // pred_region
      %455 = dma.done [#allocation15], 16
    $region189: #{ts_resnet_forward.1} parent=1 // pred_fallthru
      _
    // Predicated region
    $region190: #{ts_resnet_forward.1} parent=1 // pred_check
      _
    $region191: #{ts_resnet_forward.1} parent=1 // pred_check_branch
      %457 = sbr.rel (0) target = $region193
    $region192: #{ts_resnet_forward.1} parent=1 // pred_region
      %458 = dma.done [#allocation15], 16
    $region193: #{ts_resnet_forward.1} parent=1 // pred_fallthru
      _
    // Predicated region
    $region194: #{ts_resnet_forward.1} parent=1 // pred_check
      _
    $region195: #{ts_resnet_forward.1} parent=1 // pred_check_branch
      %460 = sbr.rel (0) target = $region197
    $region196: #{ts_resnet_forward.1} parent=1 // pred_region
      %461 = dma.done [#allocation18], 18432
    $region197: #{ts_resnet_forward.1} parent=1 // pred_fallthru
      _
    // Predicated region
    $region198: #{ts_resnet_forward.1} parent=1 // pred_check
      _
    $region199: #{ts_resnet_forward.1} parent=1 // pred_check_branch
      %463 = sbr.rel (0) target = $region201
    $region200: #{ts_resnet_forward.1} parent=1 // pred_region
      %464 = dma.done [#allocation18], 16
    $region201: #{ts_resnet_forward.1} parent=1 // pred_fallthru
      _
    // Predicated region
    $region202: #{ts_resnet_forward.1} parent=1 // pred_check
      _
    $region203: #{ts_resnet_forward.1} parent=1 // pred_check_branch
      %466 = sbr.rel (0) target = $region205
    $region204: #{ts_resnet_forward.1} parent=1 // pred_region
      %467 = dma.done [#allocation21], 16
    $region205: #{ts_resnet_forward.1} parent=1 // pred_fallthru
      _
    // Predicated region
    $region206: #{ts_resnet_forward.1} parent=1 // pred_check
      _
    $region207: #{ts_resnet_forward.1} parent=1 // pred_check_branch
      %469 = sbr.rel (0) target = $region209
    $region208: #{ts_resnet_forward.1} parent=1 // pred_region
      %470 = dma.done [#allocation21], 10240
    $region209: #{ts_resnet_forward.1} parent=1 // pred_fallthru
      _
    // Predicated region
    $region210: #{ts_resnet_forward.1} parent=1 // pred_check
      _
    $region211: #{ts_resnet_forward.1} parent=1 // pred_check_branch
      %472 = sbr.rel (0) target = $region213
    $region212: #{ts_resnet_forward.1} parent=1 // pred_region
      %473 = dma.done [#allocation24], 16
    $region213: #{ts_resnet_forward.1} parent=1 // pred_fallthru
      _
    // Predicated region
    $region214: #{ts_resnet_forward.1} parent=1 // pred_check
      _
    $region215: #{ts_resnet_forward.1} parent=1 // pred_check_branch
      %475 = sbr.rel (0) target = $region217
    $region216: #{ts_resnet_forward.1} parent=1 // pred_region
      %476 = dma.done [#allocation24], 16
    $region217: #{ts_resnet_forward.1} parent=1 // pred_fallthru
      _
    // Predicated region
    $region218: #{ts_resnet_forward.1} parent=1 // pred_check
      _
    $region219: #{ts_resnet_forward.1} parent=1 // pred_check_branch
      %478 = sbr.rel (0) target = $region221
    $region220: #{ts_resnet_forward.1} parent=1 // pred_region
      %479 = dma.done [#allocation27], 6144
    $region221: #{ts_resnet_forward.1} parent=1 // pred_fallthru
      _
    // Predicated region
    $region222: #{ts_resnet_forward.1} parent=1 // pred_check
      _
    $region223: #{ts_resnet_forward.1} parent=1 // pred_check_branch
      %481 = sbr.rel (0) target = $region225
    $region224: #{ts_resnet_forward.1} parent=1 // pred_region
      %482 = dma.done [#allocation27], 16
    $region225: #{ts_resnet_forward.1} parent=1 // pred_fallthru
      _
    // Predicated region
    $region226: #{ts_resnet_forward.1} parent=1 // pred_check
      _
    $region227: #{ts_resnet_forward.1} parent=1 // pred_check_branch
      %484 = sbr.rel (0) target = $region229
    $region228: #{ts_resnet_forward.1} parent=1 // pred_region
      %485 = dma.done [#allocation30], 16
    $region229: #{ts_resnet_forward.1} parent=1 // pred_fallthru
      _
    // Predicated region
    $region230: #{ts_resnet_forward.1} parent=1 // pred_check
      _
    $region231: #{ts_resnet_forward.1} parent=1 // pred_check_branch
      %487 = sbr.rel (0) target = $region233
    $region232: #{ts_resnet_forward.1} parent=1 // pred_region
      %488 = dma.done [#allocation30], 2048
    $region233: #{ts_resnet_forward.1} parent=1 // pred_fallthru
      _
    // Predicated region
    $region234: #{ts_resnet_forward.1} parent=1 // pred_check
      _
    $region235: #{ts_resnet_forward.1} parent=1 // pred_check_branch
      %490 = sbr.rel (0) target = $region237
    $region236: #{ts_resnet_forward.1} parent=1 // pred_region
      %491 = dma.done [#allocation33], 16
    $region237: #{ts_resnet_forward.1} parent=1 // pred_fallthru
      _
    // Predicated region
    $region238: #{ts_resnet_forward.1} parent=1 // pred_check
      _
    $region239: #{ts_resnet_forward.1} parent=1 // pred_check_branch
      %493 = sbr.rel (0) target = $region241
    $region240: #{ts_resnet_forward.1} parent=1 // pred_region
      %494 = dma.done [#allocation33], 16
    $region241: #{ts_resnet_forward.1} parent=1 // pred_fallthru
      _
    // Predicated region
    $region242: #{ts_resnet_forward.1} parent=1 // pred_check
      _
    $region243: #{ts_resnet_forward.1} parent=1 // pred_check_branch
      %496 = sbr.rel (0) target = $region245
    $region244: #{ts_resnet_forward.1} parent=1 // pred_region
      %497 = dma.done [#allocation36], 18432
    $region245: #{ts_resnet_forward.1} parent=1 // pred_fallthru
      _
    // Predicated region
    $region246: #{ts_resnet_forward.1} parent=1 // pred_check
      _
    $region247: #{ts_resnet_forward.1} parent=1 // pred_check_branch
      %499 = sbr.rel (0) target = $region249
    $region248: #{ts_resnet_forward.1} parent=1 // pred_region
      %500 = dma.done [#allocation36], 16
    $region249: #{ts_resnet_forward.1} parent=1 // pred_fallthru
      _
    // Predicated region
    $region250: #{ts_resnet_forward.1} parent=1 // pred_check
      _
    $region251: #{ts_resnet_forward.1} parent=1 // pred_check_branch
      %502 = sbr.rel (0) target = $region253
    $region252: #{ts_resnet_forward.1} parent=1 // pred_region
      %503 = dma.done [#allocation39], 16
    $region253: #{ts_resnet_forward.1} parent=1 // pred_fallthru
      _
    // Predicated region
    $region254: #{ts_resnet_forward.1} parent=1 // pred_check
      _
    $region255: #{ts_resnet_forward.1} parent=1 // pred_check_branch
      %505 = sbr.rel (0) target = $region257
    $region256: #{ts_resnet_forward.1} parent=1 // pred_region
      %506 = dma.done [#allocation39], 10240
    $region257: #{ts_resnet_forward.1} parent=1 // pred_fallthru
      _
    // Predicated region
    $region258: #{ts_resnet_forward.1} parent=1 // pred_check
      _
    $region259: #{ts_resnet_forward.1} parent=1 // pred_check_branch
      %508 = sbr.rel (0) target = $region261
    $region260: #{ts_resnet_forward.1} parent=1 // pred_region
      %509 = dma.done [#allocation42], 16
    $region261: #{ts_resnet_forward.1} parent=1 // pred_fallthru
      _
    // Predicated region
    $region262: #{ts_resnet_forward.1} parent=1 // pred_check
      _
    $region263: #{ts_resnet_forward.1} parent=1 // pred_check_branch
      %511 = sbr.rel (0) target = $region265
    $region264: #{ts_resnet_forward.1} parent=1 // pred_region
      %512 = dma.done [#allocation42], 16
    $region265: #{ts_resnet_forward.1} parent=1 // pred_fallthru
      _
    // Predicated region
    $region266: #{ts_resnet_forward.1} parent=1 // pred_check
      _
    $region267: #{ts_resnet_forward.1} parent=1 // pred_check_branch
      %514 = sbr.rel (0) target = $region269
    $region268: #{ts_resnet_forward.1} parent=1 // pred_region
      %515 = dma.done [#allocation45], 16
    $region269: #{ts_resnet_forward.1} parent=1 // pred_fallthru
      _
    // Predicated region
    $region270: #{ts_resnet_forward.1} parent=1 // pred_check
      _
    $region271: #{ts_resnet_forward.1} parent=1 // pred_check_branch
      %517 = sbr.rel (0) target = $region273
    $region272: #{ts_resnet_forward.1} parent=1 // pred_region
      %518 = dma.done [#allocation45], 2048
    $region273: #{ts_resnet_forward.1} parent=1 // pred_fallthru
      _
    %v519 = vld [vmem:[%s1] sm:$0xff]
    %v520 = vld [vmem:[%s1 + $0x8] sm:$0xff]
    %v521 = vld [vmem:[%s1 + $0x10] sm:$0xff]
    %v522 = vld [vmem:[%s1 + $0x18] sm:$0xff]
    %v523 = vld [vmem:[#allocation2] sm:$0xff]
    %v524 = vld [vmem:[#allocation2 + $0x8] sm:$0xff]
    %v525 = vld [vmem:[#allocation2 + $0x10] sm:$0xff]
    %v526 = vld [vmem:[#allocation2 + $0x18] sm:$0xff]
    %v527 = vld [vmem:[#allocation2 + $0x20] sm:$0xff]
    %v528 = vld [vmem:[#allocation2 + $0x28] sm:$0xff]
    %v529 = vld [vmem:[#allocation2 + $0x30] sm:$0xff]
    %v530 = vld [vmem:[#allocation2 + $0x38] sm:$0xff]
    %v531 = vld [vmem:[#allocation2 + $0x40] sm:$0xff]
    %v532 = vld [vmem:[#allocation2 + $0x48] sm:$0xff]
    %v533 = vld [vmem:[#allocation2 + $0x50] sm:$0xff]
    %v534 = vld [vmem:[#allocation2 + $0x58] sm:$0xff]
    %v535 = vld [vmem:[#allocation2 + $0x60] sm:$0xff]
    %v536 = vld [vmem:[#allocation2 + $0x68] sm:$0xff]
    %v537 = vld [vmem:[#allocation2 + $0x70] sm:$0xff]
    %v538 = vld [vmem:[#allocation2 + $0x78] sm:$0xff]
    %v539 = vld [vmem:[#allocation2 + $0x80] sm:$0xff]
    %v540 = vld [vmem:[#allocation2 + $0x88] sm:$0xff]
    %v541 = vld [vmem:[#allocation2 + $0x90] sm:$0xff]
    %v542 = vld [vmem:[#allocation2 + $0x98] sm:$0xff]
    %v543 = vld [vmem:[#allocation2 + $0xa0] sm:$0xff]
    %v544 = vld [vmem:[#allocation2 + $0xa8] sm:$0xff]
    %v545 = vld [vmem:[#allocation2 + $0xb0] sm:$0xff]
    %v546 = vld [vmem:[#allocation2 + $0xb8] sm:$0xff]
    %v547 = vld [vmem:[#allocation2 + $0xc0] sm:$0xff]
    %v548 = vld [vmem:[#allocation2 + $0xc8] sm:$0xff]
    %v549 = vld [vmem:[#allocation2 + $0xd0] sm:$0xff]
    %v550 = vld [vmem:[#allocation2 + $0xd8] sm:$0xff]
    %v551 = vld [vmem:[#allocation2 + $0xe0] sm:$0xff]
    %v552 = vld [vmem:[#allocation2 + $0xe8] sm:$0xff]
    %v553 = vld [vmem:[#allocation2 + $0xf0] sm:$0xff]
    %v554 = vld [vmem:[#allocation2 + $0xf8] sm:$0xff]
    %v555 = vld [vmem:[#allocation2 + $0x100] sm:$0xff]
    %v556 = vld [vmem:[#allocation2 + $0x108] sm:$0xff]
    %v557 = vld [vmem:[#allocation2 + $0x110] sm:$0xff]
    %v558 = vld [vmem:[#allocation2 + $0x118] sm:$0xff]
    %v559 = vld [vmem:[#allocation2 + $0x120] sm:$0xff]
    %v560 = vld [vmem:[#allocation2 + $0x128] sm:$0xff]
    %v561 = vld [vmem:[#allocation2 + $0x130] sm:$0xff]
    %v562 = vld [vmem:[#allocation2 + $0x138] sm:$0xff]
    %v563 = vld [vmem:[#allocation2 + $0x140] sm:$0xff]
    %v564 = vld [vmem:[#allocation2 + $0x148] sm:$0xff]
    %v565 = vld [vmem:[#allocation2 + $0x150] sm:$0xff]
    %v566 = vld [vmem:[#allocation2 + $0x158] sm:$0xff]
    %v567 = vld [vmem:[#allocation2 + $0x160] sm:$0xff]
    %v568 = vld [vmem:[#allocation2 + $0x168] sm:$0xff]
    %v569 = vld [vmem:[#allocation2 + $0x170] sm:$0xff]
    %v570 = vld [vmem:[#allocation2 + $0x178] sm:$0xff]
    %v571 = vld [vmem:[#allocation2 + $0x180] sm:$0xff]
    %v572 = vld [vmem:[#allocation2 + $0x188] sm:$0xff]
    %v573 = vld [vmem:[#allocation2 + $0x190] sm:$0xff]
    %v574 = vld [vmem:[#allocation2 + $0x198] sm:$0xff]
    %v575 = vld [vmem:[#allocation2 + $0x1a0] sm:$0xff]
    %v576 = vld [vmem:[#allocation2 + $0x1a8] sm:$0xff]
    %v577 = vld [vmem:[#allocation2 + $0x1b0] sm:$0xff]
    %v578 = vld [vmem:[#allocation2 + $0x1b8] sm:$0xff]
    %v579 = vld [vmem:[#allocation2 + $0x1c0] sm:$0xff]
    %v580 = vld [vmem:[#allocation2 + $0x1c8] sm:$0xff]
    %v581 = vld [vmem:[#allocation2 + $0x1d0] sm:$0xff]
    %v582 = vld [vmem:[#allocation2 + $0x1d8] sm:$0xff]
    %v583 = vld [vmem:[#allocation2 + $0x1e0] sm:$0xff]
    %v584 = vld [vmem:[#allocation2 + $0x1e8] sm:$0xff]
    %v585 = vld [vmem:[#allocation2 + $0x1f0] sm:$0xff]
    %v586 = vld [vmem:[#allocation2 + $0x1f8] sm:$0xff]
    %v587 = vld [vmem:[#allocation2 + $0x200] sm:$0xff]
    %v588 = vld [vmem:[#allocation2 + $0x208] sm:$0xff]
    %v589 = vld [vmem:[#allocation2 + $0x210] sm:$0xff]
    %v590 = vld [vmem:[#allocation2 + $0x218] sm:$0xff]
    %v591 = vld [vmem:[#allocation2 + $0x220] sm:$0xff]
    %v592 = vld [vmem:[#allocation2 + $0x228] sm:$0xff]
    %v593 = vld [vmem:[#allocation2 + $0x230] sm:$0xff]
    %v594 = vld [vmem:[#allocation2 + $0x238] sm:$0xff]
    %v595 = vld [vmem:[#allocation2 + $0x240] sm:$0xff]
    %v596 = vld [vmem:[#allocation2 + $0x248] sm:$0xff]
    %v597 = vld [vmem:[#allocation2 + $0x250] sm:$0xff]
    %v598 = vld [vmem:[#allocation2 + $0x258] sm:$0xff]
    %v599 = vld [vmem:[#allocation2 + $0x260] sm:$0xff]
    %v600 = vld [vmem:[#allocation2 + $0x268] sm:$0xff]
    %v601 = vld [vmem:[#allocation2 + $0x270] sm:$0xff]
    %v602 = vld [vmem:[#allocation2 + $0x278] sm:$0xff]
    %v603 = vld [vmem:[#allocation2 + $0x280] sm:$0xff]
    %v604 = vld [vmem:[#allocation2 + $0x288] sm:$0xff]
    %v605 = vld [vmem:[#allocation2 + $0x290] sm:$0xff]
    %v606 = vld [vmem:[#allocation2 + $0x298] sm:$0xff]
    %v607 = vld [vmem:[#allocation2 + $0x2a0] sm:$0xff]
    %v608 = vld [vmem:[#allocation2 + $0x2a8] sm:$0xff]
    %v609 = vld [vmem:[#allocation2 + $0x2b0] sm:$0xff]
    %v610 = vld [vmem:[#allocation2 + $0x2b8] sm:$0xff]
    %v611 = vld [vmem:[#allocation2 + $0x2c0] sm:$0xff]
    %v612 = vld [vmem:[#allocation2 + $0x2c8] sm:$0xff]
    %v613 = vld [vmem:[#allocation2 + $0x2d0] sm:$0xff]
    %v614 = vld [vmem:[#allocation2 + $0x2d8] sm:$0xff]
    %v615 = vld [vmem:[#allocation2 + $0x2e0] sm:$0xff]
    %v616 = vld [vmem:[#allocation2 + $0x2e8] sm:$0xff]
    %v617 = vld [vmem:[#allocation2 + $0x2f0] sm:$0xff]
    %v618 = vld [vmem:[#allocation2 + $0x2f8] sm:$0xff]
    %v619 = vld [vmem:[#allocation2 + $0x300] sm:$0xff]
    %v620 = vld [vmem:[#allocation2 + $0x308] sm:$0xff]
    %v621 = vld [vmem:[#allocation2 + $0x310] sm:$0xff]
    %v622 = vld [vmem:[#allocation2 + $0x318] sm:$0xff]
    %v623 = vld [vmem:[#allocation2 + $0x320] sm:$0xff]
    %v624 = vld [vmem:[#allocation2 + $0x328] sm:$0xff]
    %v625 = vld [vmem:[#allocation2 + $0x330] sm:$0xff]
    %v626 = vld [vmem:[#allocation2 + $0x338] sm:$0xff]
    %v627 = vld [vmem:[#allocation2 + $0x340] sm:$0xff]
    %v628 = vld [vmem:[#allocation2 + $0x348] sm:$0xff]
    %v629 = vld [vmem:[#allocation2 + $0x350] sm:$0xff]
    %v630 = vld [vmem:[#allocation2 + $0x358] sm:$0xff]
    %v631 = vld [vmem:[#allocation2 + $0x360] sm:$0xff]
    %v632 = vld [vmem:[#allocation2 + $0x368] sm:$0xff]
    %v633 = vld [vmem:[#allocation2 + $0x370] sm:$0xff]
    %v634 = vld [vmem:[#allocation2 + $0x378] sm:$0xff]
    %v635 = vld [vmem:[#allocation2 + $0x380] sm:$0xff]
    %v636 = vld [vmem:[#allocation2 + $0x388] sm:$0xff]
    %v637 = vld [vmem:[#allocation2 + $0x390] sm:$0xff]
    %v638 = vld [vmem:[#allocation2 + $0x398] sm:$0xff]
    %v639 = vld [vmem:[#allocation2 + $0x3a0] sm:$0xff]
    %v640 = vld [vmem:[#allocation2 + $0x3a8] sm:$0xff]
    %v641 = vld [vmem:[#allocation2 + $0x3b0] sm:$0xff]
    %v642 = vld [vmem:[#allocation2 + $0x3b8] sm:$0xff]
    %v643 = vld [vmem:[#allocation2 + $0x3c0] sm:$0xff]
    %v644 = vld [vmem:[#allocation2 + $0x3c8] sm:$0xff]
    %v645 = vld [vmem:[#allocation2 + $0x3d0] sm:$0xff]
    %v646 = vld [vmem:[#allocation2 + $0x3d8] sm:$0xff]
    %v647 = vld [vmem:[#allocation2 + $0x3e0] sm:$0xff]
    %v648 = vld [vmem:[#allocation2 + $0x3e8] sm:$0xff]
    %v649 = vld [vmem:[#allocation2 + $0x3f0] sm:$0xff]
    %v650 = vld [vmem:[#allocation2 + $0x3f8] sm:$0xff]
    %v651 = vld [vmem:[#allocation2 + $0x400] sm:$0xff]
    %v652 = vld [vmem:[#allocation2 + $0x408] sm:$0xff]
    %v653 = vld [vmem:[#allocation2 + $0x410] sm:$0xff]
    %v654 = vld [vmem:[#allocation2 + $0x418] sm:$0xff]
    %v655 = vld [vmem:[#allocation2 + $0x420] sm:$0xff]
    %v656 = vld [vmem:[#allocation2 + $0x428] sm:$0xff]
    %v657 = vld [vmem:[#allocation2 + $0x430] sm:$0xff]
    %v658 = vld [vmem:[#allocation2 + $0x438] sm:$0xff]
    %v659 = vld [vmem:[#allocation2 + $0x440] sm:$0xff]
    %v660 = vld [vmem:[#allocation2 + $0x448] sm:$0xff]
    %v661 = vld [vmem:[#allocation2 + $0x450] sm:$0xff]
    %v662 = vld [vmem:[#allocation2 + $0x458] sm:$0xff]
    %v663 = vld [vmem:[#allocation2 + $0x460] sm:$0xff]
    %v664 = vld [vmem:[#allocation2 + $0x468] sm:$0xff]
    %v665 = vld [vmem:[#allocation2 + $0x470] sm:$0xff]
    %v666 = vld [vmem:[#allocation2 + $0x478] sm:$0xff]
    %v667 = vld [vmem:[%s5] sm:$0x1]
    %v668 = vld [vmem:[%s7] sm:$0x1]
    %vm671 = vcmask 1043456
    %v672 = vrot.slane %v519, 4
    %v673 = vrot.slane %v520, 4
    %v674 = vsel %vm671, %v672, %v673
    %v678 = vsel %vm671, 0.0, %v672
    %v679 = vsel %vm671, %v673, 0.0
    %vm682 = vcmask 1046528
    %v683 = vrot.slane %v678, 1
    %v684 = vrot.slane %v674, 1
    %v685 = vsel %vm682, %v683, %v684
    %v686 = vrot.slane %v679, 1
    %v687 = vsel %vm682, %v684, %v686
    %vm690 = vcmask 1045504
    %v691 = vrot.slane %v678, 2
    %v692 = vrot.slane %v674, 2
    %v693 = vsel %vm690, %v691, %v692
    %v694 = vrot.slane %v679, 2
    %v695 = vsel %vm690, %v692, %v694
    %vm698 = vcmask 1044480
    %v699 = vrot.slane %v678, 3
    %v700 = vrot.slane %v674, 3
    %v701 = vsel %vm698, %v699, %v700
    %v702 = vrot.slane %v679, 3
    %v703 = vsel %vm698, %v700, %v702
    %v706 = vrot.slane %v678, 4
    %v707 = vrot.slane %v674, 4
    %v708 = vsel %vm671, %v706, %v707
    %v709 = vrot.slane %v679, 4
    %v710 = vsel %vm671, %v707, %v709
    %vm713 = vcmask 1042432
    %v714 = vrot.slane %v678, 5
    %v715 = vrot.slane %v674, 5
    %v716 = vsel %vm713, %v714, %v715
    %v717 = vrot.slane %v679, 5
    %v718 = vsel %vm713, %v715, %v717
    %vm721 = vcmask 1041408
    %v722 = vrot.slane %v678, 6
    %v723 = vrot.slane %v674, 6
    %v724 = vsel %vm721, %v722, %v723
    %v725 = vrot.slane %v679, 6
    %v726 = vsel %vm721, %v723, %v725
    %vm729 = vcmask 1040384
    %v730 = vrot.slane %v678, 7
    %v731 = vrot.slane %v674, 7
    %v732 = vsel %vm729, %v730, %v731
    %v733 = vrot.slane %v679, 7
    %v734 = vsel %vm729, %v731, %v733
    %737 = vmatprep.subr.mxu0 0.0
    %738 = vmatpush1.msra.mxu0 %v538
    %739 = vmatprep.subr.mxu0 0.0
    %740 = vmatpush1.msra.mxu0 %v537
    %741 = vmatprep.subr.mxu0 0.0
    %742 = vmatpush1.msra.mxu0 %v536
    %743 = vmatprep.subr.mxu0 0.0
    %744 = vmatpush1.msra.mxu0 %v535
    %745 = vmatprep.subr.mxu0 0.0
    %746 = vmatpush1.msra.mxu0 %v534
    %747 = vmatprep.subr.mxu0 0.0
    %748 = vmatpush1.msra.mxu0 %v533
    %749 = vmatprep.subr.mxu0 0.0
    %750 = vmatpush1.msra.mxu0 %v532
    %751 = vmatprep.subr.mxu0 0.0
    %752 = vmatpush1.msra.mxu0 %v531
    %753 = vmatprep.subr.mxu0 0.0
    %754 = vmatpush1.msra.mxu0 %v530
    %755 = vmatprep.subr.mxu0 0.0
    %756 = vmatpush1.msra.mxu0 %v529
    %757 = vmatprep.subr.mxu0 0.0
    %758 = vmatpush1.msra.mxu0 %v528
    %759 = vmatprep.subr.mxu0 0.0
    %760 = vmatpush1.msra.mxu0 %v527
    %761 = vmatprep.subr.mxu0 0.0
    %762 = vmatpush1.msra.mxu0 %v526
    %763 = vmatprep.subr.mxu0 0.0
    %764 = vmatpush1.msra.mxu0 %v525
    %765 = vmatprep.subr.mxu0 0.0
    %766 = vmatpush1.msra.mxu0 %v524
    %767 = vmatprep.subr.mxu0 0.0
    %768 = vmatpush1.msra.mxu0 %v523
    %769 = vmatprep.subr.mxu0 0.0
    %770 = vmatpush2.msra.mxu0 %v554
    %771 = vmatprep.subr.mxu0 0.0
    %772 = vmatpush2.msra.mxu0 %v553
    %773 = vmatprep.subr.mxu0 0.0
    %774 = vmatpush2.msra.mxu0 %v552
    %775 = vmatprep.subr.mxu0 0.0
    %776 = vmatpush2.msra.mxu0 %v551
    %777 = vmatprep.subr.mxu0 0.0
    %778 = vmatpush2.msra.mxu0 %v550
    %779 = vmatprep.subr.mxu0 0.0
    %780 = vmatpush2.msra.mxu0 %v549
    %781 = vmatprep.subr.mxu0 0.0
    %782 = vmatpush2.msra.mxu0 %v548
    %783 = vmatprep.subr.mxu0 0.0
    %784 = vmatpush2.msra.mxu0 %v547
    %785 = vmatprep.subr.mxu0 0.0
    %786 = vmatpush2.msra.mxu0 %v546
    %787 = vmatprep.subr.mxu0 0.0
    %788 = vmatpush2.msra.mxu0 %v545
    %789 = vmatprep.subr.mxu0 0.0
    %790 = vmatpush2.msra.mxu0 %v544
    %791 = vmatprep.subr.mxu0 0.0
    %792 = vmatpush2.msra.mxu0 %v543
    %793 = vmatprep.subr.mxu0 0.0
    %794 = vmatpush2.msra.mxu0 %v542
    %795 = vmatprep.subr.mxu0 0.0
    %796 = vmatpush2.msra.mxu0 %v541
    %797 = vmatprep.subr.mxu0 0.0
    %798 = vmatpush2.msra.mxu0 %v540
    %799 = vmatprep.subr.mxu0 0.0
    %800 = vmatpush2.msra.mxu0 %v539
    %801 = vmatprep.mubr.f32.mxu0 %v685
    %802 = vmatmul.mubr.f32.gmra.mxu0 %v678
    %v803 = vpop.f32.mrf.mxu0
    %v804 = vadd.f32 0.0, %v803
    %v805 = vpop.f32.mrf.mxu0
    %806 = vmatprep.mubr.f32.mxu0 %v687
    %807 = vmatmul.mubr.f32.gmra.mxu0 %v674
    %v808 = vpop.f32.mrf.mxu0
    %v809 = vadd.f32 0.0, %v808
    %v810 = vpop.f32.mrf.mxu0
    %811 = vdwg.mxu0
    %812 = vmatprep.subr.mxu0 0.0
    %813 = vmatpush1.msra.mxu0 %v570
    %814 = vmatprep.subr.mxu0 0.0
    %815 = vmatpush1.msra.mxu0 %v569
    %816 = vmatprep.subr.mxu0 0.0
    %817 = vmatpush1.msra.mxu0 %v568
    %818 = vmatprep.subr.mxu0 0.0
    %819 = vmatpush1.msra.mxu0 %v567
    %820 = vmatprep.subr.mxu0 0.0
    %821 = vmatpush1.msra.mxu0 %v566
    %822 = vmatprep.subr.mxu0 0.0
    %823 = vmatpush1.msra.mxu0 %v565
    %824 = vmatprep.subr.mxu0 0.0
    %825 = vmatpush1.msra.mxu0 %v564
    %826 = vmatprep.subr.mxu0 0.0
    %827 = vmatpush1.msra.mxu0 %v563
    %828 = vmatprep.subr.mxu0 0.0
    %829 = vmatpush1.msra.mxu0 %v562
    %830 = vmatprep.subr.mxu0 0.0
    %831 = vmatpush1.msra.mxu0 %v561
    %832 = vmatprep.subr.mxu0 0.0
    %833 = vmatpush1.msra.mxu0 %v560
    %834 = vmatprep.subr.mxu0 0.0
    %835 = vmatpush1.msra.mxu0 %v559
    %836 = vmatprep.subr.mxu0 0.0
    %837 = vmatpush1.msra.mxu0 %v558
    %838 = vmatprep.subr.mxu0 0.0
    %839 = vmatpush1.msra.mxu0 %v557
    %840 = vmatprep.subr.mxu0 0.0
    %841 = vmatpush1.msra.mxu0 %v556
    %842 = vmatprep.subr.mxu0 0.0
    %843 = vmatpush1.msra.mxu0 %v555
    %844 = vmatprep.subr.mxu0 0.0
    %845 = vmatpush2.msra.mxu0 %v586
    %846 = vmatprep.subr.mxu0 0.0
    %847 = vmatpush2.msra.mxu0 %v585
    %848 = vmatprep.subr.mxu0 0.0
    %849 = vmatpush2.msra.mxu0 %v584
    %850 = vmatprep.subr.mxu0 0.0
    %851 = vmatpush2.msra.mxu0 %v583
    %852 = vmatprep.subr.mxu0 0.0
    %853 = vmatpush2.msra.mxu0 %v582
    %854 = vmatprep.subr.mxu0 0.0
    %855 = vmatpush2.msra.mxu0 %v581
    %856 = vmatprep.subr.mxu0 0.0
    %857 = vmatpush2.msra.mxu0 %v580
    %858 = vmatprep.subr.mxu0 0.0
    %859 = vmatpush2.msra.mxu0 %v579
    %860 = vmatprep.subr.mxu0 0.0
    %861 = vmatpush2.msra.mxu0 %v578
    %862 = vmatprep.subr.mxu0 0.0
    %863 = vmatpush2.msra.mxu0 %v577
    %864 = vmatprep.subr.mxu0 0.0
    %865 = vmatpush2.msra.mxu0 %v576
    %866 = vmatprep.subr.mxu0 0.0
    %867 = vmatpush2.msra.mxu0 %v575
    %868 = vmatprep.subr.mxu0 0.0
    %869 = vmatpush2.msra.mxu0 %v574
    %870 = vmatprep.subr.mxu0 0.0
    %871 = vmatpush2.msra.mxu0 %v573
    %872 = vmatprep.subr.mxu0 0.0
    %873 = vmatpush2.msra.mxu0 %v572
    %874 = vmatprep.subr.mxu0 0.0
    %875 = vmatpush2.msra.mxu0 %v571
    %876 = vmatprep.mubr.f32.mxu0 %v701
    %877 = vmatmul.mubr.f32.gmra.mxu0 %v693
    %v878 = vpop.f32.mrf.mxu0
    %v879 = vadd.f32 %v804, %v878
    %v880 = vpop.f32.mrf.mxu0
    %881 = vmatprep.mubr.f32.mxu0 %v703
    %882 = vmatmul.mubr.f32.gmra.mxu0 %v695
    %v883 = vpop.f32.mrf.mxu0
    %v884 = vadd.f32 %v809, %v883
    %v885 = vpop.f32.mrf.mxu0
    %886 = vdwg.mxu0
    %887 = vmatprep.subr.mxu0 0.0
    %888 = vmatpush1.msra.mxu0 %v602
    %889 = vmatprep.subr.mxu0 0.0
    %890 = vmatpush1.msra.mxu0 %v601
    %891 = vmatprep.subr.mxu0 0.0
    %892 = vmatpush1.msra.mxu0 %v600
    %893 = vmatprep.subr.mxu0 0.0
    %894 = vmatpush1.msra.mxu0 %v599
    %895 = vmatprep.subr.mxu0 0.0
    %896 = vmatpush1.msra.mxu0 %v598
    %897 = vmatprep.subr.mxu0 0.0
    %898 = vmatpush1.msra.mxu0 %v597
    %899 = vmatprep.subr.mxu0 0.0
    %900 = vmatpush1.msra.mxu0 %v596
    %901 = vmatprep.subr.mxu0 0.0
    %902 = vmatpush1.msra.mxu0 %v595
    %903 = vmatprep.subr.mxu0 0.0
    %904 = vmatpush1.msra.mxu0 %v594
    %905 = vmatprep.subr.mxu0 0.0
    %906 = vmatpush1.msra.mxu0 %v593
    %907 = vmatprep.subr.mxu0 0.0
    %908 = vmatpush1.msra.mxu0 %v592
    %909 = vmatprep.subr.mxu0 0.0
    %910 = vmatpush1.msra.mxu0 %v591
    %911 = vmatprep.subr.mxu0 0.0
    %912 = vmatpush1.msra.mxu0 %v590
    %913 = vmatprep.subr.mxu0 0.0
    %914 = vmatpush1.msra.mxu0 %v589
    %915 = vmatprep.subr.mxu0 0.0
    %916 = vmatpush1.msra.mxu0 %v588
    %917 = vmatprep.subr.mxu0 0.0
    %918 = vmatpush1.msra.mxu0 %v587
    %919 = vmatprep.subr.mxu0 0.0
    %920 = vmatpush2.msra.mxu0 %v618
    %921 = vmatprep.subr.mxu0 0.0
    %922 = vmatpush2.msra.mxu0 %v617
    %923 = vmatprep.subr.mxu0 0.0
    %924 = vmatpush2.msra.mxu0 %v616
    %925 = vmatprep.subr.mxu0 0.0
    %926 = vmatpush2.msra.mxu0 %v615
    %927 = vmatprep.subr.mxu0 0.0
    %928 = vmatpush2.msra.mxu0 %v614
    %929 = vmatprep.subr.mxu0 0.0
    %930 = vmatpush2.msra.mxu0 %v613
    %931 = vmatprep.subr.mxu0 0.0
    %932 = vmatpush2.msra.mxu0 %v612
    %933 = vmatprep.subr.mxu0 0.0
    %934 = vmatpush2.msra.mxu0 %v611
    %935 = vmatprep.subr.mxu0 0.0
    %936 = vmatpush2.msra.mxu0 %v610
    %937 = vmatprep.subr.mxu0 0.0
    %938 = vmatpush2.msra.mxu0 %v609
    %939 = vmatprep.subr.mxu0 0.0
    %940 = vmatpush2.msra.mxu0 %v608
    %941 = vmatprep.subr.mxu0 0.0
    %942 = vmatpush2.msra.mxu0 %v607
    %943 = vmatprep.subr.mxu0 0.0
    %944 = vmatpush2.msra.mxu0 %v606
    %945 = vmatprep.subr.mxu0 0.0
    %946 = vmatpush2.msra.mxu0 %v605
    %947 = vmatprep.subr.mxu0 0.0
    %948 = vmatpush2.msra.mxu0 %v604
    %949 = vmatprep.subr.mxu0 0.0
    %950 = vmatpush2.msra.mxu0 %v603
    %951 = vmatprep.mubr.f32.mxu0 %v716
    %952 = vmatmul.mubr.f32.gmra.mxu0 %v708
    %v953 = vpop.f32.mrf.mxu0
    %v954 = vadd.f32 %v879, %v953
    %v955 = vpop.f32.mrf.mxu0
    %956 = vmatprep.mubr.f32.mxu0 %v718
    %957 = vmatmul.mubr.f32.gmra.mxu0 %v710
    %v958 = vpop.f32.mrf.mxu0
    %v959 = vadd.f32 %v884, %v958
    %v960 = vpop.f32.mrf.mxu0
    %961 = vdwg.mxu0
    %962 = vmatprep.subr.mxu0 0.0
    %963 = vmatpush1.msra.mxu0 %v634
    %964 = vmatprep.subr.mxu0 0.0
    %965 = vmatpush1.msra.mxu0 %v633
    %966 = vmatprep.subr.mxu0 0.0
    %967 = vmatpush1.msra.mxu0 %v632
    %968 = vmatprep.subr.mxu0 0.0
    %969 = vmatpush1.msra.mxu0 %v631
    %970 = vmatprep.subr.mxu0 0.0
    %971 = vmatpush1.msra.mxu0 %v630
    %972 = vmatprep.subr.mxu0 0.0
    %973 = vmatpush1.msra.mxu0 %v629
    %974 = vmatprep.subr.mxu0 0.0
    %975 = vmatpush1.msra.mxu0 %v628
    %976 = vmatprep.subr.mxu0 0.0
    %977 = vmatpush1.msra.mxu0 %v627
    %978 = vmatprep.subr.mxu0 0.0
    %979 = vmatpush1.msra.mxu0 %v626
    %980 = vmatprep.subr.mxu0 0.0
    %981 = vmatpush1.msra.mxu0 %v625
    %982 = vmatprep.subr.mxu0 0.0
    %983 = vmatpush1.msra.mxu0 %v624
    %984 = vmatprep.subr.mxu0 0.0
    %985 = vmatpush1.msra.mxu0 %v623
    %986 = vmatprep.subr.mxu0 0.0
    %987 = vmatpush1.msra.mxu0 %v622
    %988 = vmatprep.subr.mxu0 0.0
    %989 = vmatpush1.msra.mxu0 %v621
    %990 = vmatprep.subr.mxu0 0.0
    %991 = vmatpush1.msra.mxu0 %v620
    %992 = vmatprep.subr.mxu0 0.0
    %993 = vmatpush1.msra.mxu0 %v619
    %994 = vmatprep.subr.mxu0 0.0
    %995 = vmatpush2.msra.mxu0 %v650
    %996 = vmatprep.subr.mxu0 0.0
    %997 = vmatpush2.msra.mxu0 %v649
    %998 = vmatprep.subr.mxu0 0.0
    %999 = vmatpush2.msra.mxu0 %v648
    %1000 = vmatprep.subr.mxu0 0.0
    %1001 = vmatpush2.msra.mxu0 %v647
    %1002 = vmatprep.subr.mxu0 0.0
    %1003 = vmatpush2.msra.mxu0 %v646
    %1004 = vmatprep.subr.mxu0 0.0
    %1005 = vmatpush2.msra.mxu0 %v645
    %1006 = vmatprep.subr.mxu0 0.0
    %1007 = vmatpush2.msra.mxu0 %v644
    %1008 = vmatprep.subr.mxu0 0.0
    %1009 = vmatpush2.msra.mxu0 %v643
    %1010 = vmatprep.subr.mxu0 0.0
    %1011 = vmatpush2.msra.mxu0 %v642
    %1012 = vmatprep.subr.mxu0 0.0
    %1013 = vmatpush2.msra.mxu0 %v641
    %1014 = vmatprep.subr.mxu0 0.0
    %1015 = vmatpush2.msra.mxu0 %v640
    %1016 = vmatprep.subr.mxu0 0.0
    %1017 = vmatpush2.msra.mxu0 %v639
    %1018 = vmatprep.subr.mxu0 0.0
    %1019 = vmatpush2.msra.mxu0 %v638
    %1020 = vmatprep.subr.mxu0 0.0
    %1021 = vmatpush2.msra.mxu0 %v637
    %1022 = vmatprep.subr.mxu0 0.0
    %1023 = vmatpush2.msra.mxu0 %v636
    %1024 = vmatprep.subr.mxu0 0.0
    %1025 = vmatpush2.msra.mxu0 %v635
    %1026 = vmatprep.mubr.f32.mxu0 %v732
    %1027 = vmatmul.mubr.f32.gmra.mxu0 %v724
    %v1028 = vpop.f32.mrf.mxu0
    %v1029 = vadd.f32 %v954, %v1028
    %v1030 = vpop.f32.mrf.mxu0
    %1031 = vmatprep.mubr.f32.mxu0 %v734
    %1032 = vmatmul.mubr.f32.gmra.mxu0 %v726
    %v1033 = vpop.f32.mrf.mxu0
    %v1034 = vadd.f32 %v959, %v1033
    %v1035 = vpop.f32.mrf.mxu0
    %1036 = vdwg.mxu0
    %1037 = vmatprep.subr.mxu0 0.0
    %1038 = vmatpush1.msra.mxu0 %v666
    %1039 = vmatprep.subr.mxu0 0.0
    %1040 = vmatpush1.msra.mxu0 %v665
    %1041 = vmatprep.subr.mxu0 0.0
    %1042 = vmatpush1.msra.mxu0 %v664
    %1043 = vmatprep.subr.mxu0 0.0
    %1044 = vmatpush1.msra.mxu0 %v663
    %1045 = vmatprep.subr.mxu0 0.0
    %1046 = vmatpush1.msra.mxu0 %v662
    %1047 = vmatprep.subr.mxu0 0.0
    %1048 = vmatpush1.msra.mxu0 %v661
    %1049 = vmatprep.subr.mxu0 0.0
    %1050 = vmatpush1.msra.mxu0 %v660
    %1051 = vmatprep.subr.mxu0 0.0
    %1052 = vmatpush1.msra.mxu0 %v659
    %1053 = vmatprep.subr.mxu0 0.0
    %1054 = vmatpush1.msra.mxu0 %v658
    %1055 = vmatprep.subr.mxu0 0.0
    %1056 = vmatpush1.msra.mxu0 %v657
    %1057 = vmatprep.subr.mxu0 0.0
    %1058 = vmatpush1.msra.mxu0 %v656
    %1059 = vmatprep.subr.mxu0 0.0
    %1060 = vmatpush1.msra.mxu0 %v655
    %1061 = vmatprep.subr.mxu0 0.0
    %1062 = vmatpush1.msra.mxu0 %v654
    %1063 = vmatprep.subr.mxu0 0.0
    %1064 = vmatpush1.msra.mxu0 %v653
    %1065 = vmatprep.subr.mxu0 0.0
    %1066 = vmatpush1.msra.mxu0 %v652
    %1067 = vmatprep.subr.mxu0 0.0
    %1068 = vmatpush1.msra.mxu0 %v651
    %1069 = vmatprep.subr.mxu0 0.0
    %1070 = vmatpush2.msra.mxu0 0.0
    %1071 = vmatprep.subr.mxu0 0.0
    %1072 = vmatpush2.msra.mxu0 0.0
    %1073 = vmatprep.subr.mxu0 0.0
    %1074 = vmatpush2.msra.mxu0 0.0
    %1075 = vmatprep.subr.mxu0 0.0
    %1076 = vmatpush2.msra.mxu0 0.0
    %1077 = vmatprep.subr.mxu0 0.0
    %1078 = vmatpush2.msra.mxu0 0.0
    %1079 = vmatprep.subr.mxu0 0.0
    %1080 = vmatpush2.msra.mxu0 0.0
    %1081 = vmatprep.subr.mxu0 0.0
    %1082 = vmatpush2.msra.mxu0 0.0
    %1083 = vmatprep.subr.mxu0 0.0
    %1084 = vmatpush2.msra.mxu0 0.0
    %1085 = vmatprep.subr.mxu0 0.0
    %1086 = vmatpush2.msra.mxu0 0.0
    %1087 = vmatprep.subr.mxu0 0.0
    %1088 = vmatpush2.msra.mxu0 0.0
    %1089 = vmatprep.subr.mxu0 0.0
    %1090 = vmatpush2.msra.mxu0 0.0
    %1091 = vmatprep.subr.mxu0 0.0
    %1092 = vmatpush2.msra.mxu0 0.0
    %1093 = vmatprep.subr.mxu0 0.0
    %1094 = vmatpush2.msra.mxu0 0.0
    %1095 = vmatprep.subr.mxu0 0.0
    %1096 = vmatpush2.msra.mxu0 0.0
    %1097 = vmatprep.subr.mxu0 0.0
    %1098 = vmatpush2.msra.mxu0 0.0
    %1099 = vmatprep.subr.mxu0 0.0
    %1100 = vmatpush2.msra.mxu0 0.0
    %1101 = vmatprep.mubr.f32.mxu0 0.0
    %1102 = vmatmul.mubr.f32.gmra.mxu0 %v674
    %v1103 = vpop.f32.mrf.mxu0
    %v1104 = vadd.f32 %v1029, %v1103
    %v1105 = vpop.f32.mrf.mxu0
    %1106 = vmatprep.mubr.f32.mxu0 0.0
    %1107 = vmatmul.mubr.f32.gmra.mxu0 %v679
    %v1108 = vpop.f32.mrf.mxu0
    %v1109 = vadd.f32 %v1034, %v1108
    %v1110 = vpop.f32.mrf.mxu0
    %1111 = vdwg.mxu0
    %v1112 = vadd.f32 %v1104, %v1109
    %v1113 = vrot.slane %v1112, 4
    %v1114 = vadd.f32 %v1112, %v1113
    %v1115 = vrot.slane %v1114, 2
    %v1116 = vadd.f32 %v1114, %v1115
    %v1117 = vrot.slane %v1116, 1
    %v1118 = vadd.f32 %v1116, %v1117
    %v1119 = vadd.f32 %v1118, 0.0
    %v1120 = vmul.f32 %v1104, %v1104
    %v1121 = vmul.f32 %v1109, %v1109
    %v1122 = vadd.f32 %v1120, %v1121
    %v1123 = vrot.slane %v1122, 4
    %v1124 = vadd.f32 %v1122, %v1123
    %v1125 = vrot.slane %v1124, 2
    %v1126 = vadd.f32 %v1124, %v1125
    %v1127 = vrot.slane %v1126, 1
    %v1128 = vadd.f32 %v1126, %v1127
    %v1129 = vadd.f32 %v1128, 0.0
    %v1132 = vrot.slane %v521, 4
    %v1133 = vrot.slane %v522, 4
    %v1134 = vsel %vm671, %v1132, %v1133
    %v1138 = vsel %vm671, 0.0, %v1132
    %v1139 = vsel %vm671, %v1133, 0.0
    %v1142 = vrot.slane %v1138, 1
    %v1143 = vrot.slane %v1134, 1
    %v1144 = vsel %vm682, %v1142, %v1143
    %v1145 = vrot.slane %v1139, 1
    %v1146 = vsel %vm682, %v1143, %v1145
    %v1149 = vrot.slane %v1138, 2
    %v1150 = vrot.slane %v1134, 2
    %v1151 = vsel %vm690, %v1149, %v1150
    %v1152 = vrot.slane %v1139, 2
    %v1153 = vsel %vm690, %v1150, %v1152
    %v1156 = vrot.slane %v1138, 3
    %v1157 = vrot.slane %v1134, 3
    %v1158 = vsel %vm698, %v1156, %v1157
    %v1159 = vrot.slane %v1139, 3
    %v1160 = vsel %vm698, %v1157, %v1159
    %v1163 = vrot.slane %v1138, 4
    %v1164 = vrot.slane %v1134, 4
    %v1165 = vsel %vm671, %v1163, %v1164
    %v1166 = vrot.slane %v1139, 4
    %v1167 = vsel %vm671, %v1164, %v1166
    %v1170 = vrot.slane %v1138, 5
    %v1171 = vrot.slane %v1134, 5
    %v1172 = vsel %vm713, %v1170, %v1171
    %v1173 = vrot.slane %v1139, 5
    %v1174 = vsel %vm713, %v1171, %v1173
    %v1177 = vrot.slane %v1138, 6
    %v1178 = vrot.slane %v1134, 6
    %v1179 = vsel %vm721, %v1177, %v1178
    %v1180 = vrot.slane %v1139, 6
    %v1181 = vsel %vm721, %v1178, %v1180
    %v1184 = vrot.slane %v1138, 7
    %v1185 = vrot.slane %v1134, 7
    %v1186 = vsel %vm729, %v1184, %v1185
    %v1187 = vrot.slane %v1139, 7
    %v1188 = vsel %vm729, %v1185, %v1187
    %1191 = vmatprep.subr.mxu0 0.0
    %1192 = vmatpush1.msra.mxu0 %v538
    %1193 = vmatprep.subr.mxu0 0.0
    %1194 = vmatpush1.msra.mxu0 %v537
    %1195 = vmatprep.subr.mxu0 0.0
    %1196 = vmatpush1.msra.mxu0 %v536
    %1197 = vmatprep.subr.mxu0 0.0
    %1198 = vmatpush1.msra.mxu0 %v535
    %1199 = vmatprep.subr.mxu0 0.0
    %1200 = vmatpush1.msra.mxu0 %v534
    %1201 = vmatprep.subr.mxu0 0.0
    %1202 = vmatpush1.msra.mxu0 %v533
    %1203 = vmatprep.subr.mxu0 0.0
    %1204 = vmatpush1.msra.mxu0 %v532
    %1205 = vmatprep.subr.mxu0 0.0
    %1206 = vmatpush1.msra.mxu0 %v531
    %1207 = vmatprep.subr.mxu0 0.0
    %1208 = vmatpush1.msra.mxu0 %v530
    %1209 = vmatprep.subr.mxu0 0.0
    %1210 = vmatpush1.msra.mxu0 %v529
    %1211 = vmatprep.subr.mxu0 0.0
    %1212 = vmatpush1.msra.mxu0 %v528
    %1213 = vmatprep.subr.mxu0 0.0
    %1214 = vmatpush1.msra.mxu0 %v527
    %1215 = vmatprep.subr.mxu0 0.0
    %1216 = vmatpush1.msra.mxu0 %v526
    %1217 = vmatprep.subr.mxu0 0.0
    %1218 = vmatpush1.msra.mxu0 %v525
    %1219 = vmatprep.subr.mxu0 0.0
    %1220 = vmatpush1.msra.mxu0 %v524
    %1221 = vmatprep.subr.mxu0 0.0
    %1222 = vmatpush1.msra.mxu0 %v523
    %1223 = vmatprep.subr.mxu0 0.0
    %1224 = vmatpush2.msra.mxu0 %v554
    %1225 = vmatprep.subr.mxu0 0.0
    %1226 = vmatpush2.msra.mxu0 %v553
    %1227 = vmatprep.subr.mxu0 0.0
    %1228 = vmatpush2.msra.mxu0 %v552
    %1229 = vmatprep.subr.mxu0 0.0
    %1230 = vmatpush2.msra.mxu0 %v551
    %1231 = vmatprep.subr.mxu0 0.0
    %1232 = vmatpush2.msra.mxu0 %v550
    %1233 = vmatprep.subr.mxu0 0.0
    %1234 = vmatpush2.msra.mxu0 %v549
    %1235 = vmatprep.subr.mxu0 0.0
    %1236 = vmatpush2.msra.mxu0 %v548
    %1237 = vmatprep.subr.mxu0 0.0
    %1238 = vmatpush2.msra.mxu0 %v547
    %1239 = vmatprep.subr.mxu0 0.0
    %1240 = vmatpush2.msra.mxu0 %v546
    %1241 = vmatprep.subr.mxu0 0.0
    %1242 = vmatpush2.msra.mxu0 %v545
    %1243 = vmatprep.subr.mxu0 0.0
    %1244 = vmatpush2.msra.mxu0 %v544
    %1245 = vmatprep.subr.mxu0 0.0
    %1246 = vmatpush2.msra.mxu0 %v543
    %1247 = vmatprep.subr.mxu0 0.0
    %1248 = vmatpush2.msra.mxu0 %v542
    %1249 = vmatprep.subr.mxu0 0.0
    %1250 = vmatpush2.msra.mxu0 %v541
    %1251 = vmatprep.subr.mxu0 0.0
    %1252 = vmatpush2.msra.mxu0 %v540
    %1253 = vmatprep.subr.mxu0 0.0
    %1254 = vmatpush2.msra.mxu0 %v539
    %1255 = vmatprep.mubr.f32.mxu0 %v1144
    %1256 = vmatmul.mubr.f32.gmra.mxu0 %v1138
    %v1257 = vpop.f32.mrf.mxu0
    %v1258 = vadd.f32 0.0, %v1257
    %v1259 = vpop.f32.mrf.mxu0
    %1260 = vmatprep.mubr.f32.mxu0 %v1146
    %1261 = vmatmul.mubr.f32.gmra.mxu0 %v1134
    %v1262 = vpop.f32.mrf.mxu0
    %v1263 = vadd.f32 0.0, %v1262
    %v1264 = vpop.f32.mrf.mxu0
    %1265 = vdwg.mxu0
    %1266 = vmatprep.subr.mxu0 0.0
    %1267 = vmatpush1.msra.mxu0 %v570
    %1268 = vmatprep.subr.mxu0 0.0
    %1269 = vmatpush1.msra.mxu0 %v569
    %1270 = vmatprep.subr.mxu0 0.0
    %1271 = vmatpush1.msra.mxu0 %v568
    %1272 = vmatprep.subr.mxu0 0.0
    %1273 = vmatpush1.msra.mxu0 %v567
    %1274 = vmatprep.subr.mxu0 0.0
    %1275 = vmatpush1.msra.mxu0 %v566
    %1276 = vmatprep.subr.mxu0 0.0
    %1277 = vmatpush1.msra.mxu0 %v565
    %1278 = vmatprep.subr.mxu0 0.0
    %1279 = vmatpush1.msra.mxu0 %v564
    %1280 = vmatprep.subr.mxu0 0.0
    %1281 = vmatpush1.msra.mxu0 %v563
    %1282 = vmatprep.subr.mxu0 0.0
    %1283 = vmatpush1.msra.mxu0 %v562
    %1284 = vmatprep.subr.mxu0 0.0
    %1285 = vmatpush1.msra.mxu0 %v561
    %1286 = vmatprep.subr.mxu0 0.0
    %1287 = vmatpush1.msra.mxu0 %v560
    %1288 = vmatprep.subr.mxu0 0.0
    %1289 = vmatpush1.msra.mxu0 %v559
    %1290 = vmatprep.subr.mxu0 0.0
    %1291 = vmatpush1.msra.mxu0 %v558
    %1292 = vmatprep.subr.mxu0 0.0
    %1293 = vmatpush1.msra.mxu0 %v557
    %1294 = vmatprep.subr.mxu0 0.0
    %1295 = vmatpush1.msra.mxu0 %v556
    %1296 = vmatprep.subr.mxu0 0.0
    %1297 = vmatpush1.msra.mxu0 %v555
    %1298 = vmatprep.subr.mxu0 0.0
    %1299 = vmatpush2.msra.mxu0 %v586
    %1300 = vmatprep.subr.mxu0 0.0
    %1301 = vmatpush2.msra.mxu0 %v585
    %1302 = vmatprep.subr.mxu0 0.0
    %1303 = vmatpush2.msra.mxu0 %v584
    %1304 = vmatprep.subr.mxu0 0.0
    %1305 = vmatpush2.msra.mxu0 %v583
    %1306 = vmatprep.subr.mxu0 0.0
    %1307 = vmatpush2.msra.mxu0 %v582
    %1308 = vmatprep.subr.mxu0 0.0
    %1309 = vmatpush2.msra.mxu0 %v581
    %1310 = vmatprep.subr.mxu0 0.0
    %1311 = vmatpush2.msra.mxu0 %v580
    %1312 = vmatprep.subr.mxu0 0.0
    %1313 = vmatpush2.msra.mxu0 %v579
    %1314 = vmatprep.subr.mxu0 0.0
    %1315 = vmatpush2.msra.mxu0 %v578
    %1316 = vmatprep.subr.mxu0 0.0
    %1317 = vmatpush2.msra.mxu0 %v577
    %1318 = vmatprep.subr.mxu0 0.0
    %1319 = vmatpush2.msra.mxu0 %v576
    %1320 = vmatprep.subr.mxu0 0.0
    %1321 = vmatpush2.msra.mxu0 %v575
    %1322 = vmatprep.subr.mxu0 0.0
    %1323 = vmatpush2.msra.mxu0 %v574
    %1324 = vmatprep.subr.mxu0 0.0
    %1325 = vmatpush2.msra.mxu0 %v573
    %1326 = vmatprep.subr.mxu0 0.0
    %1327 = vmatpush2.msra.mxu0 %v572
    %1328 = vmatprep.subr.mxu0 0.0
    %1329 = vmatpush2.msra.mxu0 %v571
    %1330 = vmatprep.mubr.f32.mxu0 %v1158
    %1331 = vmatmul.mubr.f32.gmra.mxu0 %v1151
    %v1332 = vpop.f32.mrf.mxu0
    %v1333 = vadd.f32 %v1258, %v1332
    %v1334 = vpop.f32.mrf.mxu0
    %1335 = vmatprep.mubr.f32.mxu0 %v1160
    %1336 = vmatmul.mubr.f32.gmra.mxu0 %v1153
    %v1337 = vpop.f32.mrf.mxu0
    %v1338 = vadd.f32 %v1263, %v1337
    %v1339 = vpop.f32.mrf.mxu0
    %1340 = vdwg.mxu0
    %1341 = vmatprep.subr.mxu0 0.0
    %1342 = vmatpush1.msra.mxu0 %v602
    %1343 = vmatprep.subr.mxu0 0.0
    %1344 = vmatpush1.msra.mxu0 %v601
    %1345 = vmatprep.subr.mxu0 0.0
    %1346 = vmatpush1.msra.mxu0 %v600
    %1347 = vmatprep.subr.mxu0 0.0
    %1348 = vmatpush1.msra.mxu0 %v599
    %1349 = vmatprep.subr.mxu0 0.0
    %1350 = vmatpush1.msra.mxu0 %v598
    %1351 = vmatprep.subr.mxu0 0.0
    %1352 = vmatpush1.msra.mxu0 %v597
    %1353 = vmatprep.subr.mxu0 0.0
    %1354 = vmatpush1.msra.mxu0 %v596
    %1355 = vmatprep.subr.mxu0 0.0
    %1356 = vmatpush1.msra.mxu0 %v595
    %1357 = vmatprep.subr.mxu0 0.0
    %1358 = vmatpush1.msra.mxu0 %v594
    %1359 = vmatprep.subr.mxu0 0.0
    %1360 = vmatpush1.msra.mxu0 %v593
    %1361 = vmatprep.subr.mxu0 0.0
    %1362 = vmatpush1.msra.mxu0 %v592
    %1363 = vmatprep.subr.mxu0 0.0
    %1364 = vmatpush1.msra.mxu0 %v591
    %1365 = vmatprep.subr.mxu0 0.0
    %1366 = vmatpush1.msra.mxu0 %v590
    %1367 = vmatprep.subr.mxu0 0.0
    %1368 = vmatpush1.msra.mxu0 %v589
    %1369 = vmatprep.subr.mxu0 0.0
    %1370 = vmatpush1.msra.mxu0 %v588
    %1371 = vmatprep.subr.mxu0 0.0
    %1372 = vmatpush1.msra.mxu0 %v587
    %1373 = vmatprep.subr.mxu0 0.0
    %1374 = vmatpush2.msra.mxu0 %v618
    %1375 = vmatprep.subr.mxu0 0.0
    %1376 = vmatpush2.msra.mxu0 %v617
    %1377 = vmatprep.subr.mxu0 0.0
    %1378 = vmatpush2.msra.mxu0 %v616
    %1379 = vmatprep.subr.mxu0 0.0
    %1380 = vmatpush2.msra.mxu0 %v615
    %1381 = vmatprep.subr.mxu0 0.0
    %1382 = vmatpush2.msra.mxu0 %v614
    %1383 = vmatprep.subr.mxu0 0.0
    %1384 = vmatpush2.msra.mxu0 %v613
    %1385 = vmatprep.subr.mxu0 0.0
    %1386 = vmatpush2.msra.mxu0 %v612
    %1387 = vmatprep.subr.mxu0 0.0
    %1388 = vmatpush2.msra.mxu0 %v611
    %1389 = vmatprep.subr.mxu0 0.0
    %1390 = vmatpush2.msra.mxu0 %v610
    %1391 = vmatprep.subr.mxu0 0.0
    %1392 = vmatpush2.msra.mxu0 %v609
    %1393 = vmatprep.subr.mxu0 0.0
    %1394 = vmatpush2.msra.mxu0 %v608
    %1395 = vmatprep.subr.mxu0 0.0
    %1396 = vmatpush2.msra.mxu0 %v607
    %1397 = vmatprep.subr.mxu0 0.0
    %1398 = vmatpush2.msra.mxu0 %v606
    %1399 = vmatprep.subr.mxu0 0.0
    %1400 = vmatpush2.msra.mxu0 %v605
    %1401 = vmatprep.subr.mxu0 0.0
    %1402 = vmatpush2.msra.mxu0 %v604
    %1403 = vmatprep.subr.mxu0 0.0
    %1404 = vmatpush2.msra.mxu0 %v603
    %1405 = vmatprep.mubr.f32.mxu0 %v1172
    %1406 = vmatmul.mubr.f32.gmra.mxu0 %v1165
    %v1407 = vpop.f32.mrf.mxu0
    %v1408 = vadd.f32 %v1333, %v1407
    %v1409 = vpop.f32.mrf.mxu0
    %1410 = vmatprep.mubr.f32.mxu0 %v1174
    %1411 = vmatmul.mubr.f32.gmra.mxu0 %v1167
    %v1412 = vpop.f32.mrf.mxu0
    %v1413 = vadd.f32 %v1338, %v1412
    %v1414 = vpop.f32.mrf.mxu0
    %1415 = vdwg.mxu0
    %1416 = vmatprep.subr.mxu0 0.0
    %1417 = vmatpush1.msra.mxu0 %v634
    %1418 = vmatprep.subr.mxu0 0.0
    %1419 = vmatpush1.msra.mxu0 %v633
    %1420 = vmatprep.subr.mxu0 0.0
    %1421 = vmatpush1.msra.mxu0 %v632
    %1422 = vmatprep.subr.mxu0 0.0
    %1423 = vmatpush1.msra.mxu0 %v631
    %1424 = vmatprep.subr.mxu0 0.0
    %1425 = vmatpush1.msra.mxu0 %v630
    %1426 = vmatprep.subr.mxu0 0.0
    %1427 = vmatpush1.msra.mxu0 %v629
    %1428 = vmatprep.subr.mxu0 0.0
    %1429 = vmatpush1.msra.mxu0 %v628
    %1430 = vmatprep.subr.mxu0 0.0
    %1431 = vmatpush1.msra.mxu0 %v627
    %1432 = vmatprep.subr.mxu0 0.0
    %1433 = vmatpush1.msra.mxu0 %v626
    %1434 = vmatprep.subr.mxu0 0.0
    %1435 = vmatpush1.msra.mxu0 %v625
    %1436 = vmatprep.subr.mxu0 0.0
    %1437 = vmatpush1.msra.mxu0 %v624
    %1438 = vmatprep.subr.mxu0 0.0
    %1439 = vmatpush1.msra.mxu0 %v623
    %1440 = vmatprep.subr.mxu0 0.0
    %1441 = vmatpush1.msra.mxu0 %v622
    %1442 = vmatprep.subr.mxu0 0.0
    %1443 = vmatpush1.msra.mxu0 %v621
    %1444 = vmatprep.subr.mxu0 0.0
    %1445 = vmatpush1.msra.mxu0 %v620
    %1446 = vmatprep.subr.mxu0 0.0
    %1447 = vmatpush1.msra.mxu0 %v619
    %1448 = vmatprep.subr.mxu0 0.0
    %1449 = vmatpush2.msra.mxu0 %v650
    %1450 = vmatprep.subr.mxu0 0.0
    %1451 = vmatpush2.msra.mxu0 %v649
    %1452 = vmatprep.subr.mxu0 0.0
    %1453 = vmatpush2.msra.mxu0 %v648
    %1454 = vmatprep.subr.mxu0 0.0
    %1455 = vmatpush2.msra.mxu0 %v647
    %1456 = vmatprep.subr.mxu0 0.0
    %1457 = vmatpush2.msra.mxu0 %v646
    %1458 = vmatprep.subr.mxu0 0.0
    %1459 = vmatpush2.msra.mxu0 %v645
    %1460 = vmatprep.subr.mxu0 0.0
    %1461 = vmatpush2.msra.mxu0 %v644
    %1462 = vmatprep.subr.mxu0 0.0
    %1463 = vmatpush2.msra.mxu0 %v643
    %1464 = vmatprep.subr.mxu0 0.0
    %1465 = vmatpush2.msra.mxu0 %v642
    %1466 = vmatprep.subr.mxu0 0.0
    %1467 = vmatpush2.msra.mxu0 %v641
    %1468 = vmatprep.subr.mxu0 0.0
    %1469 = vmatpush2.msra.mxu0 %v640
    %1470 = vmatprep.subr.mxu0 0.0
    %1471 = vmatpush2.msra.mxu0 %v639
    %1472 = vmatprep.subr.mxu0 0.0
    %1473 = vmatpush2.msra.mxu0 %v638
    %1474 = vmatprep.subr.mxu0 0.0
    %1475 = vmatpush2.msra.mxu0 %v637
    %1476 = vmatprep.subr.mxu0 0.0
    %1477 = vmatpush2.msra.mxu0 %v636
    %1478 = vmatprep.subr.mxu0 0.0
    %1479 = vmatpush2.msra.mxu0 %v635
    %1480 = vmatprep.mubr.f32.mxu0 %v1186
    %1481 = vmatmul.mubr.f32.gmra.mxu0 %v1179
    %v1482 = vpop.f32.mrf.mxu0
    %v1483 = vadd.f32 %v1408, %v1482
    %v1484 = vpop.f32.mrf.mxu0
    %1485 = vmatprep.mubr.f32.mxu0 %v1188
    %1486 = vmatmul.mubr.f32.gmra.mxu0 %v1181
    %v1487 = vpop.f32.mrf.mxu0
    %v1488 = vadd.f32 %v1413, %v1487
    %v1489 = vpop.f32.mrf.mxu0
    %1490 = vdwg.mxu0
    %1491 = vmatprep.subr.mxu0 0.0
    %1492 = vmatpush1.msra.mxu0 %v666
    %1493 = vmatprep.subr.mxu0 0.0
    %1494 = vmatpush1.msra.mxu0 %v665
    %1495 = vmatprep.subr.mxu0 0.0
    %1496 = vmatpush1.msra.mxu0 %v664
    %1497 = vmatprep.subr.mxu0 0.0
    %1498 = vmatpush1.msra.mxu0 %v663
    %1499 = vmatprep.subr.mxu0 0.0
    %1500 = vmatpush1.msra.mxu0 %v662
    %1501 = vmatprep.subr.mxu0 0.0
    %1502 = vmatpush1.msra.mxu0 %v661
    %1503 = vmatprep.subr.mxu0 0.0
    %1504 = vmatpush1.msra.mxu0 %v660
    %1505 = vmatprep.subr.mxu0 0.0
    %1506 = vmatpush1.msra.mxu0 %v659
    %1507 = vmatprep.subr.mxu0 0.0
    %1508 = vmatpush1.msra.mxu0 %v658
    %1509 = vmatprep.subr.mxu0 0.0
    %1510 = vmatpush1.msra.mxu0 %v657
    %1511 = vmatprep.subr.mxu0 0.0
    %1512 = vmatpush1.msra.mxu0 %v656
    %1513 = vmatprep.subr.mxu0 0.0
    %1514 = vmatpush1.msra.mxu0 %v655
    %1515 = vmatprep.subr.mxu0 0.0
    %1516 = vmatpush1.msra.mxu0 %v654
    %1517 = vmatprep.subr.mxu0 0.0
    %1518 = vmatpush1.msra.mxu0 %v653
    %1519 = vmatprep.subr.mxu0 0.0
    %1520 = vmatpush1.msra.mxu0 %v652
    %1521 = vmatprep.subr.mxu0 0.0
    %1522 = vmatpush1.msra.mxu0 %v651
    %1523 = vmatprep.subr.mxu0 0.0
    %1524 = vmatpush2.msra.mxu0 0.0
    %1525 = vmatprep.subr.mxu0 0.0
    %1526 = vmatpush2.msra.mxu0 0.0
    %1527 = vmatprep.subr.mxu0 0.0
    %1528 = vmatpush2.msra.mxu0 0.0
    %1529 = vmatprep.subr.mxu0 0.0
    %1530 = vmatpush2.msra.mxu0 0.0
    %1531 = vmatprep.subr.mxu0 0.0
    %1532 = vmatpush2.msra.mxu0 0.0
    %1533 = vmatprep.subr.mxu0 0.0
    %1534 = vmatpush2.msra.mxu0 0.0
    %1535 = vmatprep.subr.mxu0 0.0
    %1536 = vmatpush2.msra.mxu0 0.0
    %1537 = vmatprep.subr.mxu0 0.0
    %1538 = vmatpush2.msra.mxu0 0.0
    %1539 = vmatprep.subr.mxu0 0.0
    %1540 = vmatpush2.msra.mxu0 0.0
    %1541 = vmatprep.subr.mxu0 0.0
    %1542 = vmatpush2.msra.mxu0 0.0
    %1543 = vmatprep.subr.mxu0 0.0
    %1544 = vmatpush2.msra.mxu0 0.0
    %1545 = vmatprep.subr.mxu0 0.0
    %1546 = vmatpush2.msra.mxu0 0.0
    %1547 = vmatprep.subr.mxu0 0.0
    %1548 = vmatpush2.msra.mxu0 0.0
    %1549 = vmatprep.subr.mxu0 0.0
    %1550 = vmatpush2.msra.mxu0 0.0
    %1551 = vmatprep.subr.mxu0 0.0
    %1552 = vmatpush2.msra.mxu0 0.0
    %1553 = vmatprep.subr.mxu0 0.0
    %1554 = vmatpush2.msra.mxu0 0.0
    %1555 = vmatprep.mubr.f32.mxu0 0.0
    %1556 = vmatmul.mubr.f32.gmra.mxu0 %v1134
    %v1557 = vpop.f32.mrf.mxu0
    %v1558 = vadd.f32 %v1483, %v1557
    %v1559 = vpop.f32.mrf.mxu0
    %1560 = vmatprep.mubr.f32.mxu0 0.0
    %1561 = vmatmul.mubr.f32.gmra.mxu0 %v1139
    %v1562 = vpop.f32.mrf.mxu0
    %v1563 = vadd.f32 %v1488, %v1562
    %v1564 = vpop.f32.mrf.mxu0
    %1565 = vdwg.mxu0
    %v1566 = vadd.f32 %v1558, %v1563
    %v1567 = vrot.slane %v1566, 4
    %v1568 = vadd.f32 %v1566, %v1567
    %v1569 = vrot.slane %v1568, 2
    %v1570 = vadd.f32 %v1568, %v1569
    %v1571 = vrot.slane %v1570, 1
    %v1572 = vadd.f32 %v1570, %v1571
    %v1573 = vadd.f32 %v1119, %v1572
    %v1574 = vmul.f32 %v1558, %v1558
    %v1575 = vmul.f32 %v1563, %v1563
    %v1576 = vadd.f32 %v1574, %v1575
    %v1577 = vrot.slane %v1576, 4
    %v1578 = vadd.f32 %v1576, %v1577
    %v1579 = vrot.slane %v1578, 2
    %v1580 = vadd.f32 %v1578, %v1579
    %v1581 = vrot.slane %v1580, 1
    %v1582 = vadd.f32 %v1580, %v1581
    %v1583 = vadd.f32 %v1129, %v1582
    %v1584 = vmul.f32 %v1573, 0.03125
    %v1585 = vmul.f32 %v1583, 0.03125
    %v1586 = vmul.f32 %v1584, %v1584
    %v1587 = vsub.f32 %v1585, %v1586
    %v1588 = vmax.f32 %v1587, 0.0
    %v1589 = vadd.f32 %v1588, 1e-05
    %v1590 = vrsqrt.pop %v1589
    %v1591 = vmul.f32 %v667, %v1590
    %v1592 = vmul.f32 %v1584, %v1591
    %v1593 = vsub.f32 %v668, %v1592
    %v1595 = vlaneseq
    %v1596 = vshrl.u32 %v1595, 7
    %v1597 = vsub.s32 0, %v1596
    %v1598 = vrot.slane %v1591, %v1597
    %v1600 = vmul.f32 %v1104, %v1598
    %v1601 = vmul.f32 %v1109, %v1598
    %v1603 = vlaneseq
    %v1604 = vshrl.u32 %v1603, 7
    %v1605 = vsub.s32 0, %v1604
    %v1606 = vrot.slane %v1593, %v1605
    %v1608 = vadd.f32 %v1600, %v1606
    %v1609 = vadd.f32 %v1601, %v1606
    %v1610 = vmax.f32 %v1608, 0.0
    %v1611 = vmax.f32 %v1609, 0.0
    %v1612 = vmul.f32 %v1558, %v1598
    %v1613 = vmul.f32 %v1563, %v1598
    %v1614 = vadd.f32 %v1612, %v1606
    %v1615 = vadd.f32 %v1613, %v1606
    %v1616 = vmax.f32 %v1614, 0.0
    %v1617 = vmax.f32 %v1615, 0.0
    %v1618 = vld [vmem:[#allocation5] sm:$0xff]
    %v1619 = vld [vmem:[#allocation5 + $0x8] sm:$0xff]
    %v1620 = vld [vmem:[#allocation5 + $0x10] sm:$0xff]
    %v1621 = vld [vmem:[#allocation5 + $0x18] sm:$0xff]
    %v1622 = vld [vmem:[#allocation5 + $0x20] sm:$0xff]
    %v1623 = vld [vmem:[#allocation5 + $0x28] sm:$0xff]
    %v1624 = vld [vmem:[#allocation5 + $0x30] sm:$0xff]
    %v1625 = vld [vmem:[#allocation5 + $0x38] sm:$0xff]
    %v1626 = vld [vmem:[#allocation5 + $0x40] sm:$0xff]
    %v1627 = vld [vmem:[#allocation5 + $0x48] sm:$0xff]
    %v1628 = vld [vmem:[#allocation5 + $0x50] sm:$0xff]
    %v1629 = vld [vmem:[#allocation5 + $0x58] sm:$0xff]
    %v1630 = vld [vmem:[#allocation5 + $0x60] sm:$0xff]
    %v1631 = vld [vmem:[#allocation5 + $0x68] sm:$0xff]
    %v1632 = vld [vmem:[#allocation5 + $0x70] sm:$0xff]
    %v1633 = vld [vmem:[#allocation5 + $0x78] sm:$0xff]
    %v1634 = vld [vmem:[#allocation5 + $0x80] sm:$0xff]
    %v1635 = vld [vmem:[#allocation5 + $0x88] sm:$0xff]
    %v1636 = vld [vmem:[#allocation5 + $0x90] sm:$0xff]
    %v1637 = vld [vmem:[#allocation5 + $0x98] sm:$0xff]
    %v1638 = vld [vmem:[#allocation5 + $0xa0] sm:$0xff]
    %v1639 = vld [vmem:[#allocation5 + $0xa8] sm:$0xff]
    %v1640 = vld [vmem:[#allocation5 + $0xb0] sm:$0xff]
    %v1641 = vld [vmem:[#allocation5 + $0xb8] sm:$0xff]
    %v1642 = vld [vmem:[#allocation5 + $0xc0] sm:$0xff]
    %v1643 = vld [vmem:[#allocation5 + $0xc8] sm:$0xff]
    %v1644 = vld [vmem:[#allocation5 + $0xd0] sm:$0xff]
    %v1645 = vld [vmem:[#allocation5 + $0xd8] sm:$0xff]
    %v1646 = vld [vmem:[#allocation5 + $0xe0] sm:$0xff]
    %v1647 = vld [vmem:[#allocation5 + $0xe8] sm:$0xff]
    %v1648 = vld [vmem:[#allocation5 + $0xf0] sm:$0xff]
    %v1649 = vld [vmem:[#allocation5 + $0xf8] sm:$0xff]
    %v1650 = vld [vmem:[#allocation5 + $0x100] sm:$0xff]
    %v1651 = vld [vmem:[#allocation5 + $0x108] sm:$0xff]
    %v1652 = vld [vmem:[#allocation5 + $0x110] sm:$0xff]
    %v1653 = vld [vmem:[#allocation5 + $0x118] sm:$0xff]
    %v1654 = vld [vmem:[#allocation5 + $0x120] sm:$0xff]
    %v1655 = vld [vmem:[#allocation5 + $0x128] sm:$0xff]
    %v1656 = vld [vmem:[#allocation5 + $0x130] sm:$0xff]
    %v1657 = vld [vmem:[#allocation5 + $0x138] sm:$0xff]
    %v1658 = vld [vmem:[#allocation5 + $0x140] sm:$0xff]
    %v1659 = vld [vmem:[#allocation5 + $0x148] sm:$0xff]
    %v1660 = vld [vmem:[#allocation5 + $0x150] sm:$0xff]
    %v1661 = vld [vmem:[#allocation5 + $0x158] sm:$0xff]
    %v1662 = vld [vmem:[#allocation5 + $0x160] sm:$0xff]
    %v1663 = vld [vmem:[#allocation5 + $0x168] sm:$0xff]
    %v1664 = vld [vmem:[#allocation5 + $0x170] sm:$0xff]
    %v1665 = vld [vmem:[#allocation5 + $0x178] sm:$0xff]
    %v1666 = vld [vmem:[#allocation5 + $0x180] sm:$0xff]
    %v1667 = vld [vmem:[#allocation5 + $0x188] sm:$0xff]
    %v1668 = vld [vmem:[#allocation5 + $0x190] sm:$0xff]
    %v1669 = vld [vmem:[#allocation5 + $0x198] sm:$0xff]
    %v1670 = vld [vmem:[#allocation5 + $0x1a0] sm:$0xff]
    %v1671 = vld [vmem:[#allocation5 + $0x1a8] sm:$0xff]
    %v1672 = vld [vmem:[#allocation5 + $0x1b0] sm:$0xff]
    %v1673 = vld [vmem:[#allocation5 + $0x1b8] sm:$0xff]
    %v1674 = vld [vmem:[#allocation5 + $0x1c0] sm:$0xff]
    %v1675 = vld [vmem:[#allocation5 + $0x1c8] sm:$0xff]
    %v1676 = vld [vmem:[#allocation5 + $0x1d0] sm:$0xff]
    %v1677 = vld [vmem:[#allocation5 + $0x1d8] sm:$0xff]
    %v1678 = vld [vmem:[#allocation5 + $0x1e0] sm:$0xff]
    %v1679 = vld [vmem:[#allocation5 + $0x1e8] sm:$0xff]
    %v1680 = vld [vmem:[#allocation5 + $0x1f0] sm:$0xff]
    %v1681 = vld [vmem:[#allocation5 + $0x1f8] sm:$0xff]
    %v1682 = vld [vmem:[#allocation5 + $0x200] sm:$0xff]
    %v1683 = vld [vmem:[#allocation5 + $0x208] sm:$0xff]
    %v1684 = vld [vmem:[#allocation5 + $0x210] sm:$0xff]
    %v1685 = vld [vmem:[#allocation5 + $0x218] sm:$0xff]
    %v1686 = vld [vmem:[#allocation5 + $0x220] sm:$0xff]
    %v1687 = vld [vmem:[#allocation5 + $0x228] sm:$0xff]
    %v1688 = vld [vmem:[#allocation5 + $0x230] sm:$0xff]
    %v1689 = vld [vmem:[#allocation5 + $0x238] sm:$0xff]
    %v1690 = vld [vmem:[#allocation5 + $0x240] sm:$0xff]
    %v1691 = vld [vmem:[#allocation5 + $0x248] sm:$0xff]
    %v1692 = vld [vmem:[#allocation5 + $0x250] sm:$0xff]
    %v1693 = vld [vmem:[#allocation5 + $0x258] sm:$0xff]
    %v1694 = vld [vmem:[#allocation5 + $0x260] sm:$0xff]
    %v1695 = vld [vmem:[#allocation5 + $0x268] sm:$0xff]
    %v1696 = vld [vmem:[#allocation5 + $0x270] sm:$0xff]
    %v1697 = vld [vmem:[#allocation5 + $0x278] sm:$0xff]
    %v1698 = vld [vmem:[%s11] sm:$0x1]
    %v1699 = vld [vmem:[#allocation7] sm:$0x1]
    %v1702 = vrot.slane %v1610, 6
    %v1703 = vrot.slane %v1611, 6
    %v1704 = vsel %vm721, %v1702, %v1703
    %v1708 = vsel %vm721, 0.0, %v1702
    %v1709 = vsel %vm721, %v1703, 0.0
    %v1712 = vrot.slane %v1708, 1
    %v1713 = vrot.slane %v1704, 1
    %v1714 = vsel %vm682, %v1712, %v1713
    %v1715 = vrot.slane %v1709, 1
    %v1716 = vsel %vm682, %v1713, %v1715
    %v1719 = vrot.slane %v1708, 2
    %v1720 = vrot.slane %v1704, 2
    %v1721 = vsel %vm690, %v1719, %v1720
    %v1722 = vrot.slane %v1709, 2
    %v1723 = vsel %vm690, %v1720, %v1722
    %v1726 = vrot.slane %v1708, 3
    %v1727 = vrot.slane %v1704, 3
    %v1728 = vsel %vm698, %v1726, %v1727
    %v1729 = vrot.slane %v1709, 3
    %v1730 = vsel %vm698, %v1727, %v1729
    %v1733 = vrot.slane %v1708, 4
    %v1734 = vrot.slane %v1704, 4
    %v1735 = vsel %vm671, %v1733, %v1734
    %v1736 = vrot.slane %v1709, 4
    %v1737 = vsel %vm671, %v1734, %v1736
    %1740 = vmatprep.subr.mxu0 0.0
    %1741 = vmatpush1.msra.mxu0 %v1633
    %1742 = vmatprep.subr.mxu0 0.0
    %1743 = vmatpush1.msra.mxu0 %v1632
    %1744 = vmatprep.subr.mxu0 0.0
    %1745 = vmatpush1.msra.mxu0 %v1631
    %1746 = vmatprep.subr.mxu0 0.0
    %1747 = vmatpush1.msra.mxu0 %v1630
    %1748 = vmatprep.subr.mxu0 0.0
    %1749 = vmatpush1.msra.mxu0 %v1629
    %1750 = vmatprep.subr.mxu0 0.0
    %1751 = vmatpush1.msra.mxu0 %v1628
    %1752 = vmatprep.subr.mxu0 0.0
    %1753 = vmatpush1.msra.mxu0 %v1627
    %1754 = vmatprep.subr.mxu0 0.0
    %1755 = vmatpush1.msra.mxu0 %v1626
    %1756 = vmatprep.subr.mxu0 0.0
    %1757 = vmatpush1.msra.mxu0 %v1625
    %1758 = vmatprep.subr.mxu0 0.0
    %1759 = vmatpush1.msra.mxu0 %v1624
    %1760 = vmatprep.subr.mxu0 0.0
    %1761 = vmatpush1.msra.mxu0 %v1623
    %1762 = vmatprep.subr.mxu0 0.0
    %1763 = vmatpush1.msra.mxu0 %v1622
    %1764 = vmatprep.subr.mxu0 0.0
    %1765 = vmatpush1.msra.mxu0 %v1621
    %1766 = vmatprep.subr.mxu0 0.0
    %1767 = vmatpush1.msra.mxu0 %v1620
    %1768 = vmatprep.subr.mxu0 0.0
    %1769 = vmatpush1.msra.mxu0 %v1619
    %1770 = vmatprep.subr.mxu0 0.0
    %1771 = vmatpush1.msra.mxu0 %v1618
    %1772 = vmatprep.subr.mxu0 0.0
    %1773 = vmatpush2.msra.mxu0 %v1649
    %1774 = vmatprep.subr.mxu0 0.0
    %1775 = vmatpush2.msra.mxu0 %v1648
    %1776 = vmatprep.subr.mxu0 0.0
    %1777 = vmatpush2.msra.mxu0 %v1647
    %1778 = vmatprep.subr.mxu0 0.0
    %1779 = vmatpush2.msra.mxu0 %v1646
    %1780 = vmatprep.subr.mxu0 0.0
    %1781 = vmatpush2.msra.mxu0 %v1645
    %1782 = vmatprep.subr.mxu0 0.0
    %1783 = vmatpush2.msra.mxu0 %v1644
    %1784 = vmatprep.subr.mxu0 0.0
    %1785 = vmatpush2.msra.mxu0 %v1643
    %1786 = vmatprep.subr.mxu0 0.0
    %1787 = vmatpush2.msra.mxu0 %v1642
    %1788 = vmatprep.subr.mxu0 0.0
    %1789 = vmatpush2.msra.mxu0 %v1641
    %1790 = vmatprep.subr.mxu0 0.0
    %1791 = vmatpush2.msra.mxu0 %v1640
    %1792 = vmatprep.subr.mxu0 0.0
    %1793 = vmatpush2.msra.mxu0 %v1639
    %1794 = vmatprep.subr.mxu0 0.0
    %1795 = vmatpush2.msra.mxu0 %v1638
    %1796 = vmatprep.subr.mxu0 0.0
    %1797 = vmatpush2.msra.mxu0 %v1637
    %1798 = vmatprep.subr.mxu0 0.0
    %1799 = vmatpush2.msra.mxu0 %v1636
    %1800 = vmatprep.subr.mxu0 0.0
    %1801 = vmatpush2.msra.mxu0 %v1635
    %1802 = vmatprep.subr.mxu0 0.0
    %1803 = vmatpush2.msra.mxu0 %v1634
    %1804 = vmatprep.mubr.f32.mxu0 %v1714
    %1805 = vmatmul.mubr.f32.gmra.mxu0 %v1708
    %v1806 = vpop.f32.mrf.mxu0
    %v1807 = vadd.f32 0.0, %v1806
    %v1808 = vpop.f32.mrf.mxu0
    %1809 = vmatprep.mubr.f32.mxu0 %v1716
    %1810 = vmatmul.mubr.f32.gmra.mxu0 %v1704
    %v1811 = vpop.f32.mrf.mxu0
    %v1812 = vadd.f32 0.0, %v1811
    %v1813 = vpop.f32.mrf.mxu0
    %1814 = vdwg.mxu0
    %1815 = vmatprep.subr.mxu0 0.0
    %1816 = vmatpush1.msra.mxu0 %v1665
    %1817 = vmatprep.subr.mxu0 0.0
    %1818 = vmatpush1.msra.mxu0 %v1664
    %1819 = vmatprep.subr.mxu0 0.0
    %1820 = vmatpush1.msra.mxu0 %v1663
    %1821 = vmatprep.subr.mxu0 0.0
    %1822 = vmatpush1.msra.mxu0 %v1662
    %1823 = vmatprep.subr.mxu0 0.0
    %1824 = vmatpush1.msra.mxu0 %v1661
    %1825 = vmatprep.subr.mxu0 0.0
    %1826 = vmatpush1.msra.mxu0 %v1660
    %1827 = vmatprep.subr.mxu0 0.0
    %1828 = vmatpush1.msra.mxu0 %v1659
    %1829 = vmatprep.subr.mxu0 0.0
    %1830 = vmatpush1.msra.mxu0 %v1658
    %1831 = vmatprep.subr.mxu0 0.0
    %1832 = vmatpush1.msra.mxu0 %v1657
    %1833 = vmatprep.subr.mxu0 0.0
    %1834 = vmatpush1.msra.mxu0 %v1656
    %1835 = vmatprep.subr.mxu0 0.0
    %1836 = vmatpush1.msra.mxu0 %v1655
    %1837 = vmatprep.subr.mxu0 0.0
    %1838 = vmatpush1.msra.mxu0 %v1654
    %1839 = vmatprep.subr.mxu0 0.0
    %1840 = vmatpush1.msra.mxu0 %v1653
    %1841 = vmatprep.subr.mxu0 0.0
    %1842 = vmatpush1.msra.mxu0 %v1652
    %1843 = vmatprep.subr.mxu0 0.0
    %1844 = vmatpush1.msra.mxu0 %v1651
    %1845 = vmatprep.subr.mxu0 0.0
    %1846 = vmatpush1.msra.mxu0 %v1650
    %1847 = vmatprep.subr.mxu0 0.0
    %1848 = vmatpush2.msra.mxu0 %v1681
    %1849 = vmatprep.subr.mxu0 0.0
    %1850 = vmatpush2.msra.mxu0 %v1680
    %1851 = vmatprep.subr.mxu0 0.0
    %1852 = vmatpush2.msra.mxu0 %v1679
    %1853 = vmatprep.subr.mxu0 0.0
    %1854 = vmatpush2.msra.mxu0 %v1678
    %1855 = vmatprep.subr.mxu0 0.0
    %1856 = vmatpush2.msra.mxu0 %v1677
    %1857 = vmatprep.subr.mxu0 0.0
    %1858 = vmatpush2.msra.mxu0 %v1676
    %1859 = vmatprep.subr.mxu0 0.0
    %1860 = vmatpush2.msra.mxu0 %v1675
    %1861 = vmatprep.subr.mxu0 0.0
    %1862 = vmatpush2.msra.mxu0 %v1674
    %1863 = vmatprep.subr.mxu0 0.0
    %1864 = vmatpush2.msra.mxu0 %v1673
    %1865 = vmatprep.subr.mxu0 0.0
    %1866 = vmatpush2.msra.mxu0 %v1672
    %1867 = vmatprep.subr.mxu0 0.0
    %1868 = vmatpush2.msra.mxu0 %v1671
    %1869 = vmatprep.subr.mxu0 0.0
    %1870 = vmatpush2.msra.mxu0 %v1670
    %1871 = vmatprep.subr.mxu0 0.0
    %1872 = vmatpush2.msra.mxu0 %v1669
    %1873 = vmatprep.subr.mxu0 0.0
    %1874 = vmatpush2.msra.mxu0 %v1668
    %1875 = vmatprep.subr.mxu0 0.0
    %1876 = vmatpush2.msra.mxu0 %v1667
    %1877 = vmatprep.subr.mxu0 0.0
    %1878 = vmatpush2.msra.mxu0 %v1666
    %1879 = vmatprep.mubr.f32.mxu0 %v1728
    %1880 = vmatmul.mubr.f32.gmra.mxu0 %v1721
    %v1881 = vpop.f32.mrf.mxu0
    %v1882 = vadd.f32 %v1807, %v1881
    %v1883 = vpop.f32.mrf.mxu0
    %1884 = vmatprep.mubr.f32.mxu0 %v1730
    %1885 = vmatmul.mubr.f32.gmra.mxu0 %v1723
    %v1886 = vpop.f32.mrf.mxu0
    %v1887 = vadd.f32 %v1812, %v1886
    %v1888 = vpop.f32.mrf.mxu0
    %1889 = vdwg.mxu0
    %1890 = vmatprep.subr.mxu0 0.0
    %1891 = vmatpush1.msra.mxu0 %v1697
    %1892 = vmatprep.subr.mxu0 0.0
    %1893 = vmatpush1.msra.mxu0 %v1696
    %1894 = vmatprep.subr.mxu0 0.0
    %1895 = vmatpush1.msra.mxu0 %v1695
    %1896 = vmatprep.subr.mxu0 0.0
    %1897 = vmatpush1.msra.mxu0 %v1694
    %1898 = vmatprep.subr.mxu0 0.0
    %1899 = vmatpush1.msra.mxu0 %v1693
    %1900 = vmatprep.subr.mxu0 0.0
    %1901 = vmatpush1.msra.mxu0 %v1692
    %1902 = vmatprep.subr.mxu0 0.0
    %1903 = vmatpush1.msra.mxu0 %v1691
    %1904 = vmatprep.subr.mxu0 0.0
    %1905 = vmatpush1.msra.mxu0 %v1690
    %1906 = vmatprep.subr.mxu0 0.0
    %1907 = vmatpush1.msra.mxu0 %v1689
    %1908 = vmatprep.subr.mxu0 0.0
    %1909 = vmatpush1.msra.mxu0 %v1688
    %1910 = vmatprep.subr.mxu0 0.0
    %1911 = vmatpush1.msra.mxu0 %v1687
    %1912 = vmatprep.subr.mxu0 0.0
    %1913 = vmatpush1.msra.mxu0 %v1686
    %1914 = vmatprep.subr.mxu0 0.0
    %1915 = vmatpush1.msra.mxu0 %v1685
    %1916 = vmatprep.subr.mxu0 0.0
    %1917 = vmatpush1.msra.mxu0 %v1684
    %1918 = vmatprep.subr.mxu0 0.0
    %1919 = vmatpush1.msra.mxu0 %v1683
    %1920 = vmatprep.subr.mxu0 0.0
    %1921 = vmatpush1.msra.mxu0 %v1682
    %1922 = vmatprep.subr.mxu0 0.0
    %1923 = vmatpush2.msra.mxu0 0.0
    %1924 = vmatprep.subr.mxu0 0.0
    %1925 = vmatpush2.msra.mxu0 0.0
    %1926 = vmatprep.subr.mxu0 0.0
    %1927 = vmatpush2.msra.mxu0 0.0
    %1928 = vmatprep.subr.mxu0 0.0
    %1929 = vmatpush2.msra.mxu0 0.0
    %1930 = vmatprep.subr.mxu0 0.0
    %1931 = vmatpush2.msra.mxu0 0.0
    %1932 = vmatprep.subr.mxu0 0.0
    %1933 = vmatpush2.msra.mxu0 0.0
    %1934 = vmatprep.subr.mxu0 0.0
    %1935 = vmatpush2.msra.mxu0 0.0
    %1936 = vmatprep.subr.mxu0 0.0
    %1937 = vmatpush2.msra.mxu0 0.0
    %1938 = vmatprep.subr.mxu0 0.0
    %1939 = vmatpush2.msra.mxu0 0.0
    %1940 = vmatprep.subr.mxu0 0.0
    %1941 = vmatpush2.msra.mxu0 0.0
    %1942 = vmatprep.subr.mxu0 0.0
    %1943 = vmatpush2.msra.mxu0 0.0
    %1944 = vmatprep.subr.mxu0 0.0
    %1945 = vmatpush2.msra.mxu0 0.0
    %1946 = vmatprep.subr.mxu0 0.0
    %1947 = vmatpush2.msra.mxu0 0.0
    %1948 = vmatprep.subr.mxu0 0.0
    %1949 = vmatpush2.msra.mxu0 0.0
    %1950 = vmatprep.subr.mxu0 0.0
    %1951 = vmatpush2.msra.mxu0 0.0
    %1952 = vmatprep.subr.mxu0 0.0
    %1953 = vmatpush2.msra.mxu0 0.0
    %1954 = vmatprep.mubr.f32.mxu0 0.0
    %1955 = vmatmul.mubr.f32.gmra.mxu0 %v1735
    %v1956 = vpop.f32.mrf.mxu0
    %v1957 = vadd.f32 %v1882, %v1956
    %v1958 = vpop.f32.mrf.mxu0
    %1959 = vmatprep.mubr.f32.mxu0 0.0
    %1960 = vmatmul.mubr.f32.gmra.mxu0 %v1737
    %v1961 = vpop.f32.mrf.mxu0
    %v1962 = vadd.f32 %v1887, %v1961
    %v1963 = vpop.f32.mrf.mxu0
    %1964 = vdwg.mxu0
    %v1965 = vadd.f32 %v1957, %v1962
    %v1966 = vrot.slane %v1965, 4
    %v1967 = vadd.f32 %v1965, %v1966
    %v1968 = vrot.slane %v1967, 2
    %v1969 = vadd.f32 %v1967, %v1968
    %v1970 = vrot.slane %v1969, 1
    %v1971 = vadd.f32 %v1969, %v1970
    %v1972 = vadd.f32 %v1971, 0.0
    %v1973 = vmul.f32 %v1957, %v1957
    %v1974 = vmul.f32 %v1962, %v1962
    %v1975 = vadd.f32 %v1973, %v1974
    %v1976 = vrot.slane %v1975, 4
    %v1977 = vadd.f32 %v1975, %v1976
    %v1978 = vrot.slane %v1977, 2
    %v1979 = vadd.f32 %v1977, %v1978
    %v1980 = vrot.slane %v1979, 1
    %v1981 = vadd.f32 %v1979, %v1980
    %v1982 = vadd.f32 %v1981, 0.0
    %v1985 = vrot.slane %v1616, 6
    %v1986 = vrot.slane %v1617, 6
    %v1987 = vsel %vm721, %v1985, %v1986
    %v1991 = vsel %vm721, 0.0, %v1985
    %v1992 = vsel %vm721, %v1986, 0.0
    %v1995 = vrot.slane %v1991, 1
    %v1996 = vrot.slane %v1987, 1
    %v1997 = vsel %vm682, %v1995, %v1996
    %v1998 = vrot.slane %v1992, 1
    %v1999 = vsel %vm682, %v1996, %v1998
    %v2002 = vrot.slane %v1991, 2
    %v2003 = vrot.slane %v1987, 2
    %v2004 = vsel %vm690, %v2002, %v2003
    %v2005 = vrot.slane %v1992, 2
    %v2006 = vsel %vm690, %v2003, %v2005
    %v2009 = vrot.slane %v1991, 3
    %v2010 = vrot.slane %v1987, 3
    %v2011 = vsel %vm698, %v2009, %v2010
    %v2012 = vrot.slane %v1992, 3
    %v2013 = vsel %vm698, %v2010, %v2012
    %v2016 = vrot.slane %v1991, 4
    %v2017 = vrot.slane %v1987, 4
    %v2018 = vsel %vm671, %v2016, %v2017
    %v2019 = vrot.slane %v1992, 4
    %v2020 = vsel %vm671, %v2017, %v2019
    %2023 = vmatprep.subr.mxu0 0.0
    %2024 = vmatpush1.msra.mxu0 %v1633
    %2025 = vmatprep.subr.mxu0 0.0
    %2026 = vmatpush1.msra.mxu0 %v1632
    %2027 = vmatprep.subr.mxu0 0.0
    %2028 = vmatpush1.msra.mxu0 %v1631
    %2029 = vmatprep.subr.mxu0 0.0
    %2030 = vmatpush1.msra.mxu0 %v1630
    %2031 = vmatprep.subr.mxu0 0.0
    %2032 = vmatpush1.msra.mxu0 %v1629
    %2033 = vmatprep.subr.mxu0 0.0
    %2034 = vmatpush1.msra.mxu0 %v1628
    %2035 = vmatprep.subr.mxu0 0.0
    %2036 = vmatpush1.msra.mxu0 %v1627
    %2037 = vmatprep.subr.mxu0 0.0
    %2038 = vmatpush1.msra.mxu0 %v1626
    %2039 = vmatprep.subr.mxu0 0.0
    %2040 = vmatpush1.msra.mxu0 %v1625
    %2041 = vmatprep.subr.mxu0 0.0
    %2042 = vmatpush1.msra.mxu0 %v1624
    %2043 = vmatprep.subr.mxu0 0.0
    %2044 = vmatpush1.msra.mxu0 %v1623
    %2045 = vmatprep.subr.mxu0 0.0
    %2046 = vmatpush1.msra.mxu0 %v1622
    %2047 = vmatprep.subr.mxu0 0.0
    %2048 = vmatpush1.msra.mxu0 %v1621
    %2049 = vmatprep.subr.mxu0 0.0
    %2050 = vmatpush1.msra.mxu0 %v1620
    %2051 = vmatprep.subr.mxu0 0.0
    %2052 = vmatpush1.msra.mxu0 %v1619
    %2053 = vmatprep.subr.mxu0 0.0
    %2054 = vmatpush1.msra.mxu0 %v1618
    %2055 = vmatprep.subr.mxu0 0.0
    %2056 = vmatpush2.msra.mxu0 %v1649
    %2057 = vmatprep.subr.mxu0 0.0
    %2058 = vmatpush2.msra.mxu0 %v1648
    %2059 = vmatprep.subr.mxu0 0.0
    %2060 = vmatpush2.msra.mxu0 %v1647
    %2061 = vmatprep.subr.mxu0 0.0
    %2062 = vmatpush2.msra.mxu0 %v1646
    %2063 = vmatprep.subr.mxu0 0.0
    %2064 = vmatpush2.msra.mxu0 %v1645
    %2065 = vmatprep.subr.mxu0 0.0
    %2066 = vmatpush2.msra.mxu0 %v1644
    %2067 = vmatprep.subr.mxu0 0.0
    %2068 = vmatpush2.msra.mxu0 %v1643
    %2069 = vmatprep.subr.mxu0 0.0
    %2070 = vmatpush2.msra.mxu0 %v1642
    %2071 = vmatprep.subr.mxu0 0.0
    %2072 = vmatpush2.msra.mxu0 %v1641
    %2073 = vmatprep.subr.mxu0 0.0
    %2074 = vmatpush2.msra.mxu0 %v1640
    %2075 = vmatprep.subr.mxu0 0.0
    %2076 = vmatpush2.msra.mxu0 %v1639
    %2077 = vmatprep.subr.mxu0 0.0
    %2078 = vmatpush2.msra.mxu0 %v1638
    %2079 = vmatprep.subr.mxu0 0.0
    %2080 = vmatpush2.msra.mxu0 %v1637
    %2081 = vmatprep.subr.mxu0 0.0
    %2082 = vmatpush2.msra.mxu0 %v1636
    %2083 = vmatprep.subr.mxu0 0.0
    %2084 = vmatpush2.msra.mxu0 %v1635
    %2085 = vmatprep.subr.mxu0 0.0
    %2086 = vmatpush2.msra.mxu0 %v1634
    %2087 = vmatprep.mubr.f32.mxu0 %v1997
    %2088 = vmatmul.mubr.f32.gmra.mxu0 %v1991
    %v2089 = vpop.f32.mrf.mxu0
    %v2090 = vadd.f32 0.0, %v2089
    %v2091 = vpop.f32.mrf.mxu0
    %2092 = vmatprep.mubr.f32.mxu0 %v1999
    %2093 = vmatmul.mubr.f32.gmra.mxu0 %v1987
    %v2094 = vpop.f32.mrf.mxu0
    %v2095 = vadd.f32 0.0, %v2094
    %v2096 = vpop.f32.mrf.mxu0
    %2097 = vdwg.mxu0
    %2098 = vmatprep.subr.mxu0 0.0
    %2099 = vmatpush1.msra.mxu0 %v1665
    %2100 = vmatprep.subr.mxu0 0.0
    %2101 = vmatpush1.msra.mxu0 %v1664
    %2102 = vmatprep.subr.mxu0 0.0
    %2103 = vmatpush1.msra.mxu0 %v1663
    %2104 = vmatprep.subr.mxu0 0.0
    %2105 = vmatpush1.msra.mxu0 %v1662
    %2106 = vmatprep.subr.mxu0 0.0
    %2107 = vmatpush1.msra.mxu0 %v1661
    %2108 = vmatprep.subr.mxu0 0.0
    %2109 = vmatpush1.msra.mxu0 %v1660
    %2110 = vmatprep.subr.mxu0 0.0
    %2111 = vmatpush1.msra.mxu0 %v1659
    %2112 = vmatprep.subr.mxu0 0.0
    %2113 = vmatpush1.msra.mxu0 %v1658
    %2114 = vmatprep.subr.mxu0 0.0
    %2115 = vmatpush1.msra.mxu0 %v1657
    %2116 = vmatprep.subr.mxu0 0.0
    %2117 = vmatpush1.msra.mxu0 %v1656
    %2118 = vmatprep.subr.mxu0 0.0
    %2119 = vmatpush1.msra.mxu0 %v1655
    %2120 = vmatprep.subr.mxu0 0.0
    %2121 = vmatpush1.msra.mxu0 %v1654
    %2122 = vmatprep.subr.mxu0 0.0
    %2123 = vmatpush1.msra.mxu0 %v1653
    %2124 = vmatprep.subr.mxu0 0.0
    %2125 = vmatpush1.msra.mxu0 %v1652
    %2126 = vmatprep.subr.mxu0 0.0
    %2127 = vmatpush1.msra.mxu0 %v1651
    %2128 = vmatprep.subr.mxu0 0.0
    %2129 = vmatpush1.msra.mxu0 %v1650
    %2130 = vmatprep.subr.mxu0 0.0
    %2131 = vmatpush2.msra.mxu0 %v1681
    %2132 = vmatprep.subr.mxu0 0.0
    %2133 = vmatpush2.msra.mxu0 %v1680
    %2134 = vmatprep.subr.mxu0 0.0
    %2135 = vmatpush2.msra.mxu0 %v1679
    %2136 = vmatprep.subr.mxu0 0.0
    %2137 = vmatpush2.msra.mxu0 %v1678
    %2138 = vmatprep.subr.mxu0 0.0
    %2139 = vmatpush2.msra.mxu0 %v1677
    %2140 = vmatprep.subr.mxu0 0.0
    %2141 = vmatpush2.msra.mxu0 %v1676
    %2142 = vmatprep.subr.mxu0 0.0
    %2143 = vmatpush2.msra.mxu0 %v1675
    %2144 = vmatprep.subr.mxu0 0.0
    %2145 = vmatpush2.msra.mxu0 %v1674
    %2146 = vmatprep.subr.mxu0 0.0
    %2147 = vmatpush2.msra.mxu0 %v1673
    %2148 = vmatprep.subr.mxu0 0.0
    %2149 = vmatpush2.msra.mxu0 %v1672
    %2150 = vmatprep.subr.mxu0 0.0
    %2151 = vmatpush2.msra.mxu0 %v1671
    %2152 = vmatprep.subr.mxu0 0.0
    %2153 = vmatpush2.msra.mxu0 %v1670
    %2154 = vmatprep.subr.mxu0 0.0
    %2155 = vmatpush2.msra.mxu0 %v1669
    %2156 = vmatprep.subr.mxu0 0.0
    %2157 = vmatpush2.msra.mxu0 %v1668
    %2158 = vmatprep.subr.mxu0 0.0
    %2159 = vmatpush2.msra.mxu0 %v1667
    %2160 = vmatprep.subr.mxu0 0.0
    %2161 = vmatpush2.msra.mxu0 %v1666
    %2162 = vmatprep.mubr.f32.mxu0 %v2011
    %2163 = vmatmul.mubr.f32.gmra.mxu0 %v2004
    %v2164 = vpop.f32.mrf.mxu0
    %v2165 = vadd.f32 %v2090, %v2164
    %v2166 = vpop.f32.mrf.mxu0
    %2167 = vmatprep.mubr.f32.mxu0 %v2013
    %2168 = vmatmul.mubr.f32.gmra.mxu0 %v2006
    %v2169 = vpop.f32.mrf.mxu0
    %v2170 = vadd.f32 %v2095, %v2169
    %v2171 = vpop.f32.mrf.mxu0
    %2172 = vdwg.mxu0
    %2173 = vmatprep.subr.mxu0 0.0
    %2174 = vmatpush1.msra.mxu0 %v1697
    %2175 = vmatprep.subr.mxu0 0.0
    %2176 = vmatpush1.msra.mxu0 %v1696
    %2177 = vmatprep.subr.mxu0 0.0
    %2178 = vmatpush1.msra.mxu0 %v1695
    %2179 = vmatprep.subr.mxu0 0.0
    %2180 = vmatpush1.msra.mxu0 %v1694
    %2181 = vmatprep.subr.mxu0 0.0
    %2182 = vmatpush1.msra.mxu0 %v1693
    %2183 = vmatprep.subr.mxu0 0.0
    %2184 = vmatpush1.msra.mxu0 %v1692
    %2185 = vmatprep.subr.mxu0 0.0
    %2186 = vmatpush1.msra.mxu0 %v1691
    %2187 = vmatprep.subr.mxu0 0.0
    %2188 = vmatpush1.msra.mxu0 %v1690
    %2189 = vmatprep.subr.mxu0 0.0
    %2190 = vmatpush1.msra.mxu0 %v1689
    %2191 = vmatprep.subr.mxu0 0.0
    %2192 = vmatpush1.msra.mxu0 %v1688
    %2193 = vmatprep.subr.mxu0 0.0
    %2194 = vmatpush1.msra.mxu0 %v1687
    %2195 = vmatprep.subr.mxu0 0.0
    %2196 = vmatpush1.msra.mxu0 %v1686
    %2197 = vmatprep.subr.mxu0 0.0
    %2198 = vmatpush1.msra.mxu0 %v1685
    %2199 = vmatprep.subr.mxu0 0.0
    %2200 = vmatpush1.msra.mxu0 %v1684
    %2201 = vmatprep.subr.mxu0 0.0
    %2202 = vmatpush1.msra.mxu0 %v1683
    %2203 = vmatprep.subr.mxu0 0.0
    %2204 = vmatpush1.msra.mxu0 %v1682
    %2205 = vmatprep.subr.mxu0 0.0
    %2206 = vmatpush2.msra.mxu0 0.0
    %2207 = vmatprep.subr.mxu0 0.0
    %2208 = vmatpush2.msra.mxu0 0.0
    %2209 = vmatprep.subr.mxu0 0.0
    %2210 = vmatpush2.msra.mxu0 0.0
    %2211 = vmatprep.subr.mxu0 0.0
    %2212 = vmatpush2.msra.mxu0 0.0
    %2213 = vmatprep.subr.mxu0 0.0
    %2214 = vmatpush2.msra.mxu0 0.0
    %2215 = vmatprep.subr.mxu0 0.0
    %2216 = vmatpush2.msra.mxu0 0.0
    %2217 = vmatprep.subr.mxu0 0.0
    %2218 = vmatpush2.msra.mxu0 0.0
    %2219 = vmatprep.subr.mxu0 0.0
    %2220 = vmatpush2.msra.mxu0 0.0
    %2221 = vmatprep.subr.mxu0 0.0
    %2222 = vmatpush2.msra.mxu0 0.0
    %2223 = vmatprep.subr.mxu0 0.0
    %2224 = vmatpush2.msra.mxu0 0.0
    %2225 = vmatprep.subr.mxu0 0.0
    %2226 = vmatpush2.msra.mxu0 0.0
    %2227 = vmatprep.subr.mxu0 0.0
    %2228 = vmatpush2.msra.mxu0 0.0
    %2229 = vmatprep.subr.mxu0 0.0
    %2230 = vmatpush2.msra.mxu0 0.0
    %2231 = vmatprep.subr.mxu0 0.0
    %2232 = vmatpush2.msra.mxu0 0.0
    %2233 = vmatprep.subr.mxu0 0.0
    %2234 = vmatpush2.msra.mxu0 0.0
    %2235 = vmatprep.subr.mxu0 0.0
    %2236 = vmatpush2.msra.mxu0 0.0
    %2237 = vmatprep.mubr.f32.mxu0 0.0
    %2238 = vmatmul.mubr.f32.gmra.mxu0 %v2018
    %v2239 = vpop.f32.mrf.mxu0
    %v2240 = vadd.f32 %v2165, %v2239
    %v2241 = vpop.f32.mrf.mxu0
    %2242 = vmatprep.mubr.f32.mxu0 0.0
    %2243 = vmatmul.mubr.f32.gmra.mxu0 %v2020
    %v2244 = vpop.f32.mrf.mxu0
    %v2245 = vadd.f32 %v2170, %v2244
    %v2246 = vpop.f32.mrf.mxu0
    %2247 = vdwg.mxu0
    %v2248 = vadd.f32 %v2240, %v2245
    %v2249 = vrot.slane %v2248, 4
    %v2250 = vadd.f32 %v2248, %v2249
    %v2251 = vrot.slane %v2250, 2
    %v2252 = vadd.f32 %v2250, %v2251
    %v2253 = vrot.slane %v2252, 1
    %v2254 = vadd.f32 %v2252, %v2253
    %v2255 = vadd.f32 %v1972, %v2254
    %v2256 = vmul.f32 %v2240, %v2240
    %v2257 = vmul.f32 %v2245, %v2245
    %v2258 = vadd.f32 %v2256, %v2257
    %v2259 = vrot.slane %v2258, 4
    %v2260 = vadd.f32 %v2258, %v2259
    %v2261 = vrot.slane %v2260, 2
    %v2262 = vadd.f32 %v2260, %v2261
    %v2263 = vrot.slane %v2262, 1
    %v2264 = vadd.f32 %v2262, %v2263
    %v2265 = vadd.f32 %v1982, %v2264
    %v2266 = vmul.f32 %v2255, 0.03125
    %v2267 = vmul.f32 %v2265, 0.03125
    %v2268 = vmul.f32 %v2266, %v2266
    %v2269 = vsub.f32 %v2267, %v2268
    %v2270 = vmax.f32 %v2269, 0.0
    %v2271 = vadd.f32 %v2270, 1e-05
    %v2272 = vrsqrt.pop %v2271
    %v2273 = vmul.f32 %v1698, %v2272
    %v2274 = vmul.f32 %v2266, %v2273
    %v2275 = vsub.f32 %v1699, %v2274
    %v2277 = vlaneseq
    %v2278 = vshrl.u32 %v2277, 7
    %v2279 = vsub.s32 0, %v2278
    %v2280 = vrot.slane %v2273, %v2279
    %v2282 = vmul.f32 %v1957, %v2280
    %v2283 = vmul.f32 %v1962, %v2280
    %v2285 = vlaneseq
    %v2286 = vshrl.u32 %v2285, 7
    %v2287 = vsub.s32 0, %v2286
    %v2288 = vrot.slane %v2275, %v2287
    %v2290 = vadd.f32 %v2282, %v2288
    %v2291 = vadd.f32 %v2283, %v2288
    %v2292 = vmax.f32 %v2290, 0.0
    %v2293 = vmax.f32 %v2291, 0.0
    %v2294 = vmul.f32 %v2240, %v2280
    %v2295 = vmul.f32 %v2245, %v2280
    %v2296 = vadd.f32 %v2294, %v2288
    %v2297 = vadd.f32 %v2295, %v2288
    %v2298 = vmax.f32 %v2296, 0.0
    %v2299 = vmax.f32 %v2297, 0.0
    %v2300 = vld [vmem:[#allocation8] sm:$0xff]
    %v2301 = vld [vmem:[#allocation8 + $0x8] sm:$0xff]
    %v2302 = vld [vmem:[#allocation8 + $0x10] sm:$0xff]
    %v2303 = vld [vmem:[#allocation8 + $0x18] sm:$0xff]
    %v2304 = vld [vmem:[#allocation8 + $0x20] sm:$0xff]
    %v2305 = vld [vmem:[#allocation8 + $0x28] sm:$0xff]
    %v2306 = vld [vmem:[#allocation8 + $0x30] sm:$0xff]
    %v2307 = vld [vmem:[#allocation8 + $0x38] sm:$0xff]
    %v2308 = vld [vmem:[#allocation8 + $0x40] sm:$0xff]
    %v2309 = vld [vmem:[#allocation8 + $0x48] sm:$0xff]
    %v2310 = vld [vmem:[#allocation8 + $0x50] sm:$0xff]
    %v2311 = vld [vmem:[#allocation8 + $0x58] sm:$0xff]
    %v2312 = vld [vmem:[#allocation8 + $0x60] sm:$0xff]
    %v2313 = vld [vmem:[#allocation8 + $0x68] sm:$0xff]
    %v2314 = vld [vmem:[#allocation8 + $0x70] sm:$0xff]
    %v2315 = vld [vmem:[#allocation8 + $0x78] sm:$0xff]
    %v2316 = vld [vmem:[#allocation8 + $0x80] sm:$0xff]
    %v2317 = vld [vmem:[#allocation8 + $0x88] sm:$0xff]
    %v2318 = vld [vmem:[#allocation8 + $0x90] sm:$0xff]
    %v2319 = vld [vmem:[#allocation8 + $0x98] sm:$0xff]
    %v2320 = vld [vmem:[#allocation8 + $0xa0] sm:$0xff]
    %v2321 = vld [vmem:[#allocation8 + $0xa8] sm:$0xff]
    %v2322 = vld [vmem:[#allocation8 + $0xb0] sm:$0xff]
    %v2323 = vld [vmem:[#allocation8 + $0xb8] sm:$0xff]
    %v2324 = vld [vmem:[#allocation8 + $0xc0] sm:$0xff]
    %v2325 = vld [vmem:[#allocation8 + $0xc8] sm:$0xff]
    %v2326 = vld [vmem:[#allocation8 + $0xd0] sm:$0xff]
    %v2327 = vld [vmem:[#allocation8 + $0xd8] sm:$0xff]
    %v2328 = vld [vmem:[#allocation8 + $0xe0] sm:$0xff]
    %v2329 = vld [vmem:[#allocation8 + $0xe8] sm:$0xff]
    %v2330 = vld [vmem:[#allocation8 + $0xf0] sm:$0xff]
    %v2331 = vld [vmem:[#allocation8 + $0xf8] sm:$0xff]
    %v2332 = vld [vmem:[#allocation8 + $0x100] sm:$0xff]
    %v2333 = vld [vmem:[#allocation8 + $0x108] sm:$0xff]
    %v2334 = vld [vmem:[#allocation8 + $0x110] sm:$0xff]
    %v2335 = vld [vmem:[#allocation8 + $0x118] sm:$0xff]
    %v2336 = vld [vmem:[#allocation8 + $0x120] sm:$0xff]
    %v2337 = vld [vmem:[#allocation8 + $0x128] sm:$0xff]
    %v2338 = vld [vmem:[#allocation8 + $0x130] sm:$0xff]
    %v2339 = vld [vmem:[#allocation8 + $0x138] sm:$0xff]
    %v2340 = vld [vmem:[#allocation8 + $0x140] sm:$0xff]
    %v2341 = vld [vmem:[#allocation8 + $0x148] sm:$0xff]
    %v2342 = vld [vmem:[#allocation8 + $0x150] sm:$0xff]
    %v2343 = vld [vmem:[#allocation8 + $0x158] sm:$0xff]
    %v2344 = vld [vmem:[#allocation8 + $0x160] sm:$0xff]
    %v2345 = vld [vmem:[#allocation8 + $0x168] sm:$0xff]
    %v2346 = vld [vmem:[#allocation8 + $0x170] sm:$0xff]
    %v2347 = vld [vmem:[#allocation8 + $0x178] sm:$0xff]
    %v2348 = vld [vmem:[#allocation10] sm:$0x1]
    %v2349 = vld [vmem:[#allocation11] sm:$0x1]
    %v2352 = vrot.slane %v2292, 6
    %v2353 = vrot.slane %v2293, 6
    %v2354 = vsel %vm721, %v2352, %v2353
    %v2358 = vsel %vm721, 0.0, %v2352
    %v2359 = vsel %vm721, %v2353, 0.0
    %v2362 = vrot.slane %v2358, 1
    %v2363 = vrot.slane %v2354, 1
    %v2364 = vsel %vm682, %v2362, %v2363
    %v2365 = vrot.slane %v2359, 1
    %v2366 = vsel %vm682, %v2363, %v2365
    %v2370 = vrot.slane %v2358, 2
    %v2371 = vrot.slane %v2354, 2
    %v2372 = vsel %vm690, %v2370, %v2371
    %v2373 = vrot.slane %v2359, 2
    %v2374 = vsel %vm690, %v2371, %v2373
    %2378 = vmatprep.subr.mxu0 0.0
    %2379 = vmatpush1.msra.mxu0 %v2315
    %2380 = vmatprep.subr.mxu0 0.0
    %2381 = vmatpush1.msra.mxu0 %v2314
    %2382 = vmatprep.subr.mxu0 0.0
    %2383 = vmatpush1.msra.mxu0 %v2313
    %2384 = vmatprep.subr.mxu0 0.0
    %2385 = vmatpush1.msra.mxu0 %v2312
    %2386 = vmatprep.subr.mxu0 0.0
    %2387 = vmatpush1.msra.mxu0 %v2311
    %2388 = vmatprep.subr.mxu0 0.0
    %2389 = vmatpush1.msra.mxu0 %v2310
    %2390 = vmatprep.subr.mxu0 0.0
    %2391 = vmatpush1.msra.mxu0 %v2309
    %2392 = vmatprep.subr.mxu0 0.0
    %2393 = vmatpush1.msra.mxu0 %v2308
    %2394 = vmatprep.subr.mxu0 0.0
    %2395 = vmatpush1.msra.mxu0 %v2307
    %2396 = vmatprep.subr.mxu0 0.0
    %2397 = vmatpush1.msra.mxu0 %v2306
    %2398 = vmatprep.subr.mxu0 0.0
    %2399 = vmatpush1.msra.mxu0 %v2305
    %2400 = vmatprep.subr.mxu0 0.0
    %2401 = vmatpush1.msra.mxu0 %v2304
    %2402 = vmatprep.subr.mxu0 0.0
    %2403 = vmatpush1.msra.mxu0 %v2303
    %2404 = vmatprep.subr.mxu0 0.0
    %2405 = vmatpush1.msra.mxu0 %v2302
    %2406 = vmatprep.subr.mxu0 0.0
    %2407 = vmatpush1.msra.mxu0 %v2301
    %2408 = vmatprep.subr.mxu0 0.0
    %2409 = vmatpush1.msra.mxu0 %v2300
    %2410 = vmatprep.subr.mxu0 0.0
    %2411 = vmatpush2.msra.mxu0 %v2331
    %2412 = vmatprep.subr.mxu0 0.0
    %2413 = vmatpush2.msra.mxu0 %v2330
    %2414 = vmatprep.subr.mxu0 0.0
    %2415 = vmatpush2.msra.mxu0 %v2329
    %2416 = vmatprep.subr.mxu0 0.0
    %2417 = vmatpush2.msra.mxu0 %v2328
    %2418 = vmatprep.subr.mxu0 0.0
    %2419 = vmatpush2.msra.mxu0 %v2327
    %2420 = vmatprep.subr.mxu0 0.0
    %2421 = vmatpush2.msra.mxu0 %v2326
    %2422 = vmatprep.subr.mxu0 0.0
    %2423 = vmatpush2.msra.mxu0 %v2325
    %2424 = vmatprep.subr.mxu0 0.0
    %2425 = vmatpush2.msra.mxu0 %v2324
    %2426 = vmatprep.subr.mxu0 0.0
    %2427 = vmatpush2.msra.mxu0 %v2323
    %2428 = vmatprep.subr.mxu0 0.0
    %2429 = vmatpush2.msra.mxu0 %v2322
    %2430 = vmatprep.subr.mxu0 0.0
    %2431 = vmatpush2.msra.mxu0 %v2321
    %2432 = vmatprep.subr.mxu0 0.0
    %2433 = vmatpush2.msra.mxu0 %v2320
    %2434 = vmatprep.subr.mxu0 0.0
    %2435 = vmatpush2.msra.mxu0 %v2319
    %2436 = vmatprep.subr.mxu0 0.0
    %2437 = vmatpush2.msra.mxu0 %v2318
    %2438 = vmatprep.subr.mxu0 0.0
    %2439 = vmatpush2.msra.mxu0 %v2317
    %2440 = vmatprep.subr.mxu0 0.0
    %2441 = vmatpush2.msra.mxu0 %v2316
    %2442 = vmatprep.mubr.f32.mxu0 %v2364
    %2443 = vmatmul.mubr.f32.gmra.mxu0 %v2358
    %v2444 = vpop.f32.mrf.mxu0
    %v2445 = vadd.f32 0.0, %v2444
    %v2446 = vpop.f32.mrf.mxu0
    %2447 = vmatprep.mubr.f32.mxu0 %v2366
    %2448 = vmatmul.mubr.f32.gmra.mxu0 %v2354
    %v2449 = vpop.f32.mrf.mxu0
    %v2450 = vadd.f32 0.0, %v2449
    %v2451 = vpop.f32.mrf.mxu0
    %2452 = vmatprep.mubr.f32.mxu0 %v2365
    %2453 = vmatmul.mubr.f32.gmra.mxu0 %v2359
    %v2454 = vpop.f32.mrf.mxu0
    %v2455 = vadd.f32 0.0, %v2454
    %v2456 = vpop.f32.mrf.mxu0
    %2457 = vdwg.mxu0
    %2458 = vmatprep.subr.mxu0 0.0
    %2459 = vmatpush1.msra.mxu0 %v2347
    %2460 = vmatprep.subr.mxu0 0.0
    %2461 = vmatpush1.msra.mxu0 %v2346
    %2462 = vmatprep.subr.mxu0 0.0
    %2463 = vmatpush1.msra.mxu0 %v2345
    %2464 = vmatprep.subr.mxu0 0.0
    %2465 = vmatpush1.msra.mxu0 %v2344
    %2466 = vmatprep.subr.mxu0 0.0
    %2467 = vmatpush1.msra.mxu0 %v2343
    %2468 = vmatprep.subr.mxu0 0.0
    %2469 = vmatpush1.msra.mxu0 %v2342
    %2470 = vmatprep.subr.mxu0 0.0
    %2471 = vmatpush1.msra.mxu0 %v2341
    %2472 = vmatprep.subr.mxu0 0.0
    %2473 = vmatpush1.msra.mxu0 %v2340
    %2474 = vmatprep.subr.mxu0 0.0
    %2475 = vmatpush1.msra.mxu0 %v2339
    %2476 = vmatprep.subr.mxu0 0.0
    %2477 = vmatpush1.msra.mxu0 %v2338
    %2478 = vmatprep.subr.mxu0 0.0
    %2479 = vmatpush1.msra.mxu0 %v2337
    %2480 = vmatprep.subr.mxu0 0.0
    %2481 = vmatpush1.msra.mxu0 %v2336
    %2482 = vmatprep.subr.mxu0 0.0
    %2483 = vmatpush1.msra.mxu0 %v2335
    %2484 = vmatprep.subr.mxu0 0.0
    %2485 = vmatpush1.msra.mxu0 %v2334
    %2486 = vmatprep.subr.mxu0 0.0
    %2487 = vmatpush1.msra.mxu0 %v2333
    %2488 = vmatprep.subr.mxu0 0.0
    %2489 = vmatpush1.msra.mxu0 %v2332
    %2490 = vmatprep.subr.mxu0 0.0
    %2491 = vmatpush2.msra.mxu0 0.0
    %2492 = vmatprep.subr.mxu0 0.0
    %2493 = vmatpush2.msra.mxu0 0.0
    %2494 = vmatprep.subr.mxu0 0.0
    %2495 = vmatpush2.msra.mxu0 0.0
    %2496 = vmatprep.subr.mxu0 0.0
    %2497 = vmatpush2.msra.mxu0 0.0
    %2498 = vmatprep.subr.mxu0 0.0
    %2499 = vmatpush2.msra.mxu0 0.0
    %2500 = vmatprep.subr.mxu0 0.0
    %2501 = vmatpush2.msra.mxu0 0.0
    %2502 = vmatprep.subr.mxu0 0.0
    %2503 = vmatpush2.msra.mxu0 0.0
    %2504 = vmatprep.subr.mxu0 0.0
    %2505 = vmatpush2.msra.mxu0 0.0
    %2506 = vmatprep.subr.mxu0 0.0
    %2507 = vmatpush2.msra.mxu0 0.0
    %2508 = vmatprep.subr.mxu0 0.0
    %2509 = vmatpush2.msra.mxu0 0.0
    %2510 = vmatprep.subr.mxu0 0.0
    %2511 = vmatpush2.msra.mxu0 0.0
    %2512 = vmatprep.subr.mxu0 0.0
    %2513 = vmatpush2.msra.mxu0 0.0
    %2514 = vmatprep.subr.mxu0 0.0
    %2515 = vmatpush2.msra.mxu0 0.0
    %2516 = vmatprep.subr.mxu0 0.0
    %2517 = vmatpush2.msra.mxu0 0.0
    %2518 = vmatprep.subr.mxu0 0.0
    %2519 = vmatpush2.msra.mxu0 0.0
    %2520 = vmatprep.subr.mxu0 0.0
    %2521 = vmatpush2.msra.mxu0 0.0
    %2522 = vmatprep.mubr.f32.mxu0 0.0
    %2523 = vmatmul.mubr.f32.gmra.mxu0 %v2372
    %v2524 = vpop.f32.mrf.mxu0
    %v2525 = vadd.f32 %v2445, %v2524
    %v2526 = vpop.f32.mrf.mxu0
    %2527 = vmatprep.mubr.f32.mxu0 0.0
    %2528 = vmatmul.mubr.f32.gmra.mxu0 %v2374
    %v2529 = vpop.f32.mrf.mxu0
    %v2530 = vadd.f32 %v2450, %v2529
    %v2531 = vpop.f32.mrf.mxu0
    %2532 = vmatprep.mubr.f32.mxu0 0.0
    %2533 = vmatmul.mubr.f32.gmra.mxu0 %v2373
    %v2534 = vpop.f32.mrf.mxu0
    %v2535 = vadd.f32 %v2455, %v2534
    %v2536 = vpop.f32.mrf.mxu0
    %2537 = vdwg.mxu0
    %v2538 = vadd.f32 %v2525, %v2530
    %v2539 = vsel %vm721, %v2535, 0.0
    %v2540 = vadd.f32 %v2538, %v2539
    %v2541 = vrot.slane %v2540, 4
    %v2542 = vadd.f32 %v2540, %v2541
    %v2543 = vrot.slane %v2542, 2
    %v2544 = vadd.f32 %v2542, %v2543
    %v2545 = vrot.slane %v2544, 1
    %v2546 = vadd.f32 %v2544, %v2545
    %v2547 = vadd.f32 %v2546, 0.0
    %v2548 = vmul.f32 %v2525, %v2525
    %v2549 = vmul.f32 %v2530, %v2530
    %v2550 = vmul.f32 %v2535, %v2535
    %v2551 = vadd.f32 %v2548, %v2549
    %v2552 = vsel %vm721, %v2550, 0.0
    %v2553 = vadd.f32 %v2551, %v2552
    %v2554 = vrot.slane %v2553, 4
    %v2555 = vadd.f32 %v2553, %v2554
    %v2556 = vrot.slane %v2555, 2
    %v2557 = vadd.f32 %v2555, %v2556
    %v2558 = vrot.slane %v2557, 1
    %v2559 = vadd.f32 %v2557, %v2558
    %v2560 = vadd.f32 %v2559, 0.0
    %v2563 = vrot.slane %v2298, 6
    %v2564 = vrot.slane %v2299, 6
    %v2565 = vsel %vm721, %v2563, %v2564
    %v2569 = vsel %vm721, 0.0, %v2563
    %v2570 = vsel %vm721, %v2564, 0.0
    %v2573 = vrot.slane %v2569, 1
    %v2574 = vrot.slane %v2565, 1
    %v2575 = vsel %vm682, %v2573, %v2574
    %v2576 = vrot.slane %v2570, 1
    %v2577 = vsel %vm682, %v2574, %v2576
    %v2581 = vrot.slane %v2569, 2
    %v2582 = vrot.slane %v2565, 2
    %v2583 = vsel %vm690, %v2581, %v2582
    %v2584 = vrot.slane %v2570, 2
    %v2585 = vsel %vm690, %v2582, %v2584
    %2589 = vmatprep.subr.mxu0 0.0
    %2590 = vmatpush1.msra.mxu0 %v2315
    %2591 = vmatprep.subr.mxu0 0.0
    %2592 = vmatpush1.msra.mxu0 %v2314
    %2593 = vmatprep.subr.mxu0 0.0
    %2594 = vmatpush1.msra.mxu0 %v2313
    %2595 = vmatprep.subr.mxu0 0.0
    %2596 = vmatpush1.msra.mxu0 %v2312
    %2597 = vmatprep.subr.mxu0 0.0
    %2598 = vmatpush1.msra.mxu0 %v2311
    %2599 = vmatprep.subr.mxu0 0.0
    %2600 = vmatpush1.msra.mxu0 %v2310
    %2601 = vmatprep.subr.mxu0 0.0
    %2602 = vmatpush1.msra.mxu0 %v2309
    %2603 = vmatprep.subr.mxu0 0.0
    %2604 = vmatpush1.msra.mxu0 %v2308
    %2605 = vmatprep.subr.mxu0 0.0
    %2606 = vmatpush1.msra.mxu0 %v2307
    %2607 = vmatprep.subr.mxu0 0.0
    %2608 = vmatpush1.msra.mxu0 %v2306
    %2609 = vmatprep.subr.mxu0 0.0
    %2610 = vmatpush1.msra.mxu0 %v2305
    %2611 = vmatprep.subr.mxu0 0.0
    %2612 = vmatpush1.msra.mxu0 %v2304
    %2613 = vmatprep.subr.mxu0 0.0
    %2614 = vmatpush1.msra.mxu0 %v2303
    %2615 = vmatprep.subr.mxu0 0.0
    %2616 = vmatpush1.msra.mxu0 %v2302
    %2617 = vmatprep.subr.mxu0 0.0
    %2618 = vmatpush1.msra.mxu0 %v2301
    %2619 = vmatprep.subr.mxu0 0.0
    %2620 = vmatpush1.msra.mxu0 %v2300
    %2621 = vmatprep.subr.mxu0 0.0
    %2622 = vmatpush2.msra.mxu0 %v2331
    %2623 = vmatprep.subr.mxu0 0.0
    %2624 = vmatpush2.msra.mxu0 %v2330
    %2625 = vmatprep.subr.mxu0 0.0
    %2626 = vmatpush2.msra.mxu0 %v2329
    %2627 = vmatprep.subr.mxu0 0.0
    %2628 = vmatpush2.msra.mxu0 %v2328
    %2629 = vmatprep.subr.mxu0 0.0
    %2630 = vmatpush2.msra.mxu0 %v2327
    %2631 = vmatprep.subr.mxu0 0.0
    %2632 = vmatpush2.msra.mxu0 %v2326
    %2633 = vmatprep.subr.mxu0 0.0
    %2634 = vmatpush2.msra.mxu0 %v2325
    %2635 = vmatprep.subr.mxu0 0.0
    %2636 = vmatpush2.msra.mxu0 %v2324
    %2637 = vmatprep.subr.mxu0 0.0
    %2638 = vmatpush2.msra.mxu0 %v2323
    %2639 = vmatprep.subr.mxu0 0.0
    %2640 = vmatpush2.msra.mxu0 %v2322
    %2641 = vmatprep.subr.mxu0 0.0
    %2642 = vmatpush2.msra.mxu0 %v2321
    %2643 = vmatprep.subr.mxu0 0.0
    %2644 = vmatpush2.msra.mxu0 %v2320
    %2645 = vmatprep.subr.mxu0 0.0
    %2646 = vmatpush2.msra.mxu0 %v2319
    %2647 = vmatprep.subr.mxu0 0.0
    %2648 = vmatpush2.msra.mxu0 %v2318
    %2649 = vmatprep.subr.mxu0 0.0
    %2650 = vmatpush2.msra.mxu0 %v2317
    %2651 = vmatprep.subr.mxu0 0.0
    %2652 = vmatpush2.msra.mxu0 %v2316
    %2653 = vmatprep.mubr.f32.mxu0 %v2575
    %2654 = vmatmul.mubr.f32.gmra.mxu0 %v2569
    %v2655 = vpop.f32.mrf.mxu0
    %v2656 = vadd.f32 0.0, %v2655
    %v2657 = vpop.f32.mrf.mxu0
    %2658 = vmatprep.mubr.f32.mxu0 %v2577
    %2659 = vmatmul.mubr.f32.gmra.mxu0 %v2565
    %v2660 = vpop.f32.mrf.mxu0
    %v2661 = vadd.f32 0.0, %v2660
    %v2662 = vpop.f32.mrf.mxu0
    %2663 = vmatprep.mubr.f32.mxu0 %v2576
    %2664 = vmatmul.mubr.f32.gmra.mxu0 %v2570
    %v2665 = vpop.f32.mrf.mxu0
    %v2666 = vadd.f32 0.0, %v2665
    %v2667 = vpop.f32.mrf.mxu0
    %2668 = vdwg.mxu0
    %2669 = vmatprep.subr.mxu0 0.0
    %2670 = vmatpush1.msra.mxu0 %v2347
    %2671 = vmatprep.subr.mxu0 0.0
    %2672 = vmatpush1.msra.mxu0 %v2346
    %2673 = vmatprep.subr.mxu0 0.0
    %2674 = vmatpush1.msra.mxu0 %v2345
    %2675 = vmatprep.subr.mxu0 0.0
    %2676 = vmatpush1.msra.mxu0 %v2344
    %2677 = vmatprep.subr.mxu0 0.0
    %2678 = vmatpush1.msra.mxu0 %v2343
    %2679 = vmatprep.subr.mxu0 0.0
    %2680 = vmatpush1.msra.mxu0 %v2342
    %2681 = vmatprep.subr.mxu0 0.0
    %2682 = vmatpush1.msra.mxu0 %v2341
    %2683 = vmatprep.subr.mxu0 0.0
    %2684 = vmatpush1.msra.mxu0 %v2340
    %2685 = vmatprep.subr.mxu0 0.0
    %2686 = vmatpush1.msra.mxu0 %v2339
    %2687 = vmatprep.subr.mxu0 0.0
    %2688 = vmatpush1.msra.mxu0 %v2338
    %2689 = vmatprep.subr.mxu0 0.0
    %2690 = vmatpush1.msra.mxu0 %v2337
    %2691 = vmatprep.subr.mxu0 0.0
    %2692 = vmatpush1.msra.mxu0 %v2336
    %2693 = vmatprep.subr.mxu0 0.0
    %2694 = vmatpush1.msra.mxu0 %v2335
    %2695 = vmatprep.subr.mxu0 0.0
    %2696 = vmatpush1.msra.mxu0 %v2334
    %2697 = vmatprep.subr.mxu0 0.0
    %2698 = vmatpush1.msra.mxu0 %v2333
    %2699 = vmatprep.subr.mxu0 0.0
    %2700 = vmatpush1.msra.mxu0 %v2332
    %2701 = vmatprep.subr.mxu0 0.0
    %2702 = vmatpush2.msra.mxu0 0.0
    %2703 = vmatprep.subr.mxu0 0.0
    %2704 = vmatpush2.msra.mxu0 0.0
    %2705 = vmatprep.subr.mxu0 0.0
    %2706 = vmatpush2.msra.mxu0 0.0
    %2707 = vmatprep.subr.mxu0 0.0
    %2708 = vmatpush2.msra.mxu0 0.0
    %2709 = vmatprep.subr.mxu0 0.0
    %2710 = vmatpush2.msra.mxu0 0.0
    %2711 = vmatprep.subr.mxu0 0.0
    %2712 = vmatpush2.msra.mxu0 0.0
    %2713 = vmatprep.subr.mxu0 0.0
    %2714 = vmatpush2.msra.mxu0 0.0
    %2715 = vmatprep.subr.mxu0 0.0
    %2716 = vmatpush2.msra.mxu0 0.0
    %2717 = vmatprep.subr.mxu0 0.0
    %2718 = vmatpush2.msra.mxu0 0.0
    %2719 = vmatprep.subr.mxu0 0.0
    %2720 = vmatpush2.msra.mxu0 0.0
    %2721 = vmatprep.subr.mxu0 0.0
    %2722 = vmatpush2.msra.mxu0 0.0
    %2723 = vmatprep.subr.mxu0 0.0
    %2724 = vmatpush2.msra.mxu0 0.0
    %2725 = vmatprep.subr.mxu0 0.0
    %2726 = vmatpush2.msra.mxu0 0.0
    %2727 = vmatprep.subr.mxu0 0.0
    %2728 = vmatpush2.msra.mxu0 0.0
    %2729 = vmatprep.subr.mxu0 0.0
    %2730 = vmatpush2.msra.mxu0 0.0
    %2731 = vmatprep.subr.mxu0 0.0
    %2732 = vmatpush2.msra.mxu0 0.0
    %2733 = vmatprep.mubr.f32.mxu0 0.0
    %2734 = vmatmul.mubr.f32.gmra.mxu0 %v2583
    %v2735 = vpop.f32.mrf.mxu0
    %v2736 = vadd.f32 %v2656, %v2735
    %v2737 = vpop.f32.mrf.mxu0
    %2738 = vmatprep.mubr.f32.mxu0 0.0
    %2739 = vmatmul.mubr.f32.gmra.mxu0 %v2585
    %v2740 = vpop.f32.mrf.mxu0
    %v2741 = vadd.f32 %v2661, %v2740
    %v2742 = vpop.f32.mrf.mxu0
    %2743 = vmatprep.mubr.f32.mxu0 0.0
    %2744 = vmatmul.mubr.f32.gmra.mxu0 %v2584
    %v2745 = vpop.f32.mrf.mxu0
    %v2746 = vadd.f32 %v2666, %v2745
    %v2747 = vpop.f32.mrf.mxu0
    %2748 = vdwg.mxu0
    %v2749 = vadd.f32 %v2736, %v2741
    %v2750 = vsel %vm721, %v2746, 0.0
    %v2751 = vadd.f32 %v2749, %v2750
    %v2752 = vrot.slane %v2751, 4
    %v2753 = vadd.f32 %v2751, %v2752
    %v2754 = vrot.slane %v2753, 2
    %v2755 = vadd.f32 %v2753, %v2754
    %v2756 = vrot.slane %v2755, 1
    %v2757 = vadd.f32 %v2755, %v2756
    %v2758 = vadd.f32 %v2547, %v2757
    %v2759 = vmul.f32 %v2736, %v2736
    %v2760 = vmul.f32 %v2741, %v2741
    %v2761 = vmul.f32 %v2746, %v2746
    %v2762 = vadd.f32 %v2759, %v2760
    %v2763 = vsel %vm721, %v2761, 0.0
    %v2764 = vadd.f32 %v2762, %v2763
    %v2765 = vrot.slane %v2764, 4
    %v2766 = vadd.f32 %v2764, %v2765
    %v2767 = vrot.slane %v2766, 2
    %v2768 = vadd.f32 %v2766, %v2767
    %v2769 = vrot.slane %v2768, 1
    %v2770 = vadd.f32 %v2768, %v2769
    %v2771 = vadd.f32 %v2560, %v2770
    %v2772 = vmul.f32 %v2758, 0.027777778
    %v2773 = vmul.f32 %v2771, 0.027777778
    %v2774 = vmul.f32 %v2772, %v2772
    %v2775 = vsub.f32 %v2773, %v2774
    %v2776 = vmax.f32 %v2775, 0.0
    %v2777 = vadd.f32 %v2776, 1e-05
    %v2778 = vrsqrt.pop %v2777
    %v2779 = vmul.f32 %v2348, %v2778
    %v2780 = vmul.f32 %v2772, %v2779
    %v2781 = vsub.f32 %v2349, %v2780
    %v2783 = vlaneseq
    %v2784 = vshrl.u32 %v2783, 7
    %v2785 = vsub.s32 0, %v2784
    %v2786 = vrot.slane %v2779, %v2785
    %v2788 = vmul.f32 %v2525, %v2786
    %v2789 = vmul.f32 %v2530, %v2786
    %v2790 = vmul.f32 %v2535, %v2786
    %v2792 = vlaneseq
    %v2793 = vshrl.u32 %v2792, 7
    %v2794 = vsub.s32 0, %v2793
    %v2795 = vrot.slane %v2781, %v2794
    %v2797 = vadd.f32 %v2788, %v2795
    %v2798 = vadd.f32 %v2789, %v2795
    %v2799 = vadd.f32 %v2790, %v2795
    %v2800 = vmax.f32 %v2797, 0.0
    %v2801 = vmax.f32 %v2798, 0.0
    %v2802 = vmax.f32 %v2799, 0.0
    %v2803 = vmul.f32 %v2736, %v2786
    %v2804 = vmul.f32 %v2741, %v2786
    %v2805 = vmul.f32 %v2746, %v2786
    %v2806 = vadd.f32 %v2803, %v2795
    %v2807 = vadd.f32 %v2804, %v2795
    %v2808 = vadd.f32 %v2805, %v2795
    %v2809 = vmax.f32 %v2806, 0.0
    %v2810 = vmax.f32 %v2807, 0.0
    %v2811 = vmax.f32 %v2808, 0.0
    %v2812 = vld [vmem:[#allocation13] sm:$0xff]
    %v2813 = vld [vmem:[#allocation13 + $0x8] sm:$0xff]
    %v2814 = vld [vmem:[#allocation13 + $0x10] sm:$0xff]
    %v2815 = vld [vmem:[#allocation13 + $0x18] sm:$0xff]
    %v2816 = vld [vmem:[#allocation13 + $0x20] sm:$0xff]
    %v2817 = vld [vmem:[#allocation13 + $0x28] sm:$0xff]
    %v2818 = vld [vmem:[#allocation13 + $0x30] sm:$0xff]
    %v2819 = vld [vmem:[#allocation13 + $0x38] sm:$0xff]
    %v2820 = vld [vmem:[#allocation13 + $0x40] sm:$0xff]
    %v2821 = vld [vmem:[#allocation13 + $0x48] sm:$0xff]
    %v2822 = vld [vmem:[#allocation13 + $0x50] sm:$0xff]
    %v2823 = vld [vmem:[#allocation13 + $0x58] sm:$0xff]
    %v2824 = vld [vmem:[#allocation13 + $0x60] sm:$0xff]
    %v2825 = vld [vmem:[#allocation13 + $0x68] sm:$0xff]
    %v2826 = vld [vmem:[#allocation13 + $0x70] sm:$0xff]
    %v2827 = vld [vmem:[#allocation13 + $0x78] sm:$0xff]
    %v2828 = vld [vmem:[#allocation14] sm:$0x1]
    %v2829 = vld [vmem:[#allocation16] sm:$0x1]
    %v2830 = vrot.slane %v519, 7
    %v2831 = vrot.slane %v520, 7
    %v2832 = vsel %vm729, %v2830, %v2831
    %v2836 = vsel %vm729, 0.0, %v2830
    %v2837 = vsel %vm729, %v2831, 0.0
    %2838 = vmatprep.subr.mxu0 0.0
    %2839 = vmatpush1.msra.mxu0 %v2827
    %2840 = vmatprep.subr.mxu0 0.0
    %2841 = vmatpush1.msra.mxu0 %v2826
    %2842 = vmatprep.subr.mxu0 0.0
    %2843 = vmatpush1.msra.mxu0 %v2825
    %2844 = vmatprep.subr.mxu0 0.0
    %2845 = vmatpush1.msra.mxu0 %v2824
    %2846 = vmatprep.subr.mxu0 0.0
    %2847 = vmatpush1.msra.mxu0 %v2823
    %2848 = vmatprep.subr.mxu0 0.0
    %2849 = vmatpush1.msra.mxu0 %v2822
    %2850 = vmatprep.subr.mxu0 0.0
    %2851 = vmatpush1.msra.mxu0 %v2821
    %2852 = vmatprep.subr.mxu0 0.0
    %2853 = vmatpush1.msra.mxu0 %v2820
    %2854 = vmatprep.subr.mxu0 0.0
    %2855 = vmatpush1.msra.mxu0 %v2819
    %2856 = vmatprep.subr.mxu0 0.0
    %2857 = vmatpush1.msra.mxu0 %v2818
    %2858 = vmatprep.subr.mxu0 0.0
    %2859 = vmatpush1.msra.mxu0 %v2817
    %2860 = vmatprep.subr.mxu0 0.0
    %2861 = vmatpush1.msra.mxu0 %v2816
    %2862 = vmatprep.subr.mxu0 0.0
    %2863 = vmatpush1.msra.mxu0 %v2815
    %2864 = vmatprep.subr.mxu0 0.0
    %2865 = vmatpush1.msra.mxu0 %v2814
    %2866 = vmatprep.subr.mxu0 0.0
    %2867 = vmatpush1.msra.mxu0 %v2813
    %2868 = vmatprep.subr.mxu0 0.0
    %2869 = vmatpush1.msra.mxu0 %v2812
    %2870 = vmatprep.subr.mxu0 0.0
    %2871 = vmatpush2.msra.mxu0 0.0
    %2872 = vmatprep.subr.mxu0 0.0
    %2873 = vmatpush2.msra.mxu0 0.0
    %2874 = vmatprep.subr.mxu0 0.0
    %2875 = vmatpush2.msra.mxu0 0.0
    %2876 = vmatprep.subr.mxu0 0.0
    %2877 = vmatpush2.msra.mxu0 0.0
    %2878 = vmatprep.subr.mxu0 0.0
    %2879 = vmatpush2.msra.mxu0 0.0
    %2880 = vmatprep.subr.mxu0 0.0
    %2881 = vmatpush2.msra.mxu0 0.0
    %2882 = vmatprep.subr.mxu0 0.0
    %2883 = vmatpush2.msra.mxu0 0.0
    %2884 = vmatprep.subr.mxu0 0.0
    %2885 = vmatpush2.msra.mxu0 0.0
    %2886 = vmatprep.subr.mxu0 0.0
    %2887 = vmatpush2.msra.mxu0 0.0
    %2888 = vmatprep.subr.mxu0 0.0
    %2889 = vmatpush2.msra.mxu0 0.0
    %2890 = vmatprep.subr.mxu0 0.0
    %2891 = vmatpush2.msra.mxu0 0.0
    %2892 = vmatprep.subr.mxu0 0.0
    %2893 = vmatpush2.msra.mxu0 0.0
    %2894 = vmatprep.subr.mxu0 0.0
    %2895 = vmatpush2.msra.mxu0 0.0
    %2896 = vmatprep.subr.mxu0 0.0
    %2897 = vmatpush2.msra.mxu0 0.0
    %2898 = vmatprep.subr.mxu0 0.0
    %2899 = vmatpush2.msra.mxu0 0.0
    %2900 = vmatprep.subr.mxu0 0.0
    %2901 = vmatpush2.msra.mxu0 0.0
    %2902 = vmatprep.mubr.f32.mxu0 0.0
    %2903 = vmatmul.mubr.f32.gmra.mxu0 %v2836
    %v2904 = vpop.f32.mrf.mxu0
    %v2905 = vadd.f32 0.0, %v2904
    %v2906 = vpop.f32.mrf.mxu0
    %2907 = vmatprep.mubr.f32.mxu0 0.0
    %2908 = vmatmul.mubr.f32.gmra.mxu0 %v2832
    %v2909 = vpop.f32.mrf.mxu0
    %v2910 = vadd.f32 0.0, %v2909
    %v2911 = vpop.f32.mrf.mxu0
    %2912 = vmatprep.mubr.f32.mxu0 0.0
    %2913 = vmatmul.mubr.f32.gmra.mxu0 %v2837
    %v2914 = vpop.f32.mrf.mxu0
    %v2915 = vadd.f32 0.0, %v2914
    %v2916 = vpop.f32.mrf.mxu0
    %2917 = vdwg.mxu0
    %v2918 = vadd.f32 %v2905, %v2910
    %v2919 = vsel %vm721, %v2915, 0.0
    %v2920 = vadd.f32 %v2918, %v2919
    %v2921 = vrot.slane %v2920, 4
    %v2922 = vadd.f32 %v2920, %v2921
    %v2923 = vrot.slane %v2922, 2
    %v2924 = vadd.f32 %v2922, %v2923
    %v2925 = vrot.slane %v2924, 1
    %v2926 = vadd.f32 %v2924, %v2925
    %v2927 = vadd.f32 %v2926, 0.0
    %v2928 = vmul.f32 %v2905, %v2905
    %v2929 = vmul.f32 %v2910, %v2910
    %v2930 = vmul.f32 %v2915, %v2915
    %v2931 = vadd.f32 %v2928, %v2929
    %v2932 = vsel %vm721, %v2930, 0.0
    %v2933 = vadd.f32 %v2931, %v2932
    %v2934 = vrot.slane %v2933, 4
    %v2935 = vadd.f32 %v2933, %v2934
    %v2936 = vrot.slane %v2935, 2
    %v2937 = vadd.f32 %v2935, %v2936
    %v2938 = vrot.slane %v2937, 1
    %v2939 = vadd.f32 %v2937, %v2938
    %v2940 = vadd.f32 %v2939, 0.0
    %v2941 = vrot.slane %v521, 7
    %v2942 = vrot.slane %v522, 7
    %v2943 = vsel %vm729, %v2941, %v2942
    %v2947 = vsel %vm729, 0.0, %v2941
    %v2948 = vsel %vm729, %v2942, 0.0
    %2949 = vmatprep.subr.mxu0 0.0
    %2950 = vmatpush1.msra.mxu0 %v2827
    %2951 = vmatprep.subr.mxu0 0.0
    %2952 = vmatpush1.msra.mxu0 %v2826
    %2953 = vmatprep.subr.mxu0 0.0
    %2954 = vmatpush1.msra.mxu0 %v2825
    %2955 = vmatprep.subr.mxu0 0.0
    %2956 = vmatpush1.msra.mxu0 %v2824
    %2957 = vmatprep.subr.mxu0 0.0
    %2958 = vmatpush1.msra.mxu0 %v2823
    %2959 = vmatprep.subr.mxu0 0.0
    %2960 = vmatpush1.msra.mxu0 %v2822
    %2961 = vmatprep.subr.mxu0 0.0
    %2962 = vmatpush1.msra.mxu0 %v2821
    %2963 = vmatprep.subr.mxu0 0.0
    %2964 = vmatpush1.msra.mxu0 %v2820
    %2965 = vmatprep.subr.mxu0 0.0
    %2966 = vmatpush1.msra.mxu0 %v2819
    %2967 = vmatprep.subr.mxu0 0.0
    %2968 = vmatpush1.msra.mxu0 %v2818
    %2969 = vmatprep.subr.mxu0 0.0
    %2970 = vmatpush1.msra.mxu0 %v2817
    %2971 = vmatprep.subr.mxu0 0.0
    %2972 = vmatpush1.msra.mxu0 %v2816
    %2973 = vmatprep.subr.mxu0 0.0
    %2974 = vmatpush1.msra.mxu0 %v2815
    %2975 = vmatprep.subr.mxu0 0.0
    %2976 = vmatpush1.msra.mxu0 %v2814
    %2977 = vmatprep.subr.mxu0 0.0
    %2978 = vmatpush1.msra.mxu0 %v2813
    %2979 = vmatprep.subr.mxu0 0.0
    %2980 = vmatpush1.msra.mxu0 %v2812
    %2981 = vmatprep.subr.mxu0 0.0
    %2982 = vmatpush2.msra.mxu0 0.0
    %2983 = vmatprep.subr.mxu0 0.0
    %2984 = vmatpush2.msra.mxu0 0.0
    %2985 = vmatprep.subr.mxu0 0.0
    %2986 = vmatpush2.msra.mxu0 0.0
    %2987 = vmatprep.subr.mxu0 0.0
    %2988 = vmatpush2.msra.mxu0 0.0
    %2989 = vmatprep.subr.mxu0 0.0
    %2990 = vmatpush2.msra.mxu0 0.0
    %2991 = vmatprep.subr.mxu0 0.0
    %2992 = vmatpush2.msra.mxu0 0.0
    %2993 = vmatprep.subr.mxu0 0.0
    %2994 = vmatpush2.msra.mxu0 0.0
    %2995 = vmatprep.subr.mxu0 0.0
    %2996 = vmatpush2.msra.mxu0 0.0
    %2997 = vmatprep.subr.mxu0 0.0
    %2998 = vmatpush2.msra.mxu0 0.0
    %2999 = vmatprep.subr.mxu0 0.0
    %3000 = vmatpush2.msra.mxu0 0.0
    %3001 = vmatprep.subr.mxu0 0.0
    %3002 = vmatpush2.msra.mxu0 0.0
    %3003 = vmatprep.subr.mxu0 0.0
    %3004 = vmatpush2.msra.mxu0 0.0
    %3005 = vmatprep.subr.mxu0 0.0
    %3006 = vmatpush2.msra.mxu0 0.0
    %3007 = vmatprep.subr.mxu0 0.0
    %3008 = vmatpush2.msra.mxu0 0.0
    %3009 = vmatprep.subr.mxu0 0.0
    %3010 = vmatpush2.msra.mxu0 0.0
    %3011 = vmatprep.subr.mxu0 0.0
    %3012 = vmatpush2.msra.mxu0 0.0
    %3013 = vmatprep.mubr.f32.mxu0 0.0
    %3014 = vmatmul.mubr.f32.gmra.mxu0 %v2947
    %v3015 = vpop.f32.mrf.mxu0
    %v3016 = vadd.f32 0.0, %v3015
    %v3017 = vpop.f32.mrf.mxu0
    %3018 = vmatprep.mubr.f32.mxu0 0.0
    %3019 = vmatmul.mubr.f32.gmra.mxu0 %v2943
    %v3020 = vpop.f32.mrf.mxu0
    %v3021 = vadd.f32 0.0, %v3020
    %v3022 = vpop.f32.mrf.mxu0
    %3023 = vmatprep.mubr.f32.mxu0 0.0
    %3024 = vmatmul.mubr.f32.gmra.mxu0 %v2948
    %v3025 = vpop.f32.mrf.mxu0
    %v3026 = vadd.f32 0.0, %v3025
    %v3027 = vpop.f32.mrf.mxu0
    %3028 = vdwg.mxu0
    %v3029 = vadd.f32 %v3016, %v3021
    %v3030 = vsel %vm721, %v3026, 0.0
    %v3031 = vadd.f32 %v3029, %v3030
    %v3032 = vrot.slane %v3031, 4
    %v3033 = vadd.f32 %v3031, %v3032
    %v3034 = vrot.slane %v3033, 2
    %v3035 = vadd.f32 %v3033, %v3034
    %v3036 = vrot.slane %v3035, 1
    %v3037 = vadd.f32 %v3035, %v3036
    %v3038 = vadd.f32 %v2927, %v3037
    %v3039 = vmul.f32 %v3016, %v3016
    %v3040 = vmul.f32 %v3021, %v3021
    %v3041 = vmul.f32 %v3026, %v3026
    %v3042 = vadd.f32 %v3039, %v3040
    %v3043 = vsel %vm721, %v3041, 0.0
    %v3044 = vadd.f32 %v3042, %v3043
    %v3045 = vrot.slane %v3044, 4
    %v3046 = vadd.f32 %v3044, %v3045
    %v3047 = vrot.slane %v3046, 2
    %v3048 = vadd.f32 %v3046, %v3047
    %v3049 = vrot.slane %v3048, 1
    %v3050 = vadd.f32 %v3048, %v3049
    %v3051 = vadd.f32 %v2940, %v3050
    %v3052 = vmul.f32 %v3038, 0.027777778
    %v3053 = vmul.f32 %v3051, 0.027777778
    %v3054 = vmul.f32 %v3052, %v3052
    %v3055 = vsub.f32 %v3053, %v3054
    %v3056 = vmax.f32 %v3055, 0.0
    %v3057 = vadd.f32 %v3056, 1e-05
    %v3058 = vrsqrt.pop %v3057
    %v3059 = vmul.f32 %v2828, %v3058
    %v3060 = vmul.f32 %v3052, %v3059
    %v3061 = vsub.f32 %v2829, %v3060
    %v3063 = vlaneseq
    %v3064 = vshrl.u32 %v3063, 7
    %v3065 = vsub.s32 0, %v3064
    %v3066 = vrot.slane %v3059, %v3065
    %v3068 = vmul.f32 %v2905, %v3066
    %v3069 = vmul.f32 %v2910, %v3066
    %v3070 = vmul.f32 %v2915, %v3066
    %v3072 = vlaneseq
    %v3073 = vshrl.u32 %v3072, 7
    %v3074 = vsub.s32 0, %v3073
    %v3075 = vrot.slane %v3061, %v3074
    %v3077 = vadd.f32 %v3068, %v3075
    %v3078 = vadd.f32 %v3069, %v3075
    %v3079 = vadd.f32 %v3070, %v3075
    %v3080 = vadd.f32 %v3077, %v2800
    %v3081 = vadd.f32 %v3078, %v2801
    %v3082 = vadd.f32 %v3079, %v2802
    %v3083 = vmax.f32 %v3080, 0.0
    %v3084 = vmax.f32 %v3081, 0.0
    %v3085 = vmax.f32 %v3082, 0.0
    %v3086 = vmul.f32 %v3016, %v3066
    %v3087 = vmul.f32 %v3021, %v3066
    %v3088 = vmul.f32 %v3026, %v3066
    %v3089 = vadd.f32 %v3086, %v3075
    %v3090 = vadd.f32 %v3087, %v3075
    %v3091 = vadd.f32 %v3088, %v3075
    %v3092 = vadd.f32 %v3089, %v2809
    %v3093 = vadd.f32 %v3090, %v2810
    %v3094 = vadd.f32 %v3091, %v2811
    %v3095 = vmax.f32 %v3092, 0.0
    %v3096 = vmax.f32 %v3093, 0.0
    %v3097 = vmax.f32 %v3094, 0.0
    %v3098 = vld [vmem:[#allocation17] sm:$0xff]
    %v3099 = vld [vmem:[#allocation17 + $0x8] sm:$0xff]
    %v3100 = vld [vmem:[#allocation17 + $0x10] sm:$0xff]
    %v3101 = vld [vmem:[#allocation17 + $0x18] sm:$0xff]
    %v3102 = vld [vmem:[#allocation17 + $0x20] sm:$0xff]
    %v3103 = vld [vmem:[#allocation17 + $0x28] sm:$0xff]
    %v3104 = vld [vmem:[#allocation17 + $0x30] sm:$0xff]
    %v3105 = vld [vmem:[#allocation17 + $0x38] sm:$0xff]
    %v3106 = vld [vmem:[#allocation17 + $0x40] sm:$0xff]
    %v3107 = vld [vmem:[#allocation17 + $0x48] sm:$0xff]
    %v3108 = vld [vmem:[#allocation17 + $0x50] sm:$0xff]
    %v3109 = vld [vmem:[#allocation17 + $0x58] sm:$0xff]
    %v3110 = vld [vmem:[#allocation17 + $0x60] sm:$0xff]
    %v3111 = vld [vmem:[#allocation17 + $0x68] sm:$0xff]
    %v3112 = vld [vmem:[#allocation17 + $0x70] sm:$0xff]
    %v3113 = vld [vmem:[#allocation17 + $0x78] sm:$0xff]
    %v3114 = vld [vmem:[#allocation17 + $0x80] sm:$0xff]
    %v3115 = vld [vmem:[#allocation17 + $0x88] sm:$0xff]
    %v3116 = vld [vmem:[#allocation17 + $0x90] sm:$0xff]
    %v3117 = vld [vmem:[#allocation17 + $0x98] sm:$0xff]
    %v3118 = vld [vmem:[#allocation17 + $0xa0] sm:$0xff]
    %v3119 = vld [vmem:[#allocation17 + $0xa8] sm:$0xff]
    %v3120 = vld [vmem:[#allocation17 + $0xb0] sm:$0xff]
    %v3121 = vld [vmem:[#allocation17 + $0xb8] sm:$0xff]
    %v3122 = vld [vmem:[#allocation17 + $0xc0] sm:$0xff]
    %v3123 = vld [vmem:[#allocation17 + $0xc8] sm:$0xff]
    %v3124 = vld [vmem:[#allocation17 + $0xd0] sm:$0xff]
    %v3125 = vld [vmem:[#allocation17 + $0xd8] sm:$0xff]
    %v3126 = vld [vmem:[#allocation17 + $0xe0] sm:$0xff]
    %v3127 = vld [vmem:[#allocation17 + $0xe8] sm:$0xff]
    %v3128 = vld [vmem:[#allocation17 + $0xf0] sm:$0xff]
    %v3129 = vld [vmem:[#allocation17 + $0xf8] sm:$0xff]
    %v3130 = vld [vmem:[#allocation17 + $0x100] sm:$0xff]
    %v3131 = vld [vmem:[#allocation17 + $0x108] sm:$0xff]
    %v3132 = vld [vmem:[#allocation17 + $0x110] sm:$0xff]
    %v3133 = vld [vmem:[#allocation17 + $0x118] sm:$0xff]
    %v3134 = vld [vmem:[#allocation17 + $0x120] sm:$0xff]
    %v3135 = vld [vmem:[#allocation17 + $0x128] sm:$0xff]
    %v3136 = vld [vmem:[#allocation17 + $0x130] sm:$0xff]
    %v3137 = vld [vmem:[#allocation17 + $0x138] sm:$0xff]
    %v3138 = vld [vmem:[#allocation17 + $0x140] sm:$0xff]
    %v3139 = vld [vmem:[#allocation17 + $0x148] sm:$0xff]
    %v3140 = vld [vmem:[#allocation17 + $0x150] sm:$0xff]
    %v3141 = vld [vmem:[#allocation17 + $0x158] sm:$0xff]
    %v3142 = vld [vmem:[#allocation17 + $0x160] sm:$0xff]
    %v3143 = vld [vmem:[#allocation17 + $0x168] sm:$0xff]
    %v3144 = vld [vmem:[#allocation17 + $0x170] sm:$0xff]
    %v3145 = vld [vmem:[#allocation17 + $0x178] sm:$0xff]
    %v3146 = vld [vmem:[#allocation17 + $0x180] sm:$0xff]
    %v3147 = vld [vmem:[#allocation17 + $0x188] sm:$0xff]
    %v3148 = vld [vmem:[#allocation17 + $0x190] sm:$0xff]
    %v3149 = vld [vmem:[#allocation17 + $0x198] sm:$0xff]
    %v3150 = vld [vmem:[#allocation17 + $0x1a0] sm:$0xff]
    %v3151 = vld [vmem:[#allocation17 + $0x1a8] sm:$0xff]
    %v3152 = vld [vmem:[#allocation17 + $0x1b0] sm:$0xff]
    %v3153 = vld [vmem:[#allocation17 + $0x1b8] sm:$0xff]
    %v3154 = vld [vmem:[#allocation17 + $0x1c0] sm:$0xff]
    %v3155 = vld [vmem:[#allocation17 + $0x1c8] sm:$0xff]
    %v3156 = vld [vmem:[#allocation17 + $0x1d0] sm:$0xff]
    %v3157 = vld [vmem:[#allocation17 + $0x1d8] sm:$0xff]
    %v3158 = vld [vmem:[#allocation17 + $0x1e0] sm:$0xff]
    %v3159 = vld [vmem:[#allocation17 + $0x1e8] sm:$0xff]
    %v3160 = vld [vmem:[#allocation17 + $0x1f0] sm:$0xff]
    %v3161 = vld [vmem:[#allocation17 + $0x1f8] sm:$0xff]
    %v3162 = vld [vmem:[#allocation17 + $0x200] sm:$0xff]
    %v3163 = vld [vmem:[#allocation17 + $0x208] sm:$0xff]
    %v3164 = vld [vmem:[#allocation17 + $0x210] sm:$0xff]
    %v3165 = vld [vmem:[#allocation17 + $0x218] sm:$0xff]
    %v3166 = vld [vmem:[#allocation17 + $0x220] sm:$0xff]
    %v3167 = vld [vmem:[#allocation17 + $0x228] sm:$0xff]
    %v3168 = vld [vmem:[#allocation17 + $0x230] sm:$0xff]
    %v3169 = vld [vmem:[#allocation17 + $0x238] sm:$0xff]
    %v3170 = vld [vmem:[#allocation17 + $0x240] sm:$0xff]
    %v3171 = vld [vmem:[#allocation17 + $0x248] sm:$0xff]
    %v3172 = vld [vmem:[#allocation17 + $0x250] sm:$0xff]
    %v3173 = vld [vmem:[#allocation17 + $0x258] sm:$0xff]
    %v3174 = vld [vmem:[#allocation17 + $0x260] sm:$0xff]
    %v3175 = vld [vmem:[#allocation17 + $0x268] sm:$0xff]
    %v3176 = vld [vmem:[#allocation17 + $0x270] sm:$0xff]
    %v3177 = vld [vmem:[#allocation17 + $0x278] sm:$0xff]
    %v3178 = vld [vmem:[#allocation17 + $0x280] sm:$0xff]
    %v3179 = vld [vmem:[#allocation17 + $0x288] sm:$0xff]
    %v3180 = vld [vmem:[#allocation17 + $0x290] sm:$0xff]
    %v3181 = vld [vmem:[#allocation17 + $0x298] sm:$0xff]
    %v3182 = vld [vmem:[#allocation17 + $0x2a0] sm:$0xff]
    %v3183 = vld [vmem:[#allocation17 + $0x2a8] sm:$0xff]
    %v3184 = vld [vmem:[#allocation17 + $0x2b0] sm:$0xff]
    %v3185 = vld [vmem:[#allocation17 + $0x2b8] sm:$0xff]
    %v3186 = vld [vmem:[#allocation17 + $0x2c0] sm:$0xff]
    %v3187 = vld [vmem:[#allocation17 + $0x2c8] sm:$0xff]
    %v3188 = vld [vmem:[#allocation17 + $0x2d0] sm:$0xff]
    %v3189 = vld [vmem:[#allocation17 + $0x2d8] sm:$0xff]
    %v3190 = vld [vmem:[#allocation17 + $0x2e0] sm:$0xff]
    %v3191 = vld [vmem:[#allocation17 + $0x2e8] sm:$0xff]
    %v3192 = vld [vmem:[#allocation17 + $0x2f0] sm:$0xff]
    %v3193 = vld [vmem:[#allocation17 + $0x2f8] sm:$0xff]
    %v3194 = vld [vmem:[#allocation17 + $0x300] sm:$0xff]
    %v3195 = vld [vmem:[#allocation17 + $0x308] sm:$0xff]
    %v3196 = vld [vmem:[#allocation17 + $0x310] sm:$0xff]
    %v3197 = vld [vmem:[#allocation17 + $0x318] sm:$0xff]
    %v3198 = vld [vmem:[#allocation17 + $0x320] sm:$0xff]
    %v3199 = vld [vmem:[#allocation17 + $0x328] sm:$0xff]
    %v3200 = vld [vmem:[#allocation17 + $0x330] sm:$0xff]
    %v3201 = vld [vmem:[#allocation17 + $0x338] sm:$0xff]
    %v3202 = vld [vmem:[#allocation17 + $0x340] sm:$0xff]
    %v3203 = vld [vmem:[#allocation17 + $0x348] sm:$0xff]
    %v3204 = vld [vmem:[#allocation17 + $0x350] sm:$0xff]
    %v3205 = vld [vmem:[#allocation17 + $0x358] sm:$0xff]
    %v3206 = vld [vmem:[#allocation17 + $0x360] sm:$0xff]
    %v3207 = vld [vmem:[#allocation17 + $0x368] sm:$0xff]
    %v3208 = vld [vmem:[#allocation17 + $0x370] sm:$0xff]
    %v3209 = vld [vmem:[#allocation17 + $0x378] sm:$0xff]
    %v3210 = vld [vmem:[#allocation17 + $0x380] sm:$0xff]
    %v3211 = vld [vmem:[#allocation17 + $0x388] sm:$0xff]
    %v3212 = vld [vmem:[#allocation17 + $0x390] sm:$0xff]
    %v3213 = vld [vmem:[#allocation17 + $0x398] sm:$0xff]
    %v3214 = vld [vmem:[#allocation17 + $0x3a0] sm:$0xff]
    %v3215 = vld [vmem:[#allocation17 + $0x3a8] sm:$0xff]
    %v3216 = vld [vmem:[#allocation17 + $0x3b0] sm:$0xff]
    %v3217 = vld [vmem:[#allocation17 + $0x3b8] sm:$0xff]
    %v3218 = vld [vmem:[#allocation17 + $0x3c0] sm:$0xff]
    %v3219 = vld [vmem:[#allocation17 + $0x3c8] sm:$0xff]
    %v3220 = vld [vmem:[#allocation17 + $0x3d0] sm:$0xff]
    %v3221 = vld [vmem:[#allocation17 + $0x3d8] sm:$0xff]
    %v3222 = vld [vmem:[#allocation17 + $0x3e0] sm:$0xff]
    %v3223 = vld [vmem:[#allocation17 + $0x3e8] sm:$0xff]
    %v3224 = vld [vmem:[#allocation17 + $0x3f0] sm:$0xff]
    %v3225 = vld [vmem:[#allocation17 + $0x3f8] sm:$0xff]
    %v3226 = vld [vmem:[#allocation17 + $0x400] sm:$0xff]
    %v3227 = vld [vmem:[#allocation17 + $0x408] sm:$0xff]
    %v3228 = vld [vmem:[#allocation17 + $0x410] sm:$0xff]
    %v3229 = vld [vmem:[#allocation17 + $0x418] sm:$0xff]
    %v3230 = vld [vmem:[#allocation17 + $0x420] sm:$0xff]
    %v3231 = vld [vmem:[#allocation17 + $0x428] sm:$0xff]
    %v3232 = vld [vmem:[#allocation17 + $0x430] sm:$0xff]
    %v3233 = vld [vmem:[#allocation17 + $0x438] sm:$0xff]
    %v3234 = vld [vmem:[#allocation17 + $0x440] sm:$0xff]
    %v3235 = vld [vmem:[#allocation17 + $0x448] sm:$0xff]
    %v3236 = vld [vmem:[#allocation17 + $0x450] sm:$0xff]
    %v3237 = vld [vmem:[#allocation17 + $0x458] sm:$0xff]
    %v3238 = vld [vmem:[#allocation17 + $0x460] sm:$0xff]
    %v3239 = vld [vmem:[#allocation17 + $0x468] sm:$0xff]
    %v3240 = vld [vmem:[#allocation17 + $0x470] sm:$0xff]
    %v3241 = vld [vmem:[#allocation17 + $0x478] sm:$0xff]
    %v3242 = vld [vmem:[#allocation19] sm:$0x1]
    %v3243 = vld [vmem:[#allocation20] sm:$0x1]
    %v3247 = vrot.slane %v3083, 4
    %v3248 = vrot.slane %v3084, 4
    %v3249 = vsel %vm671, %v3247, %v3248
    %v3250 = vrot.slane %v3085, 4
    %v3251 = vsel %vm671, %v3248, %v3250
    %v3255 = vsel %vm671, 0.0, %v3247
    %v3256 = vsel %vm690, %v3251, 0.0
    %v3259 = vrot.slane %v3255, 1
    %v3260 = vrot.slane %v3249, 1
    %v3261 = vsel %vm682, %v3259, %v3260
    %v3262 = vrot.slane %v3256, 1
    %v3263 = vsel %vm682, %v3260, %v3262
    %v3267 = vrot.slane %v3255, 2
    %v3268 = vrot.slane %v3249, 2
    %v3269 = vsel %vm690, %v3267, %v3268
    %v3270 = vrot.slane %v3256, 2
    %v3271 = vsel %vm690, %v3268, %v3270
    %v3275 = vrot.slane %v3255, 3
    %v3276 = vrot.slane %v3249, 3
    %v3277 = vsel %vm698, %v3275, %v3276
    %v3278 = vrot.slane %v3256, 3
    %v3279 = vsel %vm698, %v3276, %v3278
    %v3283 = vrot.slane %v3255, 4
    %v3284 = vrot.slane %v3249, 4
    %v3285 = vsel %vm671, %v3283, %v3284
    %v3286 = vrot.slane %v3256, 4
    %v3287 = vsel %vm671, %v3284, %v3286
    %v3291 = vrot.slane %v3255, 5
    %v3292 = vrot.slane %v3249, 5
    %v3293 = vsel %vm713, %v3291, %v3292
    %v3294 = vrot.slane %v3256, 5
    %v3295 = vsel %vm713, %v3292, %v3294
    %v3299 = vrot.slane %v3255, 6
    %v3300 = vrot.slane %v3249, 6
    %v3301 = vsel %vm721, %v3299, %v3300
    %v3302 = vrot.slane %v3256, 6
    %v3303 = vsel %vm721, %v3300, %v3302
    %v3308 = vrot.slane %v3255, 7
    %v3309 = vrot.slane %v3249, 7
    %v3310 = vsel %vm729, %v3308, %v3309
    %v3311 = vrot.slane %v3256, 7
    %v3312 = vsel %vm729, %v3309, %v3311
    %v3313 = vrot.slane 0.0, 7
    %v3314 = vsel %vm729, %v3311, %v3313
    %3318 = vmatprep.subr.mxu0 0.0
    %3319 = vmatpush1.msra.mxu0 %v3113
    %3320 = vmatprep.subr.mxu0 0.0
    %3321 = vmatpush1.msra.mxu0 %v3112
    %3322 = vmatprep.subr.mxu0 0.0
    %3323 = vmatpush1.msra.mxu0 %v3111
    %3324 = vmatprep.subr.mxu0 0.0
    %3325 = vmatpush1.msra.mxu0 %v3110
    %3326 = vmatprep.subr.mxu0 0.0
    %3327 = vmatpush1.msra.mxu0 %v3109
    %3328 = vmatprep.subr.mxu0 0.0
    %3329 = vmatpush1.msra.mxu0 %v3108
    %3330 = vmatprep.subr.mxu0 0.0
    %3331 = vmatpush1.msra.mxu0 %v3107
    %3332 = vmatprep.subr.mxu0 0.0
    %3333 = vmatpush1.msra.mxu0 %v3106
    %3334 = vmatprep.subr.mxu0 0.0
    %3335 = vmatpush1.msra.mxu0 %v3105
    %3336 = vmatprep.subr.mxu0 0.0
    %3337 = vmatpush1.msra.mxu0 %v3104
    %3338 = vmatprep.subr.mxu0 0.0
    %3339 = vmatpush1.msra.mxu0 %v3103
    %3340 = vmatprep.subr.mxu0 0.0
    %3341 = vmatpush1.msra.mxu0 %v3102
    %3342 = vmatprep.subr.mxu0 0.0
    %3343 = vmatpush1.msra.mxu0 %v3101
    %3344 = vmatprep.subr.mxu0 0.0
    %3345 = vmatpush1.msra.mxu0 %v3100
    %3346 = vmatprep.subr.mxu0 0.0
    %3347 = vmatpush1.msra.mxu0 %v3099
    %3348 = vmatprep.subr.mxu0 0.0
    %3349 = vmatpush1.msra.mxu0 %v3098
    %3350 = vmatprep.subr.mxu0 0.0
    %3351 = vmatpush2.msra.mxu0 %v3129
    %3352 = vmatprep.subr.mxu0 0.0
    %3353 = vmatpush2.msra.mxu0 %v3128
    %3354 = vmatprep.subr.mxu0 0.0
    %3355 = vmatpush2.msra.mxu0 %v3127
    %3356 = vmatprep.subr.mxu0 0.0
    %3357 = vmatpush2.msra.mxu0 %v3126
    %3358 = vmatprep.subr.mxu0 0.0
    %3359 = vmatpush2.msra.mxu0 %v3125
    %3360 = vmatprep.subr.mxu0 0.0
    %3361 = vmatpush2.msra.mxu0 %v3124
    %3362 = vmatprep.subr.mxu0 0.0
    %3363 = vmatpush2.msra.mxu0 %v3123
    %3364 = vmatprep.subr.mxu0 0.0
    %3365 = vmatpush2.msra.mxu0 %v3122
    %3366 = vmatprep.subr.mxu0 0.0
    %3367 = vmatpush2.msra.mxu0 %v3121
    %3368 = vmatprep.subr.mxu0 0.0
    %3369 = vmatpush2.msra.mxu0 %v3120
    %3370 = vmatprep.subr.mxu0 0.0
    %3371 = vmatpush2.msra.mxu0 %v3119
    %3372 = vmatprep.subr.mxu0 0.0
    %3373 = vmatpush2.msra.mxu0 %v3118
    %3374 = vmatprep.subr.mxu0 0.0
    %3375 = vmatpush2.msra.mxu0 %v3117
    %3376 = vmatprep.subr.mxu0 0.0
    %3377 = vmatpush2.msra.mxu0 %v3116
    %3378 = vmatprep.subr.mxu0 0.0
    %3379 = vmatpush2.msra.mxu0 %v3115
    %3380 = vmatprep.subr.mxu0 0.0
    %3381 = vmatpush2.msra.mxu0 %v3114
    %3382 = vmatprep.mubr.f32.mxu0 %v3261
    %3383 = vmatmul.mubr.f32.gmra.mxu0 %v3255
    %v3384 = vpop.f32.mrf.mxu0
    %v3385 = vadd.f32 0.0, %v3384
    %v3386 = vpop.f32.mrf.mxu0
    %3387 = vmatprep.mubr.f32.mxu0 %v3263
    %3388 = vmatmul.mubr.f32.gmra.mxu0 %v3249
    %v3389 = vpop.f32.mrf.mxu0
    %v3390 = vadd.f32 0.0, %v3389
    %v3391 = vpop.f32.mrf.mxu0
    %3392 = vmatprep.mubr.f32.mxu0 %v3262
    %3393 = vmatmul.mubr.f32.gmra.mxu0 %v3256
    %v3394 = vpop.f32.mrf.mxu0
    %v3395 = vadd.f32 0.0, %v3394
    %v3396 = vpop.f32.mrf.mxu0
    %3397 = vdwg.mxu0
    %3398 = vmatprep.subr.mxu0 0.0
    %3399 = vmatpush1.msra.mxu0 %v3145
    %3400 = vmatprep.subr.mxu0 0.0
    %3401 = vmatpush1.msra.mxu0 %v3144
    %3402 = vmatprep.subr.mxu0 0.0
    %3403 = vmatpush1.msra.mxu0 %v3143
    %3404 = vmatprep.subr.mxu0 0.0
    %3405 = vmatpush1.msra.mxu0 %v3142
    %3406 = vmatprep.subr.mxu0 0.0
    %3407 = vmatpush1.msra.mxu0 %v3141
    %3408 = vmatprep.subr.mxu0 0.0
    %3409 = vmatpush1.msra.mxu0 %v3140
    %3410 = vmatprep.subr.mxu0 0.0
    %3411 = vmatpush1.msra.mxu0 %v3139
    %3412 = vmatprep.subr.mxu0 0.0
    %3413 = vmatpush1.msra.mxu0 %v3138
    %3414 = vmatprep.subr.mxu0 0.0
    %3415 = vmatpush1.msra.mxu0 %v3137
    %3416 = vmatprep.subr.mxu0 0.0
    %3417 = vmatpush1.msra.mxu0 %v3136
    %3418 = vmatprep.subr.mxu0 0.0
    %3419 = vmatpush1.msra.mxu0 %v3135
    %3420 = vmatprep.subr.mxu0 0.0
    %3421 = vmatpush1.msra.mxu0 %v3134
    %3422 = vmatprep.subr.mxu0 0.0
    %3423 = vmatpush1.msra.mxu0 %v3133
    %3424 = vmatprep.subr.mxu0 0.0
    %3425 = vmatpush1.msra.mxu0 %v3132
    %3426 = vmatprep.subr.mxu0 0.0
    %3427 = vmatpush1.msra.mxu0 %v3131
    %3428 = vmatprep.subr.mxu0 0.0
    %3429 = vmatpush1.msra.mxu0 %v3130
    %3430 = vmatprep.subr.mxu0 0.0
    %3431 = vmatpush2.msra.mxu0 %v3161
    %3432 = vmatprep.subr.mxu0 0.0
    %3433 = vmatpush2.msra.mxu0 %v3160
    %3434 = vmatprep.subr.mxu0 0.0
    %3435 = vmatpush2.msra.mxu0 %v3159
    %3436 = vmatprep.subr.mxu0 0.0
    %3437 = vmatpush2.msra.mxu0 %v3158
    %3438 = vmatprep.subr.mxu0 0.0
    %3439 = vmatpush2.msra.mxu0 %v3157
    %3440 = vmatprep.subr.mxu0 0.0
    %3441 = vmatpush2.msra.mxu0 %v3156
    %3442 = vmatprep.subr.mxu0 0.0
    %3443 = vmatpush2.msra.mxu0 %v3155
    %3444 = vmatprep.subr.mxu0 0.0
    %3445 = vmatpush2.msra.mxu0 %v3154
    %3446 = vmatprep.subr.mxu0 0.0
    %3447 = vmatpush2.msra.mxu0 %v3153
    %3448 = vmatprep.subr.mxu0 0.0
    %3449 = vmatpush2.msra.mxu0 %v3152
    %3450 = vmatprep.subr.mxu0 0.0
    %3451 = vmatpush2.msra.mxu0 %v3151
    %3452 = vmatprep.subr.mxu0 0.0
    %3453 = vmatpush2.msra.mxu0 %v3150
    %3454 = vmatprep.subr.mxu0 0.0
    %3455 = vmatpush2.msra.mxu0 %v3149
    %3456 = vmatprep.subr.mxu0 0.0
    %3457 = vmatpush2.msra.mxu0 %v3148
    %3458 = vmatprep.subr.mxu0 0.0
    %3459 = vmatpush2.msra.mxu0 %v3147
    %3460 = vmatprep.subr.mxu0 0.0
    %3461 = vmatpush2.msra.mxu0 %v3146
    %3462 = vmatprep.mubr.f32.mxu0 %v3277
    %3463 = vmatmul.mubr.f32.gmra.mxu0 %v3269
    %v3464 = vpop.f32.mrf.mxu0
    %v3465 = vadd.f32 %v3385, %v3464
    %v3466 = vpop.f32.mrf.mxu0
    %3467 = vmatprep.mubr.f32.mxu0 %v3279
    %3468 = vmatmul.mubr.f32.gmra.mxu0 %v3271
    %v3469 = vpop.f32.mrf.mxu0
    %v3470 = vadd.f32 %v3390, %v3469
    %v3471 = vpop.f32.mrf.mxu0
    %3472 = vmatprep.mubr.f32.mxu0 %v3278
    %3473 = vmatmul.mubr.f32.gmra.mxu0 %v3270
    %v3474 = vpop.f32.mrf.mxu0
    %v3475 = vadd.f32 %v3395, %v3474
    %v3476 = vpop.f32.mrf.mxu0
    %3477 = vdwg.mxu0
    %3478 = vmatprep.subr.mxu0 0.0
    %3479 = vmatpush1.msra.mxu0 %v3177
    %3480 = vmatprep.subr.mxu0 0.0
    %3481 = vmatpush1.msra.mxu0 %v3176
    %3482 = vmatprep.subr.mxu0 0.0
    %3483 = vmatpush1.msra.mxu0 %v3175
    %3484 = vmatprep.subr.mxu0 0.0
    %3485 = vmatpush1.msra.mxu0 %v3174
    %3486 = vmatprep.subr.mxu0 0.0
    %3487 = vmatpush1.msra.mxu0 %v3173
    %3488 = vmatprep.subr.mxu0 0.0
    %3489 = vmatpush1.msra.mxu0 %v3172
    %3490 = vmatprep.subr.mxu0 0.0
    %3491 = vmatpush1.msra.mxu0 %v3171
    %3492 = vmatprep.subr.mxu0 0.0
    %3493 = vmatpush1.msra.mxu0 %v3170
    %3494 = vmatprep.subr.mxu0 0.0
    %3495 = vmatpush1.msra.mxu0 %v3169
    %3496 = vmatprep.subr.mxu0 0.0
    %3497 = vmatpush1.msra.mxu0 %v3168
    %3498 = vmatprep.subr.mxu0 0.0
    %3499 = vmatpush1.msra.mxu0 %v3167
    %3500 = vmatprep.subr.mxu0 0.0
    %3501 = vmatpush1.msra.mxu0 %v3166
    %3502 = vmatprep.subr.mxu0 0.0
    %3503 = vmatpush1.msra.mxu0 %v3165
    %3504 = vmatprep.subr.mxu0 0.0
    %3505 = vmatpush1.msra.mxu0 %v3164
    %3506 = vmatprep.subr.mxu0 0.0
    %3507 = vmatpush1.msra.mxu0 %v3163
    %3508 = vmatprep.subr.mxu0 0.0
    %3509 = vmatpush1.msra.mxu0 %v3162
    %3510 = vmatprep.subr.mxu0 0.0
    %3511 = vmatpush2.msra.mxu0 %v3193
    %3512 = vmatprep.subr.mxu0 0.0
    %3513 = vmatpush2.msra.mxu0 %v3192
    %3514 = vmatprep.subr.mxu0 0.0
    %3515 = vmatpush2.msra.mxu0 %v3191
    %3516 = vmatprep.subr.mxu0 0.0
    %3517 = vmatpush2.msra.mxu0 %v3190
    %3518 = vmatprep.subr.mxu0 0.0
    %3519 = vmatpush2.msra.mxu0 %v3189
    %3520 = vmatprep.subr.mxu0 0.0
    %3521 = vmatpush2.msra.mxu0 %v3188
    %3522 = vmatprep.subr.mxu0 0.0
    %3523 = vmatpush2.msra.mxu0 %v3187
    %3524 = vmatprep.subr.mxu0 0.0
    %3525 = vmatpush2.msra.mxu0 %v3186
    %3526 = vmatprep.subr.mxu0 0.0
    %3527 = vmatpush2.msra.mxu0 %v3185
    %3528 = vmatprep.subr.mxu0 0.0
    %3529 = vmatpush2.msra.mxu0 %v3184
    %3530 = vmatprep.subr.mxu0 0.0
    %3531 = vmatpush2.msra.mxu0 %v3183
    %3532 = vmatprep.subr.mxu0 0.0
    %3533 = vmatpush2.msra.mxu0 %v3182
    %3534 = vmatprep.subr.mxu0 0.0
    %3535 = vmatpush2.msra.mxu0 %v3181
    %3536 = vmatprep.subr.mxu0 0.0
    %3537 = vmatpush2.msra.mxu0 %v3180
    %3538 = vmatprep.subr.mxu0 0.0
    %3539 = vmatpush2.msra.mxu0 %v3179
    %3540 = vmatprep.subr.mxu0 0.0
    %3541 = vmatpush2.msra.mxu0 %v3178
    %3542 = vmatprep.mubr.f32.mxu0 %v3293
    %3543 = vmatmul.mubr.f32.gmra.mxu0 %v3285
    %v3544 = vpop.f32.mrf.mxu0
    %v3545 = vadd.f32 %v3465, %v3544
    %v3546 = vpop.f32.mrf.mxu0
    %3547 = vmatprep.mubr.f32.mxu0 %v3295
    %3548 = vmatmul.mubr.f32.gmra.mxu0 %v3287
    %v3549 = vpop.f32.mrf.mxu0
    %v3550 = vadd.f32 %v3470, %v3549
    %v3551 = vpop.f32.mrf.mxu0
    %3552 = vmatprep.mubr.f32.mxu0 %v3294
    %3553 = vmatmul.mubr.f32.gmra.mxu0 %v3286
    %v3554 = vpop.f32.mrf.mxu0
    %v3555 = vadd.f32 %v3475, %v3554
    %v3556 = vpop.f32.mrf.mxu0
    %3557 = vdwg.mxu0
    %3558 = vmatprep.subr.mxu0 0.0
    %3559 = vmatpush1.msra.mxu0 %v3209
    %3560 = vmatprep.subr.mxu0 0.0
    %3561 = vmatpush1.msra.mxu0 %v3208
    %3562 = vmatprep.subr.mxu0 0.0
    %3563 = vmatpush1.msra.mxu0 %v3207
    %3564 = vmatprep.subr.mxu0 0.0
    %3565 = vmatpush1.msra.mxu0 %v3206
    %3566 = vmatprep.subr.mxu0 0.0
    %3567 = vmatpush1.msra.mxu0 %v3205
    %3568 = vmatprep.subr.mxu0 0.0
    %3569 = vmatpush1.msra.mxu0 %v3204
    %3570 = vmatprep.subr.mxu0 0.0
    %3571 = vmatpush1.msra.mxu0 %v3203
    %3572 = vmatprep.subr.mxu0 0.0
    %3573 = vmatpush1.msra.mxu0 %v3202
    %3574 = vmatprep.subr.mxu0 0.0
    %3575 = vmatpush1.msra.mxu0 %v3201
    %3576 = vmatprep.subr.mxu0 0.0
    %3577 = vmatpush1.msra.mxu0 %v3200
    %3578 = vmatprep.subr.mxu0 0.0
    %3579 = vmatpush1.msra.mxu0 %v3199
    %3580 = vmatprep.subr.mxu0 0.0
    %3581 = vmatpush1.msra.mxu0 %v3198
    %3582 = vmatprep.subr.mxu0 0.0
    %3583 = vmatpush1.msra.mxu0 %v3197
    %3584 = vmatprep.subr.mxu0 0.0
    %3585 = vmatpush1.msra.mxu0 %v3196
    %3586 = vmatprep.subr.mxu0 0.0
    %3587 = vmatpush1.msra.mxu0 %v3195
    %3588 = vmatprep.subr.mxu0 0.0
    %3589 = vmatpush1.msra.mxu0 %v3194
    %3590 = vmatprep.subr.mxu0 0.0
    %3591 = vmatpush2.msra.mxu0 %v3225
    %3592 = vmatprep.subr.mxu0 0.0
    %3593 = vmatpush2.msra.mxu0 %v3224
    %3594 = vmatprep.subr.mxu0 0.0
    %3595 = vmatpush2.msra.mxu0 %v3223
    %3596 = vmatprep.subr.mxu0 0.0
    %3597 = vmatpush2.msra.mxu0 %v3222
    %3598 = vmatprep.subr.mxu0 0.0
    %3599 = vmatpush2.msra.mxu0 %v3221
    %3600 = vmatprep.subr.mxu0 0.0
    %3601 = vmatpush2.msra.mxu0 %v3220
    %3602 = vmatprep.subr.mxu0 0.0
    %3603 = vmatpush2.msra.mxu0 %v3219
    %3604 = vmatprep.subr.mxu0 0.0
    %3605 = vmatpush2.msra.mxu0 %v3218
    %3606 = vmatprep.subr.mxu0 0.0
    %3607 = vmatpush2.msra.mxu0 %v3217
    %3608 = vmatprep.subr.mxu0 0.0
    %3609 = vmatpush2.msra.mxu0 %v3216
    %3610 = vmatprep.subr.mxu0 0.0
    %3611 = vmatpush2.msra.mxu0 %v3215
    %3612 = vmatprep.subr.mxu0 0.0
    %3613 = vmatpush2.msra.mxu0 %v3214
    %3614 = vmatprep.subr.mxu0 0.0
    %3615 = vmatpush2.msra.mxu0 %v3213
    %3616 = vmatprep.subr.mxu0 0.0
    %3617 = vmatpush2.msra.mxu0 %v3212
    %3618 = vmatprep.subr.mxu0 0.0
    %3619 = vmatpush2.msra.mxu0 %v3211
    %3620 = vmatprep.subr.mxu0 0.0
    %3621 = vmatpush2.msra.mxu0 %v3210
    %3622 = vmatprep.mubr.f32.mxu0 %v3310
    %3623 = vmatmul.mubr.f32.gmra.mxu0 %v3301
    %v3624 = vpop.f32.mrf.mxu0
    %v3625 = vadd.f32 %v3545, %v3624
    %v3626 = vpop.f32.mrf.mxu0
    %3627 = vmatprep.mubr.f32.mxu0 %v3312
    %3628 = vmatmul.mubr.f32.gmra.mxu0 %v3303
    %v3629 = vpop.f32.mrf.mxu0
    %v3630 = vadd.f32 %v3550, %v3629
    %v3631 = vpop.f32.mrf.mxu0
    %3632 = vmatprep.mubr.f32.mxu0 %v3314
    %3633 = vmatmul.mubr.f32.gmra.mxu0 %v3302
    %v3634 = vpop.f32.mrf.mxu0
    %v3635 = vadd.f32 %v3555, %v3634
    %v3636 = vpop.f32.mrf.mxu0
    %3637 = vdwg.mxu0
    %3638 = vmatprep.subr.mxu0 0.0
    %3639 = vmatpush1.msra.mxu0 %v3241
    %3640 = vmatprep.subr.mxu0 0.0
    %3641 = vmatpush1.msra.mxu0 %v3240
    %3642 = vmatprep.subr.mxu0 0.0
    %3643 = vmatpush1.msra.mxu0 %v3239
    %3644 = vmatprep.subr.mxu0 0.0
    %3645 = vmatpush1.msra.mxu0 %v3238
    %3646 = vmatprep.subr.mxu0 0.0
    %3647 = vmatpush1.msra.mxu0 %v3237
    %3648 = vmatprep.subr.mxu0 0.0
    %3649 = vmatpush1.msra.mxu0 %v3236
    %3650 = vmatprep.subr.mxu0 0.0
    %3651 = vmatpush1.msra.mxu0 %v3235
    %3652 = vmatprep.subr.mxu0 0.0
    %3653 = vmatpush1.msra.mxu0 %v3234
    %3654 = vmatprep.subr.mxu0 0.0
    %3655 = vmatpush1.msra.mxu0 %v3233
    %3656 = vmatprep.subr.mxu0 0.0
    %3657 = vmatpush1.msra.mxu0 %v3232
    %3658 = vmatprep.subr.mxu0 0.0
    %3659 = vmatpush1.msra.mxu0 %v3231
    %3660 = vmatprep.subr.mxu0 0.0
    %3661 = vmatpush1.msra.mxu0 %v3230
    %3662 = vmatprep.subr.mxu0 0.0
    %3663 = vmatpush1.msra.mxu0 %v3229
    %3664 = vmatprep.subr.mxu0 0.0
    %3665 = vmatpush1.msra.mxu0 %v3228
    %3666 = vmatprep.subr.mxu0 0.0
    %3667 = vmatpush1.msra.mxu0 %v3227
    %3668 = vmatprep.subr.mxu0 0.0
    %3669 = vmatpush1.msra.mxu0 %v3226
    %3670 = vmatprep.subr.mxu0 0.0
    %3671 = vmatpush2.msra.mxu0 0.0
    %3672 = vmatprep.subr.mxu0 0.0
    %3673 = vmatpush2.msra.mxu0 0.0
    %3674 = vmatprep.subr.mxu0 0.0
    %3675 = vmatpush2.msra.mxu0 0.0
    %3676 = vmatprep.subr.mxu0 0.0
    %3677 = vmatpush2.msra.mxu0 0.0
    %3678 = vmatprep.subr.mxu0 0.0
    %3679 = vmatpush2.msra.mxu0 0.0
    %3680 = vmatprep.subr.mxu0 0.0
    %3681 = vmatpush2.msra.mxu0 0.0
    %3682 = vmatprep.subr.mxu0 0.0
    %3683 = vmatpush2.msra.mxu0 0.0
    %3684 = vmatprep.subr.mxu0 0.0
    %3685 = vmatpush2.msra.mxu0 0.0
    %3686 = vmatprep.subr.mxu0 0.0
    %3687 = vmatpush2.msra.mxu0 0.0
    %3688 = vmatprep.subr.mxu0 0.0
    %3689 = vmatpush2.msra.mxu0 0.0
    %3690 = vmatprep.subr.mxu0 0.0
    %3691 = vmatpush2.msra.mxu0 0.0
    %3692 = vmatprep.subr.mxu0 0.0
    %3693 = vmatpush2.msra.mxu0 0.0
    %3694 = vmatprep.subr.mxu0 0.0
    %3695 = vmatpush2.msra.mxu0 0.0
    %3696 = vmatprep.subr.mxu0 0.0
    %3697 = vmatpush2.msra.mxu0 0.0
    %3698 = vmatprep.subr.mxu0 0.0
    %3699 = vmatpush2.msra.mxu0 0.0
    %3700 = vmatprep.subr.mxu0 0.0
    %3701 = vmatpush2.msra.mxu0 0.0
    %3702 = vmatprep.mubr.f32.mxu0 0.0
    %3703 = vmatmul.mubr.f32.gmra.mxu0 %v3249
    %v3704 = vpop.f32.mrf.mxu0
    %v3705 = vadd.f32 %v3625, %v3704
    %v3706 = vpop.f32.mrf.mxu0
    %3707 = vmatprep.mubr.f32.mxu0 0.0
    %3708 = vmatmul.mubr.f32.gmra.mxu0 %v3256
    %v3709 = vpop.f32.mrf.mxu0
    %v3710 = vadd.f32 %v3630, %v3709
    %v3711 = vpop.f32.mrf.mxu0
    %3712 = vmatprep.mubr.f32.mxu0 0.0
    %3713 = vmatmul.mubr.f32.gmra.mxu0 0.0
    %v3714 = vpop.f32.mrf.mxu0
    %v3715 = vadd.f32 %v3635, %v3714
    %v3716 = vpop.f32.mrf.mxu0
    %3717 = vdwg.mxu0
    %v3718 = vadd.f32 %v3705, %v3710
    %v3719 = vsel %vm721, %v3715, 0.0
    %v3720 = vadd.f32 %v3718, %v3719
    %v3721 = vrot.slane %v3720, 4
    %v3722 = vadd.f32 %v3720, %v3721
    %v3723 = vrot.slane %v3722, 2
    %v3724 = vadd.f32 %v3722, %v3723
    %v3725 = vrot.slane %v3724, 1
    %v3726 = vadd.f32 %v3724, %v3725
    %v3727 = vadd.f32 %v3726, 0.0
    %v3728 = vmul.f32 %v3705, %v3705
    %v3729 = vmul.f32 %v3710, %v3710
    %v3730 = vmul.f32 %v3715, %v3715
    %v3731 = vadd.f32 %v3728, %v3729
    %v3732 = vsel %vm721, %v3730, 0.0
    %v3733 = vadd.f32 %v3731, %v3732
    %v3734 = vrot.slane %v3733, 4
    %v3735 = vadd.f32 %v3733, %v3734
    %v3736 = vrot.slane %v3735, 2
    %v3737 = vadd.f32 %v3735, %v3736
    %v3738 = vrot.slane %v3737, 1
    %v3739 = vadd.f32 %v3737, %v3738
    %v3740 = vadd.f32 %v3739, 0.0
    %v3744 = vrot.slane %v3095, 4
    %v3745 = vrot.slane %v3096, 4
    %v3746 = vsel %vm671, %v3744, %v3745
    %v3747 = vrot.slane %v3097, 4
    %v3748 = vsel %vm671, %v3745, %v3747
    %v3752 = vsel %vm671, 0.0, %v3744
    %v3753 = vsel %vm690, %v3748, 0.0
    %v3756 = vrot.slane %v3752, 1
    %v3757 = vrot.slane %v3746, 1
    %v3758 = vsel %vm682, %v3756, %v3757
    %v3759 = vrot.slane %v3753, 1
    %v3760 = vsel %vm682, %v3757, %v3759
    %v3764 = vrot.slane %v3752, 2
    %v3765 = vrot.slane %v3746, 2
    %v3766 = vsel %vm690, %v3764, %v3765
    %v3767 = vrot.slane %v3753, 2
    %v3768 = vsel %vm690, %v3765, %v3767
    %v3772 = vrot.slane %v3752, 3
    %v3773 = vrot.slane %v3746, 3
    %v3774 = vsel %vm698, %v3772, %v3773
    %v3775 = vrot.slane %v3753, 3
    %v3776 = vsel %vm698, %v3773, %v3775
    %v3780 = vrot.slane %v3752, 4
    %v3781 = vrot.slane %v3746, 4
    %v3782 = vsel %vm671, %v3780, %v3781
    %v3783 = vrot.slane %v3753, 4
    %v3784 = vsel %vm671, %v3781, %v3783
    %v3788 = vrot.slane %v3752, 5
    %v3789 = vrot.slane %v3746, 5
    %v3790 = vsel %vm713, %v3788, %v3789
    %v3791 = vrot.slane %v3753, 5
    %v3792 = vsel %vm713, %v3789, %v3791
    %v3796 = vrot.slane %v3752, 6
    %v3797 = vrot.slane %v3746, 6
    %v3798 = vsel %vm721, %v3796, %v3797
    %v3799 = vrot.slane %v3753, 6
    %v3800 = vsel %vm721, %v3797, %v3799
    %v3804 = vrot.slane %v3752, 7
    %v3805 = vrot.slane %v3746, 7
    %v3806 = vsel %vm729, %v3804, %v3805
    %v3807 = vrot.slane %v3753, 7
    %v3808 = vsel %vm729, %v3805, %v3807
    %v3809 = vsel %vm729, %v3807, %v3313
    %3813 = vmatprep.subr.mxu0 0.0
    %3814 = vmatpush1.msra.mxu0 %v3113
    %3815 = vmatprep.subr.mxu0 0.0
    %3816 = vmatpush1.msra.mxu0 %v3112
    %3817 = vmatprep.subr.mxu0 0.0
    %3818 = vmatpush1.msra.mxu0 %v3111
    %3819 = vmatprep.subr.mxu0 0.0
    %3820 = vmatpush1.msra.mxu0 %v3110
    %3821 = vmatprep.subr.mxu0 0.0
    %3822 = vmatpush1.msra.mxu0 %v3109
    %3823 = vmatprep.subr.mxu0 0.0
    %3824 = vmatpush1.msra.mxu0 %v3108
    %3825 = vmatprep.subr.mxu0 0.0
    %3826 = vmatpush1.msra.mxu0 %v3107
    %3827 = vmatprep.subr.mxu0 0.0
    %3828 = vmatpush1.msra.mxu0 %v3106
    %3829 = vmatprep.subr.mxu0 0.0
    %3830 = vmatpush1.msra.mxu0 %v3105
    %3831 = vmatprep.subr.mxu0 0.0
    %3832 = vmatpush1.msra.mxu0 %v3104
    %3833 = vmatprep.subr.mxu0 0.0
    %3834 = vmatpush1.msra.mxu0 %v3103
    %3835 = vmatprep.subr.mxu0 0.0
    %3836 = vmatpush1.msra.mxu0 %v3102
    %3837 = vmatprep.subr.mxu0 0.0
    %3838 = vmatpush1.msra.mxu0 %v3101
    %3839 = vmatprep.subr.mxu0 0.0
    %3840 = vmatpush1.msra.mxu0 %v3100
    %3841 = vmatprep.subr.mxu0 0.0
    %3842 = vmatpush1.msra.mxu0 %v3099
    %3843 = vmatprep.subr.mxu0 0.0
    %3844 = vmatpush1.msra.mxu0 %v3098
    %3845 = vmatprep.subr.mxu0 0.0
    %3846 = vmatpush2.msra.mxu0 %v3129
    %3847 = vmatprep.subr.mxu0 0.0
    %3848 = vmatpush2.msra.mxu0 %v3128
    %3849 = vmatprep.subr.mxu0 0.0
    %3850 = vmatpush2.msra.mxu0 %v3127
    %3851 = vmatprep.subr.mxu0 0.0
    %3852 = vmatpush2.msra.mxu0 %v3126
    %3853 = vmatprep.subr.mxu0 0.0
    %3854 = vmatpush2.msra.mxu0 %v3125
    %3855 = vmatprep.subr.mxu0 0.0
    %3856 = vmatpush2.msra.mxu0 %v3124
    %3857 = vmatprep.subr.mxu0 0.0
    %3858 = vmatpush2.msra.mxu0 %v3123
    %3859 = vmatprep.subr.mxu0 0.0
    %3860 = vmatpush2.msra.mxu0 %v3122
    %3861 = vmatprep.subr.mxu0 0.0
    %3862 = vmatpush2.msra.mxu0 %v3121
    %3863 = vmatprep.subr.mxu0 0.0
    %3864 = vmatpush2.msra.mxu0 %v3120
    %3865 = vmatprep.subr.mxu0 0.0
    %3866 = vmatpush2.msra.mxu0 %v3119
    %3867 = vmatprep.subr.mxu0 0.0
    %3868 = vmatpush2.msra.mxu0 %v3118
    %3869 = vmatprep.subr.mxu0 0.0
    %3870 = vmatpush2.msra.mxu0 %v3117
    %3871 = vmatprep.subr.mxu0 0.0
    %3872 = vmatpush2.msra.mxu0 %v3116
    %3873 = vmatprep.subr.mxu0 0.0
    %3874 = vmatpush2.msra.mxu0 %v3115
    %3875 = vmatprep.subr.mxu0 0.0
    %3876 = vmatpush2.msra.mxu0 %v3114
    %3877 = vmatprep.mubr.f32.mxu0 %v3758
    %3878 = vmatmul.mubr.f32.gmra.mxu0 %v3752
    %v3879 = vpop.f32.mrf.mxu0
    %v3880 = vadd.f32 0.0, %v3879
    %v3881 = vpop.f32.mrf.mxu0
    %3882 = vmatprep.mubr.f32.mxu0 %v3760
    %3883 = vmatmul.mubr.f32.gmra.mxu0 %v3746
    %v3884 = vpop.f32.mrf.mxu0
    %v3885 = vadd.f32 0.0, %v3884
    %v3886 = vpop.f32.mrf.mxu0
    %3887 = vmatprep.mubr.f32.mxu0 %v3759
    %3888 = vmatmul.mubr.f32.gmra.mxu0 %v3753
    %v3889 = vpop.f32.mrf.mxu0
    %v3890 = vadd.f32 0.0, %v3889
    %v3891 = vpop.f32.mrf.mxu0
    %3892 = vdwg.mxu0
    %3893 = vmatprep.subr.mxu0 0.0
    %3894 = vmatpush1.msra.mxu0 %v3145
    %3895 = vmatprep.subr.mxu0 0.0
    %3896 = vmatpush1.msra.mxu0 %v3144
    %3897 = vmatprep.subr.mxu0 0.0
    %3898 = vmatpush1.msra.mxu0 %v3143
    %3899 = vmatprep.subr.mxu0 0.0
    %3900 = vmatpush1.msra.mxu0 %v3142
    %3901 = vmatprep.subr.mxu0 0.0
    %3902 = vmatpush1.msra.mxu0 %v3141
    %3903 = vmatprep.subr.mxu0 0.0
    %3904 = vmatpush1.msra.mxu0 %v3140
    %3905 = vmatprep.subr.mxu0 0.0
    %3906 = vmatpush1.msra.mxu0 %v3139
    %3907 = vmatprep.subr.mxu0 0.0
    %3908 = vmatpush1.msra.mxu0 %v3138
    %3909 = vmatprep.subr.mxu0 0.0
    %3910 = vmatpush1.msra.mxu0 %v3137
    %3911 = vmatprep.subr.mxu0 0.0
    %3912 = vmatpush1.msra.mxu0 %v3136
    %3913 = vmatprep.subr.mxu0 0.0
    %3914 = vmatpush1.msra.mxu0 %v3135
    %3915 = vmatprep.subr.mxu0 0.0
    %3916 = vmatpush1.msra.mxu0 %v3134
    %3917 = vmatprep.subr.mxu0 0.0
    %3918 = vmatpush1.msra.mxu0 %v3133
    %3919 = vmatprep.subr.mxu0 0.0
    %3920 = vmatpush1.msra.mxu0 %v3132
    %3921 = vmatprep.subr.mxu0 0.0
    %3922 = vmatpush1.msra.mxu0 %v3131
    %3923 = vmatprep.subr.mxu0 0.0
    %3924 = vmatpush1.msra.mxu0 %v3130
    %3925 = vmatprep.subr.mxu0 0.0
    %3926 = vmatpush2.msra.mxu0 %v3161
    %3927 = vmatprep.subr.mxu0 0.0
    %3928 = vmatpush2.msra.mxu0 %v3160
    %3929 = vmatprep.subr.mxu0 0.0
    %3930 = vmatpush2.msra.mxu0 %v3159
    %3931 = vmatprep.subr.mxu0 0.0
    %3932 = vmatpush2.msra.mxu0 %v3158
    %3933 = vmatprep.subr.mxu0 0.0
    %3934 = vmatpush2.msra.mxu0 %v3157
    %3935 = vmatprep.subr.mxu0 0.0
    %3936 = vmatpush2.msra.mxu0 %v3156
    %3937 = vmatprep.subr.mxu0 0.0
    %3938 = vmatpush2.msra.mxu0 %v3155
    %3939 = vmatprep.subr.mxu0 0.0
    %3940 = vmatpush2.msra.mxu0 %v3154
    %3941 = vmatprep.subr.mxu0 0.0
    %3942 = vmatpush2.msra.mxu0 %v3153
    %3943 = vmatprep.subr.mxu0 0.0
    %3944 = vmatpush2.msra.mxu0 %v3152
    %3945 = vmatprep.subr.mxu0 0.0
    %3946 = vmatpush2.msra.mxu0 %v3151
    %3947 = vmatprep.subr.mxu0 0.0
    %3948 = vmatpush2.msra.mxu0 %v3150
    %3949 = vmatprep.subr.mxu0 0.0
    %3950 = vmatpush2.msra.mxu0 %v3149
    %3951 = vmatprep.subr.mxu0 0.0
    %3952 = vmatpush2.msra.mxu0 %v3148
    %3953 = vmatprep.subr.mxu0 0.0
    %3954 = vmatpush2.msra.mxu0 %v3147
    %3955 = vmatprep.subr.mxu0 0.0
    %3956 = vmatpush2.msra.mxu0 %v3146
    %3957 = vmatprep.mubr.f32.mxu0 %v3774
    %3958 = vmatmul.mubr.f32.gmra.mxu0 %v3766
    %v3959 = vpop.f32.mrf.mxu0
    %v3960 = vadd.f32 %v3880, %v3959
    %v3961 = vpop.f32.mrf.mxu0
    %3962 = vmatprep.mubr.f32.mxu0 %v3776
    %3963 = vmatmul.mubr.f32.gmra.mxu0 %v3768
    %v3964 = vpop.f32.mrf.mxu0
    %v3965 = vadd.f32 %v3885, %v3964
    %v3966 = vpop.f32.mrf.mxu0
    %3967 = vmatprep.mubr.f32.mxu0 %v3775
    %3968 = vmatmul.mubr.f32.gmra.mxu0 %v3767
    %v3969 = vpop.f32.mrf.mxu0
    %v3970 = vadd.f32 %v3890, %v3969
    %v3971 = vpop.f32.mrf.mxu0
    %3972 = vdwg.mxu0
    %3973 = vmatprep.subr.mxu0 0.0
    %3974 = vmatpush1.msra.mxu0 %v3177
    %3975 = vmatprep.subr.mxu0 0.0
    %3976 = vmatpush1.msra.mxu0 %v3176
    %3977 = vmatprep.subr.mxu0 0.0
    %3978 = vmatpush1.msra.mxu0 %v3175
    %3979 = vmatprep.subr.mxu0 0.0
    %3980 = vmatpush1.msra.mxu0 %v3174
    %3981 = vmatprep.subr.mxu0 0.0
    %3982 = vmatpush1.msra.mxu0 %v3173
    %3983 = vmatprep.subr.mxu0 0.0
    %3984 = vmatpush1.msra.mxu0 %v3172
    %3985 = vmatprep.subr.mxu0 0.0
    %3986 = vmatpush1.msra.mxu0 %v3171
    %3987 = vmatprep.subr.mxu0 0.0
    %3988 = vmatpush1.msra.mxu0 %v3170
    %3989 = vmatprep.subr.mxu0 0.0
    %3990 = vmatpush1.msra.mxu0 %v3169
    %3991 = vmatprep.subr.mxu0 0.0
    %3992 = vmatpush1.msra.mxu0 %v3168
    %3993 = vmatprep.subr.mxu0 0.0
    %3994 = vmatpush1.msra.mxu0 %v3167
    %3995 = vmatprep.subr.mxu0 0.0
    %3996 = vmatpush1.msra.mxu0 %v3166
    %3997 = vmatprep.subr.mxu0 0.0
    %3998 = vmatpush1.msra.mxu0 %v3165
    %3999 = vmatprep.subr.mxu0 0.0
    %4000 = vmatpush1.msra.mxu0 %v3164
    %4001 = vmatprep.subr.mxu0 0.0
    %4002 = vmatpush1.msra.mxu0 %v3163
    %4003 = vmatprep.subr.mxu0 0.0
    %4004 = vmatpush1.msra.mxu0 %v3162
    %4005 = vmatprep.subr.mxu0 0.0
    %4006 = vmatpush2.msra.mxu0 %v3193
    %4007 = vmatprep.subr.mxu0 0.0
    %4008 = vmatpush2.msra.mxu0 %v3192
    %4009 = vmatprep.subr.mxu0 0.0
    %4010 = vmatpush2.msra.mxu0 %v3191
    %4011 = vmatprep.subr.mxu0 0.0
    %4012 = vmatpush2.msra.mxu0 %v3190
    %4013 = vmatprep.subr.mxu0 0.0
    %4014 = vmatpush2.msra.mxu0 %v3189
    %4015 = vmatprep.subr.mxu0 0.0
    %4016 = vmatpush2.msra.mxu0 %v3188
    %4017 = vmatprep.subr.mxu0 0.0
    %4018 = vmatpush2.msra.mxu0 %v3187
    %4019 = vmatprep.subr.mxu0 0.0
    %4020 = vmatpush2.msra.mxu0 %v3186
    %4021 = vmatprep.subr.mxu0 0.0
    %4022 = vmatpush2.msra.mxu0 %v3185
    %4023 = vmatprep.subr.mxu0 0.0
    %4024 = vmatpush2.msra.mxu0 %v3184
    %4025 = vmatprep.subr.mxu0 0.0
    %4026 = vmatpush2.msra.mxu0 %v3183
    %4027 = vmatprep.subr.mxu0 0.0
    %4028 = vmatpush2.msra.mxu0 %v3182
    %4029 = vmatprep.subr.mxu0 0.0
    %4030 = vmatpush2.msra.mxu0 %v3181
    %4031 = vmatprep.subr.mxu0 0.0
    %4032 = vmatpush2.msra.mxu0 %v3180
    %4033 = vmatprep.subr.mxu0 0.0
    %4034 = vmatpush2.msra.mxu0 %v3179
    %4035 = vmatprep.subr.mxu0 0.0
    %4036 = vmatpush2.msra.mxu0 %v3178
    %4037 = vmatprep.mubr.f32.mxu0 %v3790
    %4038 = vmatmul.mubr.f32.gmra.mxu0 %v3782
    %v4039 = vpop.f32.mrf.mxu0
    %v4040 = vadd.f32 %v3960, %v4039
    %v4041 = vpop.f32.mrf.mxu0
    %4042 = vmatprep.mubr.f32.mxu0 %v3792
    %4043 = vmatmul.mubr.f32.gmra.mxu0 %v3784
    %v4044 = vpop.f32.mrf.mxu0
    %v4045 = vadd.f32 %v3965, %v4044
    %v4046 = vpop.f32.mrf.mxu0
    %4047 = vmatprep.mubr.f32.mxu0 %v3791
    %4048 = vmatmul.mubr.f32.gmra.mxu0 %v3783
    %v4049 = vpop.f32.mrf.mxu0
    %v4050 = vadd.f32 %v3970, %v4049
    %v4051 = vpop.f32.mrf.mxu0
    %4052 = vdwg.mxu0
    %4053 = vmatprep.subr.mxu0 0.0
    %4054 = vmatpush1.msra.mxu0 %v3209
    %4055 = vmatprep.subr.mxu0 0.0
    %4056 = vmatpush1.msra.mxu0 %v3208
    %4057 = vmatprep.subr.mxu0 0.0
    %4058 = vmatpush1.msra.mxu0 %v3207
    %4059 = vmatprep.subr.mxu0 0.0
    %4060 = vmatpush1.msra.mxu0 %v3206
    %4061 = vmatprep.subr.mxu0 0.0
    %4062 = vmatpush1.msra.mxu0 %v3205
    %4063 = vmatprep.subr.mxu0 0.0
    %4064 = vmatpush1.msra.mxu0 %v3204
    %4065 = vmatprep.subr.mxu0 0.0
    %4066 = vmatpush1.msra.mxu0 %v3203
    %4067 = vmatprep.subr.mxu0 0.0
    %4068 = vmatpush1.msra.mxu0 %v3202
    %4069 = vmatprep.subr.mxu0 0.0
    %4070 = vmatpush1.msra.mxu0 %v3201
    %4071 = vmatprep.subr.mxu0 0.0
    %4072 = vmatpush1.msra.mxu0 %v3200
    %4073 = vmatprep.subr.mxu0 0.0
    %4074 = vmatpush1.msra.mxu0 %v3199
    %4075 = vmatprep.subr.mxu0 0.0
    %4076 = vmatpush1.msra.mxu0 %v3198
    %4077 = vmatprep.subr.mxu0 0.0
    %4078 = vmatpush1.msra.mxu0 %v3197
    %4079 = vmatprep.subr.mxu0 0.0
    %4080 = vmatpush1.msra.mxu0 %v3196
    %4081 = vmatprep.subr.mxu0 0.0
    %4082 = vmatpush1.msra.mxu0 %v3195
    %4083 = vmatprep.subr.mxu0 0.0
    %4084 = vmatpush1.msra.mxu0 %v3194
    %4085 = vmatprep.subr.mxu0 0.0
    %4086 = vmatpush2.msra.mxu0 %v3225
    %4087 = vmatprep.subr.mxu0 0.0
    %4088 = vmatpush2.msra.mxu0 %v3224
    %4089 = vmatprep.subr.mxu0 0.0
    %4090 = vmatpush2.msra.mxu0 %v3223
    %4091 = vmatprep.subr.mxu0 0.0
    %4092 = vmatpush2.msra.mxu0 %v3222
    %4093 = vmatprep.subr.mxu0 0.0
    %4094 = vmatpush2.msra.mxu0 %v3221
    %4095 = vmatprep.subr.mxu0 0.0
    %4096 = vmatpush2.msra.mxu0 %v3220
    %4097 = vmatprep.subr.mxu0 0.0
    %4098 = vmatpush2.msra.mxu0 %v3219
    %4099 = vmatprep.subr.mxu0 0.0
    %4100 = vmatpush2.msra.mxu0 %v3218
    %4101 = vmatprep.subr.mxu0 0.0
    %4102 = vmatpush2.msra.mxu0 %v3217
    %4103 = vmatprep.subr.mxu0 0.0
    %4104 = vmatpush2.msra.mxu0 %v3216
    %4105 = vmatprep.subr.mxu0 0.0
    %4106 = vmatpush2.msra.mxu0 %v3215
    %4107 = vmatprep.subr.mxu0 0.0
    %4108 = vmatpush2.msra.mxu0 %v3214
    %4109 = vmatprep.subr.mxu0 0.0
    %4110 = vmatpush2.msra.mxu0 %v3213
    %4111 = vmatprep.subr.mxu0 0.0
    %4112 = vmatpush2.msra.mxu0 %v3212
    %4113 = vmatprep.subr.mxu0 0.0
    %4114 = vmatpush2.msra.mxu0 %v3211
    %4115 = vmatprep.subr.mxu0 0.0
    %4116 = vmatpush2.msra.mxu0 %v3210
    %4117 = vmatprep.mubr.f32.mxu0 %v3806
    %4118 = vmatmul.mubr.f32.gmra.mxu0 %v3798
    %v4119 = vpop.f32.mrf.mxu0
    %v4120 = vadd.f32 %v4040, %v4119
    %v4121 = vpop.f32.mrf.mxu0
    %4122 = vmatprep.mubr.f32.mxu0 %v3808
    %4123 = vmatmul.mubr.f32.gmra.mxu0 %v3800
    %v4124 = vpop.f32.mrf.mxu0
    %v4125 = vadd.f32 %v4045, %v4124
    %v4126 = vpop.f32.mrf.mxu0
    %4127 = vmatprep.mubr.f32.mxu0 %v3809
    %4128 = vmatmul.mubr.f32.gmra.mxu0 %v3799
    %v4129 = vpop.f32.mrf.mxu0
    %v4130 = vadd.f32 %v4050, %v4129
    %v4131 = vpop.f32.mrf.mxu0
    %4132 = vdwg.mxu0
    %4133 = vmatprep.subr.mxu0 0.0
    %4134 = vmatpush1.msra.mxu0 %v3241
    %4135 = vmatprep.subr.mxu0 0.0
    %4136 = vmatpush1.msra.mxu0 %v3240
    %4137 = vmatprep.subr.mxu0 0.0
    %4138 = vmatpush1.msra.mxu0 %v3239
    %4139 = vmatprep.subr.mxu0 0.0
    %4140 = vmatpush1.msra.mxu0 %v3238
    %4141 = vmatprep.subr.mxu0 0.0
    %4142 = vmatpush1.msra.mxu0 %v3237
    %4143 = vmatprep.subr.mxu0 0.0
    %4144 = vmatpush1.msra.mxu0 %v3236
    %4145 = vmatprep.subr.mxu0 0.0
    %4146 = vmatpush1.msra.mxu0 %v3235
    %4147 = vmatprep.subr.mxu0 0.0
    %4148 = vmatpush1.msra.mxu0 %v3234
    %4149 = vmatprep.subr.mxu0 0.0
    %4150 = vmatpush1.msra.mxu0 %v3233
    %4151 = vmatprep.subr.mxu0 0.0
    %4152 = vmatpush1.msra.mxu0 %v3232
    %4153 = vmatprep.subr.mxu0 0.0
    %4154 = vmatpush1.msra.mxu0 %v3231
    %4155 = vmatprep.subr.mxu0 0.0
    %4156 = vmatpush1.msra.mxu0 %v3230
    %4157 = vmatprep.subr.mxu0 0.0
    %4158 = vmatpush1.msra.mxu0 %v3229
    %4159 = vmatprep.subr.mxu0 0.0
    %4160 = vmatpush1.msra.mxu0 %v3228
    %4161 = vmatprep.subr.mxu0 0.0
    %4162 = vmatpush1.msra.mxu0 %v3227
    %4163 = vmatprep.subr.mxu0 0.0
    %4164 = vmatpush1.msra.mxu0 %v3226
    %4165 = vmatprep.subr.mxu0 0.0
    %4166 = vmatpush2.msra.mxu0 0.0
    %4167 = vmatprep.subr.mxu0 0.0
    %4168 = vmatpush2.msra.mxu0 0.0
    %4169 = vmatprep.subr.mxu0 0.0
    %4170 = vmatpush2.msra.mxu0 0.0
    %4171 = vmatprep.subr.mxu0 0.0
    %4172 = vmatpush2.msra.mxu0 0.0
    %4173 = vmatprep.subr.mxu0 0.0
    %4174 = vmatpush2.msra.mxu0 0.0
    %4175 = vmatprep.subr.mxu0 0.0
    %4176 = vmatpush2.msra.mxu0 0.0
    %4177 = vmatprep.subr.mxu0 0.0
    %4178 = vmatpush2.msra.mxu0 0.0
    %4179 = vmatprep.subr.mxu0 0.0
    %4180 = vmatpush2.msra.mxu0 0.0
    %4181 = vmatprep.subr.mxu0 0.0
    %4182 = vmatpush2.msra.mxu0 0.0
    %4183 = vmatprep.subr.mxu0 0.0
    %4184 = vmatpush2.msra.mxu0 0.0
    %4185 = vmatprep.subr.mxu0 0.0
    %4186 = vmatpush2.msra.mxu0 0.0
    %4187 = vmatprep.subr.mxu0 0.0
    %4188 = vmatpush2.msra.mxu0 0.0
    %4189 = vmatprep.subr.mxu0 0.0
    %4190 = vmatpush2.msra.mxu0 0.0
    %4191 = vmatprep.subr.mxu0 0.0
    %4192 = vmatpush2.msra.mxu0 0.0
    %4193 = vmatprep.subr.mxu0 0.0
    %4194 = vmatpush2.msra.mxu0 0.0
    %4195 = vmatprep.subr.mxu0 0.0
    %4196 = vmatpush2.msra.mxu0 0.0
    %4197 = vmatprep.mubr.f32.mxu0 0.0
    %4198 = vmatmul.mubr.f32.gmra.mxu0 %v3746
    %v4199 = vpop.f32.mrf.mxu0
    %v4200 = vadd.f32 %v4120, %v4199
    %v4201 = vpop.f32.mrf.mxu0
    %4202 = vmatprep.mubr.f32.mxu0 0.0
    %4203 = vmatmul.mubr.f32.gmra.mxu0 %v3753
    %v4204 = vpop.f32.mrf.mxu0
    %v4205 = vadd.f32 %v4125, %v4204
    %v4206 = vpop.f32.mrf.mxu0
    %4207 = vmatprep.mubr.f32.mxu0 0.0
    %4208 = vmatmul.mubr.f32.gmra.mxu0 0.0
    %v4209 = vpop.f32.mrf.mxu0
    %v4210 = vadd.f32 %v4130, %v4209
    %v4211 = vpop.f32.mrf.mxu0
    %4212 = vdwg.mxu0
    %v4213 = vadd.f32 %v4200, %v4205
    %v4214 = vsel %vm721, %v4210, 0.0
    %v4215 = vadd.f32 %v4213, %v4214
    %v4216 = vrot.slane %v4215, 4
    %v4217 = vadd.f32 %v4215, %v4216
    %v4218 = vrot.slane %v4217, 2
    %v4219 = vadd.f32 %v4217, %v4218
    %v4220 = vrot.slane %v4219, 1
    %v4221 = vadd.f32 %v4219, %v4220
    %v4222 = vadd.f32 %v3727, %v4221
    %v4223 = vmul.f32 %v4200, %v4200
    %v4224 = vmul.f32 %v4205, %v4205
    %v4225 = vmul.f32 %v4210, %v4210
    %v4226 = vadd.f32 %v4223, %v4224
    %v4227 = vsel %vm721, %v4225, 0.0
    %v4228 = vadd.f32 %v4226, %v4227
    %v4229 = vrot.slane %v4228, 4
    %v4230 = vadd.f32 %v4228, %v4229
    %v4231 = vrot.slane %v4230, 2
    %v4232 = vadd.f32 %v4230, %v4231
    %v4233 = vrot.slane %v4232, 1
    %v4234 = vadd.f32 %v4232, %v4233
    %v4235 = vadd.f32 %v3740, %v4234
    %v4236 = vmul.f32 %v4222, 0.027777778
    %v4237 = vmul.f32 %v4235, 0.027777778
    %v4238 = vmul.f32 %v4236, %v4236
    %v4239 = vsub.f32 %v4237, %v4238
    %v4240 = vmax.f32 %v4239, 0.0
    %v4241 = vadd.f32 %v4240, 1e-05
    %v4242 = vrsqrt.pop %v4241
    %v4243 = vmul.f32 %v3242, %v4242
    %v4244 = vmul.f32 %v4236, %v4243
    %v4245 = vsub.f32 %v3243, %v4244
    %v4247 = vlaneseq
    %v4248 = vshrl.u32 %v4247, 7
    %v4249 = vsub.s32 0, %v4248
    %v4250 = vrot.slane %v4243, %v4249
    %v4252 = vmul.f32 %v3705, %v4250
    %v4253 = vmul.f32 %v3710, %v4250
    %v4254 = vmul.f32 %v3715, %v4250
    %v4256 = vlaneseq
    %v4257 = vshrl.u32 %v4256, 7
    %v4258 = vsub.s32 0, %v4257
    %v4259 = vrot.slane %v4245, %v4258
    %v4261 = vadd.f32 %v4252, %v4259
    %v4262 = vadd.f32 %v4253, %v4259
    %v4263 = vadd.f32 %v4254, %v4259
    %v4264 = vmax.f32 %v4261, 0.0
    %v4265 = vmax.f32 %v4262, 0.0
    %v4266 = vmax.f32 %v4263, 0.0
    %v4267 = vmul.f32 %v4200, %v4250
    %v4268 = vmul.f32 %v4205, %v4250
    %v4269 = vmul.f32 %v4210, %v4250
    %v4270 = vadd.f32 %v4267, %v4259
    %v4271 = vadd.f32 %v4268, %v4259
    %v4272 = vadd.f32 %v4269, %v4259
    %v4273 = vmax.f32 %v4270, 0.0
    %v4274 = vmax.f32 %v4271, 0.0
    %v4275 = vmax.f32 %v4272, 0.0
    %v4276 = vld [vmem:[#allocation22] sm:$0xff]
    %v4277 = vld [vmem:[#allocation22 + $0x8] sm:$0xff]
    %v4278 = vld [vmem:[#allocation22 + $0x10] sm:$0xff]
    %v4279 = vld [vmem:[#allocation22 + $0x18] sm:$0xff]
    %v4280 = vld [vmem:[#allocation22 + $0x20] sm:$0xff]
    %v4281 = vld [vmem:[#allocation22 + $0x28] sm:$0xff]
    %v4282 = vld [vmem:[#allocation22 + $0x30] sm:$0xff]
    %v4283 = vld [vmem:[#allocation22 + $0x38] sm:$0xff]
    %v4284 = vld [vmem:[#allocation22 + $0x40] sm:$0xff]
    %v4285 = vld [vmem:[#allocation22 + $0x48] sm:$0xff]
    %v4286 = vld [vmem:[#allocation22 + $0x50] sm:$0xff]
    %v4287 = vld [vmem:[#allocation22 + $0x58] sm:$0xff]
    %v4288 = vld [vmem:[#allocation22 + $0x60] sm:$0xff]
    %v4289 = vld [vmem:[#allocation22 + $0x68] sm:$0xff]
    %v4290 = vld [vmem:[#allocation22 + $0x70] sm:$0xff]
    %v4291 = vld [vmem:[#allocation22 + $0x78] sm:$0xff]
    %v4292 = vld [vmem:[#allocation22 + $0x80] sm:$0xff]
    %v4293 = vld [vmem:[#allocation22 + $0x88] sm:$0xff]
    %v4294 = vld [vmem:[#allocation22 + $0x90] sm:$0xff]
    %v4295 = vld [vmem:[#allocation22 + $0x98] sm:$0xff]
    %v4296 = vld [vmem:[#allocation22 + $0xa0] sm:$0xff]
    %v4297 = vld [vmem:[#allocation22 + $0xa8] sm:$0xff]
    %v4298 = vld [vmem:[#allocation22 + $0xb0] sm:$0xff]
    %v4299 = vld [vmem:[#allocation22 + $0xb8] sm:$0xff]
    %v4300 = vld [vmem:[#allocation22 + $0xc0] sm:$0xff]
    %v4301 = vld [vmem:[#allocation22 + $0xc8] sm:$0xff]
    %v4302 = vld [vmem:[#allocation22 + $0xd0] sm:$0xff]
    %v4303 = vld [vmem:[#allocation22 + $0xd8] sm:$0xff]
    %v4304 = vld [vmem:[#allocation22 + $0xe0] sm:$0xff]
    %v4305 = vld [vmem:[#allocation22 + $0xe8] sm:$0xff]
    %v4306 = vld [vmem:[#allocation22 + $0xf0] sm:$0xff]
    %v4307 = vld [vmem:[#allocation22 + $0xf8] sm:$0xff]
    %v4308 = vld [vmem:[#allocation22 + $0x100] sm:$0xff]
    %v4309 = vld [vmem:[#allocation22 + $0x108] sm:$0xff]
    %v4310 = vld [vmem:[#allocation22 + $0x110] sm:$0xff]
    %v4311 = vld [vmem:[#allocation22 + $0x118] sm:$0xff]
    %v4312 = vld [vmem:[#allocation22 + $0x120] sm:$0xff]
    %v4313 = vld [vmem:[#allocation22 + $0x128] sm:$0xff]
    %v4314 = vld [vmem:[#allocation22 + $0x130] sm:$0xff]
    %v4315 = vld [vmem:[#allocation22 + $0x138] sm:$0xff]
    %v4316 = vld [vmem:[#allocation22 + $0x140] sm:$0xff]
    %v4317 = vld [vmem:[#allocation22 + $0x148] sm:$0xff]
    %v4318 = vld [vmem:[#allocation22 + $0x150] sm:$0xff]
    %v4319 = vld [vmem:[#allocation22 + $0x158] sm:$0xff]
    %v4320 = vld [vmem:[#allocation22 + $0x160] sm:$0xff]
    %v4321 = vld [vmem:[#allocation22 + $0x168] sm:$0xff]
    %v4322 = vld [vmem:[#allocation22 + $0x170] sm:$0xff]
    %v4323 = vld [vmem:[#allocation22 + $0x178] sm:$0xff]
    %v4324 = vld [vmem:[#allocation22 + $0x180] sm:$0xff]
    %v4325 = vld [vmem:[#allocation22 + $0x188] sm:$0xff]
    %v4326 = vld [vmem:[#allocation22 + $0x190] sm:$0xff]
    %v4327 = vld [vmem:[#allocation22 + $0x198] sm:$0xff]
    %v4328 = vld [vmem:[#allocation22 + $0x1a0] sm:$0xff]
    %v4329 = vld [vmem:[#allocation22 + $0x1a8] sm:$0xff]
    %v4330 = vld [vmem:[#allocation22 + $0x1b0] sm:$0xff]
    %v4331 = vld [vmem:[#allocation22 + $0x1b8] sm:$0xff]
    %v4332 = vld [vmem:[#allocation22 + $0x1c0] sm:$0xff]
    %v4333 = vld [vmem:[#allocation22 + $0x1c8] sm:$0xff]
    %v4334 = vld [vmem:[#allocation22 + $0x1d0] sm:$0xff]
    %v4335 = vld [vmem:[#allocation22 + $0x1d8] sm:$0xff]
    %v4336 = vld [vmem:[#allocation22 + $0x1e0] sm:$0xff]
    %v4337 = vld [vmem:[#allocation22 + $0x1e8] sm:$0xff]
    %v4338 = vld [vmem:[#allocation22 + $0x1f0] sm:$0xff]
    %v4339 = vld [vmem:[#allocation22 + $0x1f8] sm:$0xff]
    %v4340 = vld [vmem:[#allocation22 + $0x200] sm:$0xff]
    %v4341 = vld [vmem:[#allocation22 + $0x208] sm:$0xff]
    %v4342 = vld [vmem:[#allocation22 + $0x210] sm:$0xff]
    %v4343 = vld [vmem:[#allocation22 + $0x218] sm:$0xff]
    %v4344 = vld [vmem:[#allocation22 + $0x220] sm:$0xff]
    %v4345 = vld [vmem:[#allocation22 + $0x228] sm:$0xff]
    %v4346 = vld [vmem:[#allocation22 + $0x230] sm:$0xff]
    %v4347 = vld [vmem:[#allocation22 + $0x238] sm:$0xff]
    %v4348 = vld [vmem:[#allocation22 + $0x240] sm:$0xff]
    %v4349 = vld [vmem:[#allocation22 + $0x248] sm:$0xff]
    %v4350 = vld [vmem:[#allocation22 + $0x250] sm:$0xff]
    %v4351 = vld [vmem:[#allocation22 + $0x258] sm:$0xff]
    %v4352 = vld [vmem:[#allocation22 + $0x260] sm:$0xff]
    %v4353 = vld [vmem:[#allocation22 + $0x268] sm:$0xff]
    %v4354 = vld [vmem:[#allocation22 + $0x270] sm:$0xff]
    %v4355 = vld [vmem:[#allocation22 + $0x278] sm:$0xff]
    %v4356 = vld [vmem:[#allocation23] sm:$0x1]
    %v4357 = vld [vmem:[#allocation25] sm:$0x1]
    %v4361 = vrot.slane %v4264, 6
    %v4362 = vrot.slane %v4265, 6
    %v4363 = vsel %vm721, %v4361, %v4362
    %v4364 = vrot.slane %v4266, 6
    %v4365 = vsel %vm721, %v4362, %v4364
    %v4369 = vsel %vm721, 0.0, %v4361
    %v4370 = vsel %vm671, %v4365, 0.0
    %v4373 = vrot.slane %v4369, 1
    %v4374 = vrot.slane %v4363, 1
    %v4375 = vsel %vm682, %v4373, %v4374
    %v4376 = vrot.slane %v4370, 1
    %v4377 = vsel %vm682, %v4374, %v4376
    %v4381 = vrot.slane %v4369, 2
    %v4382 = vrot.slane %v4363, 2
    %v4383 = vsel %vm690, %v4381, %v4382
    %v4384 = vrot.slane %v4370, 2
    %v4385 = vsel %vm690, %v4382, %v4384
    %v4389 = vrot.slane %v4369, 3
    %v4390 = vrot.slane %v4363, 3
    %v4391 = vsel %vm698, %v4389, %v4390
    %v4392 = vrot.slane %v4370, 3
    %v4393 = vsel %vm698, %v4390, %v4392
    %v4397 = vrot.slane %v4369, 4
    %v4398 = vrot.slane %v4363, 4
    %v4399 = vsel %vm671, %v4397, %v4398
    %v4400 = vrot.slane %v4370, 4
    %v4401 = vsel %vm671, %v4398, %v4400
    %4405 = vmatprep.subr.mxu0 0.0
    %4406 = vmatpush1.msra.mxu0 %v4291
    %4407 = vmatprep.subr.mxu0 0.0
    %4408 = vmatpush1.msra.mxu0 %v4290
    %4409 = vmatprep.subr.mxu0 0.0
    %4410 = vmatpush1.msra.mxu0 %v4289
    %4411 = vmatprep.subr.mxu0 0.0
    %4412 = vmatpush1.msra.mxu0 %v4288
    %4413 = vmatprep.subr.mxu0 0.0
    %4414 = vmatpush1.msra.mxu0 %v4287
    %4415 = vmatprep.subr.mxu0 0.0
    %4416 = vmatpush1.msra.mxu0 %v4286
    %4417 = vmatprep.subr.mxu0 0.0
    %4418 = vmatpush1.msra.mxu0 %v4285
    %4419 = vmatprep.subr.mxu0 0.0
    %4420 = vmatpush1.msra.mxu0 %v4284
    %4421 = vmatprep.subr.mxu0 0.0
    %4422 = vmatpush1.msra.mxu0 %v4283
    %4423 = vmatprep.subr.mxu0 0.0
    %4424 = vmatpush1.msra.mxu0 %v4282
    %4425 = vmatprep.subr.mxu0 0.0
    %4426 = vmatpush1.msra.mxu0 %v4281
    %4427 = vmatprep.subr.mxu0 0.0
    %4428 = vmatpush1.msra.mxu0 %v4280
    %4429 = vmatprep.subr.mxu0 0.0
    %4430 = vmatpush1.msra.mxu0 %v4279
    %4431 = vmatprep.subr.mxu0 0.0
    %4432 = vmatpush1.msra.mxu0 %v4278
    %4433 = vmatprep.subr.mxu0 0.0
    %4434 = vmatpush1.msra.mxu0 %v4277
    %4435 = vmatprep.subr.mxu0 0.0
    %4436 = vmatpush1.msra.mxu0 %v4276
    %4437 = vmatprep.subr.mxu0 0.0
    %4438 = vmatpush2.msra.mxu0 %v4307
    %4439 = vmatprep.subr.mxu0 0.0
    %4440 = vmatpush2.msra.mxu0 %v4306
    %4441 = vmatprep.subr.mxu0 0.0
    %4442 = vmatpush2.msra.mxu0 %v4305
    %4443 = vmatprep.subr.mxu0 0.0
    %4444 = vmatpush2.msra.mxu0 %v4304
    %4445 = vmatprep.subr.mxu0 0.0
    %4446 = vmatpush2.msra.mxu0 %v4303
    %4447 = vmatprep.subr.mxu0 0.0
    %4448 = vmatpush2.msra.mxu0 %v4302
    %4449 = vmatprep.subr.mxu0 0.0
    %4450 = vmatpush2.msra.mxu0 %v4301
    %4451 = vmatprep.subr.mxu0 0.0
    %4452 = vmatpush2.msra.mxu0 %v4300
    %4453 = vmatprep.subr.mxu0 0.0
    %4454 = vmatpush2.msra.mxu0 %v4299
    %4455 = vmatprep.subr.mxu0 0.0
    %4456 = vmatpush2.msra.mxu0 %v4298
    %4457 = vmatprep.subr.mxu0 0.0
    %4458 = vmatpush2.msra.mxu0 %v4297
    %4459 = vmatprep.subr.mxu0 0.0
    %4460 = vmatpush2.msra.mxu0 %v4296
    %4461 = vmatprep.subr.mxu0 0.0
    %4462 = vmatpush2.msra.mxu0 %v4295
    %4463 = vmatprep.subr.mxu0 0.0
    %4464 = vmatpush2.msra.mxu0 %v4294
    %4465 = vmatprep.subr.mxu0 0.0
    %4466 = vmatpush2.msra.mxu0 %v4293
    %4467 = vmatprep.subr.mxu0 0.0
    %4468 = vmatpush2.msra.mxu0 %v4292
    %4469 = vmatprep.mubr.f32.mxu0 %v4375
    %4470 = vmatmul.mubr.f32.gmra.mxu0 %v4369
    %v4471 = vpop.f32.mrf.mxu0
    %v4472 = vadd.f32 0.0, %v4471
    %v4473 = vpop.f32.mrf.mxu0
    %4474 = vmatprep.mubr.f32.mxu0 %v4377
    %4475 = vmatmul.mubr.f32.gmra.mxu0 %v4363
    %v4476 = vpop.f32.mrf.mxu0
    %v4477 = vadd.f32 0.0, %v4476
    %v4478 = vpop.f32.mrf.mxu0
    %4479 = vmatprep.mubr.f32.mxu0 %v4376
    %4480 = vmatmul.mubr.f32.gmra.mxu0 %v4370
    %v4481 = vpop.f32.mrf.mxu0
    %v4482 = vadd.f32 0.0, %v4481
    %v4483 = vpop.f32.mrf.mxu0
    %4484 = vdwg.mxu0
    %4485 = vmatprep.subr.mxu0 0.0
    %4486 = vmatpush1.msra.mxu0 %v4323
    %4487 = vmatprep.subr.mxu0 0.0
    %4488 = vmatpush1.msra.mxu0 %v4322
    %4489 = vmatprep.subr.mxu0 0.0
    %4490 = vmatpush1.msra.mxu0 %v4321
    %4491 = vmatprep.subr.mxu0 0.0
    %4492 = vmatpush1.msra.mxu0 %v4320
    %4493 = vmatprep.subr.mxu0 0.0
    %4494 = vmatpush1.msra.mxu0 %v4319
    %4495 = vmatprep.subr.mxu0 0.0
    %4496 = vmatpush1.msra.mxu0 %v4318
    %4497 = vmatprep.subr.mxu0 0.0
    %4498 = vmatpush1.msra.mxu0 %v4317
    %4499 = vmatprep.subr.mxu0 0.0
    %4500 = vmatpush1.msra.mxu0 %v4316
    %4501 = vmatprep.subr.mxu0 0.0
    %4502 = vmatpush1.msra.mxu0 %v4315
    %4503 = vmatprep.subr.mxu0 0.0
    %4504 = vmatpush1.msra.mxu0 %v4314
    %4505 = vmatprep.subr.mxu0 0.0
    %4506 = vmatpush1.msra.mxu0 %v4313
    %4507 = vmatprep.subr.mxu0 0.0
    %4508 = vmatpush1.msra.mxu0 %v4312
    %4509 = vmatprep.subr.mxu0 0.0
    %4510 = vmatpush1.msra.mxu0 %v4311
    %4511 = vmatprep.subr.mxu0 0.0
    %4512 = vmatpush1.msra.mxu0 %v4310
    %4513 = vmatprep.subr.mxu0 0.0
    %4514 = vmatpush1.msra.mxu0 %v4309
    %4515 = vmatprep.subr.mxu0 0.0
    %4516 = vmatpush1.msra.mxu0 %v4308
    %4517 = vmatprep.subr.mxu0 0.0
    %4518 = vmatpush2.msra.mxu0 %v4339
    %4519 = vmatprep.subr.mxu0 0.0
    %4520 = vmatpush2.msra.mxu0 %v4338
    %4521 = vmatprep.subr.mxu0 0.0
    %4522 = vmatpush2.msra.mxu0 %v4337
    %4523 = vmatprep.subr.mxu0 0.0
    %4524 = vmatpush2.msra.mxu0 %v4336
    %4525 = vmatprep.subr.mxu0 0.0
    %4526 = vmatpush2.msra.mxu0 %v4335
    %4527 = vmatprep.subr.mxu0 0.0
    %4528 = vmatpush2.msra.mxu0 %v4334
    %4529 = vmatprep.subr.mxu0 0.0
    %4530 = vmatpush2.msra.mxu0 %v4333
    %4531 = vmatprep.subr.mxu0 0.0
    %4532 = vmatpush2.msra.mxu0 %v4332
    %4533 = vmatprep.subr.mxu0 0.0
    %4534 = vmatpush2.msra.mxu0 %v4331
    %4535 = vmatprep.subr.mxu0 0.0
    %4536 = vmatpush2.msra.mxu0 %v4330
    %4537 = vmatprep.subr.mxu0 0.0
    %4538 = vmatpush2.msra.mxu0 %v4329
    %4539 = vmatprep.subr.mxu0 0.0
    %4540 = vmatpush2.msra.mxu0 %v4328
    %4541 = vmatprep.subr.mxu0 0.0
    %4542 = vmatpush2.msra.mxu0 %v4327
    %4543 = vmatprep.subr.mxu0 0.0
    %4544 = vmatpush2.msra.mxu0 %v4326
    %4545 = vmatprep.subr.mxu0 0.0
    %4546 = vmatpush2.msra.mxu0 %v4325
    %4547 = vmatprep.subr.mxu0 0.0
    %4548 = vmatpush2.msra.mxu0 %v4324
    %4549 = vmatprep.mubr.f32.mxu0 %v4391
    %4550 = vmatmul.mubr.f32.gmra.mxu0 %v4383
    %v4551 = vpop.f32.mrf.mxu0
    %v4552 = vadd.f32 %v4472, %v4551
    %v4553 = vpop.f32.mrf.mxu0
    %4554 = vmatprep.mubr.f32.mxu0 %v4393
    %4555 = vmatmul.mubr.f32.gmra.mxu0 %v4385
    %v4556 = vpop.f32.mrf.mxu0
    %v4557 = vadd.f32 %v4477, %v4556
    %v4558 = vpop.f32.mrf.mxu0
    %4559 = vmatprep.mubr.f32.mxu0 %v4392
    %4560 = vmatmul.mubr.f32.gmra.mxu0 %v4384
    %v4561 = vpop.f32.mrf.mxu0
    %v4562 = vadd.f32 %v4482, %v4561
    %v4563 = vpop.f32.mrf.mxu0
    %4564 = vdwg.mxu0
    %4565 = vmatprep.subr.mxu0 0.0
    %4566 = vmatpush1.msra.mxu0 %v4355
    %4567 = vmatprep.subr.mxu0 0.0
    %4568 = vmatpush1.msra.mxu0 %v4354
    %4569 = vmatprep.subr.mxu0 0.0
    %4570 = vmatpush1.msra.mxu0 %v4353
    %4571 = vmatprep.subr.mxu0 0.0
    %4572 = vmatpush1.msra.mxu0 %v4352
    %4573 = vmatprep.subr.mxu0 0.0
    %4574 = vmatpush1.msra.mxu0 %v4351
    %4575 = vmatprep.subr.mxu0 0.0
    %4576 = vmatpush1.msra.mxu0 %v4350
    %4577 = vmatprep.subr.mxu0 0.0
    %4578 = vmatpush1.msra.mxu0 %v4349
    %4579 = vmatprep.subr.mxu0 0.0
    %4580 = vmatpush1.msra.mxu0 %v4348
    %4581 = vmatprep.subr.mxu0 0.0
    %4582 = vmatpush1.msra.mxu0 %v4347
    %4583 = vmatprep.subr.mxu0 0.0
    %4584 = vmatpush1.msra.mxu0 %v4346
    %4585 = vmatprep.subr.mxu0 0.0
    %4586 = vmatpush1.msra.mxu0 %v4345
    %4587 = vmatprep.subr.mxu0 0.0
    %4588 = vmatpush1.msra.mxu0 %v4344
    %4589 = vmatprep.subr.mxu0 0.0
    %4590 = vmatpush1.msra.mxu0 %v4343
    %4591 = vmatprep.subr.mxu0 0.0
    %4592 = vmatpush1.msra.mxu0 %v4342
    %4593 = vmatprep.subr.mxu0 0.0
    %4594 = vmatpush1.msra.mxu0 %v4341
    %4595 = vmatprep.subr.mxu0 0.0
    %4596 = vmatpush1.msra.mxu0 %v4340
    %4597 = vmatprep.subr.mxu0 0.0
    %4598 = vmatpush2.msra.mxu0 0.0
    %4599 = vmatprep.subr.mxu0 0.0
    %4600 = vmatpush2.msra.mxu0 0.0
    %4601 = vmatprep.subr.mxu0 0.0
    %4602 = vmatpush2.msra.mxu0 0.0
    %4603 = vmatprep.subr.mxu0 0.0
    %4604 = vmatpush2.msra.mxu0 0.0
    %4605 = vmatprep.subr.mxu0 0.0
    %4606 = vmatpush2.msra.mxu0 0.0
    %4607 = vmatprep.subr.mxu0 0.0
    %4608 = vmatpush2.msra.mxu0 0.0
    %4609 = vmatprep.subr.mxu0 0.0
    %4610 = vmatpush2.msra.mxu0 0.0
    %4611 = vmatprep.subr.mxu0 0.0
    %4612 = vmatpush2.msra.mxu0 0.0
    %4613 = vmatprep.subr.mxu0 0.0
    %4614 = vmatpush2.msra.mxu0 0.0
    %4615 = vmatprep.subr.mxu0 0.0
    %4616 = vmatpush2.msra.mxu0 0.0
    %4617 = vmatprep.subr.mxu0 0.0
    %4618 = vmatpush2.msra.mxu0 0.0
    %4619 = vmatprep.subr.mxu0 0.0
    %4620 = vmatpush2.msra.mxu0 0.0
    %4621 = vmatprep.subr.mxu0 0.0
    %4622 = vmatpush2.msra.mxu0 0.0
    %4623 = vmatprep.subr.mxu0 0.0
    %4624 = vmatpush2.msra.mxu0 0.0
    %4625 = vmatprep.subr.mxu0 0.0
    %4626 = vmatpush2.msra.mxu0 0.0
    %4627 = vmatprep.subr.mxu0 0.0
    %4628 = vmatpush2.msra.mxu0 0.0
    %4629 = vmatprep.mubr.f32.mxu0 0.0
    %4630 = vmatmul.mubr.f32.gmra.mxu0 %v4399
    %v4631 = vpop.f32.mrf.mxu0
    %v4632 = vadd.f32 %v4552, %v4631
    %v4633 = vpop.f32.mrf.mxu0
    %4634 = vmatprep.mubr.f32.mxu0 0.0
    %4635 = vmatmul.mubr.f32.gmra.mxu0 %v4401
    %v4636 = vpop.f32.mrf.mxu0
    %v4637 = vadd.f32 %v4557, %v4636
    %v4638 = vpop.f32.mrf.mxu0
    %4639 = vmatprep.mubr.f32.mxu0 0.0
    %4640 = vmatmul.mubr.f32.gmra.mxu0 %v4400
    %v4641 = vpop.f32.mrf.mxu0
    %v4642 = vadd.f32 %v4562, %v4641
    %v4643 = vpop.f32.mrf.mxu0
    %4644 = vdwg.mxu0
    %v4645 = vadd.f32 %v4632, %v4637
    %v4646 = vsel %vm721, %v4642, 0.0
    %v4647 = vadd.f32 %v4645, %v4646
    %v4648 = vrot.slane %v4647, 4
    %v4649 = vadd.f32 %v4647, %v4648
    %v4650 = vrot.slane %v4649, 2
    %v4651 = vadd.f32 %v4649, %v4650
    %v4652 = vrot.slane %v4651, 1
    %v4653 = vadd.f32 %v4651, %v4652
    %v4654 = vadd.f32 %v4653, 0.0
    %v4655 = vmul.f32 %v4632, %v4632
    %v4656 = vmul.f32 %v4637, %v4637
    %v4657 = vmul.f32 %v4642, %v4642
    %v4658 = vadd.f32 %v4655, %v4656
    %v4659 = vsel %vm721, %v4657, 0.0
    %v4660 = vadd.f32 %v4658, %v4659
    %v4661 = vrot.slane %v4660, 4
    %v4662 = vadd.f32 %v4660, %v4661
    %v4663 = vrot.slane %v4662, 2
    %v4664 = vadd.f32 %v4662, %v4663
    %v4665 = vrot.slane %v4664, 1
    %v4666 = vadd.f32 %v4664, %v4665
    %v4667 = vadd.f32 %v4666, 0.0
    %v4671 = vrot.slane %v4273, 6
    %v4672 = vrot.slane %v4274, 6
    %v4673 = vsel %vm721, %v4671, %v4672
    %v4674 = vrot.slane %v4275, 6
    %v4675 = vsel %vm721, %v4672, %v4674
    %v4679 = vsel %vm721, 0.0, %v4671
    %v4680 = vsel %vm671, %v4675, 0.0
    %v4683 = vrot.slane %v4679, 1
    %v4684 = vrot.slane %v4673, 1
    %v4685 = vsel %vm682, %v4683, %v4684
    %v4686 = vrot.slane %v4680, 1
    %v4687 = vsel %vm682, %v4684, %v4686
    %v4691 = vrot.slane %v4679, 2
    %v4692 = vrot.slane %v4673, 2
    %v4693 = vsel %vm690, %v4691, %v4692
    %v4694 = vrot.slane %v4680, 2
    %v4695 = vsel %vm690, %v4692, %v4694
    %v4699 = vrot.slane %v4679, 3
    %v4700 = vrot.slane %v4673, 3
    %v4701 = vsel %vm698, %v4699, %v4700
    %v4702 = vrot.slane %v4680, 3
    %v4703 = vsel %vm698, %v4700, %v4702
    %v4707 = vrot.slane %v4679, 4
    %v4708 = vrot.slane %v4673, 4
    %v4709 = vsel %vm671, %v4707, %v4708
    %v4710 = vrot.slane %v4680, 4
    %v4711 = vsel %vm671, %v4708, %v4710
    %4715 = vmatprep.subr.mxu0 0.0
    %4716 = vmatpush1.msra.mxu0 %v4291
    %4717 = vmatprep.subr.mxu0 0.0
    %4718 = vmatpush1.msra.mxu0 %v4290
    %4719 = vmatprep.subr.mxu0 0.0
    %4720 = vmatpush1.msra.mxu0 %v4289
    %4721 = vmatprep.subr.mxu0 0.0
    %4722 = vmatpush1.msra.mxu0 %v4288
    %4723 = vmatprep.subr.mxu0 0.0
    %4724 = vmatpush1.msra.mxu0 %v4287
    %4725 = vmatprep.subr.mxu0 0.0
    %4726 = vmatpush1.msra.mxu0 %v4286
    %4727 = vmatprep.subr.mxu0 0.0
    %4728 = vmatpush1.msra.mxu0 %v4285
    %4729 = vmatprep.subr.mxu0 0.0
    %4730 = vmatpush1.msra.mxu0 %v4284
    %4731 = vmatprep.subr.mxu0 0.0
    %4732 = vmatpush1.msra.mxu0 %v4283
    %4733 = vmatprep.subr.mxu0 0.0
    %4734 = vmatpush1.msra.mxu0 %v4282
    %4735 = vmatprep.subr.mxu0 0.0
    %4736 = vmatpush1.msra.mxu0 %v4281
    %4737 = vmatprep.subr.mxu0 0.0
    %4738 = vmatpush1.msra.mxu0 %v4280
    %4739 = vmatprep.subr.mxu0 0.0
    %4740 = vmatpush1.msra.mxu0 %v4279
    %4741 = vmatprep.subr.mxu0 0.0
    %4742 = vmatpush1.msra.mxu0 %v4278
    %4743 = vmatprep.subr.mxu0 0.0
    %4744 = vmatpush1.msra.mxu0 %v4277
    %4745 = vmatprep.subr.mxu0 0.0
    %4746 = vmatpush1.msra.mxu0 %v4276
    %4747 = vmatprep.subr.mxu0 0.0
    %4748 = vmatpush2.msra.mxu0 %v4307
    %4749 = vmatprep.subr.mxu0 0.0
    %4750 = vmatpush2.msra.mxu0 %v4306
    %4751 = vmatprep.subr.mxu0 0.0
    %4752 = vmatpush2.msra.mxu0 %v4305
    %4753 = vmatprep.subr.mxu0 0.0
    %4754 = vmatpush2.msra.mxu0 %v4304
    %4755 = vmatprep.subr.mxu0 0.0
    %4756 = vmatpush2.msra.mxu0 %v4303
    %4757 = vmatprep.subr.mxu0 0.0
    %4758 = vmatpush2.msra.mxu0 %v4302
    %4759 = vmatprep.subr.mxu0 0.0
    %4760 = vmatpush2.msra.mxu0 %v4301
    %4761 = vmatprep.subr.mxu0 0.0
    %4762 = vmatpush2.msra.mxu0 %v4300
    %4763 = vmatprep.subr.mxu0 0.0
    %4764 = vmatpush2.msra.mxu0 %v4299
    %4765 = vmatprep.subr.mxu0 0.0
    %4766 = vmatpush2.msra.mxu0 %v4298
    %4767 = vmatprep.subr.mxu0 0.0
    %4768 = vmatpush2.msra.mxu0 %v4297
    %4769 = vmatprep.subr.mxu0 0.0
    %4770 = vmatpush2.msra.mxu0 %v4296
    %4771 = vmatprep.subr.mxu0 0.0
    %4772 = vmatpush2.msra.mxu0 %v4295
    %4773 = vmatprep.subr.mxu0 0.0
    %4774 = vmatpush2.msra.mxu0 %v4294
    %4775 = vmatprep.subr.mxu0 0.0
    %4776 = vmatpush2.msra.mxu0 %v4293
    %4777 = vmatprep.subr.mxu0 0.0
    %4778 = vmatpush2.msra.mxu0 %v4292
    %4779 = vmatprep.mubr.f32.mxu0 %v4685
    %4780 = vmatmul.mubr.f32.gmra.mxu0 %v4679
    %v4781 = vpop.f32.mrf.mxu0
    %v4782 = vadd.f32 0.0, %v4781
    %v4783 = vpop.f32.mrf.mxu0
    %4784 = vmatprep.mubr.f32.mxu0 %v4687
    %4785 = vmatmul.mubr.f32.gmra.mxu0 %v4673
    %v4786 = vpop.f32.mrf.mxu0
    %v4787 = vadd.f32 0.0, %v4786
    %v4788 = vpop.f32.mrf.mxu0
    %4789 = vmatprep.mubr.f32.mxu0 %v4686
    %4790 = vmatmul.mubr.f32.gmra.mxu0 %v4680
    %v4791 = vpop.f32.mrf.mxu0
    %v4792 = vadd.f32 0.0, %v4791
    %v4793 = vpop.f32.mrf.mxu0
    %4794 = vdwg.mxu0
    %4795 = vmatprep.subr.mxu0 0.0
    %4796 = vmatpush1.msra.mxu0 %v4323
    %4797 = vmatprep.subr.mxu0 0.0
    %4798 = vmatpush1.msra.mxu0 %v4322
    %4799 = vmatprep.subr.mxu0 0.0
    %4800 = vmatpush1.msra.mxu0 %v4321
    %4801 = vmatprep.subr.mxu0 0.0
    %4802 = vmatpush1.msra.mxu0 %v4320
    %4803 = vmatprep.subr.mxu0 0.0
    %4804 = vmatpush1.msra.mxu0 %v4319
    %4805 = vmatprep.subr.mxu0 0.0
    %4806 = vmatpush1.msra.mxu0 %v4318
    %4807 = vmatprep.subr.mxu0 0.0
    %4808 = vmatpush1.msra.mxu0 %v4317
    %4809 = vmatprep.subr.mxu0 0.0
    %4810 = vmatpush1.msra.mxu0 %v4316
    %4811 = vmatprep.subr.mxu0 0.0
    %4812 = vmatpush1.msra.mxu0 %v4315
    %4813 = vmatprep.subr.mxu0 0.0
    %4814 = vmatpush1.msra.mxu0 %v4314
    %4815 = vmatprep.subr.mxu0 0.0
    %4816 = vmatpush1.msra.mxu0 %v4313
    %4817 = vmatprep.subr.mxu0 0.0
    %4818 = vmatpush1.msra.mxu0 %v4312
    %4819 = vmatprep.subr.mxu0 0.0
    %4820 = vmatpush1.msra.mxu0 %v4311
    %4821 = vmatprep.subr.mxu0 0.0
    %4822 = vmatpush1.msra.mxu0 %v4310
    %4823 = vmatprep.subr.mxu0 0.0
    %4824 = vmatpush1.msra.mxu0 %v4309
    %4825 = vmatprep.subr.mxu0 0.0
    %4826 = vmatpush1.msra.mxu0 %v4308
    %4827 = vmatprep.subr.mxu0 0.0
    %4828 = vmatpush2.msra.mxu0 %v4339
    %4829 = vmatprep.subr.mxu0 0.0
    %4830 = vmatpush2.msra.mxu0 %v4338
    %4831 = vmatprep.subr.mxu0 0.0
    %4832 = vmatpush2.msra.mxu0 %v4337
    %4833 = vmatprep.subr.mxu0 0.0
    %4834 = vmatpush2.msra.mxu0 %v4336
    %4835 = vmatprep.subr.mxu0 0.0
    %4836 = vmatpush2.msra.mxu0 %v4335
    %4837 = vmatprep.subr.mxu0 0.0
    %4838 = vmatpush2.msra.mxu0 %v4334
    %4839 = vmatprep.subr.mxu0 0.0
    %4840 = vmatpush2.msra.mxu0 %v4333
    %4841 = vmatprep.subr.mxu0 0.0
    %4842 = vmatpush2.msra.mxu0 %v4332
    %4843 = vmatprep.subr.mxu0 0.0
    %4844 = vmatpush2.msra.mxu0 %v4331
    %4845 = vmatprep.subr.mxu0 0.0
    %4846 = vmatpush2.msra.mxu0 %v4330
    %4847 = vmatprep.subr.mxu0 0.0
    %4848 = vmatpush2.msra.mxu0 %v4329
    %4849 = vmatprep.subr.mxu0 0.0
    %4850 = vmatpush2.msra.mxu0 %v4328
    %4851 = vmatprep.subr.mxu0 0.0
    %4852 = vmatpush2.msra.mxu0 %v4327
    %4853 = vmatprep.subr.mxu0 0.0
    %4854 = vmatpush2.msra.mxu0 %v4326
    %4855 = vmatprep.subr.mxu0 0.0
    %4856 = vmatpush2.msra.mxu0 %v4325
    %4857 = vmatprep.subr.mxu0 0.0
    %4858 = vmatpush2.msra.mxu0 %v4324
    %4859 = vmatprep.mubr.f32.mxu0 %v4701
    %4860 = vmatmul.mubr.f32.gmra.mxu0 %v4693
    %v4861 = vpop.f32.mrf.mxu0
    %v4862 = vadd.f32 %v4782, %v4861
    %v4863 = vpop.f32.mrf.mxu0
    %4864 = vmatprep.mubr.f32.mxu0 %v4703
    %4865 = vmatmul.mubr.f32.gmra.mxu0 %v4695
    %v4866 = vpop.f32.mrf.mxu0
    %v4867 = vadd.f32 %v4787, %v4866
    %v4868 = vpop.f32.mrf.mxu0
    %4869 = vmatprep.mubr.f32.mxu0 %v4702
    %4870 = vmatmul.mubr.f32.gmra.mxu0 %v4694
    %v4871 = vpop.f32.mrf.mxu0
    %v4872 = vadd.f32 %v4792, %v4871
    %v4873 = vpop.f32.mrf.mxu0
    %4874 = vdwg.mxu0
    %4875 = vmatprep.subr.mxu0 0.0
    %4876 = vmatpush1.msra.mxu0 %v4355
    %4877 = vmatprep.subr.mxu0 0.0
    %4878 = vmatpush1.msra.mxu0 %v4354
    %4879 = vmatprep.subr.mxu0 0.0
    %4880 = vmatpush1.msra.mxu0 %v4353
    %4881 = vmatprep.subr.mxu0 0.0
    %4882 = vmatpush1.msra.mxu0 %v4352
    %4883 = vmatprep.subr.mxu0 0.0
    %4884 = vmatpush1.msra.mxu0 %v4351
    %4885 = vmatprep.subr.mxu0 0.0
    %4886 = vmatpush1.msra.mxu0 %v4350
    %4887 = vmatprep.subr.mxu0 0.0
    %4888 = vmatpush1.msra.mxu0 %v4349
    %4889 = vmatprep.subr.mxu0 0.0
    %4890 = vmatpush1.msra.mxu0 %v4348
    %4891 = vmatprep.subr.mxu0 0.0
    %4892 = vmatpush1.msra.mxu0 %v4347
    %4893 = vmatprep.subr.mxu0 0.0
    %4894 = vmatpush1.msra.mxu0 %v4346
    %4895 = vmatprep.subr.mxu0 0.0
    %4896 = vmatpush1.msra.mxu0 %v4345
    %4897 = vmatprep.subr.mxu0 0.0
    %4898 = vmatpush1.msra.mxu0 %v4344
    %4899 = vmatprep.subr.mxu0 0.0
    %4900 = vmatpush1.msra.mxu0 %v4343
    %4901 = vmatprep.subr.mxu0 0.0
    %4902 = vmatpush1.msra.mxu0 %v4342
    %4903 = vmatprep.subr.mxu0 0.0
    %4904 = vmatpush1.msra.mxu0 %v4341
    %4905 = vmatprep.subr.mxu0 0.0
    %4906 = vmatpush1.msra.mxu0 %v4340
    %4907 = vmatprep.subr.mxu0 0.0
    %4908 = vmatpush2.msra.mxu0 0.0
    %4909 = vmatprep.subr.mxu0 0.0
    %4910 = vmatpush2.msra.mxu0 0.0
    %4911 = vmatprep.subr.mxu0 0.0
    %4912 = vmatpush2.msra.mxu0 0.0
    %4913 = vmatprep.subr.mxu0 0.0
    %4914 = vmatpush2.msra.mxu0 0.0
    %4915 = vmatprep.subr.mxu0 0.0
    %4916 = vmatpush2.msra.mxu0 0.0
    %4917 = vmatprep.subr.mxu0 0.0
    %4918 = vmatpush2.msra.mxu0 0.0
    %4919 = vmatprep.subr.mxu0 0.0
    %4920 = vmatpush2.msra.mxu0 0.0
    %4921 = vmatprep.subr.mxu0 0.0
    %4922 = vmatpush2.msra.mxu0 0.0
    %4923 = vmatprep.subr.mxu0 0.0
    %4924 = vmatpush2.msra.mxu0 0.0
    %4925 = vmatprep.subr.mxu0 0.0
    %4926 = vmatpush2.msra.mxu0 0.0
    %4927 = vmatprep.subr.mxu0 0.0
    %4928 = vmatpush2.msra.mxu0 0.0
    %4929 = vmatprep.subr.mxu0 0.0
    %4930 = vmatpush2.msra.mxu0 0.0
    %4931 = vmatprep.subr.mxu0 0.0
    %4932 = vmatpush2.msra.mxu0 0.0
    %4933 = vmatprep.subr.mxu0 0.0
    %4934 = vmatpush2.msra.mxu0 0.0
    %4935 = vmatprep.subr.mxu0 0.0
    %4936 = vmatpush2.msra.mxu0 0.0
    %4937 = vmatprep.subr.mxu0 0.0
    %4938 = vmatpush2.msra.mxu0 0.0
    %4939 = vmatprep.mubr.f32.mxu0 0.0
    %4940 = vmatmul.mubr.f32.gmra.mxu0 %v4709
    %v4941 = vpop.f32.mrf.mxu0
    %v4942 = vadd.f32 %v4862, %v4941
    %v4943 = vpop.f32.mrf.mxu0
    %4944 = vmatprep.mubr.f32.mxu0 0.0
    %4945 = vmatmul.mubr.f32.gmra.mxu0 %v4711
    %v4946 = vpop.f32.mrf.mxu0
    %v4947 = vadd.f32 %v4867, %v4946
    %v4948 = vpop.f32.mrf.mxu0
    %4949 = vmatprep.mubr.f32.mxu0 0.0
    %4950 = vmatmul.mubr.f32.gmra.mxu0 %v4710
    %v4951 = vpop.f32.mrf.mxu0
    %v4952 = vadd.f32 %v4872, %v4951
    %v4953 = vpop.f32.mrf.mxu0
    %4954 = vdwg.mxu0
    %v4955 = vadd.f32 %v4942, %v4947
    %v4956 = vsel %vm721, %v4952, 0.0
    %v4957 = vadd.f32 %v4955, %v4956
    %v4958 = vrot.slane %v4957, 4
    %v4959 = vadd.f32 %v4957, %v4958
    %v4960 = vrot.slane %v4959, 2
    %v4961 = vadd.f32 %v4959, %v4960
    %v4962 = vrot.slane %v4961, 1
    %v4963 = vadd.f32 %v4961, %v4962
    %v4964 = vadd.f32 %v4654, %v4963
    %v4965 = vmul.f32 %v4942, %v4942
    %v4966 = vmul.f32 %v4947, %v4947
    %v4967 = vmul.f32 %v4952, %v4952
    %v4968 = vadd.f32 %v4965, %v4966
    %v4969 = vsel %vm721, %v4967, 0.0
    %v4970 = vadd.f32 %v4968, %v4969
    %v4971 = vrot.slane %v4970, 4
    %v4972 = vadd.f32 %v4970, %v4971
    %v4973 = vrot.slane %v4972, 2
    %v4974 = vadd.f32 %v4972, %v4973
    %v4975 = vrot.slane %v4974, 1
    %v4976 = vadd.f32 %v4974, %v4975
    %v4977 = vadd.f32 %v4667, %v4976
    %v4978 = vmul.f32 %v4964, 0.027777778
    %v4979 = vmul.f32 %v4977, 0.027777778
    %v4980 = vmul.f32 %v4978, %v4978
    %v4981 = vsub.f32 %v4979, %v4980
    %v4982 = vmax.f32 %v4981, 0.0
    %v4983 = vadd.f32 %v4982, 1e-05
    %v4984 = vrsqrt.pop %v4983
    %v4985 = vmul.f32 %v4356, %v4984
    %v4986 = vmul.f32 %v4978, %v4985
    %v4987 = vsub.f32 %v4357, %v4986
    %v4989 = vlaneseq
    %v4990 = vshrl.u32 %v4989, 7
    %v4991 = vsub.s32 0, %v4990
    %v4992 = vrot.slane %v4985, %v4991
    %v4994 = vmul.f32 %v4632, %v4992
    %v4995 = vmul.f32 %v4637, %v4992
    %v4996 = vmul.f32 %v4642, %v4992
    %v4998 = vlaneseq
    %v4999 = vshrl.u32 %v4998, 7
    %v5000 = vsub.s32 0, %v4999
    %v5001 = vrot.slane %v4987, %v5000
    %v5003 = vadd.f32 %v4994, %v5001
    %v5004 = vadd.f32 %v4995, %v5001
    %v5005 = vadd.f32 %v4996, %v5001
    %v5006 = vmax.f32 %v5003, 0.0
    %v5007 = vmax.f32 %v5004, 0.0
    %v5008 = vmax.f32 %v5005, 0.0
    %v5009 = vmul.f32 %v4942, %v4992
    %v5010 = vmul.f32 %v4947, %v4992
    %v5011 = vmul.f32 %v4952, %v4992
    %v5012 = vadd.f32 %v5009, %v5001
    %v5013 = vadd.f32 %v5010, %v5001
    %v5014 = vadd.f32 %v5011, %v5001
    %v5015 = vmax.f32 %v5012, 0.0
    %v5016 = vmax.f32 %v5013, 0.0
    %v5017 = vmax.f32 %v5014, 0.0
    %v5018 = vld [vmem:[#allocation26] sm:$0xff]
    %v5019 = vld [vmem:[#allocation26 + $0x8] sm:$0xff]
    %v5020 = vld [vmem:[#allocation26 + $0x10] sm:$0xff]
    %v5021 = vld [vmem:[#allocation26 + $0x18] sm:$0xff]
    %v5022 = vld [vmem:[#allocation26 + $0x20] sm:$0xff]
    %v5023 = vld [vmem:[#allocation26 + $0x28] sm:$0xff]
    %v5024 = vld [vmem:[#allocation26 + $0x30] sm:$0xff]
    %v5025 = vld [vmem:[#allocation26 + $0x38] sm:$0xff]
    %v5026 = vld [vmem:[#allocation26 + $0x40] sm:$0xff]
    %v5027 = vld [vmem:[#allocation26 + $0x48] sm:$0xff]
    %v5028 = vld [vmem:[#allocation26 + $0x50] sm:$0xff]
    %v5029 = vld [vmem:[#allocation26 + $0x58] sm:$0xff]
    %v5030 = vld [vmem:[#allocation26 + $0x60] sm:$0xff]
    %v5031 = vld [vmem:[#allocation26 + $0x68] sm:$0xff]
    %v5032 = vld [vmem:[#allocation26 + $0x70] sm:$0xff]
    %v5033 = vld [vmem:[#allocation26 + $0x78] sm:$0xff]
    %v5034 = vld [vmem:[#allocation26 + $0x80] sm:$0xff]
    %v5035 = vld [vmem:[#allocation26 + $0x88] sm:$0xff]
    %v5036 = vld [vmem:[#allocation26 + $0x90] sm:$0xff]
    %v5037 = vld [vmem:[#allocation26 + $0x98] sm:$0xff]
    %v5038 = vld [vmem:[#allocation26 + $0xa0] sm:$0xff]
    %v5039 = vld [vmem:[#allocation26 + $0xa8] sm:$0xff]
    %v5040 = vld [vmem:[#allocation26 + $0xb0] sm:$0xff]
    %v5041 = vld [vmem:[#allocation26 + $0xb8] sm:$0xff]
    %v5042 = vld [vmem:[#allocation26 + $0xc0] sm:$0xff]
    %v5043 = vld [vmem:[#allocation26 + $0xc8] sm:$0xff]
    %v5044 = vld [vmem:[#allocation26 + $0xd0] sm:$0xff]
    %v5045 = vld [vmem:[#allocation26 + $0xd8] sm:$0xff]
    %v5046 = vld [vmem:[#allocation26 + $0xe0] sm:$0xff]
    %v5047 = vld [vmem:[#allocation26 + $0xe8] sm:$0xff]
    %v5048 = vld [vmem:[#allocation26 + $0xf0] sm:$0xff]
    %v5049 = vld [vmem:[#allocation26 + $0xf8] sm:$0xff]
    %v5050 = vld [vmem:[#allocation26 + $0x100] sm:$0xff]
    %v5051 = vld [vmem:[#allocation26 + $0x108] sm:$0xff]
    %v5052 = vld [vmem:[#allocation26 + $0x110] sm:$0xff]
    %v5053 = vld [vmem:[#allocation26 + $0x118] sm:$0xff]
    %v5054 = vld [vmem:[#allocation26 + $0x120] sm:$0xff]
    %v5055 = vld [vmem:[#allocation26 + $0x128] sm:$0xff]
    %v5056 = vld [vmem:[#allocation26 + $0x130] sm:$0xff]
    %v5057 = vld [vmem:[#allocation26 + $0x138] sm:$0xff]
    %v5058 = vld [vmem:[#allocation26 + $0x140] sm:$0xff]
    %v5059 = vld [vmem:[#allocation26 + $0x148] sm:$0xff]
    %v5060 = vld [vmem:[#allocation26 + $0x150] sm:$0xff]
    %v5061 = vld [vmem:[#allocation26 + $0x158] sm:$0xff]
    %v5062 = vld [vmem:[#allocation26 + $0x160] sm:$0xff]
    %v5063 = vld [vmem:[#allocation26 + $0x168] sm:$0xff]
    %v5064 = vld [vmem:[#allocation26 + $0x170] sm:$0xff]
    %v5065 = vld [vmem:[#allocation26 + $0x178] sm:$0xff]
    %v5066 = vld [vmem:[#allocation28] sm:$0x1]
    %v5067 = vld [vmem:[#allocation29] sm:$0x1]
    %v5071 = vrot.slane %v5006, 6
    %v5072 = vrot.slane %v5007, 6
    %v5073 = vsel %vm721, %v5071, %v5072
    %v5074 = vrot.slane %v5008, 6
    %v5075 = vsel %vm721, %v5072, %v5074
    %v5079 = vsel %vm721, 0.0, %v5071
    %v5080 = vsel %vm671, %v5075, 0.0
    %v5083 = vrot.slane %v5079, 1
    %v5084 = vrot.slane %v5073, 1
    %v5085 = vsel %vm682, %v5083, %v5084
    %v5086 = vrot.slane %v5080, 1
    %v5087 = vsel %vm682, %v5084, %v5086
    %v5091 = vrot.slane %v5079, 2
    %v5092 = vrot.slane %v5073, 2
    %v5093 = vsel %vm690, %v5091, %v5092
    %v5094 = vrot.slane %v5080, 2
    %v5095 = vsel %vm690, %v5092, %v5094
    %5099 = vmatprep.subr.mxu0 0.0
    %5100 = vmatpush1.msra.mxu0 %v5033
    %5101 = vmatprep.subr.mxu0 0.0
    %5102 = vmatpush1.msra.mxu0 %v5032
    %5103 = vmatprep.subr.mxu0 0.0
    %5104 = vmatpush1.msra.mxu0 %v5031
    %5105 = vmatprep.subr.mxu0 0.0
    %5106 = vmatpush1.msra.mxu0 %v5030
    %5107 = vmatprep.subr.mxu0 0.0
    %5108 = vmatpush1.msra.mxu0 %v5029
    %5109 = vmatprep.subr.mxu0 0.0
    %5110 = vmatpush1.msra.mxu0 %v5028
    %5111 = vmatprep.subr.mxu0 0.0
    %5112 = vmatpush1.msra.mxu0 %v5027
    %5113 = vmatprep.subr.mxu0 0.0
    %5114 = vmatpush1.msra.mxu0 %v5026
    %5115 = vmatprep.subr.mxu0 0.0
    %5116 = vmatpush1.msra.mxu0 %v5025
    %5117 = vmatprep.subr.mxu0 0.0
    %5118 = vmatpush1.msra.mxu0 %v5024
    %5119 = vmatprep.subr.mxu0 0.0
    %5120 = vmatpush1.msra.mxu0 %v5023
    %5121 = vmatprep.subr.mxu0 0.0
    %5122 = vmatpush1.msra.mxu0 %v5022
    %5123 = vmatprep.subr.mxu0 0.0
    %5124 = vmatpush1.msra.mxu0 %v5021
    %5125 = vmatprep.subr.mxu0 0.0
    %5126 = vmatpush1.msra.mxu0 %v5020
    %5127 = vmatprep.subr.mxu0 0.0
    %5128 = vmatpush1.msra.mxu0 %v5019
    %5129 = vmatprep.subr.mxu0 0.0
    %5130 = vmatpush1.msra.mxu0 %v5018
    %5131 = vmatprep.subr.mxu0 0.0
    %5132 = vmatpush2.msra.mxu0 %v5049
    %5133 = vmatprep.subr.mxu0 0.0
    %5134 = vmatpush2.msra.mxu0 %v5048
    %5135 = vmatprep.subr.mxu0 0.0
    %5136 = vmatpush2.msra.mxu0 %v5047
    %5137 = vmatprep.subr.mxu0 0.0
    %5138 = vmatpush2.msra.mxu0 %v5046
    %5139 = vmatprep.subr.mxu0 0.0
    %5140 = vmatpush2.msra.mxu0 %v5045
    %5141 = vmatprep.subr.mxu0 0.0
    %5142 = vmatpush2.msra.mxu0 %v5044
    %5143 = vmatprep.subr.mxu0 0.0
    %5144 = vmatpush2.msra.mxu0 %v5043
    %5145 = vmatprep.subr.mxu0 0.0
    %5146 = vmatpush2.msra.mxu0 %v5042
    %5147 = vmatprep.subr.mxu0 0.0
    %5148 = vmatpush2.msra.mxu0 %v5041
    %5149 = vmatprep.subr.mxu0 0.0
    %5150 = vmatpush2.msra.mxu0 %v5040
    %5151 = vmatprep.subr.mxu0 0.0
    %5152 = vmatpush2.msra.mxu0 %v5039
    %5153 = vmatprep.subr.mxu0 0.0
    %5154 = vmatpush2.msra.mxu0 %v5038
    %5155 = vmatprep.subr.mxu0 0.0
    %5156 = vmatpush2.msra.mxu0 %v5037
    %5157 = vmatprep.subr.mxu0 0.0
    %5158 = vmatpush2.msra.mxu0 %v5036
    %5159 = vmatprep.subr.mxu0 0.0
    %5160 = vmatpush2.msra.mxu0 %v5035
    %5161 = vmatprep.subr.mxu0 0.0
    %5162 = vmatpush2.msra.mxu0 %v5034
    %5163 = vmatprep.mubr.f32.mxu0 %v5085
    %5164 = vmatmul.mubr.f32.gmra.mxu0 %v5079
    %v5165 = vpop.f32.mrf.mxu0
    %v5166 = vadd.f32 0.0, %v5165
    %v5167 = vpop.f32.mrf.mxu0
    %5168 = vmatprep.mubr.f32.mxu0 %v5087
    %5169 = vmatmul.mubr.f32.gmra.mxu0 %v5073
    %v5170 = vpop.f32.mrf.mxu0
    %v5171 = vadd.f32 0.0, %v5170
    %v5172 = vpop.f32.mrf.mxu0
    %5173 = vmatprep.mubr.f32.mxu0 %v5086
    %5174 = vmatmul.mubr.f32.gmra.mxu0 %v5080
    %v5175 = vpop.f32.mrf.mxu0
    %v5176 = vadd.f32 0.0, %v5175
    %v5177 = vpop.f32.mrf.mxu0
    %5178 = vdwg.mxu0
    %5179 = vmatprep.subr.mxu0 0.0
    %5180 = vmatpush1.msra.mxu0 %v5065
    %5181 = vmatprep.subr.mxu0 0.0
    %5182 = vmatpush1.msra.mxu0 %v5064
    %5183 = vmatprep.subr.mxu0 0.0
    %5184 = vmatpush1.msra.mxu0 %v5063
    %5185 = vmatprep.subr.mxu0 0.0
    %5186 = vmatpush1.msra.mxu0 %v5062
    %5187 = vmatprep.subr.mxu0 0.0
    %5188 = vmatpush1.msra.mxu0 %v5061
    %5189 = vmatprep.subr.mxu0 0.0
    %5190 = vmatpush1.msra.mxu0 %v5060
    %5191 = vmatprep.subr.mxu0 0.0
    %5192 = vmatpush1.msra.mxu0 %v5059
    %5193 = vmatprep.subr.mxu0 0.0
    %5194 = vmatpush1.msra.mxu0 %v5058
    %5195 = vmatprep.subr.mxu0 0.0
    %5196 = vmatpush1.msra.mxu0 %v5057
    %5197 = vmatprep.subr.mxu0 0.0
    %5198 = vmatpush1.msra.mxu0 %v5056
    %5199 = vmatprep.subr.mxu0 0.0
    %5200 = vmatpush1.msra.mxu0 %v5055
    %5201 = vmatprep.subr.mxu0 0.0
    %5202 = vmatpush1.msra.mxu0 %v5054
    %5203 = vmatprep.subr.mxu0 0.0
    %5204 = vmatpush1.msra.mxu0 %v5053
    %5205 = vmatprep.subr.mxu0 0.0
    %5206 = vmatpush1.msra.mxu0 %v5052
    %5207 = vmatprep.subr.mxu0 0.0
    %5208 = vmatpush1.msra.mxu0 %v5051
    %5209 = vmatprep.subr.mxu0 0.0
    %5210 = vmatpush1.msra.mxu0 %v5050
    %5211 = vmatprep.subr.mxu0 0.0
    %5212 = vmatpush2.msra.mxu0 0.0
    %5213 = vmatprep.subr.mxu0 0.0
    %5214 = vmatpush2.msra.mxu0 0.0
    %5215 = vmatprep.subr.mxu0 0.0
    %5216 = vmatpush2.msra.mxu0 0.0
    %5217 = vmatprep.subr.mxu0 0.0
    %5218 = vmatpush2.msra.mxu0 0.0
    %5219 = vmatprep.subr.mxu0 0.0
    %5220 = vmatpush2.msra.mxu0 0.0
    %5221 = vmatprep.subr.mxu0 0.0
    %5222 = vmatpush2.msra.mxu0 0.0
    %5223 = vmatprep.subr.mxu0 0.0
    %5224 = vmatpush2.msra.mxu0 0.0
    %5225 = vmatprep.subr.mxu0 0.0
    %5226 = vmatpush2.msra.mxu0 0.0
    %5227 = vmatprep.subr.mxu0 0.0
    %5228 = vmatpush2.msra.mxu0 0.0
    %5229 = vmatprep.subr.mxu0 0.0
    %5230 = vmatpush2.msra.mxu0 0.0
    %5231 = vmatprep.subr.mxu0 0.0
    %5232 = vmatpush2.msra.mxu0 0.0
    %5233 = vmatprep.subr.mxu0 0.0
    %5234 = vmatpush2.msra.mxu0 0.0
    %5235 = vmatprep.subr.mxu0 0.0
    %5236 = vmatpush2.msra.mxu0 0.0
    %5237 = vmatprep.subr.mxu0 0.0
    %5238 = vmatpush2.msra.mxu0 0.0
    %5239 = vmatprep.subr.mxu0 0.0
    %5240 = vmatpush2.msra.mxu0 0.0
    %5241 = vmatprep.subr.mxu0 0.0
    %5242 = vmatpush2.msra.mxu0 0.0
    %5243 = vmatprep.mubr.f32.mxu0 0.0
    %5244 = vmatmul.mubr.f32.gmra.mxu0 %v5093
    %v5245 = vpop.f32.mrf.mxu0
    %v5246 = vadd.f32 %v5166, %v5245
    %v5247 = vpop.f32.mrf.mxu0
    %5248 = vmatprep.mubr.f32.mxu0 0.0
    %5249 = vmatmul.mubr.f32.gmra.mxu0 %v5095
    %v5250 = vpop.f32.mrf.mxu0
    %v5251 = vadd.f32 %v5171, %v5250
    %v5252 = vpop.f32.mrf.mxu0
    %5253 = vmatprep.mubr.f32.mxu0 0.0
    %5254 = vmatmul.mubr.f32.gmra.mxu0 %v5094
    %v5255 = vpop.f32.mrf.mxu0
    %v5256 = vadd.f32 %v5176, %v5255
    %v5257 = vpop.f32.mrf.mxu0
    %5258 = vdwg.mxu0
    %v5259 = vadd.f32 %v5246, %v5251
    %v5260 = vsel %vm671, %v5256, 0.0
    %v5261 = vadd.f32 %v5259, %v5260
    %v5262 = vrot.slane %v5261, 4
    %v5263 = vadd.f32 %v5261, %v5262
    %v5264 = vrot.slane %v5263, 2
    %v5265 = vadd.f32 %v5263, %v5264
    %v5266 = vrot.slane %v5265, 1
    %v5267 = vadd.f32 %v5265, %v5266
    %v5268 = vadd.f32 %v5267, 0.0
    %v5269 = vmul.f32 %v5246, %v5246
    %v5270 = vmul.f32 %v5251, %v5251
    %v5271 = vmul.f32 %v5256, %v5256
    %v5272 = vadd.f32 %v5269, %v5270
    %v5273 = vsel %vm671, %v5271, 0.0
    %v5274 = vadd.f32 %v5272, %v5273
    %v5275 = vrot.slane %v5274, 4
    %v5276 = vadd.f32 %v5274, %v5275
    %v5277 = vrot.slane %v5276, 2
    %v5278 = vadd.f32 %v5276, %v5277
    %v5279 = vrot.slane %v5278, 1
    %v5280 = vadd.f32 %v5278, %v5279
    %v5281 = vadd.f32 %v5280, 0.0
    %v5285 = vrot.slane %v5015, 6
    %v5286 = vrot.slane %v5016, 6
    %v5287 = vsel %vm721, %v5285, %v5286
    %v5288 = vrot.slane %v5017, 6
    %v5289 = vsel %vm721, %v5286, %v5288
    %v5293 = vsel %vm721, 0.0, %v5285
    %v5294 = vsel %vm671, %v5289, 0.0
    %v5297 = vrot.slane %v5293, 1
    %v5298 = vrot.slane %v5287, 1
    %v5299 = vsel %vm682, %v5297, %v5298
    %v5300 = vrot.slane %v5294, 1
    %v5301 = vsel %vm682, %v5298, %v5300
    %v5305 = vrot.slane %v5293, 2
    %v5306 = vrot.slane %v5287, 2
    %v5307 = vsel %vm690, %v5305, %v5306
    %v5308 = vrot.slane %v5294, 2
    %v5309 = vsel %vm690, %v5306, %v5308
    %5313 = vmatprep.subr.mxu0 0.0
    %5314 = vmatpush1.msra.mxu0 %v5033
    %5315 = vmatprep.subr.mxu0 0.0
    %5316 = vmatpush1.msra.mxu0 %v5032
    %5317 = vmatprep.subr.mxu0 0.0
    %5318 = vmatpush1.msra.mxu0 %v5031
    %5319 = vmatprep.subr.mxu0 0.0
    %5320 = vmatpush1.msra.mxu0 %v5030
    %5321 = vmatprep.subr.mxu0 0.0
    %5322 = vmatpush1.msra.mxu0 %v5029
    %5323 = vmatprep.subr.mxu0 0.0
    %5324 = vmatpush1.msra.mxu0 %v5028
    %5325 = vmatprep.subr.mxu0 0.0
    %5326 = vmatpush1.msra.mxu0 %v5027
    %5327 = vmatprep.subr.mxu0 0.0
    %5328 = vmatpush1.msra.mxu0 %v5026
    %5329 = vmatprep.subr.mxu0 0.0
    %5330 = vmatpush1.msra.mxu0 %v5025
    %5331 = vmatprep.subr.mxu0 0.0
    %5332 = vmatpush1.msra.mxu0 %v5024
    %5333 = vmatprep.subr.mxu0 0.0
    %5334 = vmatpush1.msra.mxu0 %v5023
    %5335 = vmatprep.subr.mxu0 0.0
    %5336 = vmatpush1.msra.mxu0 %v5022
    %5337 = vmatprep.subr.mxu0 0.0
    %5338 = vmatpush1.msra.mxu0 %v5021
    %5339 = vmatprep.subr.mxu0 0.0
    %5340 = vmatpush1.msra.mxu0 %v5020
    %5341 = vmatprep.subr.mxu0 0.0
    %5342 = vmatpush1.msra.mxu0 %v5019
    %5343 = vmatprep.subr.mxu0 0.0
    %5344 = vmatpush1.msra.mxu0 %v5018
    %5345 = vmatprep.subr.mxu0 0.0
    %5346 = vmatpush2.msra.mxu0 %v5049
    %5347 = vmatprep.subr.mxu0 0.0
    %5348 = vmatpush2.msra.mxu0 %v5048
    %5349 = vmatprep.subr.mxu0 0.0
    %5350 = vmatpush2.msra.mxu0 %v5047
    %5351 = vmatprep.subr.mxu0 0.0
    %5352 = vmatpush2.msra.mxu0 %v5046
    %5353 = vmatprep.subr.mxu0 0.0
    %5354 = vmatpush2.msra.mxu0 %v5045
    %5355 = vmatprep.subr.mxu0 0.0
    %5356 = vmatpush2.msra.mxu0 %v5044
    %5357 = vmatprep.subr.mxu0 0.0
    %5358 = vmatpush2.msra.mxu0 %v5043
    %5359 = vmatprep.subr.mxu0 0.0
    %5360 = vmatpush2.msra.mxu0 %v5042
    %5361 = vmatprep.subr.mxu0 0.0
    %5362 = vmatpush2.msra.mxu0 %v5041
    %5363 = vmatprep.subr.mxu0 0.0
    %5364 = vmatpush2.msra.mxu0 %v5040
    %5365 = vmatprep.subr.mxu0 0.0
    %5366 = vmatpush2.msra.mxu0 %v5039
    %5367 = vmatprep.subr.mxu0 0.0
    %5368 = vmatpush2.msra.mxu0 %v5038
    %5369 = vmatprep.subr.mxu0 0.0
    %5370 = vmatpush2.msra.mxu0 %v5037
    %5371 = vmatprep.subr.mxu0 0.0
    %5372 = vmatpush2.msra.mxu0 %v5036
    %5373 = vmatprep.subr.mxu0 0.0
    %5374 = vmatpush2.msra.mxu0 %v5035
    %5375 = vmatprep.subr.mxu0 0.0
    %5376 = vmatpush2.msra.mxu0 %v5034
    %5377 = vmatprep.mubr.f32.mxu0 %v5299
    %5378 = vmatmul.mubr.f32.gmra.mxu0 %v5293
    %v5379 = vpop.f32.mrf.mxu0
    %v5380 = vadd.f32 0.0, %v5379
    %v5381 = vpop.f32.mrf.mxu0
    %5382 = vmatprep.mubr.f32.mxu0 %v5301
    %5383 = vmatmul.mubr.f32.gmra.mxu0 %v5287
    %v5384 = vpop.f32.mrf.mxu0
    %v5385 = vadd.f32 0.0, %v5384
    %v5386 = vpop.f32.mrf.mxu0
    %5387 = vmatprep.mubr.f32.mxu0 %v5300
    %5388 = vmatmul.mubr.f32.gmra.mxu0 %v5294
    %v5389 = vpop.f32.mrf.mxu0
    %v5390 = vadd.f32 0.0, %v5389
    %v5391 = vpop.f32.mrf.mxu0
    %5392 = vdwg.mxu0
    %5393 = vmatprep.subr.mxu0 0.0
    %5394 = vmatpush1.msra.mxu0 %v5065
    %5395 = vmatprep.subr.mxu0 0.0
    %5396 = vmatpush1.msra.mxu0 %v5064
    %5397 = vmatprep.subr.mxu0 0.0
    %5398 = vmatpush1.msra.mxu0 %v5063
    %5399 = vmatprep.subr.mxu0 0.0
    %5400 = vmatpush1.msra.mxu0 %v5062
    %5401 = vmatprep.subr.mxu0 0.0
    %5402 = vmatpush1.msra.mxu0 %v5061
    %5403 = vmatprep.subr.mxu0 0.0
    %5404 = vmatpush1.msra.mxu0 %v5060
    %5405 = vmatprep.subr.mxu0 0.0
    %5406 = vmatpush1.msra.mxu0 %v5059
    %5407 = vmatprep.subr.mxu0 0.0
    %5408 = vmatpush1.msra.mxu0 %v5058
    %5409 = vmatprep.subr.mxu0 0.0
    %5410 = vmatpush1.msra.mxu0 %v5057
    %5411 = vmatprep.subr.mxu0 0.0
    %5412 = vmatpush1.msra.mxu0 %v5056
    %5413 = vmatprep.subr.mxu0 0.0
    %5414 = vmatpush1.msra.mxu0 %v5055
    %5415 = vmatprep.subr.mxu0 0.0
    %5416 = vmatpush1.msra.mxu0 %v5054
    %5417 = vmatprep.subr.mxu0 0.0
    %5418 = vmatpush1.msra.mxu0 %v5053
    %5419 = vmatprep.subr.mxu0 0.0
    %5420 = vmatpush1.msra.mxu0 %v5052
    %5421 = vmatprep.subr.mxu0 0.0
    %5422 = vmatpush1.msra.mxu0 %v5051
    %5423 = vmatprep.subr.mxu0 0.0
    %5424 = vmatpush1.msra.mxu0 %v5050
    %5425 = vmatprep.subr.mxu0 0.0
    %5426 = vmatpush2.msra.mxu0 0.0
    %5427 = vmatprep.subr.mxu0 0.0
    %5428 = vmatpush2.msra.mxu0 0.0
    %5429 = vmatprep.subr.mxu0 0.0
    %5430 = vmatpush2.msra.mxu0 0.0
    %5431 = vmatprep.subr.mxu0 0.0
    %5432 = vmatpush2.msra.mxu0 0.0
    %5433 = vmatprep.subr.mxu0 0.0
    %5434 = vmatpush2.msra.mxu0 0.0
    %5435 = vmatprep.subr.mxu0 0.0
    %5436 = vmatpush2.msra.mxu0 0.0
    %5437 = vmatprep.subr.mxu0 0.0
    %5438 = vmatpush2.msra.mxu0 0.0
    %5439 = vmatprep.subr.mxu0 0.0
    %5440 = vmatpush2.msra.mxu0 0.0
    %5441 = vmatprep.subr.mxu0 0.0
    %5442 = vmatpush2.msra.mxu0 0.0
    %5443 = vmatprep.subr.mxu0 0.0
    %5444 = vmatpush2.msra.mxu0 0.0
    %5445 = vmatprep.subr.mxu0 0.0
    %5446 = vmatpush2.msra.mxu0 0.0
    %5447 = vmatprep.subr.mxu0 0.0
    %5448 = vmatpush2.msra.mxu0 0.0
    %5449 = vmatprep.subr.mxu0 0.0
    %5450 = vmatpush2.msra.mxu0 0.0
    %5451 = vmatprep.subr.mxu0 0.0
    %5452 = vmatpush2.msra.mxu0 0.0
    %5453 = vmatprep.subr.mxu0 0.0
    %5454 = vmatpush2.msra.mxu0 0.0
    %5455 = vmatprep.subr.mxu0 0.0
    %5456 = vmatpush2.msra.mxu0 0.0
    %5457 = vmatprep.mubr.f32.mxu0 0.0
    %5458 = vmatmul.mubr.f32.gmra.mxu0 %v5307
    %v5459 = vpop.f32.mrf.mxu0
    %v5460 = vadd.f32 %v5380, %v5459
    %v5461 = vpop.f32.mrf.mxu0
    %5462 = vmatprep.mubr.f32.mxu0 0.0
    %5463 = vmatmul.mubr.f32.gmra.mxu0 %v5309
    %v5464 = vpop.f32.mrf.mxu0
    %v5465 = vadd.f32 %v5385, %v5464
    %v5466 = vpop.f32.mrf.mxu0
    %5467 = vmatprep.mubr.f32.mxu0 0.0
    %5468 = vmatmul.mubr.f32.gmra.mxu0 %v5308
    %v5469 = vpop.f32.mrf.mxu0
    %v5470 = vadd.f32 %v5390, %v5469
    %v5471 = vpop.f32.mrf.mxu0
    %5472 = vdwg.mxu0
    %v5473 = vadd.f32 %v5460, %v5465
    %v5474 = vsel %vm671, %v5470, 0.0
    %v5475 = vadd.f32 %v5473, %v5474
    %v5476 = vrot.slane %v5475, 4
    %v5477 = vadd.f32 %v5475, %v5476
    %v5478 = vrot.slane %v5477, 2
    %v5479 = vadd.f32 %v5477, %v5478
    %v5480 = vrot.slane %v5479, 1
    %v5481 = vadd.f32 %v5479, %v5480
    %v5482 = vadd.f32 %v5268, %v5481
    %v5483 = vmul.f32 %v5460, %v5460
    %v5484 = vmul.f32 %v5465, %v5465
    %v5485 = vmul.f32 %v5470, %v5470
    %v5486 = vadd.f32 %v5483, %v5484
    %v5487 = vsel %vm671, %v5485, 0.0
    %v5488 = vadd.f32 %v5486, %v5487
    %v5489 = vrot.slane %v5488, 4
    %v5490 = vadd.f32 %v5488, %v5489
    %v5491 = vrot.slane %v5490, 2
    %v5492 = vadd.f32 %v5490, %v5491
    %v5493 = vrot.slane %v5492, 1
    %v5494 = vadd.f32 %v5492, %v5493
    %v5495 = vadd.f32 %v5281, %v5494
    %v5496 = vmul.f32 %v5482, 0.025
    %v5497 = vmul.f32 %v5495, 0.025
    %v5498 = vmul.f32 %v5496, %v5496
    %v5499 = vsub.f32 %v5497, %v5498
    %v5500 = vmax.f32 %v5499, 0.0
    %v5501 = vadd.f32 %v5500, 1e-05
    %v5502 = vrsqrt.pop %v5501
    %v5503 = vmul.f32 %v5066, %v5502
    %v5504 = vmul.f32 %v5496, %v5503
    %v5505 = vsub.f32 %v5067, %v5504
    %v5507 = vlaneseq
    %v5508 = vshrl.u32 %v5507, 7
    %v5509 = vsub.s32 0, %v5508
    %v5510 = vrot.slane %v5503, %v5509
    %v5512 = vmul.f32 %v5246, %v5510
    %v5513 = vmul.f32 %v5251, %v5510
    %v5514 = vmul.f32 %v5256, %v5510
    %v5516 = vlaneseq
    %v5517 = vshrl.u32 %v5516, 7
    %v5518 = vsub.s32 0, %v5517
    %v5519 = vrot.slane %v5505, %v5518
    %v5521 = vadd.f32 %v5512, %v5519
    %v5522 = vadd.f32 %v5513, %v5519
    %v5523 = vadd.f32 %v5514, %v5519
    %v5524 = vmax.f32 %v5521, 0.0
    %v5525 = vmax.f32 %v5522, 0.0
    %v5526 = vmax.f32 %v5523, 0.0
    %v5527 = vmul.f32 %v5460, %v5510
    %v5528 = vmul.f32 %v5465, %v5510
    %v5529 = vmul.f32 %v5470, %v5510
    %v5530 = vadd.f32 %v5527, %v5519
    %v5531 = vadd.f32 %v5528, %v5519
    %v5532 = vadd.f32 %v5529, %v5519
    %v5533 = vmax.f32 %v5530, 0.0
    %v5534 = vmax.f32 %v5531, 0.0
    %v5535 = vmax.f32 %v5532, 0.0
    %v5536 = vld [vmem:[#allocation31] sm:$0xff]
    %v5537 = vld [vmem:[#allocation31 + $0x8] sm:$0xff]
    %v5538 = vld [vmem:[#allocation31 + $0x10] sm:$0xff]
    %v5539 = vld [vmem:[#allocation31 + $0x18] sm:$0xff]
    %v5540 = vld [vmem:[#allocation31 + $0x20] sm:$0xff]
    %v5541 = vld [vmem:[#allocation31 + $0x28] sm:$0xff]
    %v5542 = vld [vmem:[#allocation31 + $0x30] sm:$0xff]
    %v5543 = vld [vmem:[#allocation31 + $0x38] sm:$0xff]
    %v5544 = vld [vmem:[#allocation31 + $0x40] sm:$0xff]
    %v5545 = vld [vmem:[#allocation31 + $0x48] sm:$0xff]
    %v5546 = vld [vmem:[#allocation31 + $0x50] sm:$0xff]
    %v5547 = vld [vmem:[#allocation31 + $0x58] sm:$0xff]
    %v5548 = vld [vmem:[#allocation31 + $0x60] sm:$0xff]
    %v5549 = vld [vmem:[#allocation31 + $0x68] sm:$0xff]
    %v5550 = vld [vmem:[#allocation31 + $0x70] sm:$0xff]
    %v5551 = vld [vmem:[#allocation31 + $0x78] sm:$0xff]
    %v5552 = vld [vmem:[#allocation32] sm:$0x1]
    %v5553 = vld [vmem:[#allocation34] sm:$0x1]
    %v5554 = vrot.slane %v3083, 7
    %v5555 = vrot.slane %v3084, 7
    %v5556 = vsel %vm729, %v5554, %v5555
    %v5557 = vrot.slane %v3085, 7
    %v5558 = vsel %vm729, %v5555, %v5557
    %v5562 = vsel %vm729, 0.0, %v5554
    %v5563 = vsel %vm713, %v5558, 0.0
    %5564 = vmatprep.subr.mxu0 0.0
    %5565 = vmatpush1.msra.mxu0 %v5551
    %5566 = vmatprep.subr.mxu0 0.0
    %5567 = vmatpush1.msra.mxu0 %v5550
    %5568 = vmatprep.subr.mxu0 0.0
    %5569 = vmatpush1.msra.mxu0 %v5549
    %5570 = vmatprep.subr.mxu0 0.0
    %5571 = vmatpush1.msra.mxu0 %v5548
    %5572 = vmatprep.subr.mxu0 0.0
    %5573 = vmatpush1.msra.mxu0 %v5547
    %5574 = vmatprep.subr.mxu0 0.0
    %5575 = vmatpush1.msra.mxu0 %v5546
    %5576 = vmatprep.subr.mxu0 0.0
    %5577 = vmatpush1.msra.mxu0 %v5545
    %5578 = vmatprep.subr.mxu0 0.0
    %5579 = vmatpush1.msra.mxu0 %v5544
    %5580 = vmatprep.subr.mxu0 0.0
    %5581 = vmatpush1.msra.mxu0 %v5543
    %5582 = vmatprep.subr.mxu0 0.0
    %5583 = vmatpush1.msra.mxu0 %v5542
    %5584 = vmatprep.subr.mxu0 0.0
    %5585 = vmatpush1.msra.mxu0 %v5541
    %5586 = vmatprep.subr.mxu0 0.0
    %5587 = vmatpush1.msra.mxu0 %v5540
    %5588 = vmatprep.subr.mxu0 0.0
    %5589 = vmatpush1.msra.mxu0 %v5539
    %5590 = vmatprep.subr.mxu0 0.0
    %5591 = vmatpush1.msra.mxu0 %v5538
    %5592 = vmatprep.subr.mxu0 0.0
    %5593 = vmatpush1.msra.mxu0 %v5537
    %5594 = vmatprep.subr.mxu0 0.0
    %5595 = vmatpush1.msra.mxu0 %v5536
    %5596 = vmatprep.subr.mxu0 0.0
    %5597 = vmatpush2.msra.mxu0 0.0
    %5598 = vmatprep.subr.mxu0 0.0
    %5599 = vmatpush2.msra.mxu0 0.0
    %5600 = vmatprep.subr.mxu0 0.0
    %5601 = vmatpush2.msra.mxu0 0.0
    %5602 = vmatprep.subr.mxu0 0.0
    %5603 = vmatpush2.msra.mxu0 0.0
    %5604 = vmatprep.subr.mxu0 0.0
    %5605 = vmatpush2.msra.mxu0 0.0
    %5606 = vmatprep.subr.mxu0 0.0
    %5607 = vmatpush2.msra.mxu0 0.0
    %5608 = vmatprep.subr.mxu0 0.0
    %5609 = vmatpush2.msra.mxu0 0.0
    %5610 = vmatprep.subr.mxu0 0.0
    %5611 = vmatpush2.msra.mxu0 0.0
    %5612 = vmatprep.subr.mxu0 0.0
    %5613 = vmatpush2.msra.mxu0 0.0
    %5614 = vmatprep.subr.mxu0 0.0
    %5615 = vmatpush2.msra.mxu0 0.0
    %5616 = vmatprep.subr.mxu0 0.0
    %5617 = vmatpush2.msra.mxu0 0.0
    %5618 = vmatprep.subr.mxu0 0.0
    %5619 = vmatpush2.msra.mxu0 0.0
    %5620 = vmatprep.subr.mxu0 0.0
    %5621 = vmatpush2.msra.mxu0 0.0
    %5622 = vmatprep.subr.mxu0 0.0
    %5623 = vmatpush2.msra.mxu0 0.0
    %5624 = vmatprep.subr.mxu0 0.0
    %5625 = vmatpush2.msra.mxu0 0.0
    %5626 = vmatprep.subr.mxu0 0.0
    %5627 = vmatpush2.msra.mxu0 0.0
    %5628 = vmatprep.mubr.f32.mxu0 0.0
    %5629 = vmatmul.mubr.f32.gmra.mxu0 %v5562
    %v5630 = vpop.f32.mrf.mxu0
    %v5631 = vadd.f32 0.0, %v5630
    %v5632 = vpop.f32.mrf.mxu0
    %5633 = vmatprep.mubr.f32.mxu0 0.0
    %5634 = vmatmul.mubr.f32.gmra.mxu0 %v5556
    %v5635 = vpop.f32.mrf.mxu0
    %v5636 = vadd.f32 0.0, %v5635
    %v5637 = vpop.f32.mrf.mxu0
    %5638 = vmatprep.mubr.f32.mxu0 0.0
    %5639 = vmatmul.mubr.f32.gmra.mxu0 %v5563
    %v5640 = vpop.f32.mrf.mxu0
    %v5641 = vadd.f32 0.0, %v5640
    %v5642 = vpop.f32.mrf.mxu0
    %5643 = vdwg.mxu0
    %v5644 = vadd.f32 %v5631, %v5636
    %v5645 = vsel %vm671, %v5641, 0.0
    %v5646 = vadd.f32 %v5644, %v5645
    %v5647 = vrot.slane %v5646, 4
    %v5648 = vadd.f32 %v5646, %v5647
    %v5649 = vrot.slane %v5648, 2
    %v5650 = vadd.f32 %v5648, %v5649
    %v5651 = vrot.slane %v5650, 1
    %v5652 = vadd.f32 %v5650, %v5651
    %v5653 = vadd.f32 %v5652, 0.0
    %v5654 = vmul.f32 %v5631, %v5631
    %v5655 = vmul.f32 %v5636, %v5636
    %v5656 = vmul.f32 %v5641, %v5641
    %v5657 = vadd.f32 %v5654, %v5655
    %v5658 = vsel %vm671, %v5656, 0.0
    %v5659 = vadd.f32 %v5657, %v5658
    %v5660 = vrot.slane %v5659, 4
    %v5661 = vadd.f32 %v5659, %v5660
    %v5662 = vrot.slane %v5661, 2
    %v5663 = vadd.f32 %v5661, %v5662
    %v5664 = vrot.slane %v5663, 1
    %v5665 = vadd.f32 %v5663, %v5664
    %v5666 = vadd.f32 %v5665, 0.0
    %v5667 = vrot.slane %v3095, 7
    %v5668 = vrot.slane %v3096, 7
    %v5669 = vsel %vm729, %v5667, %v5668
    %v5670 = vrot.slane %v3097, 7
    %v5671 = vsel %vm729, %v5668, %v5670
    %v5675 = vsel %vm729, 0.0, %v5667
    %v5676 = vsel %vm713, %v5671, 0.0
    %5677 = vmatprep.subr.mxu0 0.0
    %5678 = vmatpush1.msra.mxu0 %v5551
    %5679 = vmatprep.subr.mxu0 0.0
    %5680 = vmatpush1.msra.mxu0 %v5550
    %5681 = vmatprep.subr.mxu0 0.0
    %5682 = vmatpush1.msra.mxu0 %v5549
    %5683 = vmatprep.subr.mxu0 0.0
    %5684 = vmatpush1.msra.mxu0 %v5548
    %5685 = vmatprep.subr.mxu0 0.0
    %5686 = vmatpush1.msra.mxu0 %v5547
    %5687 = vmatprep.subr.mxu0 0.0
    %5688 = vmatpush1.msra.mxu0 %v5546
    %5689 = vmatprep.subr.mxu0 0.0
    %5690 = vmatpush1.msra.mxu0 %v5545
    %5691 = vmatprep.subr.mxu0 0.0
    %5692 = vmatpush1.msra.mxu0 %v5544
    %5693 = vmatprep.subr.mxu0 0.0
    %5694 = vmatpush1.msra.mxu0 %v5543
    %5695 = vmatprep.subr.mxu0 0.0
    %5696 = vmatpush1.msra.mxu0 %v5542
    %5697 = vmatprep.subr.mxu0 0.0
    %5698 = vmatpush1.msra.mxu0 %v5541
    %5699 = vmatprep.subr.mxu0 0.0
    %5700 = vmatpush1.msra.mxu0 %v5540
    %5701 = vmatprep.subr.mxu0 0.0
    %5702 = vmatpush1.msra.mxu0 %v5539
    %5703 = vmatprep.subr.mxu0 0.0
    %5704 = vmatpush1.msra.mxu0 %v5538
    %5705 = vmatprep.subr.mxu0 0.0
    %5706 = vmatpush1.msra.mxu0 %v5537
    %5707 = vmatprep.subr.mxu0 0.0
    %5708 = vmatpush1.msra.mxu0 %v5536
    %5709 = vmatprep.subr.mxu0 0.0
    %5710 = vmatpush2.msra.mxu0 0.0
    %5711 = vmatprep.subr.mxu0 0.0
    %5712 = vmatpush2.msra.mxu0 0.0
    %5713 = vmatprep.subr.mxu0 0.0
    %5714 = vmatpush2.msra.mxu0 0.0
    %5715 = vmatprep.subr.mxu0 0.0
    %5716 = vmatpush2.msra.mxu0 0.0
    %5717 = vmatprep.subr.mxu0 0.0
    %5718 = vmatpush2.msra.mxu0 0.0
    %5719 = vmatprep.subr.mxu0 0.0
    %5720 = vmatpush2.msra.mxu0 0.0
    %5721 = vmatprep.subr.mxu0 0.0
    %5722 = vmatpush2.msra.mxu0 0.0
    %5723 = vmatprep.subr.mxu0 0.0
    %5724 = vmatpush2.msra.mxu0 0.0
    %5725 = vmatprep.subr.mxu0 0.0
    %5726 = vmatpush2.msra.mxu0 0.0
    %5727 = vmatprep.subr.mxu0 0.0
    %5728 = vmatpush2.msra.mxu0 0.0
    %5729 = vmatprep.subr.mxu0 0.0
    %5730 = vmatpush2.msra.mxu0 0.0
    %5731 = vmatprep.subr.mxu0 0.0
    %5732 = vmatpush2.msra.mxu0 0.0
    %5733 = vmatprep.subr.mxu0 0.0
    %5734 = vmatpush2.msra.mxu0 0.0
    %5735 = vmatprep.subr.mxu0 0.0
    %5736 = vmatpush2.msra.mxu0 0.0
    %5737 = vmatprep.subr.mxu0 0.0
    %5738 = vmatpush2.msra.mxu0 0.0
    %5739 = vmatprep.subr.mxu0 0.0
    %5740 = vmatpush2.msra.mxu0 0.0
    %5741 = vmatprep.mubr.f32.mxu0 0.0
    %5742 = vmatmul.mubr.f32.gmra.mxu0 %v5675
    %v5743 = vpop.f32.mrf.mxu0
    %v5744 = vadd.f32 0.0, %v5743
    %v5745 = vpop.f32.mrf.mxu0
    %5746 = vmatprep.mubr.f32.mxu0 0.0
    %5747 = vmatmul.mubr.f32.gmra.mxu0 %v5669
    %v5748 = vpop.f32.mrf.mxu0
    %v5749 = vadd.f32 0.0, %v5748
    %v5750 = vpop.f32.mrf.mxu0
    %5751 = vmatprep.mubr.f32.mxu0 0.0
    %5752 = vmatmul.mubr.f32.gmra.mxu0 %v5676
    %v5753 = vpop.f32.mrf.mxu0
    %v5754 = vadd.f32 0.0, %v5753
    %v5755 = vpop.f32.mrf.mxu0
    %5756 = vdwg.mxu0
    %v5757 = vadd.f32 %v5744, %v5749
    %v5758 = vsel %vm671, %v5754, 0.0
    %v5759 = vadd.f32 %v5757, %v5758
    %v5760 = vrot.slane %v5759, 4
    %v5761 = vadd.f32 %v5759, %v5760
    %v5762 = vrot.slane %v5761, 2
    %v5763 = vadd.f32 %v5761, %v5762
    %v5764 = vrot.slane %v5763, 1
    %v5765 = vadd.f32 %v5763, %v5764
    %v5766 = vadd.f32 %v5653, %v5765
    %v5767 = vmul.f32 %v5744, %v5744
    %v5768 = vmul.f32 %v5749, %v5749
    %v5769 = vmul.f32 %v5754, %v5754
    %v5770 = vadd.f32 %v5767, %v5768
    %v5771 = vsel %vm671, %v5769, 0.0
    %v5772 = vadd.f32 %v5770, %v5771
    %v5773 = vrot.slane %v5772, 4
    %v5774 = vadd.f32 %v5772, %v5773
    %v5775 = vrot.slane %v5774, 2
    %v5776 = vadd.f32 %v5774, %v5775
    %v5777 = vrot.slane %v5776, 1
    %v5778 = vadd.f32 %v5776, %v5777
    %v5779 = vadd.f32 %v5666, %v5778
    %v5780 = vmul.f32 %v5766, 0.025
    %v5781 = vmul.f32 %v5779, 0.025
    %v5782 = vmul.f32 %v5780, %v5780
    %v5783 = vsub.f32 %v5781, %v5782
    %v5784 = vmax.f32 %v5783, 0.0
    %v5785 = vadd.f32 %v5784, 1e-05
    %v5786 = vrsqrt.pop %v5785
    %v5787 = vmul.f32 %v5552, %v5786
    %v5788 = vmul.f32 %v5780, %v5787
    %v5789 = vsub.f32 %v5553, %v5788
    %v5791 = vlaneseq
    %v5792 = vshrl.u32 %v5791, 7
    %v5793 = vsub.s32 0, %v5792
    %v5794 = vrot.slane %v5787, %v5793
    %v5796 = vmul.f32 %v5631, %v5794
    %v5797 = vmul.f32 %v5636, %v5794
    %v5798 = vmul.f32 %v5641, %v5794
    %v5800 = vlaneseq
    %v5801 = vshrl.u32 %v5800, 7
    %v5802 = vsub.s32 0, %v5801
    %v5803 = vrot.slane %v5789, %v5802
    %v5805 = vadd.f32 %v5796, %v5803
    %v5806 = vadd.f32 %v5797, %v5803
    %v5807 = vadd.f32 %v5798, %v5803
    %v5808 = vadd.f32 %v5805, %v5524
    %v5809 = vadd.f32 %v5806, %v5525
    %v5810 = vadd.f32 %v5807, %v5526
    %v5811 = vmax.f32 %v5808, 0.0
    %v5812 = vmax.f32 %v5809, 0.0
    %v5813 = vmax.f32 %v5810, 0.0
    %v5814 = vmul.f32 %v5744, %v5794
    %v5815 = vmul.f32 %v5749, %v5794
    %v5816 = vmul.f32 %v5754, %v5794
    %v5817 = vadd.f32 %v5814, %v5803
    %v5818 = vadd.f32 %v5815, %v5803
    %v5819 = vadd.f32 %v5816, %v5803
    %v5820 = vadd.f32 %v5817, %v5533
    %v5821 = vadd.f32 %v5818, %v5534
    %v5822 = vadd.f32 %v5819, %v5535
    %v5823 = vmax.f32 %v5820, 0.0
    %v5824 = vmax.f32 %v5821, 0.0
    %v5825 = vmax.f32 %v5822, 0.0
    %v5826 = vld [vmem:[#allocation35] sm:$0xff]
    %v5827 = vld [vmem:[#allocation35 + $0x8] sm:$0xff]
    %v5828 = vld [vmem:[#allocation35 + $0x10] sm:$0xff]
    %v5829 = vld [vmem:[#allocation35 + $0x18] sm:$0xff]
    %v5830 = vld [vmem:[#allocation35 + $0x20] sm:$0xff]
    %v5831 = vld [vmem:[#allocation35 + $0x28] sm:$0xff]
    %v5832 = vld [vmem:[#allocation35 + $0x30] sm:$0xff]
    %v5833 = vld [vmem:[#allocation35 + $0x38] sm:$0xff]
    %v5834 = vld [vmem:[#allocation35 + $0x40] sm:$0xff]
    %v5835 = vld [vmem:[#allocation35 + $0x48] sm:$0xff]
    %v5836 = vld [vmem:[#allocation35 + $0x50] sm:$0xff]
    %v5837 = vld [vmem:[#allocation35 + $0x58] sm:$0xff]
    %v5838 = vld [vmem:[#allocation35 + $0x60] sm:$0xff]
    %v5839 = vld [vmem:[#allocation35 + $0x68] sm:$0xff]
    %v5840 = vld [vmem:[#allocation35 + $0x70] sm:$0xff]
    %v5841 = vld [vmem:[#allocation35 + $0x78] sm:$0xff]
    %v5842 = vld [vmem:[#allocation35 + $0x80] sm:$0xff]
    %v5843 = vld [vmem:[#allocation35 + $0x88] sm:$0xff]
    %v5844 = vld [vmem:[#allocation35 + $0x90] sm:$0xff]
    %v5845 = vld [vmem:[#allocation35 + $0x98] sm:$0xff]
    %v5846 = vld [vmem:[#allocation35 + $0xa0] sm:$0xff]
    %v5847 = vld [vmem:[#allocation35 + $0xa8] sm:$0xff]
    %v5848 = vld [vmem:[#allocation35 + $0xb0] sm:$0xff]
    %v5849 = vld [vmem:[#allocation35 + $0xb8] sm:$0xff]
    %v5850 = vld [vmem:[#allocation35 + $0xc0] sm:$0xff]
    %v5851 = vld [vmem:[#allocation35 + $0xc8] sm:$0xff]
    %v5852 = vld [vmem:[#allocation35 + $0xd0] sm:$0xff]
    %v5853 = vld [vmem:[#allocation35 + $0xd8] sm:$0xff]
    %v5854 = vld [vmem:[#allocation35 + $0xe0] sm:$0xff]
    %v5855 = vld [vmem:[#allocation35 + $0xe8] sm:$0xff]
    %v5856 = vld [vmem:[#allocation35 + $0xf0] sm:$0xff]
    %v5857 = vld [vmem:[#allocation35 + $0xf8] sm:$0xff]
    %v5858 = vld [vmem:[#allocation35 + $0x100] sm:$0xff]
    %v5859 = vld [vmem:[#allocation35 + $0x108] sm:$0xff]
    %v5860 = vld [vmem:[#allocation35 + $0x110] sm:$0xff]
    %v5861 = vld [vmem:[#allocation35 + $0x118] sm:$0xff]
    %v5862 = vld [vmem:[#allocation35 + $0x120] sm:$0xff]
    %v5863 = vld [vmem:[#allocation35 + $0x128] sm:$0xff]
    %v5864 = vld [vmem:[#allocation35 + $0x130] sm:$0xff]
    %v5865 = vld [vmem:[#allocation35 + $0x138] sm:$0xff]
    %v5866 = vld [vmem:[#allocation35 + $0x140] sm:$0xff]
    %v5867 = vld [vmem:[#allocation35 + $0x148] sm:$0xff]
    %v5868 = vld [vmem:[#allocation35 + $0x150] sm:$0xff]
    %v5869 = vld [vmem:[#allocation35 + $0x158] sm:$0xff]
    %v5870 = vld [vmem:[#allocation35 + $0x160] sm:$0xff]
    %v5871 = vld [vmem:[#allocation35 + $0x168] sm:$0xff]
    %v5872 = vld [vmem:[#allocation35 + $0x170] sm:$0xff]
    %v5873 = vld [vmem:[#allocation35 + $0x178] sm:$0xff]
    %v5874 = vld [vmem:[#allocation35 + $0x180] sm:$0xff]
    %v5875 = vld [vmem:[#allocation35 + $0x188] sm:$0xff]
    %v5876 = vld [vmem:[#allocation35 + $0x190] sm:$0xff]
    %v5877 = vld [vmem:[#allocation35 + $0x198] sm:$0xff]
    %v5878 = vld [vmem:[#allocation35 + $0x1a0] sm:$0xff]
    %v5879 = vld [vmem:[#allocation35 + $0x1a8] sm:$0xff]
    %v5880 = vld [vmem:[#allocation35 + $0x1b0] sm:$0xff]
    %v5881 = vld [vmem:[#allocation35 + $0x1b8] sm:$0xff]
    %v5882 = vld [vmem:[#allocation35 + $0x1c0] sm:$0xff]
    %v5883 = vld [vmem:[#allocation35 + $0x1c8] sm:$0xff]
    %v5884 = vld [vmem:[#allocation35 + $0x1d0] sm:$0xff]
    %v5885 = vld [vmem:[#allocation35 + $0x1d8] sm:$0xff]
    %v5886 = vld [vmem:[#allocation35 + $0x1e0] sm:$0xff]
    %v5887 = vld [vmem:[#allocation35 + $0x1e8] sm:$0xff]
    %v5888 = vld [vmem:[#allocation35 + $0x1f0] sm:$0xff]
    %v5889 = vld [vmem:[#allocation35 + $0x1f8] sm:$0xff]
    %v5890 = vld [vmem:[#allocation35 + $0x200] sm:$0xff]
    %v5891 = vld [vmem:[#allocation35 + $0x208] sm:$0xff]
    %v5892 = vld [vmem:[#allocation35 + $0x210] sm:$0xff]
    %v5893 = vld [vmem:[#allocation35 + $0x218] sm:$0xff]
    %v5894 = vld [vmem:[#allocation35 + $0x220] sm:$0xff]
    %v5895 = vld [vmem:[#allocation35 + $0x228] sm:$0xff]
    %v5896 = vld [vmem:[#allocation35 + $0x230] sm:$0xff]
    %v5897 = vld [vmem:[#allocation35 + $0x238] sm:$0xff]
    %v5898 = vld [vmem:[#allocation35 + $0x240] sm:$0xff]
    %v5899 = vld [vmem:[#allocation35 + $0x248] sm:$0xff]
    %v5900 = vld [vmem:[#allocation35 + $0x250] sm:$0xff]
    %v5901 = vld [vmem:[#allocation35 + $0x258] sm:$0xff]
    %v5902 = vld [vmem:[#allocation35 + $0x260] sm:$0xff]
    %v5903 = vld [vmem:[#allocation35 + $0x268] sm:$0xff]
    %v5904 = vld [vmem:[#allocation35 + $0x270] sm:$0xff]
    %v5905 = vld [vmem:[#allocation35 + $0x278] sm:$0xff]
    %v5906 = vld [vmem:[#allocation35 + $0x280] sm:$0xff]
    %v5907 = vld [vmem:[#allocation35 + $0x288] sm:$0xff]
    %v5908 = vld [vmem:[#allocation35 + $0x290] sm:$0xff]
    %v5909 = vld [vmem:[#allocation35 + $0x298] sm:$0xff]
    %v5910 = vld [vmem:[#allocation35 + $0x2a0] sm:$0xff]
    %v5911 = vld [vmem:[#allocation35 + $0x2a8] sm:$0xff]
    %v5912 = vld [vmem:[#allocation35 + $0x2b0] sm:$0xff]
    %v5913 = vld [vmem:[#allocation35 + $0x2b8] sm:$0xff]
    %v5914 = vld [vmem:[#allocation35 + $0x2c0] sm:$0xff]
    %v5915 = vld [vmem:[#allocation35 + $0x2c8] sm:$0xff]
    %v5916 = vld [vmem:[#allocation35 + $0x2d0] sm:$0xff]
    %v5917 = vld [vmem:[#allocation35 + $0x2d8] sm:$0xff]
    %v5918 = vld [vmem:[#allocation35 + $0x2e0] sm:$0xff]
    %v5919 = vld [vmem:[#allocation35 + $0x2e8] sm:$0xff]
    %v5920 = vld [vmem:[#allocation35 + $0x2f0] sm:$0xff]
    %v5921 = vld [vmem:[#allocation35 + $0x2f8] sm:$0xff]
    %v5922 = vld [vmem:[#allocation35 + $0x300] sm:$0xff]
    %v5923 = vld [vmem:[#allocation35 + $0x308] sm:$0xff]
    %v5924 = vld [vmem:[#allocation35 + $0x310] sm:$0xff]
    %v5925 = vld [vmem:[#allocation35 + $0x318] sm:$0xff]
    %v5926 = vld [vmem:[#allocation35 + $0x320] sm:$0xff]
    %v5927 = vld [vmem:[#allocation35 + $0x328] sm:$0xff]
    %v5928 = vld [vmem:[#allocation35 + $0x330] sm:$0xff]
    %v5929 = vld [vmem:[#allocation35 + $0x338] sm:$0xff]
    %v5930 = vld [vmem:[#allocation35 + $0x340] sm:$0xff]
    %v5931 = vld [vmem:[#allocation35 + $0x348] sm:$0xff]
    %v5932 = vld [vmem:[#allocation35 + $0x350] sm:$0xff]
    %v5933 = vld [vmem:[#allocation35 + $0x358] sm:$0xff]
    %v5934 = vld [vmem:[#allocation35 + $0x360] sm:$0xff]
    %v5935 = vld [vmem:[#allocation35 + $0x368] sm:$0xff]
    %v5936 = vld [vmem:[#allocation35 + $0x370] sm:$0xff]
    %v5937 = vld [vmem:[#allocation35 + $0x378] sm:$0xff]
    %v5938 = vld [vmem:[#allocation35 + $0x380] sm:$0xff]
    %v5939 = vld [vmem:[#allocation35 + $0x388] sm:$0xff]
    %v5940 = vld [vmem:[#allocation35 + $0x390] sm:$0xff]
    %v5941 = vld [vmem:[#allocation35 + $0x398] sm:$0xff]
    %v5942 = vld [vmem:[#allocation35 + $0x3a0] sm:$0xff]
    %v5943 = vld [vmem:[#allocation35 + $0x3a8] sm:$0xff]
    %v5944 = vld [vmem:[#allocation35 + $0x3b0] sm:$0xff]
    %v5945 = vld [vmem:[#allocation35 + $0x3b8] sm:$0xff]
    %v5946 = vld [vmem:[#allocation35 + $0x3c0] sm:$0xff]
    %v5947 = vld [vmem:[#allocation35 + $0x3c8] sm:$0xff]
    %v5948 = vld [vmem:[#allocation35 + $0x3d0] sm:$0xff]
    %v5949 = vld [vmem:[#allocation35 + $0x3d8] sm:$0xff]
    %v5950 = vld [vmem:[#allocation35 + $0x3e0] sm:$0xff]
    %v5951 = vld [vmem:[#allocation35 + $0x3e8] sm:$0xff]
    %v5952 = vld [vmem:[#allocation35 + $0x3f0] sm:$0xff]
    %v5953 = vld [vmem:[#allocation35 + $0x3f8] sm:$0xff]
    %v5954 = vld [vmem:[#allocation35 + $0x400] sm:$0xff]
    %v5955 = vld [vmem:[#allocation35 + $0x408] sm:$0xff]
    %v5956 = vld [vmem:[#allocation35 + $0x410] sm:$0xff]
    %v5957 = vld [vmem:[#allocation35 + $0x418] sm:$0xff]
    %v5958 = vld [vmem:[#allocation35 + $0x420] sm:$0xff]
    %v5959 = vld [vmem:[#allocation35 + $0x428] sm:$0xff]
    %v5960 = vld [vmem:[#allocation35 + $0x430] sm:$0xff]
    %v5961 = vld [vmem:[#allocation35 + $0x438] sm:$0xff]
    %v5962 = vld [vmem:[#allocation35 + $0x440] sm:$0xff]
    %v5963 = vld [vmem:[#allocation35 + $0x448] sm:$0xff]
    %v5964 = vld [vmem:[#allocation35 + $0x450] sm:$0xff]
    %v5965 = vld [vmem:[#allocation35 + $0x458] sm:$0xff]
    %v5966 = vld [vmem:[#allocation35 + $0x460] sm:$0xff]
    %v5967 = vld [vmem:[#allocation35 + $0x468] sm:$0xff]
    %v5968 = vld [vmem:[#allocation35 + $0x470] sm:$0xff]
    %v5969 = vld [vmem:[#allocation35 + $0x478] sm:$0xff]
    %v5970 = vld [vmem:[#allocation37] sm:$0x1]
    %v5971 = vld [vmem:[#allocation38] sm:$0x1]
    %v5975 = vrot.slane %v5811, 4
    %v5976 = vrot.slane %v5812, 4
    %v5977 = vsel %vm671, %v5975, %v5976
    %v5978 = vrot.slane %v5813, 4
    %v5979 = vsel %vm671, %v5976, %v5978
    %v5983 = vsel %vm671, 0.0, %v5975
    %v5985 = vrot.slane %v5983, 1
    %v5986 = vrot.slane %v5977, 1
    %v5987 = vsel %vm682, %v5985, %v5986
    %v5988 = vrot.slane %v5979, 1
    %v5989 = vsel %vm682, %v5986, %v5988
    %v5993 = vrot.slane %v5983, 2
    %v5994 = vrot.slane %v5977, 2
    %v5995 = vsel %vm690, %v5993, %v5994
    %v5996 = vrot.slane %v5979, 2
    %v5997 = vsel %vm690, %v5994, %v5996
    %v6001 = vrot.slane %v5983, 3
    %v6002 = vrot.slane %v5977, 3
    %v6003 = vsel %vm698, %v6001, %v6002
    %v6004 = vrot.slane %v5979, 3
    %v6005 = vsel %vm698, %v6002, %v6004
    %v6009 = vrot.slane %v5983, 4
    %v6010 = vrot.slane %v5977, 4
    %v6011 = vsel %vm671, %v6009, %v6010
    %v6012 = vrot.slane %v5979, 4
    %v6013 = vsel %vm671, %v6010, %v6012
    %v6017 = vrot.slane %v5983, 5
    %v6018 = vrot.slane %v5977, 5
    %v6019 = vsel %vm713, %v6017, %v6018
    %v6020 = vrot.slane %v5979, 5
    %v6021 = vsel %vm713, %v6018, %v6020
    %v6022 = vrot.slane 0.0, 5
    %v6023 = vsel %vm713, %v6020, %v6022
    %v6027 = vrot.slane %v5983, 6
    %v6028 = vrot.slane %v5977, 6
    %v6029 = vsel %vm721, %v6027, %v6028
    %v6030 = vrot.slane %v5979, 6
    %v6031 = vsel %vm721, %v6028, %v6030
    %v6032 = vrot.slane 0.0, 6
    %v6033 = vsel %vm721, %v6030, %v6032
    %v6037 = vrot.slane %v5983, 7
    %v6038 = vrot.slane %v5977, 7
    %v6039 = vsel %vm729, %v6037, %v6038
    %v6040 = vrot.slane %v5979, 7
    %v6041 = vsel %vm729, %v6038, %v6040
    %v6042 = vsel %vm729, %v6040, %v3313
    %6046 = vmatprep.subr.mxu0 0.0
    %6047 = vmatpush1.msra.mxu0 %v5841
    %6048 = vmatprep.subr.mxu0 0.0
    %6049 = vmatpush1.msra.mxu0 %v5840
    %6050 = vmatprep.subr.mxu0 0.0
    %6051 = vmatpush1.msra.mxu0 %v5839
    %6052 = vmatprep.subr.mxu0 0.0
    %6053 = vmatpush1.msra.mxu0 %v5838
    %6054 = vmatprep.subr.mxu0 0.0
    %6055 = vmatpush1.msra.mxu0 %v5837
    %6056 = vmatprep.subr.mxu0 0.0
    %6057 = vmatpush1.msra.mxu0 %v5836
    %6058 = vmatprep.subr.mxu0 0.0
    %6059 = vmatpush1.msra.mxu0 %v5835
    %6060 = vmatprep.subr.mxu0 0.0
    %6061 = vmatpush1.msra.mxu0 %v5834
    %6062 = vmatprep.subr.mxu0 0.0
    %6063 = vmatpush1.msra.mxu0 %v5833
    %6064 = vmatprep.subr.mxu0 0.0
    %6065 = vmatpush1.msra.mxu0 %v5832
    %6066 = vmatprep.subr.mxu0 0.0
    %6067 = vmatpush1.msra.mxu0 %v5831
    %6068 = vmatprep.subr.mxu0 0.0
    %6069 = vmatpush1.msra.mxu0 %v5830
    %6070 = vmatprep.subr.mxu0 0.0
    %6071 = vmatpush1.msra.mxu0 %v5829
    %6072 = vmatprep.subr.mxu0 0.0
    %6073 = vmatpush1.msra.mxu0 %v5828
    %6074 = vmatprep.subr.mxu0 0.0
    %6075 = vmatpush1.msra.mxu0 %v5827
    %6076 = vmatprep.subr.mxu0 0.0
    %6077 = vmatpush1.msra.mxu0 %v5826
    %6078 = vmatprep.subr.mxu0 0.0
    %6079 = vmatpush2.msra.mxu0 %v5857
    %6080 = vmatprep.subr.mxu0 0.0
    %6081 = vmatpush2.msra.mxu0 %v5856
    %6082 = vmatprep.subr.mxu0 0.0
    %6083 = vmatpush2.msra.mxu0 %v5855
    %6084 = vmatprep.subr.mxu0 0.0
    %6085 = vmatpush2.msra.mxu0 %v5854
    %6086 = vmatprep.subr.mxu0 0.0
    %6087 = vmatpush2.msra.mxu0 %v5853
    %6088 = vmatprep.subr.mxu0 0.0
    %6089 = vmatpush2.msra.mxu0 %v5852
    %6090 = vmatprep.subr.mxu0 0.0
    %6091 = vmatpush2.msra.mxu0 %v5851
    %6092 = vmatprep.subr.mxu0 0.0
    %6093 = vmatpush2.msra.mxu0 %v5850
    %6094 = vmatprep.subr.mxu0 0.0
    %6095 = vmatpush2.msra.mxu0 %v5849
    %6096 = vmatprep.subr.mxu0 0.0
    %6097 = vmatpush2.msra.mxu0 %v5848
    %6098 = vmatprep.subr.mxu0 0.0
    %6099 = vmatpush2.msra.mxu0 %v5847
    %6100 = vmatprep.subr.mxu0 0.0
    %6101 = vmatpush2.msra.mxu0 %v5846
    %6102 = vmatprep.subr.mxu0 0.0
    %6103 = vmatpush2.msra.mxu0 %v5845
    %6104 = vmatprep.subr.mxu0 0.0
    %6105 = vmatpush2.msra.mxu0 %v5844
    %6106 = vmatprep.subr.mxu0 0.0
    %6107 = vmatpush2.msra.mxu0 %v5843
    %6108 = vmatprep.subr.mxu0 0.0
    %6109 = vmatpush2.msra.mxu0 %v5842
    %6110 = vmatprep.mubr.f32.mxu0 %v5987
    %6111 = vmatmul.mubr.f32.gmra.mxu0 %v5983
    %v6112 = vpop.f32.mrf.mxu0
    %v6113 = vadd.f32 0.0, %v6112
    %v6114 = vpop.f32.mrf.mxu0
    %6115 = vmatprep.mubr.f32.mxu0 %v5989
    %6116 = vmatmul.mubr.f32.gmra.mxu0 %v5977
    %v6117 = vpop.f32.mrf.mxu0
    %v6118 = vadd.f32 0.0, %v6117
    %v6119 = vpop.f32.mrf.mxu0
    %6120 = vmatprep.mubr.f32.mxu0 %v5988
    %6121 = vmatmul.mubr.f32.gmra.mxu0 %v5979
    %v6122 = vpop.f32.mrf.mxu0
    %v6123 = vadd.f32 0.0, %v6122
    %v6124 = vpop.f32.mrf.mxu0
    %6125 = vdwg.mxu0
    %6126 = vmatprep.subr.mxu0 0.0
    %6127 = vmatpush1.msra.mxu0 %v5873
    %6128 = vmatprep.subr.mxu0 0.0
    %6129 = vmatpush1.msra.mxu0 %v5872
    %6130 = vmatprep.subr.mxu0 0.0
    %6131 = vmatpush1.msra.mxu0 %v5871
    %6132 = vmatprep.subr.mxu0 0.0
    %6133 = vmatpush1.msra.mxu0 %v5870
    %6134 = vmatprep.subr.mxu0 0.0
    %6135 = vmatpush1.msra.mxu0 %v5869
    %6136 = vmatprep.subr.mxu0 0.0
    %6137 = vmatpush1.msra.mxu0 %v5868
    %6138 = vmatprep.subr.mxu0 0.0
    %6139 = vmatpush1.msra.mxu0 %v5867
    %6140 = vmatprep.subr.mxu0 0.0
    %6141 = vmatpush1.msra.mxu0 %v5866
    %6142 = vmatprep.subr.mxu0 0.0
    %6143 = vmatpush1.msra.mxu0 %v5865
    %6144 = vmatprep.subr.mxu0 0.0
    %6145 = vmatpush1.msra.mxu0 %v5864
    %6146 = vmatprep.subr.mxu0 0.0
    %6147 = vmatpush1.msra.mxu0 %v5863
    %6148 = vmatprep.subr.mxu0 0.0
    %6149 = vmatpush1.msra.mxu0 %v5862
    %6150 = vmatprep.subr.mxu0 0.0
    %6151 = vmatpush1.msra.mxu0 %v5861
    %6152 = vmatprep.subr.mxu0 0.0
    %6153 = vmatpush1.msra.mxu0 %v5860
    %6154 = vmatprep.subr.mxu0 0.0
    %6155 = vmatpush1.msra.mxu0 %v5859
    %6156 = vmatprep.subr.mxu0 0.0
    %6157 = vmatpush1.msra.mxu0 %v5858
    %6158 = vmatprep.subr.mxu0 0.0
    %6159 = vmatpush2.msra.mxu0 %v5889
    %6160 = vmatprep.subr.mxu0 0.0
    %6161 = vmatpush2.msra.mxu0 %v5888
    %6162 = vmatprep.subr.mxu0 0.0
    %6163 = vmatpush2.msra.mxu0 %v5887
    %6164 = vmatprep.subr.mxu0 0.0
    %6165 = vmatpush2.msra.mxu0 %v5886
    %6166 = vmatprep.subr.mxu0 0.0
    %6167 = vmatpush2.msra.mxu0 %v5885
    %6168 = vmatprep.subr.mxu0 0.0
    %6169 = vmatpush2.msra.mxu0 %v5884
    %6170 = vmatprep.subr.mxu0 0.0
    %6171 = vmatpush2.msra.mxu0 %v5883
    %6172 = vmatprep.subr.mxu0 0.0
    %6173 = vmatpush2.msra.mxu0 %v5882
    %6174 = vmatprep.subr.mxu0 0.0
    %6175 = vmatpush2.msra.mxu0 %v5881
    %6176 = vmatprep.subr.mxu0 0.0
    %6177 = vmatpush2.msra.mxu0 %v5880
    %6178 = vmatprep.subr.mxu0 0.0
    %6179 = vmatpush2.msra.mxu0 %v5879
    %6180 = vmatprep.subr.mxu0 0.0
    %6181 = vmatpush2.msra.mxu0 %v5878
    %6182 = vmatprep.subr.mxu0 0.0
    %6183 = vmatpush2.msra.mxu0 %v5877
    %6184 = vmatprep.subr.mxu0 0.0
    %6185 = vmatpush2.msra.mxu0 %v5876
    %6186 = vmatprep.subr.mxu0 0.0
    %6187 = vmatpush2.msra.mxu0 %v5875
    %6188 = vmatprep.subr.mxu0 0.0
    %6189 = vmatpush2.msra.mxu0 %v5874
    %6190 = vmatprep.mubr.f32.mxu0 %v6003
    %6191 = vmatmul.mubr.f32.gmra.mxu0 %v5995
    %v6192 = vpop.f32.mrf.mxu0
    %v6193 = vadd.f32 %v6113, %v6192
    %v6194 = vpop.f32.mrf.mxu0
    %6195 = vmatprep.mubr.f32.mxu0 %v6005
    %6196 = vmatmul.mubr.f32.gmra.mxu0 %v5997
    %v6197 = vpop.f32.mrf.mxu0
    %v6198 = vadd.f32 %v6118, %v6197
    %v6199 = vpop.f32.mrf.mxu0
    %6200 = vmatprep.mubr.f32.mxu0 %v6004
    %6201 = vmatmul.mubr.f32.gmra.mxu0 %v5996
    %v6202 = vpop.f32.mrf.mxu0
    %v6203 = vadd.f32 %v6123, %v6202
    %v6204 = vpop.f32.mrf.mxu0
    %6205 = vdwg.mxu0
    %6206 = vmatprep.subr.mxu0 0.0
    %6207 = vmatpush1.msra.mxu0 %v5905
    %6208 = vmatprep.subr.mxu0 0.0
    %6209 = vmatpush1.msra.mxu0 %v5904
    %6210 = vmatprep.subr.mxu0 0.0
    %6211 = vmatpush1.msra.mxu0 %v5903
    %6212 = vmatprep.subr.mxu0 0.0
    %6213 = vmatpush1.msra.mxu0 %v5902
    %6214 = vmatprep.subr.mxu0 0.0
    %6215 = vmatpush1.msra.mxu0 %v5901
    %6216 = vmatprep.subr.mxu0 0.0
    %6217 = vmatpush1.msra.mxu0 %v5900
    %6218 = vmatprep.subr.mxu0 0.0
    %6219 = vmatpush1.msra.mxu0 %v5899
    %6220 = vmatprep.subr.mxu0 0.0
    %6221 = vmatpush1.msra.mxu0 %v5898
    %6222 = vmatprep.subr.mxu0 0.0
    %6223 = vmatpush1.msra.mxu0 %v5897
    %6224 = vmatprep.subr.mxu0 0.0
    %6225 = vmatpush1.msra.mxu0 %v5896
    %6226 = vmatprep.subr.mxu0 0.0
    %6227 = vmatpush1.msra.mxu0 %v5895
    %6228 = vmatprep.subr.mxu0 0.0
    %6229 = vmatpush1.msra.mxu0 %v5894
    %6230 = vmatprep.subr.mxu0 0.0
    %6231 = vmatpush1.msra.mxu0 %v5893
    %6232 = vmatprep.subr.mxu0 0.0
    %6233 = vmatpush1.msra.mxu0 %v5892
    %6234 = vmatprep.subr.mxu0 0.0
    %6235 = vmatpush1.msra.mxu0 %v5891
    %6236 = vmatprep.subr.mxu0 0.0
    %6237 = vmatpush1.msra.mxu0 %v5890
    %6238 = vmatprep.subr.mxu0 0.0
    %6239 = vmatpush2.msra.mxu0 %v5921
    %6240 = vmatprep.subr.mxu0 0.0
    %6241 = vmatpush2.msra.mxu0 %v5920
    %6242 = vmatprep.subr.mxu0 0.0
    %6243 = vmatpush2.msra.mxu0 %v5919
    %6244 = vmatprep.subr.mxu0 0.0
    %6245 = vmatpush2.msra.mxu0 %v5918
    %6246 = vmatprep.subr.mxu0 0.0
    %6247 = vmatpush2.msra.mxu0 %v5917
    %6248 = vmatprep.subr.mxu0 0.0
    %6249 = vmatpush2.msra.mxu0 %v5916
    %6250 = vmatprep.subr.mxu0 0.0
    %6251 = vmatpush2.msra.mxu0 %v5915
    %6252 = vmatprep.subr.mxu0 0.0
    %6253 = vmatpush2.msra.mxu0 %v5914
    %6254 = vmatprep.subr.mxu0 0.0
    %6255 = vmatpush2.msra.mxu0 %v5913
    %6256 = vmatprep.subr.mxu0 0.0
    %6257 = vmatpush2.msra.mxu0 %v5912
    %6258 = vmatprep.subr.mxu0 0.0
    %6259 = vmatpush2.msra.mxu0 %v5911
    %6260 = vmatprep.subr.mxu0 0.0
    %6261 = vmatpush2.msra.mxu0 %v5910
    %6262 = vmatprep.subr.mxu0 0.0
    %6263 = vmatpush2.msra.mxu0 %v5909
    %6264 = vmatprep.subr.mxu0 0.0
    %6265 = vmatpush2.msra.mxu0 %v5908
    %6266 = vmatprep.subr.mxu0 0.0
    %6267 = vmatpush2.msra.mxu0 %v5907
    %6268 = vmatprep.subr.mxu0 0.0
    %6269 = vmatpush2.msra.mxu0 %v5906
    %6270 = vmatprep.mubr.f32.mxu0 %v6019
    %6271 = vmatmul.mubr.f32.gmra.mxu0 %v6011
    %v6272 = vpop.f32.mrf.mxu0
    %v6273 = vadd.f32 %v6193, %v6272
    %v6274 = vpop.f32.mrf.mxu0
    %6275 = vmatprep.mubr.f32.mxu0 %v6021
    %6276 = vmatmul.mubr.f32.gmra.mxu0 %v6013
    %v6277 = vpop.f32.mrf.mxu0
    %v6278 = vadd.f32 %v6198, %v6277
    %v6279 = vpop.f32.mrf.mxu0
    %6280 = vmatprep.mubr.f32.mxu0 %v6023
    %6281 = vmatmul.mubr.f32.gmra.mxu0 %v6012
    %v6282 = vpop.f32.mrf.mxu0
    %v6283 = vadd.f32 %v6203, %v6282
    %v6284 = vpop.f32.mrf.mxu0
    %6285 = vdwg.mxu0
    %6286 = vmatprep.subr.mxu0 0.0
    %6287 = vmatpush1.msra.mxu0 %v5937
    %6288 = vmatprep.subr.mxu0 0.0
    %6289 = vmatpush1.msra.mxu0 %v5936
    %6290 = vmatprep.subr.mxu0 0.0
    %6291 = vmatpush1.msra.mxu0 %v5935
    %6292 = vmatprep.subr.mxu0 0.0
    %6293 = vmatpush1.msra.mxu0 %v5934
    %6294 = vmatprep.subr.mxu0 0.0
    %6295 = vmatpush1.msra.mxu0 %v5933
    %6296 = vmatprep.subr.mxu0 0.0
    %6297 = vmatpush1.msra.mxu0 %v5932
    %6298 = vmatprep.subr.mxu0 0.0
    %6299 = vmatpush1.msra.mxu0 %v5931
    %6300 = vmatprep.subr.mxu0 0.0
    %6301 = vmatpush1.msra.mxu0 %v5930
    %6302 = vmatprep.subr.mxu0 0.0
    %6303 = vmatpush1.msra.mxu0 %v5929
    %6304 = vmatprep.subr.mxu0 0.0
    %6305 = vmatpush1.msra.mxu0 %v5928
    %6306 = vmatprep.subr.mxu0 0.0
    %6307 = vmatpush1.msra.mxu0 %v5927
    %6308 = vmatprep.subr.mxu0 0.0
    %6309 = vmatpush1.msra.mxu0 %v5926
    %6310 = vmatprep.subr.mxu0 0.0
    %6311 = vmatpush1.msra.mxu0 %v5925
    %6312 = vmatprep.subr.mxu0 0.0
    %6313 = vmatpush1.msra.mxu0 %v5924
    %6314 = vmatprep.subr.mxu0 0.0
    %6315 = vmatpush1.msra.mxu0 %v5923
    %6316 = vmatprep.subr.mxu0 0.0
    %6317 = vmatpush1.msra.mxu0 %v5922
    %6318 = vmatprep.subr.mxu0 0.0
    %6319 = vmatpush2.msra.mxu0 %v5953
    %6320 = vmatprep.subr.mxu0 0.0
    %6321 = vmatpush2.msra.mxu0 %v5952
    %6322 = vmatprep.subr.mxu0 0.0
    %6323 = vmatpush2.msra.mxu0 %v5951
    %6324 = vmatprep.subr.mxu0 0.0
    %6325 = vmatpush2.msra.mxu0 %v5950
    %6326 = vmatprep.subr.mxu0 0.0
    %6327 = vmatpush2.msra.mxu0 %v5949
    %6328 = vmatprep.subr.mxu0 0.0
    %6329 = vmatpush2.msra.mxu0 %v5948
    %6330 = vmatprep.subr.mxu0 0.0
    %6331 = vmatpush2.msra.mxu0 %v5947
    %6332 = vmatprep.subr.mxu0 0.0
    %6333 = vmatpush2.msra.mxu0 %v5946
    %6334 = vmatprep.subr.mxu0 0.0
    %6335 = vmatpush2.msra.mxu0 %v5945
    %6336 = vmatprep.subr.mxu0 0.0
    %6337 = vmatpush2.msra.mxu0 %v5944
    %6338 = vmatprep.subr.mxu0 0.0
    %6339 = vmatpush2.msra.mxu0 %v5943
    %6340 = vmatprep.subr.mxu0 0.0
    %6341 = vmatpush2.msra.mxu0 %v5942
    %6342 = vmatprep.subr.mxu0 0.0
    %6343 = vmatpush2.msra.mxu0 %v5941
    %6344 = vmatprep.subr.mxu0 0.0
    %6345 = vmatpush2.msra.mxu0 %v5940
    %6346 = vmatprep.subr.mxu0 0.0
    %6347 = vmatpush2.msra.mxu0 %v5939
    %6348 = vmatprep.subr.mxu0 0.0
    %6349 = vmatpush2.msra.mxu0 %v5938
    %6350 = vmatprep.mubr.f32.mxu0 %v6039
    %6351 = vmatmul.mubr.f32.gmra.mxu0 %v6029
    %v6352 = vpop.f32.mrf.mxu0
    %v6353 = vadd.f32 %v6273, %v6352
    %v6354 = vpop.f32.mrf.mxu0
    %6355 = vmatprep.mubr.f32.mxu0 %v6041
    %6356 = vmatmul.mubr.f32.gmra.mxu0 %v6031
    %v6357 = vpop.f32.mrf.mxu0
    %v6358 = vadd.f32 %v6278, %v6357
    %v6359 = vpop.f32.mrf.mxu0
    %6360 = vmatprep.mubr.f32.mxu0 %v6042
    %6361 = vmatmul.mubr.f32.gmra.mxu0 %v6033
    %v6362 = vpop.f32.mrf.mxu0
    %v6363 = vadd.f32 %v6283, %v6362
    %v6364 = vpop.f32.mrf.mxu0
    %6365 = vdwg.mxu0
    %6366 = vmatprep.subr.mxu0 0.0
    %6367 = vmatpush1.msra.mxu0 %v5969
    %6368 = vmatprep.subr.mxu0 0.0
    %6369 = vmatpush1.msra.mxu0 %v5968
    %6370 = vmatprep.subr.mxu0 0.0
    %6371 = vmatpush1.msra.mxu0 %v5967
    %6372 = vmatprep.subr.mxu0 0.0
    %6373 = vmatpush1.msra.mxu0 %v5966
    %6374 = vmatprep.subr.mxu0 0.0
    %6375 = vmatpush1.msra.mxu0 %v5965
    %6376 = vmatprep.subr.mxu0 0.0
    %6377 = vmatpush1.msra.mxu0 %v5964
    %6378 = vmatprep.subr.mxu0 0.0
    %6379 = vmatpush1.msra.mxu0 %v5963
    %6380 = vmatprep.subr.mxu0 0.0
    %6381 = vmatpush1.msra.mxu0 %v5962
    %6382 = vmatprep.subr.mxu0 0.0
    %6383 = vmatpush1.msra.mxu0 %v5961
    %6384 = vmatprep.subr.mxu0 0.0
    %6385 = vmatpush1.msra.mxu0 %v5960
    %6386 = vmatprep.subr.mxu0 0.0
    %6387 = vmatpush1.msra.mxu0 %v5959
    %6388 = vmatprep.subr.mxu0 0.0
    %6389 = vmatpush1.msra.mxu0 %v5958
    %6390 = vmatprep.subr.mxu0 0.0
    %6391 = vmatpush1.msra.mxu0 %v5957
    %6392 = vmatprep.subr.mxu0 0.0
    %6393 = vmatpush1.msra.mxu0 %v5956
    %6394 = vmatprep.subr.mxu0 0.0
    %6395 = vmatpush1.msra.mxu0 %v5955
    %6396 = vmatprep.subr.mxu0 0.0
    %6397 = vmatpush1.msra.mxu0 %v5954
    %6398 = vmatprep.subr.mxu0 0.0
    %6399 = vmatpush2.msra.mxu0 0.0
    %6400 = vmatprep.subr.mxu0 0.0
    %6401 = vmatpush2.msra.mxu0 0.0
    %6402 = vmatprep.subr.mxu0 0.0
    %6403 = vmatpush2.msra.mxu0 0.0
    %6404 = vmatprep.subr.mxu0 0.0
    %6405 = vmatpush2.msra.mxu0 0.0
    %6406 = vmatprep.subr.mxu0 0.0
    %6407 = vmatpush2.msra.mxu0 0.0
    %6408 = vmatprep.subr.mxu0 0.0
    %6409 = vmatpush2.msra.mxu0 0.0
    %6410 = vmatprep.subr.mxu0 0.0
    %6411 = vmatpush2.msra.mxu0 0.0
    %6412 = vmatprep.subr.mxu0 0.0
    %6413 = vmatpush2.msra.mxu0 0.0
    %6414 = vmatprep.subr.mxu0 0.0
    %6415 = vmatpush2.msra.mxu0 0.0
    %6416 = vmatprep.subr.mxu0 0.0
    %6417 = vmatpush2.msra.mxu0 0.0
    %6418 = vmatprep.subr.mxu0 0.0
    %6419 = vmatpush2.msra.mxu0 0.0
    %6420 = vmatprep.subr.mxu0 0.0
    %6421 = vmatpush2.msra.mxu0 0.0
    %6422 = vmatprep.subr.mxu0 0.0
    %6423 = vmatpush2.msra.mxu0 0.0
    %6424 = vmatprep.subr.mxu0 0.0
    %6425 = vmatpush2.msra.mxu0 0.0
    %6426 = vmatprep.subr.mxu0 0.0
    %6427 = vmatpush2.msra.mxu0 0.0
    %6428 = vmatprep.subr.mxu0 0.0
    %6429 = vmatpush2.msra.mxu0 0.0
    %6430 = vmatprep.mubr.f32.mxu0 0.0
    %6431 = vmatmul.mubr.f32.gmra.mxu0 %v5977
    %v6432 = vpop.f32.mrf.mxu0
    %v6433 = vadd.f32 %v6353, %v6432
    %v6434 = vpop.f32.mrf.mxu0
    %6435 = vmatprep.mubr.f32.mxu0 0.0
    %6436 = vmatmul.mubr.f32.gmra.mxu0 %v5979
    %v6437 = vpop.f32.mrf.mxu0
    %v6438 = vadd.f32 %v6358, %v6437
    %v6439 = vpop.f32.mrf.mxu0
    %6440 = vmatprep.mubr.f32.mxu0 0.0
    %6441 = vmatmul.mubr.f32.gmra.mxu0 0.0
    %v6442 = vpop.f32.mrf.mxu0
    %v6443 = vadd.f32 %v6363, %v6442
    %v6444 = vpop.f32.mrf.mxu0
    %6445 = vdwg.mxu0
    %v6446 = vadd.f32 %v6433, %v6438
    %v6447 = vsel %vm671, %v6443, 0.0
    %v6448 = vadd.f32 %v6446, %v6447
    %v6449 = vrot.slane %v6448, 4
    %v6450 = vadd.f32 %v6448, %v6449
    %v6451 = vrot.slane %v6450, 2
    %v6452 = vadd.f32 %v6450, %v6451
    %v6453 = vrot.slane %v6452, 1
    %v6454 = vadd.f32 %v6452, %v6453
    %v6455 = vadd.f32 %v6454, 0.0
    %v6456 = vmul.f32 %v6433, %v6433
    %v6457 = vmul.f32 %v6438, %v6438
    %v6458 = vmul.f32 %v6443, %v6443
    %v6459 = vadd.f32 %v6456, %v6457
    %v6460 = vsel %vm671, %v6458, 0.0
    %v6461 = vadd.f32 %v6459, %v6460
    %v6462 = vrot.slane %v6461, 4
    %v6463 = vadd.f32 %v6461, %v6462
    %v6464 = vrot.slane %v6463, 2
    %v6465 = vadd.f32 %v6463, %v6464
    %v6466 = vrot.slane %v6465, 1
    %v6467 = vadd.f32 %v6465, %v6466
    %v6468 = vadd.f32 %v6467, 0.0
    %v6472 = vrot.slane %v5823, 4
    %v6473 = vrot.slane %v5824, 4
    %v6474 = vsel %vm671, %v6472, %v6473
    %v6475 = vrot.slane %v5825, 4
    %v6476 = vsel %vm671, %v6473, %v6475
    %v6480 = vsel %vm671, 0.0, %v6472
    %v6482 = vrot.slane %v6480, 1
    %v6483 = vrot.slane %v6474, 1
    %v6484 = vsel %vm682, %v6482, %v6483
    %v6485 = vrot.slane %v6476, 1
    %v6486 = vsel %vm682, %v6483, %v6485
    %v6490 = vrot.slane %v6480, 2
    %v6491 = vrot.slane %v6474, 2
    %v6492 = vsel %vm690, %v6490, %v6491
    %v6493 = vrot.slane %v6476, 2
    %v6494 = vsel %vm690, %v6491, %v6493
    %v6498 = vrot.slane %v6480, 3
    %v6499 = vrot.slane %v6474, 3
    %v6500 = vsel %vm698, %v6498, %v6499
    %v6501 = vrot.slane %v6476, 3
    %v6502 = vsel %vm698, %v6499, %v6501
    %v6506 = vrot.slane %v6480, 4
    %v6507 = vrot.slane %v6474, 4
    %v6508 = vsel %vm671, %v6506, %v6507
    %v6509 = vrot.slane %v6476, 4
    %v6510 = vsel %vm671, %v6507, %v6509
    %v6514 = vrot.slane %v6480, 5
    %v6515 = vrot.slane %v6474, 5
    %v6516 = vsel %vm713, %v6514, %v6515
    %v6517 = vrot.slane %v6476, 5
    %v6518 = vsel %vm713, %v6515, %v6517
    %v6519 = vsel %vm713, %v6517, %v6022
    %v6523 = vrot.slane %v6480, 6
    %v6524 = vrot.slane %v6474, 6
    %v6525 = vsel %vm721, %v6523, %v6524
    %v6526 = vrot.slane %v6476, 6
    %v6527 = vsel %vm721, %v6524, %v6526
    %v6528 = vsel %vm721, %v6526, %v6032
    %v6532 = vrot.slane %v6480, 7
    %v6533 = vrot.slane %v6474, 7
    %v6534 = vsel %vm729, %v6532, %v6533
    %v6535 = vrot.slane %v6476, 7
    %v6536 = vsel %vm729, %v6533, %v6535
    %v6537 = vsel %vm729, %v6535, %v3313
    %6541 = vmatprep.subr.mxu0 0.0
    %6542 = vmatpush1.msra.mxu0 %v5841
    %6543 = vmatprep.subr.mxu0 0.0
    %6544 = vmatpush1.msra.mxu0 %v5840
    %6545 = vmatprep.subr.mxu0 0.0
    %6546 = vmatpush1.msra.mxu0 %v5839
    %6547 = vmatprep.subr.mxu0 0.0
    %6548 = vmatpush1.msra.mxu0 %v5838
    %6549 = vmatprep.subr.mxu0 0.0
    %6550 = vmatpush1.msra.mxu0 %v5837
    %6551 = vmatprep.subr.mxu0 0.0
    %6552 = vmatpush1.msra.mxu0 %v5836
    %6553 = vmatprep.subr.mxu0 0.0
    %6554 = vmatpush1.msra.mxu0 %v5835
    %6555 = vmatprep.subr.mxu0 0.0
    %6556 = vmatpush1.msra.mxu0 %v5834
    %6557 = vmatprep.subr.mxu0 0.0
    %6558 = vmatpush1.msra.mxu0 %v5833
    %6559 = vmatprep.subr.mxu0 0.0
    %6560 = vmatpush1.msra.mxu0 %v5832
    %6561 = vmatprep.subr.mxu0 0.0
    %6562 = vmatpush1.msra.mxu0 %v5831
    %6563 = vmatprep.subr.mxu0 0.0
    %6564 = vmatpush1.msra.mxu0 %v5830
    %6565 = vmatprep.subr.mxu0 0.0
    %6566 = vmatpush1.msra.mxu0 %v5829
    %6567 = vmatprep.subr.mxu0 0.0
    %6568 = vmatpush1.msra.mxu0 %v5828
    %6569 = vmatprep.subr.mxu0 0.0
    %6570 = vmatpush1.msra.mxu0 %v5827
    %6571 = vmatprep.subr.mxu0 0.0
    %6572 = vmatpush1.msra.mxu0 %v5826
    %6573 = vmatprep.subr.mxu0 0.0
    %6574 = vmatpush2.msra.mxu0 %v5857
    %6575 = vmatprep.subr.mxu0 0.0
    %6576 = vmatpush2.msra.mxu0 %v5856
    %6577 = vmatprep.subr.mxu0 0.0
    %6578 = vmatpush2.msra.mxu0 %v5855
    %6579 = vmatprep.subr.mxu0 0.0
    %6580 = vmatpush2.msra.mxu0 %v5854
    %6581 = vmatprep.subr.mxu0 0.0
    %6582 = vmatpush2.msra.mxu0 %v5853
    %6583 = vmatprep.subr.mxu0 0.0
    %6584 = vmatpush2.msra.mxu0 %v5852
    %6585 = vmatprep.subr.mxu0 0.0
    %6586 = vmatpush2.msra.mxu0 %v5851
    %6587 = vmatprep.subr.mxu0 0.0
    %6588 = vmatpush2.msra.mxu0 %v5850
    %6589 = vmatprep.subr.mxu0 0.0
    %6590 = vmatpush2.msra.mxu0 %v5849
    %6591 = vmatprep.subr.mxu0 0.0
    %6592 = vmatpush2.msra.mxu0 %v5848
    %6593 = vmatprep.subr.mxu0 0.0
    %6594 = vmatpush2.msra.mxu0 %v5847
    %6595 = vmatprep.subr.mxu0 0.0
    %6596 = vmatpush2.msra.mxu0 %v5846
    %6597 = vmatprep.subr.mxu0 0.0
    %6598 = vmatpush2.msra.mxu0 %v5845
    %6599 = vmatprep.subr.mxu0 0.0
    %6600 = vmatpush2.msra.mxu0 %v5844
    %6601 = vmatprep.subr.mxu0 0.0
    %6602 = vmatpush2.msra.mxu0 %v5843
    %6603 = vmatprep.subr.mxu0 0.0
    %6604 = vmatpush2.msra.mxu0 %v5842
    %6605 = vmatprep.mubr.f32.mxu0 %v6484
    %6606 = vmatmul.mubr.f32.gmra.mxu0 %v6480
    %v6607 = vpop.f32.mrf.mxu0
    %v6608 = vadd.f32 0.0, %v6607
    %v6609 = vpop.f32.mrf.mxu0
    %6610 = vmatprep.mubr.f32.mxu0 %v6486
    %6611 = vmatmul.mubr.f32.gmra.mxu0 %v6474
    %v6612 = vpop.f32.mrf.mxu0
    %v6613 = vadd.f32 0.0, %v6612
    %v6614 = vpop.f32.mrf.mxu0
    %6615 = vmatprep.mubr.f32.mxu0 %v6485
    %6616 = vmatmul.mubr.f32.gmra.mxu0 %v6476
    %v6617 = vpop.f32.mrf.mxu0
    %v6618 = vadd.f32 0.0, %v6617
    %v6619 = vpop.f32.mrf.mxu0
    %6620 = vdwg.mxu0
    %6621 = vmatprep.subr.mxu0 0.0
    %6622 = vmatpush1.msra.mxu0 %v5873
    %6623 = vmatprep.subr.mxu0 0.0
    %6624 = vmatpush1.msra.mxu0 %v5872
    %6625 = vmatprep.subr.mxu0 0.0
    %6626 = vmatpush1.msra.mxu0 %v5871
    %6627 = vmatprep.subr.mxu0 0.0
    %6628 = vmatpush1.msra.mxu0 %v5870
    %6629 = vmatprep.subr.mxu0 0.0
    %6630 = vmatpush1.msra.mxu0 %v5869
    %6631 = vmatprep.subr.mxu0 0.0
    %6632 = vmatpush1.msra.mxu0 %v5868
    %6633 = vmatprep.subr.mxu0 0.0
    %6634 = vmatpush1.msra.mxu0 %v5867
    %6635 = vmatprep.subr.mxu0 0.0
    %6636 = vmatpush1.msra.mxu0 %v5866
    %6637 = vmatprep.subr.mxu0 0.0
    %6638 = vmatpush1.msra.mxu0 %v5865
    %6639 = vmatprep.subr.mxu0 0.0
    %6640 = vmatpush1.msra.mxu0 %v5864
    %6641 = vmatprep.subr.mxu0 0.0
    %6642 = vmatpush1.msra.mxu0 %v5863
    %6643 = vmatprep.subr.mxu0 0.0
    %6644 = vmatpush1.msra.mxu0 %v5862
    %6645 = vmatprep.subr.mxu0 0.0
    %6646 = vmatpush1.msra.mxu0 %v5861
    %6647 = vmatprep.subr.mxu0 0.0
    %6648 = vmatpush1.msra.mxu0 %v5860
    %6649 = vmatprep.subr.mxu0 0.0
    %6650 = vmatpush1.msra.mxu0 %v5859
    %6651 = vmatprep.subr.mxu0 0.0
    %6652 = vmatpush1.msra.mxu0 %v5858
    %6653 = vmatprep.subr.mxu0 0.0
    %6654 = vmatpush2.msra.mxu0 %v5889
    %6655 = vmatprep.subr.mxu0 0.0
    %6656 = vmatpush2.msra.mxu0 %v5888
    %6657 = vmatprep.subr.mxu0 0.0
    %6658 = vmatpush2.msra.mxu0 %v5887
    %6659 = vmatprep.subr.mxu0 0.0
    %6660 = vmatpush2.msra.mxu0 %v5886
    %6661 = vmatprep.subr.mxu0 0.0
    %6662 = vmatpush2.msra.mxu0 %v5885
    %6663 = vmatprep.subr.mxu0 0.0
    %6664 = vmatpush2.msra.mxu0 %v5884
    %6665 = vmatprep.subr.mxu0 0.0
    %6666 = vmatpush2.msra.mxu0 %v5883
    %6667 = vmatprep.subr.mxu0 0.0
    %6668 = vmatpush2.msra.mxu0 %v5882
    %6669 = vmatprep.subr.mxu0 0.0
    %6670 = vmatpush2.msra.mxu0 %v5881
    %6671 = vmatprep.subr.mxu0 0.0
    %6672 = vmatpush2.msra.mxu0 %v5880
    %6673 = vmatprep.subr.mxu0 0.0
    %6674 = vmatpush2.msra.mxu0 %v5879
    %6675 = vmatprep.subr.mxu0 0.0
    %6676 = vmatpush2.msra.mxu0 %v5878
    %6677 = vmatprep.subr.mxu0 0.0
    %6678 = vmatpush2.msra.mxu0 %v5877
    %6679 = vmatprep.subr.mxu0 0.0
    %6680 = vmatpush2.msra.mxu0 %v5876
    %6681 = vmatprep.subr.mxu0 0.0
    %6682 = vmatpush2.msra.mxu0 %v5875
    %6683 = vmatprep.subr.mxu0 0.0
    %6684 = vmatpush2.msra.mxu0 %v5874
    %6685 = vmatprep.mubr.f32.mxu0 %v6500
    %6686 = vmatmul.mubr.f32.gmra.mxu0 %v6492
    %v6687 = vpop.f32.mrf.mxu0
    %v6688 = vadd.f32 %v6608, %v6687
    %v6689 = vpop.f32.mrf.mxu0
    %6690 = vmatprep.mubr.f32.mxu0 %v6502
    %6691 = vmatmul.mubr.f32.gmra.mxu0 %v6494
    %v6692 = vpop.f32.mrf.mxu0
    %v6693 = vadd.f32 %v6613, %v6692
    %v6694 = vpop.f32.mrf.mxu0
    %6695 = vmatprep.mubr.f32.mxu0 %v6501
    %6696 = vmatmul.mubr.f32.gmra.mxu0 %v6493
    %v6697 = vpop.f32.mrf.mxu0
    %v6698 = vadd.f32 %v6618, %v6697
    %v6699 = vpop.f32.mrf.mxu0
    %6700 = vdwg.mxu0
    %6701 = vmatprep.subr.mxu0 0.0
    %6702 = vmatpush1.msra.mxu0 %v5905
    %6703 = vmatprep.subr.mxu0 0.0
    %6704 = vmatpush1.msra.mxu0 %v5904
    %6705 = vmatprep.subr.mxu0 0.0
    %6706 = vmatpush1.msra.mxu0 %v5903
    %6707 = vmatprep.subr.mxu0 0.0
    %6708 = vmatpush1.msra.mxu0 %v5902
    %6709 = vmatprep.subr.mxu0 0.0
    %6710 = vmatpush1.msra.mxu0 %v5901
    %6711 = vmatprep.subr.mxu0 0.0
    %6712 = vmatpush1.msra.mxu0 %v5900
    %6713 = vmatprep.subr.mxu0 0.0
    %6714 = vmatpush1.msra.mxu0 %v5899
    %6715 = vmatprep.subr.mxu0 0.0
    %6716 = vmatpush1.msra.mxu0 %v5898
    %6717 = vmatprep.subr.mxu0 0.0
    %6718 = vmatpush1.msra.mxu0 %v5897
    %6719 = vmatprep.subr.mxu0 0.0
    %6720 = vmatpush1.msra.mxu0 %v5896
    %6721 = vmatprep.subr.mxu0 0.0
    %6722 = vmatpush1.msra.mxu0 %v5895
    %6723 = vmatprep.subr.mxu0 0.0
    %6724 = vmatpush1.msra.mxu0 %v5894
    %6725 = vmatprep.subr.mxu0 0.0
    %6726 = vmatpush1.msra.mxu0 %v5893
    %6727 = vmatprep.subr.mxu0 0.0
    %6728 = vmatpush1.msra.mxu0 %v5892
    %6729 = vmatprep.subr.mxu0 0.0
    %6730 = vmatpush1.msra.mxu0 %v5891
    %6731 = vmatprep.subr.mxu0 0.0
    %6732 = vmatpush1.msra.mxu0 %v5890
    %6733 = vmatprep.subr.mxu0 0.0
    %6734 = vmatpush2.msra.mxu0 %v5921
    %6735 = vmatprep.subr.mxu0 0.0
    %6736 = vmatpush2.msra.mxu0 %v5920
    %6737 = vmatprep.subr.mxu0 0.0
    %6738 = vmatpush2.msra.mxu0 %v5919
    %6739 = vmatprep.subr.mxu0 0.0
    %6740 = vmatpush2.msra.mxu0 %v5918
    %6741 = vmatprep.subr.mxu0 0.0
    %6742 = vmatpush2.msra.mxu0 %v5917
    %6743 = vmatprep.subr.mxu0 0.0
    %6744 = vmatpush2.msra.mxu0 %v5916
    %6745 = vmatprep.subr.mxu0 0.0
    %6746 = vmatpush2.msra.mxu0 %v5915
    %6747 = vmatprep.subr.mxu0 0.0
    %6748 = vmatpush2.msra.mxu0 %v5914
    %6749 = vmatprep.subr.mxu0 0.0
    %6750 = vmatpush2.msra.mxu0 %v5913
    %6751 = vmatprep.subr.mxu0 0.0
    %6752 = vmatpush2.msra.mxu0 %v5912
    %6753 = vmatprep.subr.mxu0 0.0
    %6754 = vmatpush2.msra.mxu0 %v5911
    %6755 = vmatprep.subr.mxu0 0.0
    %6756 = vmatpush2.msra.mxu0 %v5910
    %6757 = vmatprep.subr.mxu0 0.0
    %6758 = vmatpush2.msra.mxu0 %v5909
    %6759 = vmatprep.subr.mxu0 0.0
    %6760 = vmatpush2.msra.mxu0 %v5908
    %6761 = vmatprep.subr.mxu0 0.0
    %6762 = vmatpush2.msra.mxu0 %v5907
    %6763 = vmatprep.subr.mxu0 0.0
    %6764 = vmatpush2.msra.mxu0 %v5906
    %6765 = vmatprep.mubr.f32.mxu0 %v6516
    %6766 = vmatmul.mubr.f32.gmra.mxu0 %v6508
    %v6767 = vpop.f32.mrf.mxu0
    %v6768 = vadd.f32 %v6688, %v6767
    %v6769 = vpop.f32.mrf.mxu0
    %6770 = vmatprep.mubr.f32.mxu0 %v6518
    %6771 = vmatmul.mubr.f32.gmra.mxu0 %v6510
    %v6772 = vpop.f32.mrf.mxu0
    %v6773 = vadd.f32 %v6693, %v6772
    %v6774 = vpop.f32.mrf.mxu0
    %6775 = vmatprep.mubr.f32.mxu0 %v6519
    %6776 = vmatmul.mubr.f32.gmra.mxu0 %v6509
    %v6777 = vpop.f32.mrf.mxu0
    %v6778 = vadd.f32 %v6698, %v6777
    %v6779 = vpop.f32.mrf.mxu0
    %6780 = vdwg.mxu0
    %6781 = vmatprep.subr.mxu0 0.0
    %6782 = vmatpush1.msra.mxu0 %v5937
    %6783 = vmatprep.subr.mxu0 0.0
    %6784 = vmatpush1.msra.mxu0 %v5936
    %6785 = vmatprep.subr.mxu0 0.0
    %6786 = vmatpush1.msra.mxu0 %v5935
    %6787 = vmatprep.subr.mxu0 0.0
    %6788 = vmatpush1.msra.mxu0 %v5934
    %6789 = vmatprep.subr.mxu0 0.0
    %6790 = vmatpush1.msra.mxu0 %v5933
    %6791 = vmatprep.subr.mxu0 0.0
    %6792 = vmatpush1.msra.mxu0 %v5932
    %6793 = vmatprep.subr.mxu0 0.0
    %6794 = vmatpush1.msra.mxu0 %v5931
    %6795 = vmatprep.subr.mxu0 0.0
    %6796 = vmatpush1.msra.mxu0 %v5930
    %6797 = vmatprep.subr.mxu0 0.0
    %6798 = vmatpush1.msra.mxu0 %v5929
    %6799 = vmatprep.subr.mxu0 0.0
    %6800 = vmatpush1.msra.mxu0 %v5928
    %6801 = vmatprep.subr.mxu0 0.0
    %6802 = vmatpush1.msra.mxu0 %v5927
    %6803 = vmatprep.subr.mxu0 0.0
    %6804 = vmatpush1.msra.mxu0 %v5926
    %6805 = vmatprep.subr.mxu0 0.0
    %6806 = vmatpush1.msra.mxu0 %v5925
    %6807 = vmatprep.subr.mxu0 0.0
    %6808 = vmatpush1.msra.mxu0 %v5924
    %6809 = vmatprep.subr.mxu0 0.0
    %6810 = vmatpush1.msra.mxu0 %v5923
    %6811 = vmatprep.subr.mxu0 0.0
    %6812 = vmatpush1.msra.mxu0 %v5922
    %6813 = vmatprep.subr.mxu0 0.0
    %6814 = vmatpush2.msra.mxu0 %v5953
    %6815 = vmatprep.subr.mxu0 0.0
    %6816 = vmatpush2.msra.mxu0 %v5952
    %6817 = vmatprep.subr.mxu0 0.0
    %6818 = vmatpush2.msra.mxu0 %v5951
    %6819 = vmatprep.subr.mxu0 0.0
    %6820 = vmatpush2.msra.mxu0 %v5950
    %6821 = vmatprep.subr.mxu0 0.0
    %6822 = vmatpush2.msra.mxu0 %v5949
    %6823 = vmatprep.subr.mxu0 0.0
    %6824 = vmatpush2.msra.mxu0 %v5948
    %6825 = vmatprep.subr.mxu0 0.0
    %6826 = vmatpush2.msra.mxu0 %v5947
    %6827 = vmatprep.subr.mxu0 0.0
    %6828 = vmatpush2.msra.mxu0 %v5946
    %6829 = vmatprep.subr.mxu0 0.0
    %6830 = vmatpush2.msra.mxu0 %v5945
    %6831 = vmatprep.subr.mxu0 0.0
    %6832 = vmatpush2.msra.mxu0 %v5944
    %6833 = vmatprep.subr.mxu0 0.0
    %6834 = vmatpush2.msra.mxu0 %v5943
    %6835 = vmatprep.subr.mxu0 0.0
    %6836 = vmatpush2.msra.mxu0 %v5942
    %6837 = vmatprep.subr.mxu0 0.0
    %6838 = vmatpush2.msra.mxu0 %v5941
    %6839 = vmatprep.subr.mxu0 0.0
    %6840 = vmatpush2.msra.mxu0 %v5940
    %6841 = vmatprep.subr.mxu0 0.0
    %6842 = vmatpush2.msra.mxu0 %v5939
    %6843 = vmatprep.subr.mxu0 0.0
    %6844 = vmatpush2.msra.mxu0 %v5938
    %6845 = vmatprep.mubr.f32.mxu0 %v6534
    %6846 = vmatmul.mubr.f32.gmra.mxu0 %v6525
    %v6847 = vpop.f32.mrf.mxu0
    %v6848 = vadd.f32 %v6768, %v6847
    %v6849 = vpop.f32.mrf.mxu0
    %6850 = vmatprep.mubr.f32.mxu0 %v6536
    %6851 = vmatmul.mubr.f32.gmra.mxu0 %v6527
    %v6852 = vpop.f32.mrf.mxu0
    %v6853 = vadd.f32 %v6773, %v6852
    %v6854 = vpop.f32.mrf.mxu0
    %6855 = vmatprep.mubr.f32.mxu0 %v6537
    %6856 = vmatmul.mubr.f32.gmra.mxu0 %v6528
    %v6857 = vpop.f32.mrf.mxu0
    %v6858 = vadd.f32 %v6778, %v6857
    %v6859 = vpop.f32.mrf.mxu0
    %6860 = vdwg.mxu0
    %6861 = vmatprep.subr.mxu0 0.0
    %6862 = vmatpush1.msra.mxu0 %v5969
    %6863 = vmatprep.subr.mxu0 0.0
    %6864 = vmatpush1.msra.mxu0 %v5968
    %6865 = vmatprep.subr.mxu0 0.0
    %6866 = vmatpush1.msra.mxu0 %v5967
    %6867 = vmatprep.subr.mxu0 0.0
    %6868 = vmatpush1.msra.mxu0 %v5966
    %6869 = vmatprep.subr.mxu0 0.0
    %6870 = vmatpush1.msra.mxu0 %v5965
    %6871 = vmatprep.subr.mxu0 0.0
    %6872 = vmatpush1.msra.mxu0 %v5964
    %6873 = vmatprep.subr.mxu0 0.0
    %6874 = vmatpush1.msra.mxu0 %v5963
    %6875 = vmatprep.subr.mxu0 0.0
    %6876 = vmatpush1.msra.mxu0 %v5962
    %6877 = vmatprep.subr.mxu0 0.0
    %6878 = vmatpush1.msra.mxu0 %v5961
    %6879 = vmatprep.subr.mxu0 0.0
    %6880 = vmatpush1.msra.mxu0 %v5960
    %6881 = vmatprep.subr.mxu0 0.0
    %6882 = vmatpush1.msra.mxu0 %v5959
    %6883 = vmatprep.subr.mxu0 0.0
    %6884 = vmatpush1.msra.mxu0 %v5958
    %6885 = vmatprep.subr.mxu0 0.0
    %6886 = vmatpush1.msra.mxu0 %v5957
    %6887 = vmatprep.subr.mxu0 0.0
    %6888 = vmatpush1.msra.mxu0 %v5956
    %6889 = vmatprep.subr.mxu0 0.0
    %6890 = vmatpush1.msra.mxu0 %v5955
    %6891 = vmatprep.subr.mxu0 0.0
    %6892 = vmatpush1.msra.mxu0 %v5954
    %6893 = vmatprep.subr.mxu0 0.0
    %6894 = vmatpush2.msra.mxu0 0.0
    %6895 = vmatprep.subr.mxu0 0.0
    %6896 = vmatpush2.msra.mxu0 0.0
    %6897 = vmatprep.subr.mxu0 0.0
    %6898 = vmatpush2.msra.mxu0 0.0
    %6899 = vmatprep.subr.mxu0 0.0
    %6900 = vmatpush2.msra.mxu0 0.0
    %6901 = vmatprep.subr.mxu0 0.0
    %6902 = vmatpush2.msra.mxu0 0.0
    %6903 = vmatprep.subr.mxu0 0.0
    %6904 = vmatpush2.msra.mxu0 0.0
    %6905 = vmatprep.subr.mxu0 0.0
    %6906 = vmatpush2.msra.mxu0 0.0
    %6907 = vmatprep.subr.mxu0 0.0
    %6908 = vmatpush2.msra.mxu0 0.0
    %6909 = vmatprep.subr.mxu0 0.0
    %6910 = vmatpush2.msra.mxu0 0.0
    %6911 = vmatprep.subr.mxu0 0.0
    %6912 = vmatpush2.msra.mxu0 0.0
    %6913 = vmatprep.subr.mxu0 0.0
    %6914 = vmatpush2.msra.mxu0 0.0
    %6915 = vmatprep.subr.mxu0 0.0
    %6916 = vmatpush2.msra.mxu0 0.0
    %6917 = vmatprep.subr.mxu0 0.0
    %6918 = vmatpush2.msra.mxu0 0.0
    %6919 = vmatprep.subr.mxu0 0.0
    %6920 = vmatpush2.msra.mxu0 0.0
    %6921 = vmatprep.subr.mxu0 0.0
    %6922 = vmatpush2.msra.mxu0 0.0
    %6923 = vmatprep.subr.mxu0 0.0
    %6924 = vmatpush2.msra.mxu0 0.0
    %6925 = vmatprep.mubr.f32.mxu0 0.0
    %6926 = vmatmul.mubr.f32.gmra.mxu0 %v6474
    %v6927 = vpop.f32.mrf.mxu0
    %v6928 = vadd.f32 %v6848, %v6927
    %v6929 = vpop.f32.mrf.mxu0
    %6930 = vmatprep.mubr.f32.mxu0 0.0
    %6931 = vmatmul.mubr.f32.gmra.mxu0 %v6476
    %v6932 = vpop.f32.mrf.mxu0
    %v6933 = vadd.f32 %v6853, %v6932
    %v6934 = vpop.f32.mrf.mxu0
    %6935 = vmatprep.mubr.f32.mxu0 0.0
    %6936 = vmatmul.mubr.f32.gmra.mxu0 0.0
    %v6937 = vpop.f32.mrf.mxu0
    %v6938 = vadd.f32 %v6858, %v6937
    %v6939 = vpop.f32.mrf.mxu0
    %6940 = vdwg.mxu0
    %v6941 = vadd.f32 %v6928, %v6933
    %v6942 = vsel %vm671, %v6938, 0.0
    %v6943 = vadd.f32 %v6941, %v6942
    %v6944 = vrot.slane %v6943, 4
    %v6945 = vadd.f32 %v6943, %v6944
    %v6946 = vrot.slane %v6945, 2
    %v6947 = vadd.f32 %v6945, %v6946
    %v6948 = vrot.slane %v6947, 1
    %v6949 = vadd.f32 %v6947, %v6948
    %v6950 = vadd.f32 %v6455, %v6949
    %v6951 = vmul.f32 %v6928, %v6928
    %v6952 = vmul.f32 %v6933, %v6933
    %v6953 = vmul.f32 %v6938, %v6938
    %v6954 = vadd.f32 %v6951, %v6952
    %v6955 = vsel %vm671, %v6953, 0.0
    %v6956 = vadd.f32 %v6954, %v6955
    %v6957 = vrot.slane %v6956, 4
    %v6958 = vadd.f32 %v6956, %v6957
    %v6959 = vrot.slane %v6958, 2
    %v6960 = vadd.f32 %v6958, %v6959
    %v6961 = vrot.slane %v6960, 1
    %v6962 = vadd.f32 %v6960, %v6961
    %v6963 = vadd.f32 %v6468, %v6962
    %v6964 = vmul.f32 %v6950, 0.025
    %v6965 = vmul.f32 %v6963, 0.025
    %v6966 = vmul.f32 %v6964, %v6964
    %v6967 = vsub.f32 %v6965, %v6966
    %v6968 = vmax.f32 %v6967, 0.0
    %v6969 = vadd.f32 %v6968, 1e-05
    %v6970 = vrsqrt.pop %v6969
    %v6971 = vmul.f32 %v5970, %v6970
    %v6972 = vmul.f32 %v6964, %v6971
    %v6973 = vsub.f32 %v5971, %v6972
    %v6975 = vlaneseq
    %v6976 = vshrl.u32 %v6975, 7
    %v6977 = vsub.s32 0, %v6976
    %v6978 = vrot.slane %v6971, %v6977
    %v6980 = vmul.f32 %v6433, %v6978
    %v6981 = vmul.f32 %v6438, %v6978
    %v6982 = vmul.f32 %v6443, %v6978
    %v6984 = vlaneseq
    %v6985 = vshrl.u32 %v6984, 7
    %v6986 = vsub.s32 0, %v6985
    %v6987 = vrot.slane %v6973, %v6986
    %v6989 = vadd.f32 %v6980, %v6987
    %v6990 = vadd.f32 %v6981, %v6987
    %v6991 = vadd.f32 %v6982, %v6987
    %v6992 = vmax.f32 %v6989, 0.0
    %v6993 = vmax.f32 %v6990, 0.0
    %v6994 = vmax.f32 %v6991, 0.0
    %v6995 = vmul.f32 %v6928, %v6978
    %v6996 = vmul.f32 %v6933, %v6978
    %v6997 = vmul.f32 %v6938, %v6978
    %v6998 = vadd.f32 %v6995, %v6987
    %v6999 = vadd.f32 %v6996, %v6987
    %v7000 = vadd.f32 %v6997, %v6987
    %v7001 = vmax.f32 %v6998, 0.0
    %v7002 = vmax.f32 %v6999, 0.0
    %v7003 = vmax.f32 %v7000, 0.0
    %v7004 = vld [vmem:[#allocation40] sm:$0xff]
    %v7005 = vld [vmem:[#allocation40 + $0x8] sm:$0xff]
    %v7006 = vld [vmem:[#allocation40 + $0x10] sm:$0xff]
    %v7007 = vld [vmem:[#allocation40 + $0x18] sm:$0xff]
    %v7008 = vld [vmem:[#allocation40 + $0x20] sm:$0xff]
    %v7009 = vld [vmem:[#allocation40 + $0x28] sm:$0xff]
    %v7010 = vld [vmem:[#allocation40 + $0x30] sm:$0xff]
    %v7011 = vld [vmem:[#allocation40 + $0x38] sm:$0xff]
    %v7012 = vld [vmem:[#allocation40 + $0x40] sm:$0xff]
    %v7013 = vld [vmem:[#allocation40 + $0x48] sm:$0xff]
    %v7014 = vld [vmem:[#allocation40 + $0x50] sm:$0xff]
    %v7015 = vld [vmem:[#allocation40 + $0x58] sm:$0xff]
    %v7016 = vld [vmem:[#allocation40 + $0x60] sm:$0xff]
    %v7017 = vld [vmem:[#allocation40 + $0x68] sm:$0xff]
    %v7018 = vld [vmem:[#allocation40 + $0x70] sm:$0xff]
    %v7019 = vld [vmem:[#allocation40 + $0x78] sm:$0xff]
    %v7020 = vld [vmem:[#allocation40 + $0x80] sm:$0xff]
    %v7021 = vld [vmem:[#allocation40 + $0x88] sm:$0xff]
    %v7022 = vld [vmem:[#allocation40 + $0x90] sm:$0xff]
    %v7023 = vld [vmem:[#allocation40 + $0x98] sm:$0xff]
    %v7024 = vld [vmem:[#allocation40 + $0xa0] sm:$0xff]
    %v7025 = vld [vmem:[#allocation40 + $0xa8] sm:$0xff]
    %v7026 = vld [vmem:[#allocation40 + $0xb0] sm:$0xff]
    %v7027 = vld [vmem:[#allocation40 + $0xb8] sm:$0xff]
    %v7028 = vld [vmem:[#allocation40 + $0xc0] sm:$0xff]
    %v7029 = vld [vmem:[#allocation40 + $0xc8] sm:$0xff]
    %v7030 = vld [vmem:[#allocation40 + $0xd0] sm:$0xff]
    %v7031 = vld [vmem:[#allocation40 + $0xd8] sm:$0xff]
    %v7032 = vld [vmem:[#allocation40 + $0xe0] sm:$0xff]
    %v7033 = vld [vmem:[#allocation40 + $0xe8] sm:$0xff]
    %v7034 = vld [vmem:[#allocation40 + $0xf0] sm:$0xff]
    %v7035 = vld [vmem:[#allocation40 + $0xf8] sm:$0xff]
    %v7036 = vld [vmem:[#allocation40 + $0x100] sm:$0xff]
    %v7037 = vld [vmem:[#allocation40 + $0x108] sm:$0xff]
    %v7038 = vld [vmem:[#allocation40 + $0x110] sm:$0xff]
    %v7039 = vld [vmem:[#allocation40 + $0x118] sm:$0xff]
    %v7040 = vld [vmem:[#allocation40 + $0x120] sm:$0xff]
    %v7041 = vld [vmem:[#allocation40 + $0x128] sm:$0xff]
    %v7042 = vld [vmem:[#allocation40 + $0x130] sm:$0xff]
    %v7043 = vld [vmem:[#allocation40 + $0x138] sm:$0xff]
    %v7044 = vld [vmem:[#allocation40 + $0x140] sm:$0xff]
    %v7045 = vld [vmem:[#allocation40 + $0x148] sm:$0xff]
    %v7046 = vld [vmem:[#allocation40 + $0x150] sm:$0xff]
    %v7047 = vld [vmem:[#allocation40 + $0x158] sm:$0xff]
    %v7048 = vld [vmem:[#allocation40 + $0x160] sm:$0xff]
    %v7049 = vld [vmem:[#allocation40 + $0x168] sm:$0xff]
    %v7050 = vld [vmem:[#allocation40 + $0x170] sm:$0xff]
    %v7051 = vld [vmem:[#allocation40 + $0x178] sm:$0xff]
    %v7052 = vld [vmem:[#allocation40 + $0x180] sm:$0xff]
    %v7053 = vld [vmem:[#allocation40 + $0x188] sm:$0xff]
    %v7054 = vld [vmem:[#allocation40 + $0x190] sm:$0xff]
    %v7055 = vld [vmem:[#allocation40 + $0x198] sm:$0xff]
    %v7056 = vld [vmem:[#allocation40 + $0x1a0] sm:$0xff]
    %v7057 = vld [vmem:[#allocation40 + $0x1a8] sm:$0xff]
    %v7058 = vld [vmem:[#allocation40 + $0x1b0] sm:$0xff]
    %v7059 = vld [vmem:[#allocation40 + $0x1b8] sm:$0xff]
    %v7060 = vld [vmem:[#allocation40 + $0x1c0] sm:$0xff]
    %v7061 = vld [vmem:[#allocation40 + $0x1c8] sm:$0xff]
    %v7062 = vld [vmem:[#allocation40 + $0x1d0] sm:$0xff]
    %v7063 = vld [vmem:[#allocation40 + $0x1d8] sm:$0xff]
    %v7064 = vld [vmem:[#allocation40 + $0x1e0] sm:$0xff]
    %v7065 = vld [vmem:[#allocation40 + $0x1e8] sm:$0xff]
    %v7066 = vld [vmem:[#allocation40 + $0x1f0] sm:$0xff]
    %v7067 = vld [vmem:[#allocation40 + $0x1f8] sm:$0xff]
    %v7068 = vld [vmem:[#allocation40 + $0x200] sm:$0xff]
    %v7069 = vld [vmem:[#allocation40 + $0x208] sm:$0xff]
    %v7070 = vld [vmem:[#allocation40 + $0x210] sm:$0xff]
    %v7071 = vld [vmem:[#allocation40 + $0x218] sm:$0xff]
    %v7072 = vld [vmem:[#allocation40 + $0x220] sm:$0xff]
    %v7073 = vld [vmem:[#allocation40 + $0x228] sm:$0xff]
    %v7074 = vld [vmem:[#allocation40 + $0x230] sm:$0xff]
    %v7075 = vld [vmem:[#allocation40 + $0x238] sm:$0xff]
    %v7076 = vld [vmem:[#allocation40 + $0x240] sm:$0xff]
    %v7077 = vld [vmem:[#allocation40 + $0x248] sm:$0xff]
    %v7078 = vld [vmem:[#allocation40 + $0x250] sm:$0xff]
    %v7079 = vld [vmem:[#allocation40 + $0x258] sm:$0xff]
    %v7080 = vld [vmem:[#allocation40 + $0x260] sm:$0xff]
    %v7081 = vld [vmem:[#allocation40 + $0x268] sm:$0xff]
    %v7082 = vld [vmem:[#allocation40 + $0x270] sm:$0xff]
    %v7083 = vld [vmem:[#allocation40 + $0x278] sm:$0xff]
    %v7084 = vld [vmem:[#allocation41] sm:$0x1]
    %v7085 = vld [vmem:[#allocation43] sm:$0x1]
    %v7089 = vrot.slane %v6992, 6
    %v7090 = vrot.slane %v6993, 6
    %v7091 = vsel %vm721, %v7089, %v7090
    %v7092 = vrot.slane %v6994, 6
    %v7093 = vsel %vm721, %v7090, %v7092
    %v7097 = vsel %vm721, 0.0, %v7089
    %v7098 = vsel %vm690, %v7093, 0.0
    %v7101 = vrot.slane %v7097, 1
    %v7102 = vrot.slane %v7091, 1
    %v7103 = vsel %vm682, %v7101, %v7102
    %v7104 = vrot.slane %v7098, 1
    %v7105 = vsel %vm682, %v7102, %v7104
    %v7109 = vrot.slane %v7097, 2
    %v7110 = vrot.slane %v7091, 2
    %v7111 = vsel %vm690, %v7109, %v7110
    %v7112 = vrot.slane %v7098, 2
    %v7113 = vsel %vm690, %v7110, %v7112
    %v7117 = vrot.slane %v7097, 3
    %v7118 = vrot.slane %v7091, 3
    %v7119 = vsel %vm698, %v7117, %v7118
    %v7120 = vrot.slane %v7098, 3
    %v7121 = vsel %vm698, %v7118, %v7120
    %v7125 = vrot.slane %v7097, 4
    %v7126 = vrot.slane %v7091, 4
    %v7127 = vsel %vm671, %v7125, %v7126
    %v7128 = vrot.slane %v7098, 4
    %v7129 = vsel %vm671, %v7126, %v7128
    %7133 = vmatprep.subr.mxu0 0.0
    %7134 = vmatpush1.msra.mxu0 %v7019
    %7135 = vmatprep.subr.mxu0 0.0
    %7136 = vmatpush1.msra.mxu0 %v7018
    %7137 = vmatprep.subr.mxu0 0.0
    %7138 = vmatpush1.msra.mxu0 %v7017
    %7139 = vmatprep.subr.mxu0 0.0
    %7140 = vmatpush1.msra.mxu0 %v7016
    %7141 = vmatprep.subr.mxu0 0.0
    %7142 = vmatpush1.msra.mxu0 %v7015
    %7143 = vmatprep.subr.mxu0 0.0
    %7144 = vmatpush1.msra.mxu0 %v7014
    %7145 = vmatprep.subr.mxu0 0.0
    %7146 = vmatpush1.msra.mxu0 %v7013
    %7147 = vmatprep.subr.mxu0 0.0
    %7148 = vmatpush1.msra.mxu0 %v7012
    %7149 = vmatprep.subr.mxu0 0.0
    %7150 = vmatpush1.msra.mxu0 %v7011
    %7151 = vmatprep.subr.mxu0 0.0
    %7152 = vmatpush1.msra.mxu0 %v7010
    %7153 = vmatprep.subr.mxu0 0.0
    %7154 = vmatpush1.msra.mxu0 %v7009
    %7155 = vmatprep.subr.mxu0 0.0
    %7156 = vmatpush1.msra.mxu0 %v7008
    %7157 = vmatprep.subr.mxu0 0.0
    %7158 = vmatpush1.msra.mxu0 %v7007
    %7159 = vmatprep.subr.mxu0 0.0
    %7160 = vmatpush1.msra.mxu0 %v7006
    %7161 = vmatprep.subr.mxu0 0.0
    %7162 = vmatpush1.msra.mxu0 %v7005
    %7163 = vmatprep.subr.mxu0 0.0
    %7164 = vmatpush1.msra.mxu0 %v7004
    %7165 = vmatprep.subr.mxu0 0.0
    %7166 = vmatpush2.msra.mxu0 %v7035
    %7167 = vmatprep.subr.mxu0 0.0
    %7168 = vmatpush2.msra.mxu0 %v7034
    %7169 = vmatprep.subr.mxu0 0.0
    %7170 = vmatpush2.msra.mxu0 %v7033
    %7171 = vmatprep.subr.mxu0 0.0
    %7172 = vmatpush2.msra.mxu0 %v7032
    %7173 = vmatprep.subr.mxu0 0.0
    %7174 = vmatpush2.msra.mxu0 %v7031
    %7175 = vmatprep.subr.mxu0 0.0
    %7176 = vmatpush2.msra.mxu0 %v7030
    %7177 = vmatprep.subr.mxu0 0.0
    %7178 = vmatpush2.msra.mxu0 %v7029
    %7179 = vmatprep.subr.mxu0 0.0
    %7180 = vmatpush2.msra.mxu0 %v7028
    %7181 = vmatprep.subr.mxu0 0.0
    %7182 = vmatpush2.msra.mxu0 %v7027
    %7183 = vmatprep.subr.mxu0 0.0
    %7184 = vmatpush2.msra.mxu0 %v7026
    %7185 = vmatprep.subr.mxu0 0.0
    %7186 = vmatpush2.msra.mxu0 %v7025
    %7187 = vmatprep.subr.mxu0 0.0
    %7188 = vmatpush2.msra.mxu0 %v7024
    %7189 = vmatprep.subr.mxu0 0.0
    %7190 = vmatpush2.msra.mxu0 %v7023
    %7191 = vmatprep.subr.mxu0 0.0
    %7192 = vmatpush2.msra.mxu0 %v7022
    %7193 = vmatprep.subr.mxu0 0.0
    %7194 = vmatpush2.msra.mxu0 %v7021
    %7195 = vmatprep.subr.mxu0 0.0
    %7196 = vmatpush2.msra.mxu0 %v7020
    %7197 = vmatprep.mubr.f32.mxu0 %v7103
    %7198 = vmatmul.mubr.f32.gmra.mxu0 %v7097
    %v7199 = vpop.f32.mrf.mxu0
    %v7200 = vadd.f32 0.0, %v7199
    %v7201 = vpop.f32.mrf.mxu0
    %7202 = vmatprep.mubr.f32.mxu0 %v7105
    %7203 = vmatmul.mubr.f32.gmra.mxu0 %v7091
    %v7204 = vpop.f32.mrf.mxu0
    %v7205 = vadd.f32 0.0, %v7204
    %v7206 = vpop.f32.mrf.mxu0
    %7207 = vmatprep.mubr.f32.mxu0 %v7104
    %7208 = vmatmul.mubr.f32.gmra.mxu0 %v7098
    %v7209 = vpop.f32.mrf.mxu0
    %v7210 = vadd.f32 0.0, %v7209
    %v7211 = vpop.f32.mrf.mxu0
    %7212 = vdwg.mxu0
    %7213 = vmatprep.subr.mxu0 0.0
    %7214 = vmatpush1.msra.mxu0 %v7051
    %7215 = vmatprep.subr.mxu0 0.0
    %7216 = vmatpush1.msra.mxu0 %v7050
    %7217 = vmatprep.subr.mxu0 0.0
    %7218 = vmatpush1.msra.mxu0 %v7049
    %7219 = vmatprep.subr.mxu0 0.0
    %7220 = vmatpush1.msra.mxu0 %v7048
    %7221 = vmatprep.subr.mxu0 0.0
    %7222 = vmatpush1.msra.mxu0 %v7047
    %7223 = vmatprep.subr.mxu0 0.0
    %7224 = vmatpush1.msra.mxu0 %v7046
    %7225 = vmatprep.subr.mxu0 0.0
    %7226 = vmatpush1.msra.mxu0 %v7045
    %7227 = vmatprep.subr.mxu0 0.0
    %7228 = vmatpush1.msra.mxu0 %v7044
    %7229 = vmatprep.subr.mxu0 0.0
    %7230 = vmatpush1.msra.mxu0 %v7043
    %7231 = vmatprep.subr.mxu0 0.0
    %7232 = vmatpush1.msra.mxu0 %v7042
    %7233 = vmatprep.subr.mxu0 0.0
    %7234 = vmatpush1.msra.mxu0 %v7041
    %7235 = vmatprep.subr.mxu0 0.0
    %7236 = vmatpush1.msra.mxu0 %v7040
    %7237 = vmatprep.subr.mxu0 0.0
    %7238 = vmatpush1.msra.mxu0 %v7039
    %7239 = vmatprep.subr.mxu0 0.0
    %7240 = vmatpush1.msra.mxu0 %v7038
    %7241 = vmatprep.subr.mxu0 0.0
    %7242 = vmatpush1.msra.mxu0 %v7037
    %7243 = vmatprep.subr.mxu0 0.0
    %7244 = vmatpush1.msra.mxu0 %v7036
    %7245 = vmatprep.subr.mxu0 0.0
    %7246 = vmatpush2.msra.mxu0 %v7067
    %7247 = vmatprep.subr.mxu0 0.0
    %7248 = vmatpush2.msra.mxu0 %v7066
    %7249 = vmatprep.subr.mxu0 0.0
    %7250 = vmatpush2.msra.mxu0 %v7065
    %7251 = vmatprep.subr.mxu0 0.0
    %7252 = vmatpush2.msra.mxu0 %v7064
    %7253 = vmatprep.subr.mxu0 0.0
    %7254 = vmatpush2.msra.mxu0 %v7063
    %7255 = vmatprep.subr.mxu0 0.0
    %7256 = vmatpush2.msra.mxu0 %v7062
    %7257 = vmatprep.subr.mxu0 0.0
    %7258 = vmatpush2.msra.mxu0 %v7061
    %7259 = vmatprep.subr.mxu0 0.0
    %7260 = vmatpush2.msra.mxu0 %v7060
    %7261 = vmatprep.subr.mxu0 0.0
    %7262 = vmatpush2.msra.mxu0 %v7059
    %7263 = vmatprep.subr.mxu0 0.0
    %7264 = vmatpush2.msra.mxu0 %v7058
    %7265 = vmatprep.subr.mxu0 0.0
    %7266 = vmatpush2.msra.mxu0 %v7057
    %7267 = vmatprep.subr.mxu0 0.0
    %7268 = vmatpush2.msra.mxu0 %v7056
    %7269 = vmatprep.subr.mxu0 0.0
    %7270 = vmatpush2.msra.mxu0 %v7055
    %7271 = vmatprep.subr.mxu0 0.0
    %7272 = vmatpush2.msra.mxu0 %v7054
    %7273 = vmatprep.subr.mxu0 0.0
    %7274 = vmatpush2.msra.mxu0 %v7053
    %7275 = vmatprep.subr.mxu0 0.0
    %7276 = vmatpush2.msra.mxu0 %v7052
    %7277 = vmatprep.mubr.f32.mxu0 %v7119
    %7278 = vmatmul.mubr.f32.gmra.mxu0 %v7111
    %v7279 = vpop.f32.mrf.mxu0
    %v7280 = vadd.f32 %v7200, %v7279
    %v7281 = vpop.f32.mrf.mxu0
    %7282 = vmatprep.mubr.f32.mxu0 %v7121
    %7283 = vmatmul.mubr.f32.gmra.mxu0 %v7113
    %v7284 = vpop.f32.mrf.mxu0
    %v7285 = vadd.f32 %v7205, %v7284
    %v7286 = vpop.f32.mrf.mxu0
    %7287 = vmatprep.mubr.f32.mxu0 %v7120
    %7288 = vmatmul.mubr.f32.gmra.mxu0 %v7112
    %v7289 = vpop.f32.mrf.mxu0
    %v7290 = vadd.f32 %v7210, %v7289
    %v7291 = vpop.f32.mrf.mxu0
    %7292 = vdwg.mxu0
    %7293 = vmatprep.subr.mxu0 0.0
    %7294 = vmatpush1.msra.mxu0 %v7083
    %7295 = vmatprep.subr.mxu0 0.0
    %7296 = vmatpush1.msra.mxu0 %v7082
    %7297 = vmatprep.subr.mxu0 0.0
    %7298 = vmatpush1.msra.mxu0 %v7081
    %7299 = vmatprep.subr.mxu0 0.0
    %7300 = vmatpush1.msra.mxu0 %v7080
    %7301 = vmatprep.subr.mxu0 0.0
    %7302 = vmatpush1.msra.mxu0 %v7079
    %7303 = vmatprep.subr.mxu0 0.0
    %7304 = vmatpush1.msra.mxu0 %v7078
    %7305 = vmatprep.subr.mxu0 0.0
    %7306 = vmatpush1.msra.mxu0 %v7077
    %7307 = vmatprep.subr.mxu0 0.0
    %7308 = vmatpush1.msra.mxu0 %v7076
    %7309 = vmatprep.subr.mxu0 0.0
    %7310 = vmatpush1.msra.mxu0 %v7075
    %7311 = vmatprep.subr.mxu0 0.0
    %7312 = vmatpush1.msra.mxu0 %v7074
    %7313 = vmatprep.subr.mxu0 0.0
    %7314 = vmatpush1.msra.mxu0 %v7073
    %7315 = vmatprep.subr.mxu0 0.0
    %7316 = vmatpush1.msra.mxu0 %v7072
    %7317 = vmatprep.subr.mxu0 0.0
    %7318 = vmatpush1.msra.mxu0 %v7071
    %7319 = vmatprep.subr.mxu0 0.0
    %7320 = vmatpush1.msra.mxu0 %v7070
    %7321 = vmatprep.subr.mxu0 0.0
    %7322 = vmatpush1.msra.mxu0 %v7069
    %7323 = vmatprep.subr.mxu0 0.0
    %7324 = vmatpush1.msra.mxu0 %v7068
    %7325 = vmatprep.subr.mxu0 0.0
    %7326 = vmatpush2.msra.mxu0 0.0
    %7327 = vmatprep.subr.mxu0 0.0
    %7328 = vmatpush2.msra.mxu0 0.0
    %7329 = vmatprep.subr.mxu0 0.0
    %7330 = vmatpush2.msra.mxu0 0.0
    %7331 = vmatprep.subr.mxu0 0.0
    %7332 = vmatpush2.msra.mxu0 0.0
    %7333 = vmatprep.subr.mxu0 0.0
    %7334 = vmatpush2.msra.mxu0 0.0
    %7335 = vmatprep.subr.mxu0 0.0
    %7336 = vmatpush2.msra.mxu0 0.0
    %7337 = vmatprep.subr.mxu0 0.0
    %7338 = vmatpush2.msra.mxu0 0.0
    %7339 = vmatprep.subr.mxu0 0.0
    %7340 = vmatpush2.msra.mxu0 0.0
    %7341 = vmatprep.subr.mxu0 0.0
    %7342 = vmatpush2.msra.mxu0 0.0
    %7343 = vmatprep.subr.mxu0 0.0
    %7344 = vmatpush2.msra.mxu0 0.0
    %7345 = vmatprep.subr.mxu0 0.0
    %7346 = vmatpush2.msra.mxu0 0.0
    %7347 = vmatprep.subr.mxu0 0.0
    %7348 = vmatpush2.msra.mxu0 0.0
    %7349 = vmatprep.subr.mxu0 0.0
    %7350 = vmatpush2.msra.mxu0 0.0
    %7351 = vmatprep.subr.mxu0 0.0
    %7352 = vmatpush2.msra.mxu0 0.0
    %7353 = vmatprep.subr.mxu0 0.0
    %7354 = vmatpush2.msra.mxu0 0.0
    %7355 = vmatprep.subr.mxu0 0.0
    %7356 = vmatpush2.msra.mxu0 0.0
    %7357 = vmatprep.mubr.f32.mxu0 0.0
    %7358 = vmatmul.mubr.f32.gmra.mxu0 %v7127
    %v7359 = vpop.f32.mrf.mxu0
    %v7360 = vadd.f32 %v7280, %v7359
    %v7361 = vpop.f32.mrf.mxu0
    %7362 = vmatprep.mubr.f32.mxu0 0.0
    %7363 = vmatmul.mubr.f32.gmra.mxu0 %v7129
    %v7364 = vpop.f32.mrf.mxu0
    %v7365 = vadd.f32 %v7285, %v7364
    %v7366 = vpop.f32.mrf.mxu0
    %7367 = vmatprep.mubr.f32.mxu0 0.0
    %7368 = vmatmul.mubr.f32.gmra.mxu0 %v7128
    %v7369 = vpop.f32.mrf.mxu0
    %v7370 = vadd.f32 %v7290, %v7369
    %v7371 = vpop.f32.mrf.mxu0
    %7372 = vdwg.mxu0
    %v7373 = vadd.f32 %v7360, %v7365
    %v7374 = vsel %vm671, %v7370, 0.0
    %v7375 = vadd.f32 %v7373, %v7374
    %v7376 = vrot.slane %v7375, 4
    %v7377 = vadd.f32 %v7375, %v7376
    %v7378 = vrot.slane %v7377, 2
    %v7379 = vadd.f32 %v7377, %v7378
    %v7380 = vrot.slane %v7379, 1
    %v7381 = vadd.f32 %v7379, %v7380
    %v7382 = vadd.f32 %v7381, 0.0
    %v7383 = vmul.f32 %v7360, %v7360
    %v7384 = vmul.f32 %v7365, %v7365
    %v7385 = vmul.f32 %v7370, %v7370
    %v7386 = vadd.f32 %v7383, %v7384
    %v7387 = vsel %vm671, %v7385, 0.0
    %v7388 = vadd.f32 %v7386, %v7387
    %v7389 = vrot.slane %v7388, 4
    %v7390 = vadd.f32 %v7388, %v7389
    %v7391 = vrot.slane %v7390, 2
    %v7392 = vadd.f32 %v7390, %v7391
    %v7393 = vrot.slane %v7392, 1
    %v7394 = vadd.f32 %v7392, %v7393
    %v7395 = vadd.f32 %v7394, 0.0
    %v7399 = vrot.slane %v7001, 6
    %v7400 = vrot.slane %v7002, 6
    %v7401 = vsel %vm721, %v7399, %v7400
    %v7402 = vrot.slane %v7003, 6
    %v7403 = vsel %vm721, %v7400, %v7402
    %v7407 = vsel %vm721, 0.0, %v7399
    %v7408 = vsel %vm690, %v7403, 0.0
    %v7411 = vrot.slane %v7407, 1
    %v7412 = vrot.slane %v7401, 1
    %v7413 = vsel %vm682, %v7411, %v7412
    %v7414 = vrot.slane %v7408, 1
    %v7415 = vsel %vm682, %v7412, %v7414
    %v7419 = vrot.slane %v7407, 2
    %v7420 = vrot.slane %v7401, 2
    %v7421 = vsel %vm690, %v7419, %v7420
    %v7422 = vrot.slane %v7408, 2
    %v7423 = vsel %vm690, %v7420, %v7422
    %v7427 = vrot.slane %v7407, 3
    %v7428 = vrot.slane %v7401, 3
    %v7429 = vsel %vm698, %v7427, %v7428
    %v7430 = vrot.slane %v7408, 3
    %v7431 = vsel %vm698, %v7428, %v7430
    %v7435 = vrot.slane %v7407, 4
    %v7436 = vrot.slane %v7401, 4
    %v7437 = vsel %vm671, %v7435, %v7436
    %v7438 = vrot.slane %v7408, 4
    %v7439 = vsel %vm671, %v7436, %v7438
    %7443 = vmatprep.subr.mxu0 0.0
    %7444 = vmatpush1.msra.mxu0 %v7019
    %7445 = vmatprep.subr.mxu0 0.0
    %7446 = vmatpush1.msra.mxu0 %v7018
    %7447 = vmatprep.subr.mxu0 0.0
    %7448 = vmatpush1.msra.mxu0 %v7017
    %7449 = vmatprep.subr.mxu0 0.0
    %7450 = vmatpush1.msra.mxu0 %v7016
    %7451 = vmatprep.subr.mxu0 0.0
    %7452 = vmatpush1.msra.mxu0 %v7015
    %7453 = vmatprep.subr.mxu0 0.0
    %7454 = vmatpush1.msra.mxu0 %v7014
    %7455 = vmatprep.subr.mxu0 0.0
    %7456 = vmatpush1.msra.mxu0 %v7013
    %7457 = vmatprep.subr.mxu0 0.0
    %7458 = vmatpush1.msra.mxu0 %v7012
    %7459 = vmatprep.subr.mxu0 0.0
    %7460 = vmatpush1.msra.mxu0 %v7011
    %7461 = vmatprep.subr.mxu0 0.0
    %7462 = vmatpush1.msra.mxu0 %v7010
    %7463 = vmatprep.subr.mxu0 0.0
    %7464 = vmatpush1.msra.mxu0 %v7009
    %7465 = vmatprep.subr.mxu0 0.0
    %7466 = vmatpush1.msra.mxu0 %v7008
    %7467 = vmatprep.subr.mxu0 0.0
    %7468 = vmatpush1.msra.mxu0 %v7007
    %7469 = vmatprep.subr.mxu0 0.0
    %7470 = vmatpush1.msra.mxu0 %v7006
    %7471 = vmatprep.subr.mxu0 0.0
    %7472 = vmatpush1.msra.mxu0 %v7005
    %7473 = vmatprep.subr.mxu0 0.0
    %7474 = vmatpush1.msra.mxu0 %v7004
    %7475 = vmatprep.subr.mxu0 0.0
    %7476 = vmatpush2.msra.mxu0 %v7035
    %7477 = vmatprep.subr.mxu0 0.0
    %7478 = vmatpush2.msra.mxu0 %v7034
    %7479 = vmatprep.subr.mxu0 0.0
    %7480 = vmatpush2.msra.mxu0 %v7033
    %7481 = vmatprep.subr.mxu0 0.0
    %7482 = vmatpush2.msra.mxu0 %v7032
    %7483 = vmatprep.subr.mxu0 0.0
    %7484 = vmatpush2.msra.mxu0 %v7031
    %7485 = vmatprep.subr.mxu0 0.0
    %7486 = vmatpush2.msra.mxu0 %v7030
    %7487 = vmatprep.subr.mxu0 0.0
    %7488 = vmatpush2.msra.mxu0 %v7029
    %7489 = vmatprep.subr.mxu0 0.0
    %7490 = vmatpush2.msra.mxu0 %v7028
    %7491 = vmatprep.subr.mxu0 0.0
    %7492 = vmatpush2.msra.mxu0 %v7027
    %7493 = vmatprep.subr.mxu0 0.0
    %7494 = vmatpush2.msra.mxu0 %v7026
    %7495 = vmatprep.subr.mxu0 0.0
    %7496 = vmatpush2.msra.mxu0 %v7025
    %7497 = vmatprep.subr.mxu0 0.0
    %7498 = vmatpush2.msra.mxu0 %v7024
    %7499 = vmatprep.subr.mxu0 0.0
    %7500 = vmatpush2.msra.mxu0 %v7023
    %7501 = vmatprep.subr.mxu0 0.0
    %7502 = vmatpush2.msra.mxu0 %v7022
    %7503 = vmatprep.subr.mxu0 0.0
    %7504 = vmatpush2.msra.mxu0 %v7021
    %7505 = vmatprep.subr.mxu0 0.0
    %7506 = vmatpush2.msra.mxu0 %v7020
    %7507 = vmatprep.mubr.f32.mxu0 %v7413
    %7508 = vmatmul.mubr.f32.gmra.mxu0 %v7407
    %v7509 = vpop.f32.mrf.mxu0
    %v7510 = vadd.f32 0.0, %v7509
    %v7511 = vpop.f32.mrf.mxu0
    %7512 = vmatprep.mubr.f32.mxu0 %v7415
    %7513 = vmatmul.mubr.f32.gmra.mxu0 %v7401
    %v7514 = vpop.f32.mrf.mxu0
    %v7515 = vadd.f32 0.0, %v7514
    %v7516 = vpop.f32.mrf.mxu0
    %7517 = vmatprep.mubr.f32.mxu0 %v7414
    %7518 = vmatmul.mubr.f32.gmra.mxu0 %v7408
    %v7519 = vpop.f32.mrf.mxu0
    %v7520 = vadd.f32 0.0, %v7519
    %v7521 = vpop.f32.mrf.mxu0
    %7522 = vdwg.mxu0
    %7523 = vmatprep.subr.mxu0 0.0
    %7524 = vmatpush1.msra.mxu0 %v7051
    %7525 = vmatprep.subr.mxu0 0.0
    %7526 = vmatpush1.msra.mxu0 %v7050
    %7527 = vmatprep.subr.mxu0 0.0
    %7528 = vmatpush1.msra.mxu0 %v7049
    %7529 = vmatprep.subr.mxu0 0.0
    %7530 = vmatpush1.msra.mxu0 %v7048
    %7531 = vmatprep.subr.mxu0 0.0
    %7532 = vmatpush1.msra.mxu0 %v7047
    %7533 = vmatprep.subr.mxu0 0.0
    %7534 = vmatpush1.msra.mxu0 %v7046
    %7535 = vmatprep.subr.mxu0 0.0
    %7536 = vmatpush1.msra.mxu0 %v7045
    %7537 = vmatprep.subr.mxu0 0.0
    %7538 = vmatpush1.msra.mxu0 %v7044
    %7539 = vmatprep.subr.mxu0 0.0
    %7540 = vmatpush1.msra.mxu0 %v7043
    %7541 = vmatprep.subr.mxu0 0.0
    %7542 = vmatpush1.msra.mxu0 %v7042
    %7543 = vmatprep.subr.mxu0 0.0
    %7544 = vmatpush1.msra.mxu0 %v7041
    %7545 = vmatprep.subr.mxu0 0.0
    %7546 = vmatpush1.msra.mxu0 %v7040
    %7547 = vmatprep.subr.mxu0 0.0
    %7548 = vmatpush1.msra.mxu0 %v7039
    %7549 = vmatprep.subr.mxu0 0.0
    %7550 = vmatpush1.msra.mxu0 %v7038
    %7551 = vmatprep.subr.mxu0 0.0
    %7552 = vmatpush1.msra.mxu0 %v7037
    %7553 = vmatprep.subr.mxu0 0.0
    %7554 = vmatpush1.msra.mxu0 %v7036
    %7555 = vmatprep.subr.mxu0 0.0
    %7556 = vmatpush2.msra.mxu0 %v7067
    %7557 = vmatprep.subr.mxu0 0.0
    %7558 = vmatpush2.msra.mxu0 %v7066
    %7559 = vmatprep.subr.mxu0 0.0
    %7560 = vmatpush2.msra.mxu0 %v7065
    %7561 = vmatprep.subr.mxu0 0.0
    %7562 = vmatpush2.msra.mxu0 %v7064
    %7563 = vmatprep.subr.mxu0 0.0
    %7564 = vmatpush2.msra.mxu0 %v7063
    %7565 = vmatprep.subr.mxu0 0.0
    %7566 = vmatpush2.msra.mxu0 %v7062
    %7567 = vmatprep.subr.mxu0 0.0
    %7568 = vmatpush2.msra.mxu0 %v7061
    %7569 = vmatprep.subr.mxu0 0.0
    %7570 = vmatpush2.msra.mxu0 %v7060
    %7571 = vmatprep.subr.mxu0 0.0
    %7572 = vmatpush2.msra.mxu0 %v7059
    %7573 = vmatprep.subr.mxu0 0.0
    %7574 = vmatpush2.msra.mxu0 %v7058
    %7575 = vmatprep.subr.mxu0 0.0
    %7576 = vmatpush2.msra.mxu0 %v7057
    %7577 = vmatprep.subr.mxu0 0.0
    %7578 = vmatpush2.msra.mxu0 %v7056
    %7579 = vmatprep.subr.mxu0 0.0
    %7580 = vmatpush2.msra.mxu0 %v7055
    %7581 = vmatprep.subr.mxu0 0.0
    %7582 = vmatpush2.msra.mxu0 %v7054
    %7583 = vmatprep.subr.mxu0 0.0
    %7584 = vmatpush2.msra.mxu0 %v7053
    %7585 = vmatprep.subr.mxu0 0.0
    %7586 = vmatpush2.msra.mxu0 %v7052
    %7587 = vmatprep.mubr.f32.mxu0 %v7429
    %7588 = vmatmul.mubr.f32.gmra.mxu0 %v7421
    %v7589 = vpop.f32.mrf.mxu0
    %v7590 = vadd.f32 %v7510, %v7589
    %v7591 = vpop.f32.mrf.mxu0
    %7592 = vmatprep.mubr.f32.mxu0 %v7431
    %7593 = vmatmul.mubr.f32.gmra.mxu0 %v7423
    %v7594 = vpop.f32.mrf.mxu0
    %v7595 = vadd.f32 %v7515, %v7594
    %v7596 = vpop.f32.mrf.mxu0
    %7597 = vmatprep.mubr.f32.mxu0 %v7430
    %7598 = vmatmul.mubr.f32.gmra.mxu0 %v7422
    %v7599 = vpop.f32.mrf.mxu0
    %v7600 = vadd.f32 %v7520, %v7599
    %v7601 = vpop.f32.mrf.mxu0
    %7602 = vdwg.mxu0
    %7603 = vmatprep.subr.mxu0 0.0
    %7604 = vmatpush1.msra.mxu0 %v7083
    %7605 = vmatprep.subr.mxu0 0.0
    %7606 = vmatpush1.msra.mxu0 %v7082
    %7607 = vmatprep.subr.mxu0 0.0
    %7608 = vmatpush1.msra.mxu0 %v7081
    %7609 = vmatprep.subr.mxu0 0.0
    %7610 = vmatpush1.msra.mxu0 %v7080
    %7611 = vmatprep.subr.mxu0 0.0
    %7612 = vmatpush1.msra.mxu0 %v7079
    %7613 = vmatprep.subr.mxu0 0.0
    %7614 = vmatpush1.msra.mxu0 %v7078
    %7615 = vmatprep.subr.mxu0 0.0
    %7616 = vmatpush1.msra.mxu0 %v7077
    %7617 = vmatprep.subr.mxu0 0.0
    %7618 = vmatpush1.msra.mxu0 %v7076
    %7619 = vmatprep.subr.mxu0 0.0
    %7620 = vmatpush1.msra.mxu0 %v7075
    %7621 = vmatprep.subr.mxu0 0.0
    %7622 = vmatpush1.msra.mxu0 %v7074
    %7623 = vmatprep.subr.mxu0 0.0
    %7624 = vmatpush1.msra.mxu0 %v7073
    %7625 = vmatprep.subr.mxu0 0.0
    %7626 = vmatpush1.msra.mxu0 %v7072
    %7627 = vmatprep.subr.mxu0 0.0
    %7628 = vmatpush1.msra.mxu0 %v7071
    %7629 = vmatprep.subr.mxu0 0.0
    %7630 = vmatpush1.msra.mxu0 %v7070
    %7631 = vmatprep.subr.mxu0 0.0
    %7632 = vmatpush1.msra.mxu0 %v7069
    %7633 = vmatprep.subr.mxu0 0.0
    %7634 = vmatpush1.msra.mxu0 %v7068
    %7635 = vmatprep.subr.mxu0 0.0
    %7636 = vmatpush2.msra.mxu0 0.0
    %7637 = vmatprep.subr.mxu0 0.0
    %7638 = vmatpush2.msra.mxu0 0.0
    %7639 = vmatprep.subr.mxu0 0.0
    %7640 = vmatpush2.msra.mxu0 0.0
    %7641 = vmatprep.subr.mxu0 0.0
    %7642 = vmatpush2.msra.mxu0 0.0
    %7643 = vmatprep.subr.mxu0 0.0
    %7644 = vmatpush2.msra.mxu0 0.0
    %7645 = vmatprep.subr.mxu0 0.0
    %7646 = vmatpush2.msra.mxu0 0.0
    %7647 = vmatprep.subr.mxu0 0.0
    %7648 = vmatpush2.msra.mxu0 0.0
    %7649 = vmatprep.subr.mxu0 0.0
    %7650 = vmatpush2.msra.mxu0 0.0
    %7651 = vmatprep.subr.mxu0 0.0
    %7652 = vmatpush2.msra.mxu0 0.0
    %7653 = vmatprep.subr.mxu0 0.0
    %7654 = vmatpush2.msra.mxu0 0.0
    %7655 = vmatprep.subr.mxu0 0.0
    %7656 = vmatpush2.msra.mxu0 0.0
    %7657 = vmatprep.subr.mxu0 0.0
    %7658 = vmatpush2.msra.mxu0 0.0
    %7659 = vmatprep.subr.mxu0 0.0
    %7660 = vmatpush2.msra.mxu0 0.0
    %7661 = vmatprep.subr.mxu0 0.0
    %7662 = vmatpush2.msra.mxu0 0.0
    %7663 = vmatprep.subr.mxu0 0.0
    %7664 = vmatpush2.msra.mxu0 0.0
    %7665 = vmatprep.subr.mxu0 0.0
    %7666 = vmatpush2.msra.mxu0 0.0
    %7667 = vmatprep.mubr.f32.mxu0 0.0
    %7668 = vmatmul.mubr.f32.gmra.mxu0 %v7437
    %v7669 = vpop.f32.mrf.mxu0
    %v7670 = vadd.f32 %v7590, %v7669
    %v7671 = vpop.f32.mrf.mxu0
    %7672 = vmatprep.mubr.f32.mxu0 0.0
    %7673 = vmatmul.mubr.f32.gmra.mxu0 %v7439
    %v7674 = vpop.f32.mrf.mxu0
    %v7675 = vadd.f32 %v7595, %v7674
    %v7676 = vpop.f32.mrf.mxu0
    %7677 = vmatprep.mubr.f32.mxu0 0.0
    %7678 = vmatmul.mubr.f32.gmra.mxu0 %v7438
    %v7679 = vpop.f32.mrf.mxu0
    %v7680 = vadd.f32 %v7600, %v7679
    %v7681 = vpop.f32.mrf.mxu0
    %7682 = vdwg.mxu0
    %v7683 = vadd.f32 %v7670, %v7675
    %v7684 = vsel %vm671, %v7680, 0.0
    %v7685 = vadd.f32 %v7683, %v7684
    %v7686 = vrot.slane %v7685, 4
    %v7687 = vadd.f32 %v7685, %v7686
    %v7688 = vrot.slane %v7687, 2
    %v7689 = vadd.f32 %v7687, %v7688
    %v7690 = vrot.slane %v7689, 1
    %v7691 = vadd.f32 %v7689, %v7690
    %v7692 = vadd.f32 %v7382, %v7691
    %v7693 = vmul.f32 %v7670, %v7670
    %v7694 = vmul.f32 %v7675, %v7675
    %v7695 = vmul.f32 %v7680, %v7680
    %v7696 = vadd.f32 %v7693, %v7694
    %v7697 = vsel %vm671, %v7695, 0.0
    %v7698 = vadd.f32 %v7696, %v7697
    %v7699 = vrot.slane %v7698, 4
    %v7700 = vadd.f32 %v7698, %v7699
    %v7701 = vrot.slane %v7700, 2
    %v7702 = vadd.f32 %v7700, %v7701
    %v7703 = vrot.slane %v7702, 1
    %v7704 = vadd.f32 %v7702, %v7703
    %v7705 = vadd.f32 %v7395, %v7704
    %v7706 = vmul.f32 %v7692, 0.025
    %v7707 = vmul.f32 %v7705, 0.025
    %v7708 = vmul.f32 %v7706, %v7706
    %v7709 = vsub.f32 %v7707, %v7708
    %v7710 = vmax.f32 %v7709, 0.0
    %v7711 = vadd.f32 %v7710, 1e-05
    %v7712 = vrsqrt.pop %v7711
    %v7713 = vmul.f32 %v7084, %v7712
    %v7714 = vmul.f32 %v7706, %v7713
    %v7715 = vsub.f32 %v7085, %v7714
    %v7717 = vlaneseq
    %v7718 = vshrl.u32 %v7717, 7
    %v7719 = vsub.s32 0, %v7718
    %v7720 = vrot.slane %v7713, %v7719
    %v7722 = vmul.f32 %v7360, %v7720
    %v7723 = vmul.f32 %v7365, %v7720
    %v7724 = vmul.f32 %v7370, %v7720
    %v7726 = vlaneseq
    %v7727 = vshrl.u32 %v7726, 7
    %v7728 = vsub.s32 0, %v7727
    %v7729 = vrot.slane %v7715, %v7728
    %v7731 = vadd.f32 %v7722, %v7729
    %v7732 = vadd.f32 %v7723, %v7729
    %v7733 = vadd.f32 %v7724, %v7729
    %v7734 = vmax.f32 %v7731, 0.0
    %v7735 = vmax.f32 %v7732, 0.0
    %v7736 = vmax.f32 %v7733, 0.0
    %v7737 = vmul.f32 %v7670, %v7720
    %v7738 = vmul.f32 %v7675, %v7720
    %v7739 = vmul.f32 %v7680, %v7720
    %v7740 = vadd.f32 %v7737, %v7729
    %v7741 = vadd.f32 %v7738, %v7729
    %v7742 = vadd.f32 %v7739, %v7729
    %v7743 = vmax.f32 %v7740, 0.0
    %v7744 = vmax.f32 %v7741, 0.0
    %v7745 = vmax.f32 %v7742, 0.0
    %v7746 = vld [vmem:[%s63] sm:$0xff]
    %v7747 = vld [vmem:[%s63 + $0x8] sm:$0xff]
    %v7748 = vld [vmem:[%s63 + $0x10] sm:$0xff]
    %v7749 = vld [vmem:[%s63 + $0x18] sm:$0xff]
    %v7750 = vld [vmem:[%s63 + $0x20] sm:$0xff]
    %v7751 = vld [vmem:[%s63 + $0x28] sm:$0xff]
    %v7752 = vld [vmem:[%s63 + $0x30] sm:$0xff]
    %v7753 = vld [vmem:[%s63 + $0x38] sm:$0xff]
    %v7754 = vld [vmem:[%s63 + $0x40] sm:$0xff]
    %v7755 = vld [vmem:[%s63 + $0x48] sm:$0xff]
    %v7756 = vld [vmem:[%s63 + $0x50] sm:$0xff]
    %v7757 = vld [vmem:[%s63 + $0x58] sm:$0xff]
    %v7758 = vld [vmem:[%s63 + $0x60] sm:$0xff]
    %v7759 = vld [vmem:[%s63 + $0x68] sm:$0xff]
    %v7760 = vld [vmem:[%s63 + $0x70] sm:$0xff]
    %v7761 = vld [vmem:[%s63 + $0x78] sm:$0xff]
    %v7762 = vld [vmem:[%s63 + $0x80] sm:$0xff]
    %v7763 = vld [vmem:[%s63 + $0x88] sm:$0xff]
    %v7764 = vld [vmem:[%s63 + $0x90] sm:$0xff]
    %v7765 = vld [vmem:[%s63 + $0x98] sm:$0xff]
    %v7766 = vld [vmem:[%s63 + $0xa0] sm:$0xff]
    %v7767 = vld [vmem:[%s63 + $0xa8] sm:$0xff]
    %v7768 = vld [vmem:[%s63 + $0xb0] sm:$0xff]
    %v7769 = vld [vmem:[%s63 + $0xb8] sm:$0xff]
    %v7770 = vld [vmem:[%s63 + $0xc0] sm:$0xff]
    %v7771 = vld [vmem:[%s63 + $0xc8] sm:$0xff]
    %v7772 = vld [vmem:[%s63 + $0xd0] sm:$0xff]
    %v7773 = vld [vmem:[%s63 + $0xd8] sm:$0xff]
    %v7774 = vld [vmem:[%s63 + $0xe0] sm:$0xff]
    %v7775 = vld [vmem:[%s63 + $0xe8] sm:$0xff]
    %v7776 = vld [vmem:[%s63 + $0xf0] sm:$0xff]
    %v7777 = vld [vmem:[%s63 + $0xf8] sm:$0xff]
    %v7778 = vld [vmem:[%s63 + $0x100] sm:$0xff]
    %v7779 = vld [vmem:[%s63 + $0x108] sm:$0xff]
    %v7780 = vld [vmem:[%s63 + $0x110] sm:$0xff]
    %v7781 = vld [vmem:[%s63 + $0x118] sm:$0xff]
    %v7782 = vld [vmem:[%s63 + $0x120] sm:$0xff]
    %v7783 = vld [vmem:[%s63 + $0x128] sm:$0xff]
    %v7784 = vld [vmem:[%s63 + $0x130] sm:$0xff]
    %v7785 = vld [vmem:[%s63 + $0x138] sm:$0xff]
    %v7786 = vld [vmem:[%s63 + $0x140] sm:$0xff]
    %v7787 = vld [vmem:[%s63 + $0x148] sm:$0xff]
    %v7788 = vld [vmem:[%s63 + $0x150] sm:$0xff]
    %v7789 = vld [vmem:[%s63 + $0x158] sm:$0xff]
    %v7790 = vld [vmem:[%s63 + $0x160] sm:$0xff]
    %v7791 = vld [vmem:[%s63 + $0x168] sm:$0xff]
    %v7792 = vld [vmem:[%s63 + $0x170] sm:$0xff]
    %v7793 = vld [vmem:[%s63 + $0x178] sm:$0xff]
    %v7794 = vld [vmem:[#allocation44] sm:$0x1]
    %v7795 = vld [vmem:[%s67] sm:$0x1]
    %v7799 = vrot.slane %v7734, 6
    %v7800 = vrot.slane %v7735, 6
    %v7801 = vsel %vm721, %v7799, %v7800
    %v7802 = vrot.slane %v7736, 6
    %v7803 = vsel %vm721, %v7800, %v7802
    %v7807 = vsel %vm721, 0.0, %v7799
    %v7808 = vsel %vm690, %v7803, 0.0
    %v7811 = vrot.slane %v7807, 1
    %v7812 = vrot.slane %v7801, 1
    %v7813 = vsel %vm682, %v7811, %v7812
    %v7814 = vrot.slane %v7808, 1
    %v7815 = vsel %vm682, %v7812, %v7814
    %v7819 = vrot.slane %v7807, 2
    %v7820 = vrot.slane %v7801, 2
    %v7821 = vsel %vm690, %v7819, %v7820
    %v7822 = vrot.slane %v7808, 2
    %v7823 = vsel %vm690, %v7820, %v7822
    %7827 = vmatprep.subr.mxu0 0.0
    %7828 = vmatpush1.msra.mxu0 %v7761
    %7829 = vmatprep.subr.mxu0 0.0
    %7830 = vmatpush1.msra.mxu0 %v7760
    %7831 = vmatprep.subr.mxu0 0.0
    %7832 = vmatpush1.msra.mxu0 %v7759
    %7833 = vmatprep.subr.mxu0 0.0
    %7834 = vmatpush1.msra.mxu0 %v7758
    %7835 = vmatprep.subr.mxu0 0.0
    %7836 = vmatpush1.msra.mxu0 %v7757
    %7837 = vmatprep.subr.mxu0 0.0
    %7838 = vmatpush1.msra.mxu0 %v7756
    %7839 = vmatprep.subr.mxu0 0.0
    %7840 = vmatpush1.msra.mxu0 %v7755
    %7841 = vmatprep.subr.mxu0 0.0
    %7842 = vmatpush1.msra.mxu0 %v7754
    %7843 = vmatprep.subr.mxu0 0.0
    %7844 = vmatpush1.msra.mxu0 %v7753
    %7845 = vmatprep.subr.mxu0 0.0
    %7846 = vmatpush1.msra.mxu0 %v7752
    %7847 = vmatprep.subr.mxu0 0.0
    %7848 = vmatpush1.msra.mxu0 %v7751
    %7849 = vmatprep.subr.mxu0 0.0
    %7850 = vmatpush1.msra.mxu0 %v7750
    %7851 = vmatprep.subr.mxu0 0.0
    %7852 = vmatpush1.msra.mxu0 %v7749
    %7853 = vmatprep.subr.mxu0 0.0
    %7854 = vmatpush1.msra.mxu0 %v7748
    %7855 = vmatprep.subr.mxu0 0.0
    %7856 = vmatpush1.msra.mxu0 %v7747
    %7857 = vmatprep.subr.mxu0 0.0
    %7858 = vmatpush1.msra.mxu0 %v7746
    %7859 = vmatprep.subr.mxu0 0.0
    %7860 = vmatpush2.msra.mxu0 %v7777
    %7861 = vmatprep.subr.mxu0 0.0
    %7862 = vmatpush2.msra.mxu0 %v7776
    %7863 = vmatprep.subr.mxu0 0.0
    %7864 = vmatpush2.msra.mxu0 %v7775
    %7865 = vmatprep.subr.mxu0 0.0
    %7866 = vmatpush2.msra.mxu0 %v7774
    %7867 = vmatprep.subr.mxu0 0.0
    %7868 = vmatpush2.msra.mxu0 %v7773
    %7869 = vmatprep.subr.mxu0 0.0
    %7870 = vmatpush2.msra.mxu0 %v7772
    %7871 = vmatprep.subr.mxu0 0.0
    %7872 = vmatpush2.msra.mxu0 %v7771
    %7873 = vmatprep.subr.mxu0 0.0
    %7874 = vmatpush2.msra.mxu0 %v7770
    %7875 = vmatprep.subr.mxu0 0.0
    %7876 = vmatpush2.msra.mxu0 %v7769
    %7877 = vmatprep.subr.mxu0 0.0
    %7878 = vmatpush2.msra.mxu0 %v7768
    %7879 = vmatprep.subr.mxu0 0.0
    %7880 = vmatpush2.msra.mxu0 %v7767
    %7881 = vmatprep.subr.mxu0 0.0
    %7882 = vmatpush2.msra.mxu0 %v7766
    %7883 = vmatprep.subr.mxu0 0.0
    %7884 = vmatpush2.msra.mxu0 %v7765
    %7885 = vmatprep.subr.mxu0 0.0
    %7886 = vmatpush2.msra.mxu0 %v7764
    %7887 = vmatprep.subr.mxu0 0.0
    %7888 = vmatpush2.msra.mxu0 %v7763
    %7889 = vmatprep.subr.mxu0 0.0
    %7890 = vmatpush2.msra.mxu0 %v7762
    %7891 = vmatprep.mubr.f32.mxu0 %v7813
    %7892 = vmatmul.mubr.f32.gmra.mxu0 %v7807
    %v7893 = vpop.f32.mrf.mxu0
    %v7894 = vadd.f32 0.0, %v7893
    %v7895 = vpop.f32.mrf.mxu0
    %7896 = vmatprep.mubr.f32.mxu0 %v7815
    %7897 = vmatmul.mubr.f32.gmra.mxu0 %v7801
    %v7898 = vpop.f32.mrf.mxu0
    %v7899 = vadd.f32 0.0, %v7898
    %v7900 = vpop.f32.mrf.mxu0
    %7901 = vmatprep.mubr.f32.mxu0 %v7814
    %7902 = vmatmul.mubr.f32.gmra.mxu0 %v7808
    %v7903 = vpop.f32.mrf.mxu0
    %v7904 = vadd.f32 0.0, %v7903
    %v7905 = vpop.f32.mrf.mxu0
    %7906 = vdwg.mxu0
    %7907 = vmatprep.subr.mxu0 0.0
    %7908 = vmatpush1.msra.mxu0 %v7793
    %7909 = vmatprep.subr.mxu0 0.0
    %7910 = vmatpush1.msra.mxu0 %v7792
    %7911 = vmatprep.subr.mxu0 0.0
    %7912 = vmatpush1.msra.mxu0 %v7791
    %7913 = vmatprep.subr.mxu0 0.0
    %7914 = vmatpush1.msra.mxu0 %v7790
    %7915 = vmatprep.subr.mxu0 0.0
    %7916 = vmatpush1.msra.mxu0 %v7789
    %7917 = vmatprep.subr.mxu0 0.0
    %7918 = vmatpush1.msra.mxu0 %v7788
    %7919 = vmatprep.subr.mxu0 0.0
    %7920 = vmatpush1.msra.mxu0 %v7787
    %7921 = vmatprep.subr.mxu0 0.0
    %7922 = vmatpush1.msra.mxu0 %v7786
    %7923 = vmatprep.subr.mxu0 0.0
    %7924 = vmatpush1.msra.mxu0 %v7785
    %7925 = vmatprep.subr.mxu0 0.0
    %7926 = vmatpush1.msra.mxu0 %v7784
    %7927 = vmatprep.subr.mxu0 0.0
    %7928 = vmatpush1.msra.mxu0 %v7783
    %7929 = vmatprep.subr.mxu0 0.0
    %7930 = vmatpush1.msra.mxu0 %v7782
    %7931 = vmatprep.subr.mxu0 0.0
    %7932 = vmatpush1.msra.mxu0 %v7781
    %7933 = vmatprep.subr.mxu0 0.0
    %7934 = vmatpush1.msra.mxu0 %v7780
    %7935 = vmatprep.subr.mxu0 0.0
    %7936 = vmatpush1.msra.mxu0 %v7779
    %7937 = vmatprep.subr.mxu0 0.0
    %7938 = vmatpush1.msra.mxu0 %v7778
    %7939 = vmatprep.subr.mxu0 0.0
    %7940 = vmatpush2.msra.mxu0 0.0
    %7941 = vmatprep.subr.mxu0 0.0
    %7942 = vmatpush2.msra.mxu0 0.0
    %7943 = vmatprep.subr.mxu0 0.0
    %7944 = vmatpush2.msra.mxu0 0.0
    %7945 = vmatprep.subr.mxu0 0.0
    %7946 = vmatpush2.msra.mxu0 0.0
    %7947 = vmatprep.subr.mxu0 0.0
    %7948 = vmatpush2.msra.mxu0 0.0
    %7949 = vmatprep.subr.mxu0 0.0
    %7950 = vmatpush2.msra.mxu0 0.0
    %7951 = vmatprep.subr.mxu0 0.0
    %7952 = vmatpush2.msra.mxu0 0.0
    %7953 = vmatprep.subr.mxu0 0.0
    %7954 = vmatpush2.msra.mxu0 0.0
    %7955 = vmatprep.subr.mxu0 0.0
    %7956 = vmatpush2.msra.mxu0 0.0
    %7957 = vmatprep.subr.mxu0 0.0
    %7958 = vmatpush2.msra.mxu0 0.0
    %7959 = vmatprep.subr.mxu0 0.0
    %7960 = vmatpush2.msra.mxu0 0.0
    %7961 = vmatprep.subr.mxu0 0.0
    %7962 = vmatpush2.msra.mxu0 0.0
    %7963 = vmatprep.subr.mxu0 0.0
    %7964 = vmatpush2.msra.mxu0 0.0
    %7965 = vmatprep.subr.mxu0 0.0
    %7966 = vmatpush2.msra.mxu0 0.0
    %7967 = vmatprep.subr.mxu0 0.0
    %7968 = vmatpush2.msra.mxu0 0.0
    %7969 = vmatprep.subr.mxu0 0.0
    %7970 = vmatpush2.msra.mxu0 0.0
    %7971 = vmatprep.mubr.f32.mxu0 0.0
    %7972 = vmatmul.mubr.f32.gmra.mxu0 %v7821
    %v7973 = vpop.f32.mrf.mxu0
    %v7974 = vadd.f32 %v7894, %v7973
    %v7975 = vpop.f32.mrf.mxu0
    %7976 = vmatprep.mubr.f32.mxu0 0.0
    %7977 = vmatmul.mubr.f32.gmra.mxu0 %v7823
    %v7978 = vpop.f32.mrf.mxu0
    %v7979 = vadd.f32 %v7899, %v7978
    %v7980 = vpop.f32.mrf.mxu0
    %7981 = vmatprep.mubr.f32.mxu0 0.0
    %7982 = vmatmul.mubr.f32.gmra.mxu0 %v7822
    %v7983 = vpop.f32.mrf.mxu0
    %v7984 = vadd.f32 %v7904, %v7983
    %v7985 = vpop.f32.mrf.mxu0
    %7986 = vdwg.mxu0
    %v7987 = vadd.f32 %v7974, %v7979
    %v7988 = vsel %vm690, %v7984, 0.0
    %v7989 = vadd.f32 %v7987, %v7988
    %v7990 = vrot.slane %v7989, 4
    %v7991 = vadd.f32 %v7989, %v7990
    %v7992 = vrot.slane %v7991, 2
    %v7993 = vadd.f32 %v7991, %v7992
    %v7994 = vrot.slane %v7993, 1
    %v7995 = vadd.f32 %v7993, %v7994
    %v7996 = vadd.f32 %v7995, 0.0
    %v7997 = vmul.f32 %v7974, %v7974
    %v7998 = vmul.f32 %v7979, %v7979
    %v7999 = vmul.f32 %v7984, %v7984
    %v8000 = vadd.f32 %v7997, %v7998
    %v8001 = vsel %vm690, %v7999, 0.0
    %v8002 = vadd.f32 %v8000, %v8001
    %v8003 = vrot.slane %v8002, 4
    %v8004 = vadd.f32 %v8002, %v8003
    %v8005 = vrot.slane %v8004, 2
    %v8006 = vadd.f32 %v8004, %v8005
    %v8007 = vrot.slane %v8006, 1
    %v8008 = vadd.f32 %v8006, %v8007
    %v8009 = vadd.f32 %v8008, 0.0
    %v8013 = vrot.slane %v7743, 6
    %v8014 = vrot.slane %v7744, 6
    %v8015 = vsel %vm721, %v8013, %v8014
    %v8016 = vrot.slane %v7745, 6
    %v8017 = vsel %vm721, %v8014, %v8016
    %v8021 = vsel %vm721, 0.0, %v8013
    %v8022 = vsel %vm690, %v8017, 0.0
    %v8025 = vrot.slane %v8021, 1
    %v8026 = vrot.slane %v8015, 1
    %v8027 = vsel %vm682, %v8025, %v8026
    %v8028 = vrot.slane %v8022, 1
    %v8029 = vsel %vm682, %v8026, %v8028
    %v8033 = vrot.slane %v8021, 2
    %v8034 = vrot.slane %v8015, 2
    %v8035 = vsel %vm690, %v8033, %v8034
    %v8036 = vrot.slane %v8022, 2
    %v8037 = vsel %vm690, %v8034, %v8036
    %8041 = vmatprep.subr.mxu0 0.0
    %8042 = vmatpush1.msra.mxu0 %v7761
    %8043 = vmatprep.subr.mxu0 0.0
    %8044 = vmatpush1.msra.mxu0 %v7760
    %8045 = vmatprep.subr.mxu0 0.0
    %8046 = vmatpush1.msra.mxu0 %v7759
    %8047 = vmatprep.subr.mxu0 0.0
    %8048 = vmatpush1.msra.mxu0 %v7758
    %8049 = vmatprep.subr.mxu0 0.0
    %8050 = vmatpush1.msra.mxu0 %v7757
    %8051 = vmatprep.subr.mxu0 0.0
    %8052 = vmatpush1.msra.mxu0 %v7756
    %8053 = vmatprep.subr.mxu0 0.0
    %8054 = vmatpush1.msra.mxu0 %v7755
    %8055 = vmatprep.subr.mxu0 0.0
    %8056 = vmatpush1.msra.mxu0 %v7754
    %8057 = vmatprep.subr.mxu0 0.0
    %8058 = vmatpush1.msra.mxu0 %v7753
    %8059 = vmatprep.subr.mxu0 0.0
    %8060 = vmatpush1.msra.mxu0 %v7752
    %8061 = vmatprep.subr.mxu0 0.0
    %8062 = vmatpush1.msra.mxu0 %v7751
    %8063 = vmatprep.subr.mxu0 0.0
    %8064 = vmatpush1.msra.mxu0 %v7750
    %8065 = vmatprep.subr.mxu0 0.0
    %8066 = vmatpush1.msra.mxu0 %v7749
    %8067 = vmatprep.subr.mxu0 0.0
    %8068 = vmatpush1.msra.mxu0 %v7748
    %8069 = vmatprep.subr.mxu0 0.0
    %8070 = vmatpush1.msra.mxu0 %v7747
    %8071 = vmatprep.subr.mxu0 0.0
    %8072 = vmatpush1.msra.mxu0 %v7746
    %8073 = vmatprep.subr.mxu0 0.0
    %8074 = vmatpush2.msra.mxu0 %v7777
    %8075 = vmatprep.subr.mxu0 0.0
    %8076 = vmatpush2.msra.mxu0 %v7776
    %8077 = vmatprep.subr.mxu0 0.0
    %8078 = vmatpush2.msra.mxu0 %v7775
    %8079 = vmatprep.subr.mxu0 0.0
    %8080 = vmatpush2.msra.mxu0 %v7774
    %8081 = vmatprep.subr.mxu0 0.0
    %8082 = vmatpush2.msra.mxu0 %v7773
    %8083 = vmatprep.subr.mxu0 0.0
    %8084 = vmatpush2.msra.mxu0 %v7772
    %8085 = vmatprep.subr.mxu0 0.0
    %8086 = vmatpush2.msra.mxu0 %v7771
    %8087 = vmatprep.subr.mxu0 0.0
    %8088 = vmatpush2.msra.mxu0 %v7770
    %8089 = vmatprep.subr.mxu0 0.0
    %8090 = vmatpush2.msra.mxu0 %v7769
    %8091 = vmatprep.subr.mxu0 0.0
    %8092 = vmatpush2.msra.mxu0 %v7768
    %8093 = vmatprep.subr.mxu0 0.0
    %8094 = vmatpush2.msra.mxu0 %v7767
    %8095 = vmatprep.subr.mxu0 0.0
    %8096 = vmatpush2.msra.mxu0 %v7766
    %8097 = vmatprep.subr.mxu0 0.0
    %8098 = vmatpush2.msra.mxu0 %v7765
    %8099 = vmatprep.subr.mxu0 0.0
    %8100 = vmatpush2.msra.mxu0 %v7764
    %8101 = vmatprep.subr.mxu0 0.0
    %8102 = vmatpush2.msra.mxu0 %v7763
    %8103 = vmatprep.subr.mxu0 0.0
    %8104 = vmatpush2.msra.mxu0 %v7762
    %8105 = vmatprep.mubr.f32.mxu0 %v8027
    %8106 = vmatmul.mubr.f32.gmra.mxu0 %v8021
    %v8107 = vpop.f32.mrf.mxu0
    %v8108 = vadd.f32 0.0, %v8107
    %v8109 = vpop.f32.mrf.mxu0
    %8110 = vmatprep.mubr.f32.mxu0 %v8029
    %8111 = vmatmul.mubr.f32.gmra.mxu0 %v8015
    %v8112 = vpop.f32.mrf.mxu0
    %v8113 = vadd.f32 0.0, %v8112
    %v8114 = vpop.f32.mrf.mxu0
    %8115 = vmatprep.mubr.f32.mxu0 %v8028
    %8116 = vmatmul.mubr.f32.gmra.mxu0 %v8022
    %v8117 = vpop.f32.mrf.mxu0
    %v8118 = vadd.f32 0.0, %v8117
    %v8119 = vpop.f32.mrf.mxu0
    %8120 = vdwg.mxu0
    %8121 = vmatprep.subr.mxu0 0.0
    %8122 = vmatpush1.msra.mxu0 %v7793
    %8123 = vmatprep.subr.mxu0 0.0
    %8124 = vmatpush1.msra.mxu0 %v7792
    %8125 = vmatprep.subr.mxu0 0.0
    %8126 = vmatpush1.msra.mxu0 %v7791
    %8127 = vmatprep.subr.mxu0 0.0
    %8128 = vmatpush1.msra.mxu0 %v7790
    %8129 = vmatprep.subr.mxu0 0.0
    %8130 = vmatpush1.msra.mxu0 %v7789
    %8131 = vmatprep.subr.mxu0 0.0
    %8132 = vmatpush1.msra.mxu0 %v7788
    %8133 = vmatprep.subr.mxu0 0.0
    %8134 = vmatpush1.msra.mxu0 %v7787
    %8135 = vmatprep.subr.mxu0 0.0
    %8136 = vmatpush1.msra.mxu0 %v7786
    %8137 = vmatprep.subr.mxu0 0.0
    %8138 = vmatpush1.msra.mxu0 %v7785
    %8139 = vmatprep.subr.mxu0 0.0
    %8140 = vmatpush1.msra.mxu0 %v7784
    %8141 = vmatprep.subr.mxu0 0.0
    %8142 = vmatpush1.msra.mxu0 %v7783
    %8143 = vmatprep.subr.mxu0 0.0
    %8144 = vmatpush1.msra.mxu0 %v7782
    %8145 = vmatprep.subr.mxu0 0.0
    %8146 = vmatpush1.msra.mxu0 %v7781
    %8147 = vmatprep.subr.mxu0 0.0
    %8148 = vmatpush1.msra.mxu0 %v7780
    %8149 = vmatprep.subr.mxu0 0.0
    %8150 = vmatpush1.msra.mxu0 %v7779
    %8151 = vmatprep.subr.mxu0 0.0
    %8152 = vmatpush1.msra.mxu0 %v7778
    %8153 = vmatprep.subr.mxu0 0.0
    %8154 = vmatpush2.msra.mxu0 0.0
    %8155 = vmatprep.subr.mxu0 0.0
    %8156 = vmatpush2.msra.mxu0 0.0
    %8157 = vmatprep.subr.mxu0 0.0
    %8158 = vmatpush2.msra.mxu0 0.0
    %8159 = vmatprep.subr.mxu0 0.0
    %8160 = vmatpush2.msra.mxu0 0.0
    %8161 = vmatprep.subr.mxu0 0.0
    %8162 = vmatpush2.msra.mxu0 0.0
    %8163 = vmatprep.subr.mxu0 0.0
    %8164 = vmatpush2.msra.mxu0 0.0
    %8165 = vmatprep.subr.mxu0 0.0
    %8166 = vmatpush2.msra.mxu0 0.0
    %8167 = vmatprep.subr.mxu0 0.0
    %8168 = vmatpush2.msra.mxu0 0.0
    %8169 = vmatprep.subr.mxu0 0.0
    %8170 = vmatpush2.msra.mxu0 0.0
    %8171 = vmatprep.subr.mxu0 0.0
    %8172 = vmatpush2.msra.mxu0 0.0
    %8173 = vmatprep.subr.mxu0 0.0
    %8174 = vmatpush2.msra.mxu0 0.0
    %8175 = vmatprep.subr.mxu0 0.0
    %8176 = vmatpush2.msra.mxu0 0.0
    %8177 = vmatprep.subr.mxu0 0.0
    %8178 = vmatpush2.msra.mxu0 0.0
    %8179 = vmatprep.subr.mxu0 0.0
    %8180 = vmatpush2.msra.mxu0 0.0
    %8181 = vmatprep.subr.mxu0 0.0
    %8182 = vmatpush2.msra.mxu0 0.0
    %8183 = vmatprep.subr.mxu0 0.0
    %8184 = vmatpush2.msra.mxu0 0.0
    %8185 = vmatprep.mubr.f32.mxu0 0.0
    %8186 = vmatmul.mubr.f32.gmra.mxu0 %v8035
    %v8187 = vpop.f32.mrf.mxu0
    %v8188 = vadd.f32 %v8108, %v8187
    %v8189 = vpop.f32.mrf.mxu0
    %8190 = vmatprep.mubr.f32.mxu0 0.0
    %8191 = vmatmul.mubr.f32.gmra.mxu0 %v8037
    %v8192 = vpop.f32.mrf.mxu0
    %v8193 = vadd.f32 %v8113, %v8192
    %v8194 = vpop.f32.mrf.mxu0
    %8195 = vmatprep.mubr.f32.mxu0 0.0
    %8196 = vmatmul.mubr.f32.gmra.mxu0 %v8036
    %v8197 = vpop.f32.mrf.mxu0
    %v8198 = vadd.f32 %v8118, %v8197
    %v8199 = vpop.f32.mrf.mxu0
    %8200 = vdwg.mxu0
    %v8201 = vadd.f32 %v8188, %v8193
    %v8202 = vsel %vm690, %v8198, 0.0
    %v8203 = vadd.f32 %v8201, %v8202
    %v8204 = vrot.slane %v8203, 4
    %v8205 = vadd.f32 %v8203, %v8204
    %v8206 = vrot.slane %v8205, 2
    %v8207 = vadd.f32 %v8205, %v8206
    %v8208 = vrot.slane %v8207, 1
    %v8209 = vadd.f32 %v8207, %v8208
    %v8210 = vadd.f32 %v7996, %v8209
    %v8211 = vmul.f32 %v8188, %v8188
    %v8212 = vmul.f32 %v8193, %v8193
    %v8213 = vmul.f32 %v8198, %v8198
    %v8214 = vadd.f32 %v8211, %v8212
    %v8215 = vsel %vm690, %v8213, 0.0
    %v8216 = vadd.f32 %v8214, %v8215
    %v8217 = vrot.slane %v8216, 4
    %v8218 = vadd.f32 %v8216, %v8217
    %v8219 = vrot.slane %v8218, 2
    %v8220 = vadd.f32 %v8218, %v8219
    %v8221 = vrot.slane %v8220, 1
    %v8222 = vadd.f32 %v8220, %v8221
    %v8223 = vadd.f32 %v8009, %v8222
    %v8224 = vmul.f32 %v8210, 0.022727273
    %v8225 = vmul.f32 %v8223, 0.022727273
    %v8226 = vmul.f32 %v8224, %v8224
    %v8227 = vsub.f32 %v8225, %v8226
    %v8228 = vmax.f32 %v8227, 0.0
    %v8229 = vadd.f32 %v8228, 1e-05
    %v8230 = vrsqrt.pop %v8229
    %v8231 = vmul.f32 %v7794, %v8230
    %v8232 = vmul.f32 %v8224, %v8231
    %v8233 = vsub.f32 %v7795, %v8232
    %v8235 = vlaneseq
    %v8236 = vshrl.u32 %v8235, 7
    %v8237 = vsub.s32 0, %v8236
    %v8238 = vrot.slane %v8231, %v8237
    %v8240 = vmul.f32 %v7974, %v8238
    %v8241 = vmul.f32 %v7979, %v8238
    %v8243 = vlaneseq
    %v8244 = vshrl.u32 %v8243, 7
    %v8245 = vsub.s32 0, %v8244
    %v8246 = vrot.slane %v8233, %v8245
    %v8248 = vadd.f32 %v8240, %v8246
    %v8249 = vadd.f32 %v8241, %v8246
    %v8250 = vmax.f32 %v8248, 0.0
    %v8251 = vmax.f32 %v8249, 0.0
    %v8252 = vmul.f32 %v8188, %v8238
    %v8253 = vmul.f32 %v8193, %v8238
    %v8254 = vadd.f32 %v8252, %v8246
    %v8255 = vadd.f32 %v8253, %v8246
    %v8256 = vmax.f32 %v8254, 0.0
    %v8257 = vmax.f32 %v8255, 0.0
    %v8258 = vld [vmem:[#allocation46] sm:$0xff]
    %v8259 = vld [vmem:[#allocation46 + $0x8] sm:$0xff]
    %v8260 = vld [vmem:[#allocation46 + $0x10] sm:$0xff]
    %v8261 = vld [vmem:[#allocation46 + $0x18] sm:$0xff]
    %v8262 = vld [vmem:[#allocation46 + $0x20] sm:$0xff]
    %v8263 = vld [vmem:[#allocation46 + $0x28] sm:$0xff]
    %v8264 = vld [vmem:[#allocation46 + $0x30] sm:$0xff]
    %v8265 = vld [vmem:[#allocation46 + $0x38] sm:$0xff]
    %v8266 = vld [vmem:[#allocation46 + $0x40] sm:$0xff]
    %v8267 = vld [vmem:[#allocation46 + $0x48] sm:$0xff]
    %v8268 = vld [vmem:[#allocation46 + $0x50] sm:$0xff]
    %v8269 = vld [vmem:[#allocation46 + $0x58] sm:$0xff]
    %v8270 = vld [vmem:[#allocation46 + $0x60] sm:$0xff]
    %v8271 = vld [vmem:[#allocation46 + $0x68] sm:$0xff]
    %v8272 = vld [vmem:[#allocation46 + $0x70] sm:$0xff]
    %v8273 = vld [vmem:[#allocation46 + $0x78] sm:$0xff]
    %v8274 = vld [vmem:[%s71] sm:$0x1]
    %v8275 = vld [vmem:[%s73] sm:$0x1]
    %v8276 = vrot.slane %v5811, 7
    %v8277 = vrot.slane %v5812, 7
    %v8278 = vsel %vm729, %v8276, %v8277
    %v8279 = vrot.slane %v5813, 7
    %v8280 = vsel %vm729, %v8277, %v8279
    %v8284 = vsel %vm729, 0.0, %v8276
    %v8285 = vsel %vm698, %v8280, 0.0
    %8286 = vmatprep.subr.mxu0 0.0
    %8287 = vmatpush1.msra.mxu0 %v8273
    %8288 = vmatprep.subr.mxu0 0.0
    %8289 = vmatpush1.msra.mxu0 %v8272
    %8290 = vmatprep.subr.mxu0 0.0
    %8291 = vmatpush1.msra.mxu0 %v8271
    %8292 = vmatprep.subr.mxu0 0.0
    %8293 = vmatpush1.msra.mxu0 %v8270
    %8294 = vmatprep.subr.mxu0 0.0
    %8295 = vmatpush1.msra.mxu0 %v8269
    %8296 = vmatprep.subr.mxu0 0.0
    %8297 = vmatpush1.msra.mxu0 %v8268
    %8298 = vmatprep.subr.mxu0 0.0
    %8299 = vmatpush1.msra.mxu0 %v8267
    %8300 = vmatprep.subr.mxu0 0.0
    %8301 = vmatpush1.msra.mxu0 %v8266
    %8302 = vmatprep.subr.mxu0 0.0
    %8303 = vmatpush1.msra.mxu0 %v8265
    %8304 = vmatprep.subr.mxu0 0.0
    %8305 = vmatpush1.msra.mxu0 %v8264
    %8306 = vmatprep.subr.mxu0 0.0
    %8307 = vmatpush1.msra.mxu0 %v8263
    %8308 = vmatprep.subr.mxu0 0.0
    %8309 = vmatpush1.msra.mxu0 %v8262
    %8310 = vmatprep.subr.mxu0 0.0
    %8311 = vmatpush1.msra.mxu0 %v8261
    %8312 = vmatprep.subr.mxu0 0.0
    %8313 = vmatpush1.msra.mxu0 %v8260
    %8314 = vmatprep.subr.mxu0 0.0
    %8315 = vmatpush1.msra.mxu0 %v8259
    %8316 = vmatprep.subr.mxu0 0.0
    %8317 = vmatpush1.msra.mxu0 %v8258
    %8318 = vmatprep.subr.mxu0 0.0
    %8319 = vmatpush2.msra.mxu0 0.0
    %8320 = vmatprep.subr.mxu0 0.0
    %8321 = vmatpush2.msra.mxu0 0.0
    %8322 = vmatprep.subr.mxu0 0.0
    %8323 = vmatpush2.msra.mxu0 0.0
    %8324 = vmatprep.subr.mxu0 0.0
    %8325 = vmatpush2.msra.mxu0 0.0
    %8326 = vmatprep.subr.mxu0 0.0
    %8327 = vmatpush2.msra.mxu0 0.0
    %8328 = vmatprep.subr.mxu0 0.0
    %8329 = vmatpush2.msra.mxu0 0.0
    %8330 = vmatprep.subr.mxu0 0.0
    %8331 = vmatpush2.msra.mxu0 0.0
    %8332 = vmatprep.subr.mxu0 0.0
    %8333 = vmatpush2.msra.mxu0 0.0
    %8334 = vmatprep.subr.mxu0 0.0
    %8335 = vmatpush2.msra.mxu0 0.0
    %8336 = vmatprep.subr.mxu0 0.0
    %8337 = vmatpush2.msra.mxu0 0.0
    %8338 = vmatprep.subr.mxu0 0.0
    %8339 = vmatpush2.msra.mxu0 0.0
    %8340 = vmatprep.subr.mxu0 0.0
    %8341 = vmatpush2.msra.mxu0 0.0
    %8342 = vmatprep.subr.mxu0 0.0
    %8343 = vmatpush2.msra.mxu0 0.0
    %8344 = vmatprep.subr.mxu0 0.0
    %8345 = vmatpush2.msra.mxu0 0.0
    %8346 = vmatprep.subr.mxu0 0.0
    %8347 = vmatpush2.msra.mxu0 0.0
    %8348 = vmatprep.subr.mxu0 0.0
    %8349 = vmatpush2.msra.mxu0 0.0
    %8350 = vmatprep.mubr.f32.mxu0 0.0
    %8351 = vmatmul.mubr.f32.gmra.mxu0 %v8284
    %v8352 = vpop.f32.mrf.mxu0
    %v8353 = vadd.f32 0.0, %v8352
    %v8354 = vpop.f32.mrf.mxu0
    %8355 = vmatprep.mubr.f32.mxu0 0.0
    %8356 = vmatmul.mubr.f32.gmra.mxu0 %v8278
    %v8357 = vpop.f32.mrf.mxu0
    %v8358 = vadd.f32 0.0, %v8357
    %v8359 = vpop.f32.mrf.mxu0
    %8360 = vmatprep.mubr.f32.mxu0 0.0
    %8361 = vmatmul.mubr.f32.gmra.mxu0 %v8285
    %v8362 = vpop.f32.mrf.mxu0
    %v8363 = vadd.f32 0.0, %v8362
    %v8364 = vpop.f32.mrf.mxu0
    %8365 = vdwg.mxu0
    %v8366 = vadd.f32 %v8353, %v8358
    %v8367 = vsel %vm690, %v8363, 0.0
    %v8368 = vadd.f32 %v8366, %v8367
    %v8369 = vrot.slane %v8368, 4
    %v8370 = vadd.f32 %v8368, %v8369
    %v8371 = vrot.slane %v8370, 2
    %v8372 = vadd.f32 %v8370, %v8371
    %v8373 = vrot.slane %v8372, 1
    %v8374 = vadd.f32 %v8372, %v8373
    %v8375 = vadd.f32 %v8374, 0.0
    %v8376 = vmul.f32 %v8353, %v8353
    %v8377 = vmul.f32 %v8358, %v8358
    %v8378 = vmul.f32 %v8363, %v8363
    %v8379 = vadd.f32 %v8376, %v8377
    %v8380 = vsel %vm690, %v8378, 0.0
    %v8381 = vadd.f32 %v8379, %v8380
    %v8382 = vrot.slane %v8381, 4
    %v8383 = vadd.f32 %v8381, %v8382
    %v8384 = vrot.slane %v8383, 2
    %v8385 = vadd.f32 %v8383, %v8384
    %v8386 = vrot.slane %v8385, 1
    %v8387 = vadd.f32 %v8385, %v8386
    %v8388 = vadd.f32 %v8387, 0.0
    %v8389 = vrot.slane %v5823, 7
    %v8390 = vrot.slane %v5824, 7
    %v8391 = vsel %vm729, %v8389, %v8390
    %v8392 = vrot.slane %v5825, 7
    %v8393 = vsel %vm729, %v8390, %v8392
    %v8397 = vsel %vm729, 0.0, %v8389
    %v8398 = vsel %vm698, %v8393, 0.0
    %8399 = vmatprep.subr.mxu0 0.0
    %8400 = vmatpush1.msra.mxu0 %v8273
    %8401 = vmatprep.subr.mxu0 0.0
    %8402 = vmatpush1.msra.mxu0 %v8272
    %8403 = vmatprep.subr.mxu0 0.0
    %8404 = vmatpush1.msra.mxu0 %v8271
    %8405 = vmatprep.subr.mxu0 0.0
    %8406 = vmatpush1.msra.mxu0 %v8270
    %8407 = vmatprep.subr.mxu0 0.0
    %8408 = vmatpush1.msra.mxu0 %v8269
    %8409 = vmatprep.subr.mxu0 0.0
    %8410 = vmatpush1.msra.mxu0 %v8268
    %8411 = vmatprep.subr.mxu0 0.0
    %8412 = vmatpush1.msra.mxu0 %v8267
    %8413 = vmatprep.subr.mxu0 0.0
    %8414 = vmatpush1.msra.mxu0 %v8266
    %8415 = vmatprep.subr.mxu0 0.0
    %8416 = vmatpush1.msra.mxu0 %v8265
    %8417 = vmatprep.subr.mxu0 0.0
    %8418 = vmatpush1.msra.mxu0 %v8264
    %8419 = vmatprep.subr.mxu0 0.0
    %8420 = vmatpush1.msra.mxu0 %v8263
    %8421 = vmatprep.subr.mxu0 0.0
    %8422 = vmatpush1.msra.mxu0 %v8262
    %8423 = vmatprep.subr.mxu0 0.0
    %8424 = vmatpush1.msra.mxu0 %v8261
    %8425 = vmatprep.subr.mxu0 0.0
    %8426 = vmatpush1.msra.mxu0 %v8260
    %8427 = vmatprep.subr.mxu0 0.0
    %8428 = vmatpush1.msra.mxu0 %v8259
    %8429 = vmatprep.subr.mxu0 0.0
    %8430 = vmatpush1.msra.mxu0 %v8258
    %8431 = vmatprep.subr.mxu0 0.0
    %8432 = vmatpush2.msra.mxu0 0.0
    %8433 = vmatprep.subr.mxu0 0.0
    %8434 = vmatpush2.msra.mxu0 0.0
    %8435 = vmatprep.subr.mxu0 0.0
    %8436 = vmatpush2.msra.mxu0 0.0
    %8437 = vmatprep.subr.mxu0 0.0
    %8438 = vmatpush2.msra.mxu0 0.0
    %8439 = vmatprep.subr.mxu0 0.0
    %8440 = vmatpush2.msra.mxu0 0.0
    %8441 = vmatprep.subr.mxu0 0.0
    %8442 = vmatpush2.msra.mxu0 0.0
    %8443 = vmatprep.subr.mxu0 0.0
    %8444 = vmatpush2.msra.mxu0 0.0
    %8445 = vmatprep.subr.mxu0 0.0
    %8446 = vmatpush2.msra.mxu0 0.0
    %8447 = vmatprep.subr.mxu0 0.0
    %8448 = vmatpush2.msra.mxu0 0.0
    %8449 = vmatprep.subr.mxu0 0.0
    %8450 = vmatpush2.msra.mxu0 0.0
    %8451 = vmatprep.subr.mxu0 0.0
    %8452 = vmatpush2.msra.mxu0 0.0
    %8453 = vmatprep.subr.mxu0 0.0
    %8454 = vmatpush2.msra.mxu0 0.0
    %8455 = vmatprep.subr.mxu0 0.0
    %8456 = vmatpush2.msra.mxu0 0.0
    %8457 = vmatprep.subr.mxu0 0.0
    %8458 = vmatpush2.msra.mxu0 0.0
    %8459 = vmatprep.subr.mxu0 0.0
    %8460 = vmatpush2.msra.mxu0 0.0
    %8461 = vmatprep.subr.mxu0 0.0
    %8462 = vmatpush2.msra.mxu0 0.0
    %8463 = vmatprep.mubr.f32.mxu0 0.0
    %8464 = vmatmul.mubr.f32.gmra.mxu0 %v8397
    %v8465 = vpop.f32.mrf.mxu0
    %v8466 = vadd.f32 0.0, %v8465
    %v8467 = vpop.f32.mrf.mxu0
    %8468 = vmatprep.mubr.f32.mxu0 0.0
    %8469 = vmatmul.mubr.f32.gmra.mxu0 %v8391
    %v8470 = vpop.f32.mrf.mxu0
    %v8471 = vadd.f32 0.0, %v8470
    %v8472 = vpop.f32.mrf.mxu0
    %8473 = vmatprep.mubr.f32.mxu0 0.0
    %8474 = vmatmul.mubr.f32.gmra.mxu0 %v8398
    %v8475 = vpop.f32.mrf.mxu0
    %v8476 = vadd.f32 0.0, %v8475
    %v8477 = vpop.f32.mrf.mxu0
    %8478 = vdwg.mxu0
    %v8479 = vadd.f32 %v8466, %v8471
    %v8480 = vsel %vm690, %v8476, 0.0
    %v8481 = vadd.f32 %v8479, %v8480
    %v8482 = vrot.slane %v8481, 4
    %v8483 = vadd.f32 %v8481, %v8482
    %v8484 = vrot.slane %v8483, 2
    %v8485 = vadd.f32 %v8483, %v8484
    %v8486 = vrot.slane %v8485, 1
    %v8487 = vadd.f32 %v8485, %v8486
    %v8488 = vadd.f32 %v8375, %v8487
    %v8489 = vmul.f32 %v8466, %v8466
    %v8490 = vmul.f32 %v8471, %v8471
    %v8491 = vmul.f32 %v8476, %v8476
    %v8492 = vadd.f32 %v8489, %v8490
    %v8493 = vsel %vm690, %v8491, 0.0
    %v8494 = vadd.f32 %v8492, %v8493
    %v8495 = vrot.slane %v8494, 4
    %v8496 = vadd.f32 %v8494, %v8495
    %v8497 = vrot.slane %v8496, 2
    %v8498 = vadd.f32 %v8496, %v8497
    %v8499 = vrot.slane %v8498, 1
    %v8500 = vadd.f32 %v8498, %v8499
    %v8501 = vadd.f32 %v8388, %v8500
    %v8502 = vmul.f32 %v8488, 0.022727273
    %v8503 = vmul.f32 %v8501, 0.022727273
    %v8504 = vmul.f32 %v8502, %v8502
    %v8505 = vsub.f32 %v8503, %v8504
    %v8506 = vmax.f32 %v8505, 0.0
    %v8507 = vadd.f32 %v8506, 1e-05
    %v8508 = vrsqrt.pop %v8507
    %v8509 = vmul.f32 %v8274, %v8508
    %v8510 = vmul.f32 %v8502, %v8509
    %v8511 = vsub.f32 %v8275, %v8510
    %v8513 = vlaneseq
    %v8514 = vshrl.u32 %v8513, 7
    %v8515 = vsub.s32 0, %v8514
    %v8516 = vrot.slane %v8509, %v8515
    %v8518 = vmul.f32 %v8353, %v8516
    %v8519 = vmul.f32 %v8358, %v8516
    %v8521 = vlaneseq
    %v8522 = vshrl.u32 %v8521, 7
    %v8523 = vsub.s32 0, %v8522
    %v8524 = vrot.slane %v8511, %v8523
    %v8526 = vadd.f32 %v8518, %v8524
    %v8527 = vadd.f32 %v8519, %v8524
    %v8528 = vadd.f32 %v8526, %v8250
    %v8529 = vadd.f32 %v8527, %v8251
    %v8530 = vmax.f32 %v8528, 0.0
    %v8531 = vmax.f32 %v8529, 0.0
    %v8532 = vmul.f32 %v8466, %v8516
    %v8533 = vmul.f32 %v8471, %v8516
    %v8534 = vadd.f32 %v8532, %v8524
    %v8535 = vadd.f32 %v8533, %v8524
    %v8536 = vadd.f32 %v8534, %v8256
    %v8537 = vadd.f32 %v8535, %v8257
    %v8538 = vmax.f32 %v8536, 0.0
    %v8539 = vmax.f32 %v8537, 0.0
    %v8540 = vld [vmem:[%s75] sm:$0xff]
    %v8541 = vld [vmem:[%s75 + $0x8] sm:$0xff]
    %v8542 = vld [vmem:[%s75 + $0x10] sm:$0xff]
    %v8543 = vld [vmem:[%s75 + $0x18] sm:$0xff]
    %v8544 = vld [vmem:[%s75 + $0x20] sm:$0xff]
    %v8545 = vld [vmem:[%s75 + $0x28] sm:$0xff]
    %v8546 = vld [vmem:[%s75 + $0x30] sm:$0xff]
    %v8547 = vld [vmem:[%s75 + $0x38] sm:$0xff]
    %v8548 = vld [vmem:[%s75 + $0x40] sm:$0xff]
    %v8549 = vld [vmem:[%s75 + $0x48] sm:$0xff]
    %v8550 = vld [vmem:[%s75 + $0x50] sm:$0xff]
    %v8551 = vld [vmem:[%s75 + $0x58] sm:$0xff]
    %v8552 = vld [vmem:[%s75 + $0x60] sm:$0xff]
    %v8553 = vld [vmem:[%s75 + $0x68] sm:$0xff]
    %v8554 = vld [vmem:[%s75 + $0x70] sm:$0xff]
    %v8555 = vld [vmem:[%s75 + $0x78] sm:$0xff]
    %v8556 = vld [vmem:[%s77] sm:$0x1]
    %v8557 = vsel %vm690, %v8531, 0.0
    %v8558 = vadd.f32 %v8530, %v8557
    %v8559 = vrot.slane %v8558, 4
    %v8560 = vadd.f32 %v8558, %v8559
    %v8561 = vrot.slane %v8560, 2
    %v8562 = vadd.f32 %v8560, %v8561
    %v8563 = vrot.slane %v8562, 1
    %v8564 = vadd.f32 %v8562, %v8563
    %v8565 = vsel %vm690, %v8539, 0.0
    %v8566 = vadd.f32 %v8538, %v8565
    %v8567 = vrot.slane %v8566, 4
    %v8568 = vadd.f32 %v8566, %v8567
    %v8569 = vrot.slane %v8568, 2
    %v8570 = vadd.f32 %v8568, %v8569
    %v8571 = vrot.slane %v8570, 1
    %v8572 = vadd.f32 %v8570, %v8571
    %v8573 = vsel %vm729, %v8564, %v8572
    %v8574 = vmul.f32 %v8573, 0.071428575
    %v8576 = vlaneseq
    %v8577 = vshrl.u32 %v8576, 7
    %v8578 = vsub.s32 0, %v8577
    %v8579 = vrot.slane %v8556, %v8578
    %8581 = vmatprep.subr.mxu0 0.0
    %8582 = vmatpush1.msra.mxu0 %v8555
    %8583 = vmatprep.subr.mxu0 0.0
    %8584 = vmatpush1.msra.mxu0 %v8554
    %8585 = vmatprep.subr.mxu0 0.0
    %8586 = vmatpush1.msra.mxu0 %v8553
    %8587 = vmatprep.subr.mxu0 0.0
    %8588 = vmatpush1.msra.mxu0 %v8552
    %8589 = vmatprep.subr.mxu0 0.0
    %8590 = vmatpush1.msra.mxu0 %v8551
    %8591 = vmatprep.subr.mxu0 0.0
    %8592 = vmatpush1.msra.mxu0 %v8550
    %8593 = vmatprep.subr.mxu0 0.0
    %8594 = vmatpush1.msra.mxu0 %v8549
    %8595 = vmatprep.subr.mxu0 0.0
    %8596 = vmatpush1.msra.mxu0 %v8548
    %8597 = vmatprep.subr.mxu0 0.0
    %8598 = vmatpush1.msra.mxu0 %v8547
    %8599 = vmatprep.subr.mxu0 0.0
    %8600 = vmatpush1.msra.mxu0 %v8546
    %8601 = vmatprep.subr.mxu0 0.0
    %8602 = vmatpush1.msra.mxu0 %v8545
    %8603 = vmatprep.subr.mxu0 0.0
    %8604 = vmatpush1.msra.mxu0 %v8544
    %8605 = vmatprep.subr.mxu0 0.0
    %8606 = vmatpush1.msra.mxu0 %v8543
    %8607 = vmatprep.subr.mxu0 0.0
    %8608 = vmatpush1.msra.mxu0 %v8542
    %8609 = vmatprep.subr.mxu0 0.0
    %8610 = vmatpush1.msra.mxu0 %v8541
    %8611 = vmatprep.subr.mxu0 0.0
    %8612 = vmatpush1.msra.mxu0 %v8540
    %8613 = vmatprep.subr.mxu0 0.0
    %8614 = vmatpush2.msra.mxu0 0.0
    %8615 = vmatprep.subr.mxu0 0.0
    %8616 = vmatpush2.msra.mxu0 0.0
    %8617 = vmatprep.subr.mxu0 0.0
    %8618 = vmatpush2.msra.mxu0 0.0
    %8619 = vmatprep.subr.mxu0 0.0
    %8620 = vmatpush2.msra.mxu0 0.0
    %8621 = vmatprep.subr.mxu0 0.0
    %8622 = vmatpush2.msra.mxu0 0.0
    %8623 = vmatprep.subr.mxu0 0.0
    %8624 = vmatpush2.msra.mxu0 0.0
    %8625 = vmatprep.subr.mxu0 0.0
    %8626 = vmatpush2.msra.mxu0 0.0
    %8627 = vmatprep.subr.mxu0 0.0
    %8628 = vmatpush2.msra.mxu0 0.0
    %8629 = vmatprep.subr.mxu0 0.0
    %8630 = vmatpush2.msra.mxu0 0.0
    %8631 = vmatprep.subr.mxu0 0.0
    %8632 = vmatpush2.msra.mxu0 0.0
    %8633 = vmatprep.subr.mxu0 0.0
    %8634 = vmatpush2.msra.mxu0 0.0
    %8635 = vmatprep.subr.mxu0 0.0
    %8636 = vmatpush2.msra.mxu0 0.0
    %8637 = vmatprep.subr.mxu0 0.0
    %8638 = vmatpush2.msra.mxu0 0.0
    %8639 = vmatprep.subr.mxu0 0.0
    %8640 = vmatpush2.msra.mxu0 0.0
    %8641 = vmatprep.subr.mxu0 0.0
    %8642 = vmatpush2.msra.mxu0 0.0
    %8643 = vmatprep.subr.mxu0 0.0
    %8644 = vmatpush2.msra.mxu0 0.0
    %8645 = vmatprep.mubr.f32.mxu0 0.0
    %8646 = vmatmul.mubr.f32.gmra.mxu0 %v8574
    %v8647 = vpop.f32.mrf.mxu0
    %v8648 = vadd.f32 %v8579, %v8647
    %v8649 = vpop.f32.mrf.mxu0
    %8650 = vdwg.mxu0
    %vm8651 = vcmask 74752
    %8652 = vst.msk [vmem:[#allocation47] sm:$0x3] %vm8651, %v8648
    // Predicated region
    $region274: #{ts_resnet_forward.1} parent=1 // pred_check
      _
    $region275: #{ts_resnet_forward.1} parent=1 // pred_check_branch
      %8654 = sbr.rel (0) target = $region277
    $region276: #{ts_resnet_forward.1} parent=1 // pred_region
      %s8656 = ssub.s32 32, 32
      %8657 = vsyncadd [#allocation4], %s8656
      %s8659 = sshll.u32 [#allocation47], 4
      %s8660 = int_to_ptr.vmem [resolvable:$true] %s8659
      %8662 = dma.vmem_to_hbm [thread:$0]  %s8660, 32, %s79, [#allocation4]
    $region277: #{ts_resnet_forward.1} parent=1 // pred_fallthru
      _
    // Predicated region
    $region278: #{ts_resnet_forward.1} parent=1 // pred_check
      _
    $region279: #{ts_resnet_forward.1} parent=1 // pred_check_branch
      %8664 = sbr.rel (0) target = $region281
    $region280: #{ts_resnet_forward.1} parent=1 // pred_region
      %8665 = dma.done [#allocation4], 32
    $region281: #{ts_resnet_forward.1} parent=1 // pred_fallthru
      _
    %8666 = vsyncpa [#allocation3], 1
    %8667 = vsyncpa [#allocation6], 1
    %8668 = vsyncpa [#allocation9], 1
    %8669 = vsyncpa [#allocation12], 1
    %8670 = vsyncpa [#allocation15], 1
    %8671 = vsyncpa [#allocation18], 1
    %8672 = vsyncpa [#allocation21], 1
    %8673 = vsyncpa [#allocation24], 1
    %8674 = vsyncpa [#allocation27], 1
    %8675 = vsyncpa [#allocation30], 1
    %8676 = vsyncpa [#allocation33], 1
    %8677 = vsyncpa [#allocation36], 1
    %8678 = vsyncpa [#allocation39], 1
    %8679 = vsyncpa [#allocation42], 1
    %8680 = vsyncpa [#allocation45], 1
    %8681 = vsyncpa [#allocation4], 1

</llo_original>
